<compile_context>
chip_gen: v5e
topology: v5e:2x2
jax: 0.10.0
libtpu: 0.0.40
codegen_flags: <defaults>
</compile_context>

<pallas_src>
import functools

import jax
import jax.numpy as jnp
from jax import lax
from jax.experimental import pallas as pl
from jax.experimental.pallas import tpu as pltpu


def _round_up(x, m):
    return (x + m - 1) // m * m


# ---------------------------------------------------------------------------
# Kernel 1: hoisted non-recurrent x-conv (+ bias).  grid=(T,), parallel.
# ---------------------------------------------------------------------------
def _xconv_kernel(x_ref, wx_ref, b_ref, o_ref, *, B, H, W, Cx, Hd, KH, KW):
    # x_ref : (1, B, Hp, Wp, Cx) f32  padded x_t (H padded both sides, W pad at
    #                                 the right edge, all pad columns/rows zero)
    # wx_ref: (KH*KW, Cx, 4*Hd) bf16  conv weights for the x channels
    # b_ref : (1, 4*Hd) f32           conv bias
    # o_ref : (1, B, H*W, 4*Hd) f32   conv2d(x_t, Wx) + bias, lane-dense
    pw = KW // 2
    Wp = x_ref.shape[3]
    M = B * H * W
    C4 = 4 * Hd

    x = x_ref[0]                                      # (B, Hp, Wp, Cx) f32
    acc = jnp.broadcast_to(b_ref[...], (M, C4))       # bias folded into init
    for kx in range(KW):
        shift = (pw - kx) % Wp
        # Circular W roll: wrapped-in columns are the right-edge zero pads, so
        # this reproduces zero 'SAME' padding with tile-aligned [0:W] slices.
        xr = pltpu.roll(x, shift, axis=2) if shift else x
        xr_bf = xr.astype(jnp.bfloat16)               # cast once per kx
        for ky in range(KH):
            tap = ky * KW + kx
            lhs = xr_bf[:, ky:ky + H, 0:W, :].reshape(M, Cx)
            acc = acc + jnp.dot(lhs, wx_ref[tap],
                                preferred_element_type=jnp.float32)
    o_ref[0] = acc.reshape(B, H * W, C4)


# ---------------------------------------------------------------------------
# Kernel 2: serial recurrence.  grid=(B, T), ("parallel", "arbitrary").
# ---------------------------------------------------------------------------
def _convlstm_rec_kernel(xc_ref, wh_ref,            # inputs
                         h_seq_ref, c_last_ref,     # outputs
                         hpad_ref, c_ref,           # VMEM scratch
                         *, H, W, Hd, KH, KW):
    # xc_ref    : (1, 1, H*W, 4*Hd) f32  precomputed conv(x_t, Wx) + bias
    # wh_ref    : (KH*KW, Hd, 4*Hd) bf16 conv weights for the h channels
    # h_seq_ref : (1, 1, Hp, Wp, Hd) f32 h_t in the padded layout (next layer
    #                                    consumes it directly)
    # c_last_ref: (1, H, W, Hd) f32      c_T (written at t == T-1 only)
    # hpad_ref  : (Hp, Wp, Hd) f32       h_{t-1}; H padded both sides, W pad at
    #                                    the right edge (all borders zero)
    # c_ref     : (H*W, Hd) f32          running cell state
    t = pl.program_id(1)
    ph, pw = KH // 2, KW // 2
    Hp, Wp, _ = hpad_ref.shape
    M = H * W
    C4 = 4 * Hd

    @pl.when(t == 0)
    def _init():
        hpad_ref[...] = jnp.zeros_like(hpad_ref)   # h_{-1} = 0 and zero borders
        c_ref[...] = jnp.zeros_like(c_ref)         # c_{-1} = 0

    # Recurrent conv: conv2d(h_{t-1}, Wh, SAME) accumulated (locally, no VMEM
    # RMW) on top of the precomputed x-conv + bias.
    cc = xc_ref[0, 0]                              # (M, C4) f32
    h_full = hpad_ref[...]                         # (Hp, Wp, Hd) f32
    for kx in range(KW):
        shift = (pw - kx) % Wp
        h_roll = pltpu.roll(h_full, shift, axis=1) if shift else h_full
        h_bf = h_roll.astype(jnp.bfloat16)         # cast once per kx
        for ky in range(KH):
            tap = ky * KW + kx
            lhs = h_bf[ky:ky + H, 0:W, :].reshape(M, Hd)
            cc = cc + jnp.dot(lhs, wh_ref[tap],
                              preferred_element_type=jnp.float32)

    # Lane-dense activations over the whole (M, 128) pre-activation:
    #   lanes [0, 3*Hd)   (i, f, o): sigmoid(x) = 0.5 * tanh(0.5 * x) + 0.5
    #   lanes [3*Hd, C4)  (g)      : tanh(x)
    lane = lax.broadcasted_iota(jnp.int32, (M, C4), 1)
    is_g = lane >= 3 * Hd
    th = jnp.tanh(jnp.where(is_g, cc, 0.5 * cc))   # single EUP pass
    act = jnp.where(is_g, th, 0.5 * th + 0.5)

    i_g = act[:, 0 * Hd:1 * Hd]
    f_g = act[:, 1 * Hd:2 * Hd]
    o_g = act[:, 2 * Hd:3 * Hd]
    g_g = act[:, 3 * Hd:4 * Hd]

    c_next = f_g * c_ref[...] + i_g * g_g
    h_next = o_g * jnp.tanh(c_next)
    c_ref[...] = c_next

    # Store h_t into the padded scratch (aligned interior store: rows
    # [ph:ph+H] on the untiled axis, sublane columns [0:W] at offset 0; the
    # zero borders written at t == 0 are never touched again).
    hpad_ref[ph:ph + H, 0:W, :] = h_next.reshape(H, W, Hd)
    # Emit the layer output directly in the padded layout.
    h_seq_ref[0, 0] = hpad_ref[...]

    @pl.when(t == pl.num_programs(1) - 1)
    def _final():
        c_last_ref[0] = c_next.reshape(H, W, Hd)


# ---------------------------------------------------------------------------
# Per-layer wrapper: one parallel x-conv pallas_call + one serial recurrence.
# ---------------------------------------------------------------------------
def convlstm_layer(x_pad_seq, wx, wh, bias2, *, H, W, Hd, KH, KW):
    """x_pad_seq: (T, B, Hp, Wp, Cx) f32 in the padded layout.

    Returns h_seq_pad (T, B, Hp, Wp, Hd) f32 (padded layout, zero borders) and
    c_last (B, H, W, Hd) f32.
    """
    T, B, Hp, Wp, Cx = x_pad_seq.shape
    C4 = 4 * Hd

    xconv = pl.pallas_call(
        functools.partial(_xconv_kernel, B=B, H=H, W=W, Cx=Cx, Hd=Hd,
                          KH=KH, KW=KW),
        out_shape=jax.ShapeDtypeStruct((T, B, H * W, C4), jnp.float32),
        grid_spec=pltpu.PrefetchScalarGridSpec(
            num_scalar_prefetch=0,
            grid=(T,),
            in_specs=[
                pl.BlockSpec((1, B, Hp, Wp, Cx), lambda t: (t, 0, 0, 0, 0)),
                pl.BlockSpec((KH * KW, Cx, C4), lambda t: (0, 0, 0)),
                pl.BlockSpec((1, C4), lambda t: (0, 0)),
            ],
            out_specs=pl.BlockSpec((1, B, H * W, C4), lambda t: (t, 0, 0, 0)),
        ),
        compiler_params=pltpu.CompilerParams(
            dimension_semantics=("parallel",)),
    )(x_pad_seq, wx, bias2)

    h_seq_pad, c_last = pl.pallas_call(
        functools.partial(_convlstm_rec_kernel, H=H, W=W, Hd=Hd, KH=KH, KW=KW),
        out_shape=(jax.ShapeDtypeStruct((T, B, Hp, Wp, Hd), jnp.float32),
                   jax.ShapeDtypeStruct((B, H, W, Hd), jnp.float32)),
        grid_spec=pltpu.PrefetchScalarGridSpec(
            num_scalar_prefetch=0,
            grid=(B, T),
            in_specs=[
                pl.BlockSpec((1, 1, H * W, C4), lambda b, t: (t, b, 0, 0)),
                pl.BlockSpec((KH * KW, Hd, C4), lambda b, t: (0, 0, 0)),
            ],
            out_specs=[
                pl.BlockSpec((1, 1, Hp, Wp, Hd), lambda b, t: (t, b, 0, 0, 0)),
                pl.BlockSpec((1, H, W, Hd), lambda b, t: (b, 0, 0, 0)),
            ],
            scratch_shapes=[
                pltpu.VMEM((Hp, Wp, Hd), jnp.float32),     # padded h_{t-1}
                pltpu.VMEM((H * W, Hd), jnp.float32),      # cell state c
            ],
        ),
        compiler_params=pltpu.CompilerParams(
            dimension_semantics=("parallel", "arbitrary")),
    )(xconv, wh)
    return h_seq_pad, c_last


# ---------------------------------------------------------------------------
# Full ConvLSTM forward.  Matches ConvLSTM.forward with hidden_state=None,
# prop_hidden=False, return_all_layers=False: ([layer_output], [[h, c]]), NCHW.
# ---------------------------------------------------------------------------
def convlstm_forward(x_nchw, params, hidden_dims, kernel_sizes,
                     return_all_layers=False):
    B, T, C, H, W = x_nchw.shape
    cur = jnp.transpose(x_nchw, (1, 0, 3, 4, 2)).astype(jnp.float32)  # (T,B,H,W,C)
    cur_ph = None      # None -> `cur` is unpadded; else padded layout with this ph

    num_layers = len(hidden_dims)
    padded_outs, c_lasts = [], []
    for li in range(num_layers):
        Hd = hidden_dims[li]
        KH, KW = kernel_sizes[li]
        ph, pw = KH // 2, KW // 2
        Hp = H + 2 * ph
        Wp = _round_up(W + 2 * pw, 8)

        # Bring the layer input into the padded layout expected by the kernels.
        if cur_ph is None:
            x_pad = jnp.pad(cur, ((0, 0), (0, 0), (ph, ph), (0, Wp - W), (0, 0)))
        elif cur_ph == ph and cur.shape[3] >= W + 2 * pw:
            x_pad = cur     # previous layer's padded output is compatible: reuse
        else:
            interior = cur[:, :, cur_ph:cur_ph + H, 0:W, :]
            x_pad = jnp.pad(interior,
                            ((0, 0), (0, 0), (ph, ph), (0, Wp - W), (0, 0)))

        Cx = x_pad.shape[-1]
        w_hwio, bias = params[li]                 # (KH,KW,Cx+Hd,4Hd), (4Hd,)
        wx = w_hwio[:, :, :Cx, :].reshape(KH * KW, Cx, 4 * Hd).astype(jnp.bfloat16)
        wh = w_hwio[:, :, Cx:, :].reshape(KH * KW, Hd, 4 * Hd).astype(jnp.bfloat16)
        b2 = bias.reshape(1, 4 * Hd).astype(jnp.float32)

        h_seq_pad, c_last = convlstm_layer(x_pad, wx, wh, b2,
                                           H=H, W=W, Hd=Hd, KH=KH, KW=KW)
        padded_outs.append((h_seq_pad, ph))
        c_lasts.append(c_last)
        cur, cur_ph = h_seq_pad, ph

    sel = range(num_layers) if return_all_layers else [num_layers - 1]
    layer_output_list, last_state_list = [], []
    for li in sel:
        h_seq_pad, ph = padded_outs[li]
        h_int = h_seq_pad[:, :, ph:ph + H, 0:W, :]                 # (T,B,H,W,Hd)
        layer_output_list.append(jnp.transpose(h_int, (1, 0, 4, 2, 3)))  # (B,T,Hd,H,W)
        h_last = h_int[-1]                                         # (B,H,W,Hd)
        last_state_list.append((jnp.transpose(h_last, (0, 3, 1, 2)),
                                jnp.transpose(c_lasts[li], (0, 3, 1, 2))))
    return layer_output_list, last_state_list


# ---------------------------------------------------------------------------
# Pure-JAX reference (lax.conv, f32) for correctness checking.
# ---------------------------------------------------------------------------
def convlstm_forward_ref(x_nchw, params, hidden_dims, kernel_sizes):
    B, T, C, H, W = x_nchw.shape
    x = jnp.transpose(x_nchw, (0, 1, 3, 4, 2))
    cur = x
    for li in range(len(hidden_dims)):
        Hd = hidden_dims[li]
        w_hwio, bias = params[li]
        h = jnp.zeros((B, H, W, Hd), jnp.float32)
        c = jnp.zeros((B, H, W, Hd), jnp.float32)
        outs = []
        for t in range(T):
            comb = jnp.concatenate([cur[:, t], h], axis=-1)
            cc_all = lax.conv_general_dilated(
                comb, w_hwio, (1, 1), 'SAME',
                dimension_numbers=('NHWC', 'HWIO', 'NHWC'),
                precision=lax.Precision.HIGHEST) + bias
            i = jax.nn.sigmoid(cc_all[..., 0 * Hd:1 * Hd])
            f = jax.nn.sigmoid(cc_all[..., 1 * Hd:2 * Hd])
            o = jax.nn.sigmoid(cc_all[..., 2 * Hd:3 * Hd])
            g = jnp.tanh(cc_all[..., 3 * Hd:4 * Hd])
            c = f * c + i * g
            h = o * jnp.tanh(c)
            outs.append(h)
        cur = jnp.stack(outs, axis=1)
    last = jnp.transpose(cur, (0, 1, 4, 2, 3))
    return last, jnp.transpose(h, (0, 3, 1, 2)), jnp.transpose(c, (0, 3, 1, 2))


if __name__ == "__main__":
    # Small shapes consistent with ConvLSTM.forward: input (B, T, C, H, W).
    B, T, C, H, W = 2, 8, 4, 16, 16
    num_layers = 2
    hidden_dims = [32, 32]
    kernel_sizes = [(3, 3), (3, 3)]

    key = jax.random.PRNGKey(0)
    key, kx = jax.random.split(key)
    x = jax.random.normal(kx, (B, T, C, H, W), jnp.float32)

    # Deterministic parameter init (PyTorch Conv2d default: U(-k, k),
    # k = 1/sqrt(fan_in)), stored in HWIO layout with input channels [x, h].
    params = []
    for li in range(num_layers):
        cur_in = C if li == 0 else hidden_dims[li - 1]
        Hd = hidden_dims[li]
        KH, KW = kernel_sizes[li]
        cin = cur_in + Hd
        fan_in = cin * KH * KW
        bound = 1.0 / (fan_in ** 0.5)
        key, kw_, kb_ = jax.random.split(key, 3)
        w = jax.random.uniform(kw_, (KH, KW, cin, 4 * Hd), jnp.float32,
                               -bound, bound)
        b = jax.random.uniform(kb_, (4 * Hd,), jnp.float32, -bound, bound)
        params.append((w, b))

    fwd = jax.jit(functools.partial(convlstm_forward,
                                    hidden_dims=tuple(hidden_dims),
                                    kernel_sizes=tuple(kernel_sizes)))
    layer_output_list, last_state_list = fwd(x, params)
    layer_out = jax.block_until_ready(layer_output_list[0])
    h_last = jax.block_until_ready(last_state_list[0][0])
    c_last = jax.block_until_ready(last_state_list[0][1])

    # Sanity-check shapes (NCHW, matching the PyTorch module).
    assert layer_out.shape == (B, T, hidden_dims[-1], H, W)
    assert h_last.shape == (B, hidden_dims[-1], H, W)
    assert c_last.shape == (B, hidden_dims[-1], H, W)

    # Numerical check against a pure-JAX f32 reference (kernel uses bf16 MXU
    # operands with f32 accumulation, hence the loosened tolerance).
    ref_out, ref_h, ref_c = convlstm_forward_ref(x, params, hidden_dims,
                                                 kernel_sizes)
    assert jnp.allclose(layer_out, ref_out, atol=2e-2, rtol=2e-2)
    assert jnp.allclose(h_last, ref_h, atol=2e-2, rtol=2e-2)
    assert jnp.allclose(c_last, ref_c, atol=2e-2, rtol=2e-2)

    print("KERNEL_OK")
</pallas_src>

<mosaic_0001>
module attributes {stable_mosaic.version = 11 : i64} {
  func.func @_xconv_kernel(%arg0: i32, %arg1: memref<1x2x18x24x4xf32, #tpu.memory_space<vmem>>, %arg2: memref<9x4x128xbf16, #tpu.memory_space<vmem>>, %arg3: memref<1x128xf32, #tpu.memory_space<vmem>>, %arg4: memref<1x2x256x128xf32, #tpu.memory_space<vmem>>) attributes {dimension_semantics = [#tpu.dimension_semantics<parallel>], iteration_bounds = array<i64: 8>, scalar_prefetch = 0 : i64, scratch_operands = 0 : i64, tpu.core_type = #tpu.core_type<tc>, window_params = [{transform_indices = @transform_0, window_bounds = array<i64: 1, 2, 18, 24, 4>}, {pipeline_mode = #tpu.pipeline_mode<synchronous>, transform_indices = @transform_1, window_bounds = array<i64: 9, 4, 128>}, {pipeline_mode = #tpu.pipeline_mode<synchronous>, transform_indices = @transform_2, window_bounds = array<i64: 1, 128>}, {transform_indices = @transform_3, window_bounds = array<i64: 1, 2, 256, 128>}]} {
    %c0 = arith.constant 0 : index
    %c0_0 = arith.constant 0 : index
    %c0_1 = arith.constant 0 : index
    %c0_2 = arith.constant 0 : index
    %c0_3 = arith.constant 0 : index
    %0 = vector.load %arg1[%c0, %c0_0, %c0_1, %c0_2, %c0_3] : memref<1x2x18x24x4xf32, #tpu.memory_space<vmem>>, vector<1x2x18x24x4xf32>
    %1 = vector.shape_cast %0 : vector<1x2x18x24x4xf32> to vector<2x18x24x4xf32>
    %c0_4 = arith.constant 0 : index
    %c0_5 = arith.constant 0 : index
    %2 = vector.load %arg3[%c0_4, %c0_5] : memref<1x128xf32, #tpu.memory_space<vmem>>, vector<1x128xf32>
    %3 = vector.shape_cast %2 : vector<1x128xf32> to vector<1x128xf32>
    %4 = vector.broadcast %3 : vector<1x128xf32> to vector<512x128xf32>
    %c1_i32 = arith.constant 1 : i32
    %5 = tpu.dynamic_rotate %1 by %c1_i32 dim 2 : vector<2x18x24x4xf32>, i32 -> vector<2x18x24x4xf32>
    %6 = arith.truncf %5 : vector<2x18x24x4xf32> to vector<2x18x24x4xbf16>
    %7 = vector.extract_strided_slice %6 {offsets = [0, 0, 0, 0], sizes = [2, 16, 16, 4], strides = [1, 1, 1, 1]} : vector<2x18x24x4xbf16> to vector<2x16x16x4xbf16>
    %8 = vector.shape_cast %7 : vector<2x16x16x4xbf16> to vector<512x4xbf16>
    %c0_6 = arith.constant 0 : index
    %c0_7 = arith.constant 0 : index
    %c0_8 = arith.constant 0 : index
    %9 = vector.load %arg2[%c0_6, %c0_7, %c0_8] : memref<9x4x128xbf16, #tpu.memory_space<vmem>>, vector<1x4x128xbf16>
    %10 = vector.shape_cast %9 : vector<1x4x128xbf16> to vector<4x128xbf16>
    %cst = arith.constant dense<0.000000e+00> : vector<512x128xf32>
    %11 = tpu.matmul %8, %10, %cst {dimension_numbers = #tpu.dot_dimension_numbers<[1], [0], [0], [1], [0, 0, 1, 1], [], []>} : vector<512x4xbf16>, vector<4x128xbf16>, vector<512x128xf32> -> vector<512x128xf32>
    %12 = arith.addf %4, %11 : vector<512x128xf32>
    %13 = vector.extract_strided_slice %6 {offsets = [0, 1, 0, 0], sizes = [2, 16, 16, 4], strides = [1, 1, 1, 1]} : vector<2x18x24x4xbf16> to vector<2x16x16x4xbf16>
    %14 = vector.shape_cast %13 : vector<2x16x16x4xbf16> to vector<512x4xbf16>
    %c3 = arith.constant 3 : index
    %c0_9 = arith.constant 0 : index
    %c0_10 = arith.constant 0 : index
    %15 = vector.load %arg2[%c3, %c0_9, %c0_10] : memref<9x4x128xbf16, #tpu.memory_space<vmem>>, vector<1x4x128xbf16>
    %16 = vector.shape_cast %15 : vector<1x4x128xbf16> to vector<4x128xbf16>
    %cst_11 = arith.constant dense<0.000000e+00> : vector<512x128xf32>
    %17 = tpu.matmul %14, %16, %cst_11 {dimension_numbers = #tpu.dot_dimension_numbers<[1], [0], [0], [1], [0, 0, 1, 1], [], []>} : vector<512x4xbf16>, vector<4x128xbf16>, vector<512x128xf32> -> vector<512x128xf32>
    %18 = arith.addf %12, %17 : vector<512x128xf32>
    %19 = vector.extract_strided_slice %6 {offsets = [0, 2, 0, 0], sizes = [2, 16, 16, 4], strides = [1, 1, 1, 1]} : vector<2x18x24x4xbf16> to vector<2x16x16x4xbf16>
    %20 = vector.shape_cast %19 : vector<2x16x16x4xbf16> to vector<512x4xbf16>
    %c6 = arith.constant 6 : index
    %c0_12 = arith.constant 0 : index
    %c0_13 = arith.constant 0 : index
    %21 = vector.load %arg2[%c6, %c0_12, %c0_13] : memref<9x4x128xbf16, #tpu.memory_space<vmem>>, vector<1x4x128xbf16>
    %22 = vector.shape_cast %21 : vector<1x4x128xbf16> to vector<4x128xbf16>
    %cst_14 = arith.constant dense<0.000000e+00> : vector<512x128xf32>
    %23 = tpu.matmul %20, %22, %cst_14 {dimension_numbers = #tpu.dot_dimension_numbers<[1], [0], [0], [1], [0, 0, 1, 1], [], []>} : vector<512x4xbf16>, vector<4x128xbf16>, vector<512x128xf32> -> vector<512x128xf32>
    %24 = arith.addf %18, %23 : vector<512x128xf32>
    %25 = arith.truncf %1 : vector<2x18x24x4xf32> to vector<2x18x24x4xbf16>
    %26 = vector.extract_strided_slice %25 {offsets = [0, 0, 0, 0], sizes = [2, 16, 16, 4], strides = [1, 1, 1, 1]} : vector<2x18x24x4xbf16> to vector<2x16x16x4xbf16>
    %27 = vector.shape_cast %26 : vector<2x16x16x4xbf16> to vector<512x4xbf16>
    %c1 = arith.constant 1 : index
    %c0_15 = arith.constant 0 : index
    %c0_16 = arith.constant 0 : index
    %28 = vector.load %arg2[%c1, %c0_15, %c0_16] : memref<9x4x128xbf16, #tpu.memory_space<vmem>>, vector<1x4x128xbf16>
    %29 = vector.shape_cast %28 : vector<1x4x128xbf16> to vector<4x128xbf16>
    %cst_17 = arith.constant dense<0.000000e+00> : vector<512x128xf32>
    %30 = tpu.matmul %27, %29, %cst_17 {dimension_numbers = #tpu.dot_dimension_numbers<[1], [0], [0], [1], [0, 0, 1, 1], [], []>} : vector<512x4xbf16>, vector<4x128xbf16>, vector<512x128xf32> -> vector<512x128xf32>
    %31 = arith.addf %24, %30 : vector<512x128xf32>
    %32 = vector.extract_strided_slice %25 {offsets = [0, 1, 0, 0], sizes = [2, 16, 16, 4], strides = [1, 1, 1, 1]} : vector<2x18x24x4xbf16> to vector<2x16x16x4xbf16>
    %33 = vector.shape_cast %32 : vector<2x16x16x4xbf16> to vector<512x4xbf16>
    %c4 = arith.constant 4 : index
    %c0_18 = arith.constant 0 : index
    %c0_19 = arith.constant 0 : index
    %34 = vector.load %arg2[%c4, %c0_18, %c0_19] : memref<9x4x128xbf16, #tpu.memory_space<vmem>>, vector<1x4x128xbf16>
    %35 = vector.shape_cast %34 : vector<1x4x128xbf16> to vector<4x128xbf16>
    %cst_20 = arith.constant dense<0.000000e+00> : vector<512x128xf32>
    %36 = tpu.matmul %33, %35, %cst_20 {dimension_numbers = #tpu.dot_dimension_numbers<[1], [0], [0], [1], [0, 0, 1, 1], [], []>} : vector<512x4xbf16>, vector<4x128xbf16>, vector<512x128xf32> -> vector<512x128xf32>
    %37 = arith.addf %31, %36 : vector<512x128xf32>
    %38 = vector.extract_strided_slice %25 {offsets = [0, 2, 0, 0], sizes = [2, 16, 16, 4], strides = [1, 1, 1, 1]} : vector<2x18x24x4xbf16> to vector<2x16x16x4xbf16>
    %39 = vector.shape_cast %38 : vector<2x16x16x4xbf16> to vector<512x4xbf16>
    %c7 = arith.constant 7 : index
    %c0_21 = arith.constant 0 : index
    %c0_22 = arith.constant 0 : index
    %40 = vector.load %arg2[%c7, %c0_21, %c0_22] : memref<9x4x128xbf16, #tpu.memory_space<vmem>>, vector<1x4x128xbf16>
    %41 = vector.shape_cast %40 : vector<1x4x128xbf16> to vector<4x128xbf16>
    %cst_23 = arith.constant dense<0.000000e+00> : vector<512x128xf32>
    %42 = tpu.matmul %39, %41, %cst_23 {dimension_numbers = #tpu.dot_dimension_numbers<[1], [0], [0], [1], [0, 0, 1, 1], [], []>} : vector<512x4xbf16>, vector<4x128xbf16>, vector<512x128xf32> -> vector<512x128xf32>
    %43 = arith.addf %37, %42 : vector<512x128xf32>
    %c23_i32 = arith.constant 23 : i32
    %44 = tpu.dynamic_rotate %1 by %c23_i32 dim 2 : vector<2x18x24x4xf32>, i32 -> vector<2x18x24x4xf32>
    %45 = arith.truncf %44 : vector<2x18x24x4xf32> to vector<2x18x24x4xbf16>
    %46 = vector.extract_strided_slice %45 {offsets = [0, 0, 0, 0], sizes = [2, 16, 16, 4], strides = [1, 1, 1, 1]} : vector<2x18x24x4xbf16> to vector<2x16x16x4xbf16>
    %47 = vector.shape_cast %46 : vector<2x16x16x4xbf16> to vector<512x4xbf16>
    %c2 = arith.constant 2 : index
    %c0_24 = arith.constant 0 : index
    %c0_25 = arith.constant 0 : index
    %48 = vector.load %arg2[%c2, %c0_24, %c0_25] : memref<9x4x128xbf16, #tpu.memory_space<vmem>>, vector<1x4x128xbf16>
    %49 = vector.shape_cast %48 : vector<1x4x128xbf16> to vector<4x128xbf16>
    %cst_26 = arith.constant dense<0.000000e+00> : vector<512x128xf32>
    %50 = tpu.matmul %47, %49, %cst_26 {dimension_numbers = #tpu.dot_dimension_numbers<[1], [0], [0], [1], [0, 0, 1, 1], [], []>} : vector<512x4xbf16>, vector<4x128xbf16>, vector<512x128xf32> -> vector<512x128xf32>
    %51 = arith.addf %43, %50 : vector<512x128xf32>
    %52 = vector.extract_strided_slice %45 {offsets = [0, 1, 0, 0], sizes = [2, 16, 16, 4], strides = [1, 1, 1, 1]} : vector<2x18x24x4xbf16> to vector<2x16x16x4xbf16>
    %53 = vector.shape_cast %52 : vector<2x16x16x4xbf16> to vector<512x4xbf16>
    %c5 = arith.constant 5 : index
    %c0_27 = arith.constant 0 : index
    %c0_28 = arith.constant 0 : index
    %54 = vector.load %arg2[%c5, %c0_27, %c0_28] : memref<9x4x128xbf16, #tpu.memory_space<vmem>>, vector<1x4x128xbf16>
    %55 = vector.shape_cast %54 : vector<1x4x128xbf16> to vector<4x128xbf16>
    %cst_29 = arith.constant dense<0.000000e+00> : vector<512x128xf32>
    %56 = tpu.matmul %53, %55, %cst_29 {dimension_numbers = #tpu.dot_dimension_numbers<[1], [0], [0], [1], [0, 0, 1, 1], [], []>} : vector<512x4xbf16>, vector<4x128xbf16>, vector<512x128xf32> -> vector<512x128xf32>
    %57 = arith.addf %51, %56 : vector<512x128xf32>
    %58 = vector.extract_strided_slice %45 {offsets = [0, 2, 0, 0], sizes = [2, 16, 16, 4], strides = [1, 1, 1, 1]} : vector<2x18x24x4xbf16> to vector<2x16x16x4xbf16>
    %59 = vector.shape_cast %58 : vector<2x16x16x4xbf16> to vector<512x4xbf16>
    %c8 = arith.constant 8 : index
    %c0_30 = arith.constant 0 : index
    %c0_31 = arith.constant 0 : index
    %60 = vector.load %arg2[%c8, %c0_30, %c0_31] : memref<9x4x128xbf16, #tpu.memory_space<vmem>>, vector<1x4x128xbf16>
    %61 = vector.shape_cast %60 : vector<1x4x128xbf16> to vector<4x128xbf16>
    %cst_32 = arith.constant dense<0.000000e+00> : vector<512x128xf32>
    %62 = tpu.matmul %59, %61, %cst_32 {dimension_numbers = #tpu.dot_dimension_numbers<[1], [0], [0], [1], [0, 0, 1, 1], [], []>} : vector<512x4xbf16>, vector<4x128xbf16>, vector<512x128xf32> -> vector<512x128xf32>
    %63 = arith.addf %57, %62 : vector<512x128xf32>
    %64 = vector.shape_cast %63 : vector<512x128xf32> to vector<2x256x128xf32>
    %c0_33 = arith.constant 0 : index
    %c0_34 = arith.constant 0 : index
    %c0_35 = arith.constant 0 : index
    %c0_36 = arith.constant 0 : index
    %65 = vector.load %arg4[%c0_33, %c0_34, %c0_35, %c0_36] : memref<1x2x256x128xf32, #tpu.memory_space<vmem>>, vector<1x2x256x128xf32>
    %66 = vector.shape_cast %65 : vector<1x2x256x128xf32> to vector<2x256x128xf32>
    %67 = vector.shape_cast %64 : vector<2x256x128xf32> to vector<1x2x256x128xf32>
    tpu.vector_store %arg4[%c0_33, %c0_34, %c0_35, %c0_36], %67 {strides = array<i32>} : memref<1x2x256x128xf32, #tpu.memory_space<vmem>>, vector<1x2x256x128xf32>,
    return
  }
  func.func @transform_0(%arg0: i32) -> (i32, i32, i32, i32, i32) {
    %c0_i32 = arith.constant 0 : i32
    %c0_i32_0 = arith.constant 0 : i32
    %c0_i32_1 = arith.constant 0 : i32
    %c0_i32_2 = arith.constant 0 : i32
    %c0_i32_3 = arith.constant 0 : i32
    return %arg0, %c0_i32, %c0_i32_0, %c0_i32_1, %c0_i32_2 : i32, i32, i32, i32, i32
  }
  func.func @transform_1(%arg0: i32) -> (i32, i32, i32) {
    %c0_i32 = arith.constant 0 : i32
    %c0_i32_0 = arith.constant 0 : i32
    %c0_i32_1 = arith.constant 0 : i32
    %c0_i32_2 = arith.constant 0 : i32
    return %c0_i32, %c0_i32_0, %c0_i32_1 : i32, i32, i32
  }
  func.func @transform_2(%arg0: i32) -> (i32, i32) {
    %c0_i32 = arith.constant 0 : i32
    %c0_i32_0 = arith.constant 0 : i32
    %c0_i32_1 = arith.constant 0 : i32
    return %c0_i32, %c0_i32_0 : i32, i32
  }
  func.func @transform_3(%arg0: i32) -> (i32, i32, i32, i32) {
    %c0_i32 = arith.constant 0 : i32
    %c0_i32_0 = arith.constant 0 : i32
    %c0_i32_1 = arith.constant 0 : i32
    %c0_i32_2 = arith.constant 0 : i32
    return %arg0, %c0_i32, %c0_i32_0, %c0_i32_1 : i32, i32, i32, i32
  }
}

module attributes {stable_mosaic.version = 11 : i64} {
  func.func @_convlstm_rec_kernel(%arg0: i32, %arg1: i32, %arg2: memref<1x1x256x128xf32, #tpu.memory_space<vmem>>, %arg3: memref<9x32x128xbf16, #tpu.memory_space<vmem>>, %arg4: memref<1x1x18x24x32xf32, #tpu.memory_space<vmem>>, %arg5: memref<1x16x16x32xf32, #tpu.memory_space<vmem>>, %arg6: memref<18x24x32xf32, #tpu.memory_space<vmem>>, %arg7: memref<256x32xf32, #tpu.memory_space<vmem>>) attributes {dimension_semantics = [#tpu.dimension_semantics<parallel>, #tpu.dimension_semantics<arbitrary>], iteration_bounds = array<i64: 2, 8>, scalar_prefetch = 0 : i64, scratch_operands = 2 : i64, tpu.core_type = #tpu.core_type<tc>, window_params = [{transform_indices = @transform_0, window_bounds = array<i64: 1, 1, 256, 128>}, {pipeline_mode = #tpu.pipeline_mode<synchronous>, transform_indices = @transform_1, window_bounds = array<i64: 9, 32, 128>}, {transform_indices = @transform_2, window_bounds = array<i64: 1, 1, 18, 24, 32>}, {transform_indices = @transform_3, window_bounds = array<i64: 1, 16, 16, 32>}]} {
    %c0_i32 = arith.constant 0 : i32
    %0 = arith.cmpi eq, %arg1, %c0_i32 : i32
    %1 = arith.extui %0 : i1 to i32
    %c0_i32_0 = arith.constant 0 : i32
    %2 = arith.cmpi ne, %1, %c0_i32_0 : i32
    scf.if %2 {
      %cst_53 = arith.constant 0.000000e+00 : f32
      %97 = vector.broadcast %cst_53 : f32 to vector<18x24x32xf32>
      %c0_54 = arith.constant 0 : index
      %c0_55 = arith.constant 0 : index
      %c0_56 = arith.constant 0 : index
      %98 = vector.load %arg6[%c0_54, %c0_55, %c0_56] : memref<18x24x32xf32, #tpu.memory_space<vmem>>, vector<18x24x32xf32>
      tpu.vector_store %arg6[%c0_54, %c0_55, %c0_56], %97 {strides = array<i32>} : memref<18x24x32xf32, #tpu.memory_space<vmem>>, vector<18x24x32xf32>,
      %cst_57 = arith.constant 0.000000e+00 : f32
      %99 = vector.broadcast %cst_57 : f32 to vector<256x32xf32>
      %c0_58 = arith.constant 0 : index
      %c0_59 = arith.constant 0 : index
      %100 = vector.load %arg7[%c0_58, %c0_59] : memref<256x32xf32, #tpu.memory_space<vmem>>, vector<256x32xf32>
      tpu.vector_store %arg7[%c0_58, %c0_59], %99 {strides = array<i32>} : memref<256x32xf32, #tpu.memory_space<vmem>>, vector<256x32xf32>,
    } else {
    }
    %c0 = arith.constant 0 : index
    %c0_1 = arith.constant 0 : index
    %c0_2 = arith.constant 0 : index
    %c0_3 = arith.constant 0 : index
    %3 = vector.load %arg2[%c0, %c0_1, %c0_2, %c0_3] : memref<1x1x256x128xf32, #tpu.memory_space<vmem>>, vector<1x1x256x128xf32>
    %4 = vector.shape_cast %3 : vector<1x1x256x128xf32> to vector<256x128xf32>
    %c0_4 = arith.constant 0 : index
    %c0_5 = arith.constant 0 : index
    %c0_6 = arith.constant 0 : index
    %5 = vector.load %arg6[%c0_4, %c0_5, %c0_6] : memref<18x24x32xf32, #tpu.memory_space<vmem>>, vector<18x24x32xf32>
    %c1_i32 = arith.constant 1 : i32
    %6 = tpu.dynamic_rotate %5 by %c1_i32 dim 1 : vector<18x24x32xf32>, i32 -> vector<18x24x32xf32>
    %7 = arith.truncf %6 : vector<18x24x32xf32> to vector<18x24x32xbf16>
    %8 = vector.extract_strided_slice %7 {offsets = [0, 0, 0], sizes = [16, 16, 32], strides = [1, 1, 1]} : vector<18x24x32xbf16> to vector<16x16x32xbf16>
    %9 = vector.shape_cast %8 : vector<16x16x32xbf16> to vector<256x32xbf16>
    %c0_7 = arith.constant 0 : index
    %c0_8 = arith.constant 0 : index
    %c0_9 = arith.constant 0 : index
    %10 = vector.load %arg3[%c0_7, %c0_8, %c0_9] : memref<9x32x128xbf16, #tpu.memory_space<vmem>>, vector<1x32x128xbf16>
    %11 = vector.shape_cast %10 : vector<1x32x128xbf16> to vector<32x128xbf16>
    %cst = arith.constant dense<0.000000e+00> : vector<256x128xf32>
    %12 = tpu.matmul %9, %11, %cst {dimension_numbers = #tpu.dot_dimension_numbers<[1], [0], [0], [1], [0, 0, 1, 1], [], []>} : vector<256x32xbf16>, vector<32x128xbf16>, vector<256x128xf32> -> vector<256x128xf32>
    %13 = arith.addf %4, %12 : vector<256x128xf32>
    %14 = vector.extract_strided_slice %7 {offsets = [1, 0, 0], sizes = [16, 16, 32], strides = [1, 1, 1]} : vector<18x24x32xbf16> to vector<16x16x32xbf16>
    %15 = vector.shape_cast %14 : vector<16x16x32xbf16> to vector<256x32xbf16>
    %c3 = arith.constant 3 : index
    %c0_10 = arith.constant 0 : index
    %c0_11 = arith.constant 0 : index
    %16 = vector.load %arg3[%c3, %c0_10, %c0_11] : memref<9x32x128xbf16, #tpu.memory_space<vmem>>, vector<1x32x128xbf16>
    %17 = vector.shape_cast %16 : vector<1x32x128xbf16> to vector<32x128xbf16>
    %cst_12 = arith.constant dense<0.000000e+00> : vector<256x128xf32>
    %18 = tpu.matmul %15, %17, %cst_12 {dimension_numbers = #tpu.dot_dimension_numbers<[1], [0], [0], [1], [0, 0, 1, 1], [], []>} : vector<256x32xbf16>, vector<32x128xbf16>, vector<256x128xf32> -> vector<256x128xf32>
    %19 = arith.addf %13, %18 : vector<256x128xf32>
    %20 = vector.extract_strided_slice %7 {offsets = [2, 0, 0], sizes = [16, 16, 32], strides = [1, 1, 1]} : vector<18x24x32xbf16> to vector<16x16x32xbf16>
    %21 = vector.shape_cast %20 : vector<16x16x32xbf16> to vector<256x32xbf16>
    %c6 = arith.constant 6 : index
    %c0_13 = arith.constant 0 : index
    %c0_14 = arith.constant 0 : index
    %22 = vector.load %arg3[%c6, %c0_13, %c0_14] : memref<9x32x128xbf16, #tpu.memory_space<vmem>>, vector<1x32x128xbf16>
    %23 = vector.shape_cast %22 : vector<1x32x128xbf16> to vector<32x128xbf16>
    %cst_15 = arith.constant dense<0.000000e+00> : vector<256x128xf32>
    %24 = tpu.matmul %21, %23, %cst_15 {dimension_numbers = #tpu.dot_dimension_numbers<[1], [0], [0], [1], [0, 0, 1, 1], [], []>} : vector<256x32xbf16>, vector<32x128xbf16>, vector<256x128xf32> -> vector<256x128xf32>
    %25 = arith.addf %19, %24 : vector<256x128xf32>
    %26 = arith.truncf %5 : vector<18x24x32xf32> to vector<18x24x32xbf16>
    %27 = vector.extract_strided_slice %26 {offsets = [0, 0, 0], sizes = [16, 16, 32], strides = [1, 1, 1]} : vector<18x24x32xbf16> to vector<16x16x32xbf16>
    %28 = vector.shape_cast %27 : vector<16x16x32xbf16> to vector<256x32xbf16>
    %c1 = arith.constant 1 : index
    %c0_16 = arith.constant 0 : index
    %c0_17 = arith.constant 0 : index
    %29 = vector.load %arg3[%c1, %c0_16, %c0_17] : memref<9x32x128xbf16, #tpu.memory_space<vmem>>, vector<1x32x128xbf16>
    %30 = vector.shape_cast %29 : vector<1x32x128xbf16> to vector<32x128xbf16>
    %cst_18 = arith.constant dense<0.000000e+00> : vector<256x128xf32>
    %31 = tpu.matmul %28, %30, %cst_18 {dimension_numbers = #tpu.dot_dimension_numbers<[1], [0], [0], [1], [0, 0, 1, 1], [], []>} : vector<256x32xbf16>, vector<32x128xbf16>, vector<256x128xf32> -> vector<256x128xf32>
    %32 = arith.addf %25, %31 : vector<256x128xf32>
    %33 = vector.extract_strided_slice %26 {offsets = [1, 0, 0], sizes = [16, 16, 32], strides = [1, 1, 1]} : vector<18x24x32xbf16> to vector<16x16x32xbf16>
    %34 = vector.shape_cast %33 : vector<16x16x32xbf16> to vector<256x32xbf16>
    %c4 = arith.constant 4 : index
    %c0_19 = arith.constant 0 : index
    %c0_20 = arith.constant 0 : index
    %35 = vector.load %arg3[%c4, %c0_19, %c0_20] : memref<9x32x128xbf16, #tpu.memory_space<vmem>>, vector<1x32x128xbf16>
    %36 = vector.shape_cast %35 : vector<1x32x128xbf16> to vector<32x128xbf16>
    %cst_21 = arith.constant dense<0.000000e+00> : vector<256x128xf32>
    %37 = tpu.matmul %34, %36, %cst_21 {dimension_numbers = #tpu.dot_dimension_numbers<[1], [0], [0], [1], [0, 0, 1, 1], [], []>} : vector<256x32xbf16>, vector<32x128xbf16>, vector<256x128xf32> -> vector<256x128xf32>
    %38 = arith.addf %32, %37 : vector<256x128xf32>
    %39 = vector.extract_strided_slice %26 {offsets = [2, 0, 0], sizes = [16, 16, 32], strides = [1, 1, 1]} : vector<18x24x32xbf16> to vector<16x16x32xbf16>
    %40 = vector.shape_cast %39 : vector<16x16x32xbf16> to vector<256x32xbf16>
    %c7 = arith.constant 7 : index
    %c0_22 = arith.constant 0 : index
    %c0_23 = arith.constant 0 : index
    %41 = vector.load %arg3[%c7, %c0_22, %c0_23] : memref<9x32x128xbf16, #tpu.memory_space<vmem>>, vector<1x32x128xbf16>
    %42 = vector.shape_cast %41 : vector<1x32x128xbf16> to vector<32x128xbf16>
    %cst_24 = arith.constant dense<0.000000e+00> : vector<256x128xf32>
    %43 = tpu.matmul %40, %42, %cst_24 {dimension_numbers = #tpu.dot_dimension_numbers<[1], [0], [0], [1], [0, 0, 1, 1], [], []>} : vector<256x32xbf16>, vector<32x128xbf16>, vector<256x128xf32> -> vector<256x128xf32>
    %44 = arith.addf %38, %43 : vector<256x128xf32>
    %c23_i32 = arith.constant 23 : i32
    %45 = tpu.dynamic_rotate %5 by %c23_i32 dim 1 : vector<18x24x32xf32>, i32 -> vector<18x24x32xf32>
    %46 = arith.truncf %45 : vector<18x24x32xf32> to vector<18x24x32xbf16>
    %47 = vector.extract_strided_slice %46 {offsets = [0, 0, 0], sizes = [16, 16, 32], strides = [1, 1, 1]} : vector<18x24x32xbf16> to vector<16x16x32xbf16>
    %48 = vector.shape_cast %47 : vector<16x16x32xbf16> to vector<256x32xbf16>
    %c2 = arith.constant 2 : index
    %c0_25 = arith.constant 0 : index
    %c0_26 = arith.constant 0 : index
    %49 = vector.load %arg3[%c2, %c0_25, %c0_26] : memref<9x32x128xbf16, #tpu.memory_space<vmem>>, vector<1x32x128xbf16>
    %50 = vector.shape_cast %49 : vector<1x32x128xbf16> to vector<32x128xbf16>
    %cst_27 = arith.constant dense<0.000000e+00> : vector<256x128xf32>
    %51 = tpu.matmul %48, %50, %cst_27 {dimension_numbers = #tpu.dot_dimension_numbers<[1], [0], [0], [1], [0, 0, 1, 1], [], []>} : vector<256x32xbf16>, vector<32x128xbf16>, vector<256x128xf32> -> vector<256x128xf32>
    %52 = arith.addf %44, %51 : vector<256x128xf32>
    %53 = vector.extract_strided_slice %46 {offsets = [1, 0, 0], sizes = [16, 16, 32], strides = [1, 1, 1]} : vector<18x24x32xbf16> to vector<16x16x32xbf16>
    %54 = vector.shape_cast %53 : vector<16x16x32xbf16> to vector<256x32xbf16>
    %c5 = arith.constant 5 : index
    %c0_28 = arith.constant 0 : index
    %c0_29 = arith.constant 0 : index
    %55 = vector.load %arg3[%c5, %c0_28, %c0_29] : memref<9x32x128xbf16, #tpu.memory_space<vmem>>, vector<1x32x128xbf16>
    %56 = vector.shape_cast %55 : vector<1x32x128xbf16> to vector<32x128xbf16>
    %cst_30 = arith.constant dense<0.000000e+00> : vector<256x128xf32>
    %57 = tpu.matmul %54, %56, %cst_30 {dimension_numbers = #tpu.dot_dimension_numbers<[1], [0], [0], [1], [0, 0, 1, 1], [], []>} : vector<256x32xbf16>, vector<32x128xbf16>, vector<256x128xf32> -> vector<256x128xf32>
    %58 = arith.addf %52, %57 : vector<256x128xf32>
    %59 = vector.extract_strided_slice %46 {offsets = [2, 0, 0], sizes = [16, 16, 32], strides = [1, 1, 1]} : vector<18x24x32xbf16> to vector<16x16x32xbf16>
    %60 = vector.shape_cast %59 : vector<16x16x32xbf16> to vector<256x32xbf16>
    %c8 = arith.constant 8 : index
    %c0_31 = arith.constant 0 : index
    %c0_32 = arith.constant 0 : index
    %61 = vector.load %arg3[%c8, %c0_31, %c0_32] : memref<9x32x128xbf16, #tpu.memory_space<vmem>>, vector<1x32x128xbf16>
    %62 = vector.shape_cast %61 : vector<1x32x128xbf16> to vector<32x128xbf16>
    %cst_33 = arith.constant dense<0.000000e+00> : vector<256x128xf32>
    %63 = tpu.matmul %60, %62, %cst_33 {dimension_numbers = #tpu.dot_dimension_numbers<[1], [0], [0], [1], [0, 0, 1, 1], [], []>} : vector<256x32xbf16>, vector<32x128xbf16>, vector<256x128xf32> -> vector<256x128xf32>
    %64 = arith.addf %58, %63 : vector<256x128xf32>
    %65 = tpu.iota {dimensions = array<i32: 1>} : vector<256x128xi32>
    %c96_i32 = arith.constant 96 : i32
    %66 = vector.broadcast %c96_i32 : i32 to vector<256x128xi32>
    %67 = arith.cmpi sge, %65, %66 : vector<256x128xi32>
    %cst_34 = arith.constant 5.000000e-01 : f32
    %68 = vector.broadcast %cst_34 : f32 to vector<256x128xf32>
    %69 = arith.mulf %68, %64 : vector<256x128xf32>
    %70 = arith.select %67, %64, %69 : vector<256x128xi1>, vector<256x128xf32>
    %71 = math.tanh %70 : vector<256x128xf32>
    %cst_35 = arith.constant 5.000000e-01 : f32
    %72 = vector.broadcast %cst_35 : f32 to vector<256x128xf32>
    %73 = arith.mulf %72, %71 : vector<256x128xf32>
    %cst_36 = arith.constant 5.000000e-01 : f32
    %74 = vector.broadcast %cst_36 : f32 to vector<256x128xf32>
    %75 = arith.addf %73, %74 : vector<256x128xf32>
    %76 = arith.select %67, %71, %75 : vector<256x128xi1>, vector<256x128xf32>
    %77 = vector.extract_strided_slice %76 {offsets = [0, 0], sizes = [256, 32], strides = [1, 1]} : vector<256x128xf32> to vector<256x32xf32>
    %78 = vector.extract_strided_slice %76 {offsets = [0, 32], sizes = [256, 32], strides = [1, 1]} : vector<256x128xf32> to vector<256x32xf32>
    %79 = vector.extract_strided_slice %76 {offsets = [0, 64], sizes = [256, 32], strides = [1, 1]} : vector<256x128xf32> to vector<256x32xf32>
    %80 = vector.extract_strided_slice %76 {offsets = [0, 96], sizes = [256, 32], strides = [1, 1]} : vector<256x128xf32> to vector<256x32xf32>
    %c0_37 = arith.constant 0 : index
    %c0_38 = arith.constant 0 : index
    %81 = vector.load %arg7[%c0_37, %c0_38] : memref<256x32xf32, #tpu.memory_space<vmem>>, vector<256x32xf32>
    %82 = arith.mulf %78, %81 : vector<256x32xf32>
    %83 = arith.mulf %77, %80 : vector<256x32xf32>
    %84 = arith.addf %82, %83 : vector<256x32xf32>
    %85 = math.tanh %84 : vector<256x32xf32>
    %86 = arith.mulf %79, %85 : vector<256x32xf32>
    %c0_39 = arith.constant 0 : index
    %c0_40 = arith.constant 0 : index
    %87 = vector.load %arg7[%c0_39, %c0_40] : memref<256x32xf32, #tpu.memory_space<vmem>>, vector<256x32xf32>
    tpu.vector_store %arg7[%c0_39, %c0_40], %84 {strides = array<i32>} : memref<256x32xf32, #tpu.memory_space<vmem>>, vector<256x32xf32>,
    %88 = vector.shape_cast %86 : vector<256x32xf32> to vector<16x16x32xf32>
    %c1_41 = arith.constant 1 : index
    %c0_42 = arith.constant 0 : index
    %c0_43 = arith.constant 0 : index
    %89 = vector.load %arg6[%c1_41, %c0_42, %c0_43] : memref<18x24x32xf32, #tpu.memory_space<vmem>>, vector<16x16x32xf32>
    tpu.vector_store %arg6[%c1_41, %c0_42, %c0_43], %88 {strides = array<i32>} : memref<18x24x32xf32, #tpu.memory_space<vmem>>, vector<16x16x32xf32>,
    %c0_44 = arith.constant 0 : index
    %c0_45 = arith.constant 0 : index
    %c0_46 = arith.constant 0 : index
    %90 = vector.load %arg6[%c0_44, %c0_45, %c0_46] : memref<18x24x32xf32, #tpu.memory_space<vmem>>, vector<18x24x32xf32>
    %c0_47 = arith.constant 0 : index
    %c0_48 = arith.constant 0 : index
    %c0_49 = arith.constant 0 : index
    %c0_50 = arith.constant 0 : index
    %c0_51 = arith.constant 0 : index
    %91 = vector.load %arg4[%c0_47, %c0_48, %c0_49, %c0_50, %c0_51] : memref<1x1x18x24x32xf32, #tpu.memory_space<vmem>>, vector<1x1x18x24x32xf32>
    %92 = vector.shape_cast %91 : vector<1x1x18x24x32xf32> to vector<18x24x32xf32>
    %93 = vector.shape_cast %90 : vector<18x24x32xf32> to vector<1x1x18x24x32xf32>
    tpu.vector_store %arg4[%c0_47, %c0_48, %c0_49, %c0_50, %c0_51], %93 {strides = array<i32>} : memref<1x1x18x24x32xf32, #tpu.memory_space<vmem>>, vector<1x1x18x24x32xf32>,
    %c7_i32 = arith.constant 7 : i32
    %94 = arith.cmpi eq, %arg1, %c7_i32 : i32
    %95 = arith.extui %94 : i1 to i32
    %c0_i32_52 = arith.constant 0 : i32
    %96 = arith.cmpi ne, %95, %c0_i32_52 : i32
    scf.if %96 {
      %97 = vector.shape_cast %84 : vector<256x32xf32> to vector<16x16x32xf32>
      %c0_53 = arith.constant 0 : index
      %c0_54 = arith.constant 0 : index
      %c0_55 = arith.constant 0 : index
      %c0_56 = arith.constant 0 : index
      %98 = vector.load %arg5[%c0_53, %c0_54, %c0_55, %c0_56] : memref<1x16x16x32xf32, #tpu.memory_space<vmem>>, vector<1x16x16x32xf32>
      %99 = vector.shape_cast %98 : vector<1x16x16x32xf32> to vector<16x16x32xf32>
      %100 = vector.shape_cast %97 : vector<16x16x32xf32> to vector<1x16x16x32xf32>
      tpu.vector_store %arg5[%c0_53, %c0_54, %c0_55, %c0_56], %100 {strides = array<i32>} : memref<1x16x16x32xf32, #tpu.memory_space<vmem>>, vector<1x16x16x32xf32>,
    } else {
    }
    return
  }
  func.func @transform_0(%arg0: i32, %arg1: i32) -> (i32, i32, i32, i32) {
    %c0_i32 = arith.constant 0 : i32
    %c0_i32_0 = arith.constant 0 : i32
    %c0_i32_1 = arith.constant 0 : i32
    return %arg1, %arg0, %c0_i32, %c0_i32_0 : i32, i32, i32, i32
  }
  func.func @transform_1(%arg0: i32, %arg1: i32) -> (i32, i32, i32) {
    %c0_i32 = arith.constant 0 : i32
    %c0_i32_0 = arith.constant 0 : i32
    %c0_i32_1 = arith.constant 0 : i32
    %c0_i32_2 = arith.constant 0 : i32
    return %c0_i32, %c0_i32_0, %c0_i32_1 : i32, i32, i32
  }
  func.func @transform_2(%arg0: i32, %arg1: i32) -> (i32, i32, i32, i32, i32) {
    %c0_i32 = arith.constant 0 : i32
    %c0_i32_0 = arith.constant 0 : i32
    %c0_i32_1 = arith.constant 0 : i32
    %c0_i32_2 = arith.constant 0 : i32
    return %arg1, %arg0, %c0_i32, %c0_i32_0, %c0_i32_1 : i32, i32, i32, i32, i32
  }
  func.func @transform_3(%arg0: i32, %arg1: i32) -> (i32, i32, i32, i32) {
    %c0_i32 = arith.constant 0 : i32
    %c0_i32_0 = arith.constant 0 : i32
    %c0_i32_1 = arith.constant 0 : i32
    %c0_i32_2 = arith.constant 0 : i32
    return %arg0, %c0_i32, %c0_i32_0, %c0_i32_1 : i32, i32, i32, i32
  }
}

module attributes {stable_mosaic.version = 11 : i64} {
  func.func @_xconv_kernel(%arg0: i32, %arg1: memref<1x2x18x24x32xf32, #tpu.memory_space<vmem>>, %arg2: memref<9x32x128xbf16, #tpu.memory_space<vmem>>, %arg3: memref<1x128xf32, #tpu.memory_space<vmem>>, %arg4: memref<1x2x256x128xf32, #tpu.memory_space<vmem>>) attributes {dimension_semantics = [#tpu.dimension_semantics<parallel>], iteration_bounds = array<i64: 8>, scalar_prefetch = 0 : i64, scratch_operands = 0 : i64, tpu.core_type = #tpu.core_type<tc>, window_params = [{transform_indices = @transform_0, window_bounds = array<i64: 1, 2, 18, 24, 32>}, {pipeline_mode = #tpu.pipeline_mode<synchronous>, transform_indices = @transform_1, window_bounds = array<i64: 9, 32, 128>}, {pipeline_mode = #tpu.pipeline_mode<synchronous>, transform_indices = @transform_2, window_bounds = array<i64: 1, 128>}, {transform_indices = @transform_3, window_bounds = array<i64: 1, 2, 256, 128>}]} {
    %c0 = arith.constant 0 : index
    %c0_0 = arith.constant 0 : index
    %c0_1 = arith.constant 0 : index
    %c0_2 = arith.constant 0 : index
    %c0_3 = arith.constant 0 : index
    %0 = vector.load %arg1[%c0, %c0_0, %c0_1, %c0_2, %c0_3] : memref<1x2x18x24x32xf32, #tpu.memory_space<vmem>>, vector<1x2x18x24x32xf32>
    %1 = vector.shape_cast %0 : vector<1x2x18x24x32xf32> to vector<2x18x24x32xf32>
    %c0_4 = arith.constant 0 : index
    %c0_5 = arith.constant 0 : index
    %2 = vector.load %arg3[%c0_4, %c0_5] : memref<1x128xf32, #tpu.memory_space<vmem>>, vector<1x128xf32>
    %3 = vector.shape_cast %2 : vector<1x128xf32> to vector<1x128xf32>
    %4 = vector.broadcast %3 : vector<1x128xf32> to vector<512x128xf32>
    %c1_i32 = arith.constant 1 : i32
    %5 = tpu.dynamic_rotate %1 by %c1_i32 dim 2 : vector<2x18x24x32xf32>, i32 -> vector<2x18x24x32xf32>
    %6 = arith.truncf %5 : vector<2x18x24x32xf32> to vector<2x18x24x32xbf16>
    %7 = vector.extract_strided_slice %6 {offsets = [0, 0, 0, 0], sizes = [2, 16, 16, 32], strides = [1, 1, 1, 1]} : vector<2x18x24x32xbf16> to vector<2x16x16x32xbf16>
    %8 = vector.shape_cast %7 : vector<2x16x16x32xbf16> to vector<512x32xbf16>
    %c0_6 = arith.constant 0 : index
    %c0_7 = arith.constant 0 : index
    %c0_8 = arith.constant 0 : index
    %9 = vector.load %arg2[%c0_6, %c0_7, %c0_8] : memref<9x32x128xbf16, #tpu.memory_space<vmem>>, vector<1x32x128xbf16>
    %10 = vector.shape_cast %9 : vector<1x32x128xbf16> to vector<32x128xbf16>
    %cst = arith.constant dense<0.000000e+00> : vector<512x128xf32>
    %11 = tpu.matmul %8, %10, %cst {dimension_numbers = #tpu.dot_dimension_numbers<[1], [0], [0], [1], [0, 0, 1, 1], [], []>} : vector<512x32xbf16>, vector<32x128xbf16>, vector<512x128xf32> -> vector<512x128xf32>
    %12 = arith.addf %4, %11 : vector<512x128xf32>
    %13 = vector.extract_strided_slice %6 {offsets = [0, 1, 0, 0], sizes = [2, 16, 16, 32], strides = [1, 1, 1, 1]} : vector<2x18x24x32xbf16> to vector<2x16x16x32xbf16>
    %14 = vector.shape_cast %13 : vector<2x16x16x32xbf16> to vector<512x32xbf16>
    %c3 = arith.constant 3 : index
    %c0_9 = arith.constant 0 : index
    %c0_10 = arith.constant 0 : index
    %15 = vector.load %arg2[%c3, %c0_9, %c0_10] : memref<9x32x128xbf16, #tpu.memory_space<vmem>>, vector<1x32x128xbf16>
    %16 = vector.shape_cast %15 : vector<1x32x128xbf16> to vector<32x128xbf16>
    %cst_11 = arith.constant dense<0.000000e+00> : vector<512x128xf32>
    %17 = tpu.matmul %14, %16, %cst_11 {dimension_numbers = #tpu.dot_dimension_numbers<[1], [0], [0], [1], [0, 0, 1, 1], [], []>} : vector<512x32xbf16>, vector<32x128xbf16>, vector<512x128xf32> -> vector<512x128xf32>
    %18 = arith.addf %12, %17 : vector<512x128xf32>
    %19 = vector.extract_strided_slice %6 {offsets = [0, 2, 0, 0], sizes = [2, 16, 16, 32], strides = [1, 1, 1, 1]} : vector<2x18x24x32xbf16> to vector<2x16x16x32xbf16>
    %20 = vector.shape_cast %19 : vector<2x16x16x32xbf16> to vector<512x32xbf16>
    %c6 = arith.constant 6 : index
    %c0_12 = arith.constant 0 : index
    %c0_13 = arith.constant 0 : index
    %21 = vector.load %arg2[%c6, %c0_12, %c0_13] : memref<9x32x128xbf16, #tpu.memory_space<vmem>>, vector<1x32x128xbf16>
    %22 = vector.shape_cast %21 : vector<1x32x128xbf16> to vector<32x128xbf16>
    %cst_14 = arith.constant dense<0.000000e+00> : vector<512x128xf32>
    %23 = tpu.matmul %20, %22, %cst_14 {dimension_numbers = #tpu.dot_dimension_numbers<[1], [0], [0], [1], [0, 0, 1, 1], [], []>} : vector<512x32xbf16>, vector<32x128xbf16>, vector<512x128xf32> -> vector<512x128xf32>
    %24 = arith.addf %18, %23 : vector<512x128xf32>
    %25 = arith.truncf %1 : vector<2x18x24x32xf32> to vector<2x18x24x32xbf16>
    %26 = vector.extract_strided_slice %25 {offsets = [0, 0, 0, 0], sizes = [2, 16, 16, 32], strides = [1, 1, 1, 1]} : vector<2x18x24x32xbf16> to vector<2x16x16x32xbf16>
    %27 = vector.shape_cast %26 : vector<2x16x16x32xbf16> to vector<512x32xbf16>
    %c1 = arith.constant 1 : index
    %c0_15 = arith.constant 0 : index
    %c0_16 = arith.constant 0 : index
    %28 = vector.load %arg2[%c1, %c0_15, %c0_16] : memref<9x32x128xbf16, #tpu.memory_space<vmem>>, vector<1x32x128xbf16>
    %29 = vector.shape_cast %28 : vector<1x32x128xbf16> to vector<32x128xbf16>
    %cst_17 = arith.constant dense<0.000000e+00> : vector<512x128xf32>
    %30 = tpu.matmul %27, %29, %cst_17 {dimension_numbers = #tpu.dot_dimension_numbers<[1], [0], [0], [1], [0, 0, 1, 1], [], []>} : vector<512x32xbf16>, vector<32x128xbf16>, vector<512x128xf32> -> vector<512x128xf32>
    %31 = arith.addf %24, %30 : vector<512x128xf32>
    %32 = vector.extract_strided_slice %25 {offsets = [0, 1, 0, 0], sizes = [2, 16, 16, 32], strides = [1, 1, 1, 1]} : vector<2x18x24x32xbf16> to vector<2x16x16x32xbf16>
    %33 = vector.shape_cast %32 : vector<2x16x16x32xbf16> to vector<512x32xbf16>
    %c4 = arith.constant 4 : index
    %c0_18 = arith.constant 0 : index
    %c0_19 = arith.constant 0 : index
    %34 = vector.load %arg2[%c4, %c0_18, %c0_19] : memref<9x32x128xbf16, #tpu.memory_space<vmem>>, vector<1x32x128xbf16>
    %35 = vector.shape_cast %34 : vector<1x32x128xbf16> to vector<32x128xbf16>
    %cst_20 = arith.constant dense<0.000000e+00> : vector<512x128xf32>
    %36 = tpu.matmul %33, %35, %cst_20 {dimension_numbers = #tpu.dot_dimension_numbers<[1], [0], [0], [1], [0, 0, 1, 1], [], []>} : vector<512x32xbf16>, vector<32x128xbf16>, vector<512x128xf32> -> vector<512x128xf32>
    %37 = arith.addf %31, %36 : vector<512x128xf32>
    %38 = vector.extract_strided_slice %25 {offsets = [0, 2, 0, 0], sizes = [2, 16, 16, 32], strides = [1, 1, 1, 1]} : vector<2x18x24x32xbf16> to vector<2x16x16x32xbf16>
    %39 = vector.shape_cast %38 : vector<2x16x16x32xbf16> to vector<512x32xbf16>
    %c7 = arith.constant 7 : index
    %c0_21 = arith.constant 0 : index
    %c0_22 = arith.constant 0 : index
    %40 = vector.load %arg2[%c7, %c0_21, %c0_22] : memref<9x32x128xbf16, #tpu.memory_space<vmem>>, vector<1x32x128xbf16>
    %41 = vector.shape_cast %40 : vector<1x32x128xbf16> to vector<32x128xbf16>
    %cst_23 = arith.constant dense<0.000000e+00> : vector<512x128xf32>
    %42 = tpu.matmul %39, %41, %cst_23 {dimension_numbers = #tpu.dot_dimension_numbers<[1], [0], [0], [1], [0, 0, 1, 1], [], []>} : vector<512x32xbf16>, vector<32x128xbf16>, vector<512x128xf32> -> vector<512x128xf32>
    %43 = arith.addf %37, %42 : vector<512x128xf32>
    %c23_i32 = arith.constant 23 : i32
    %44 = tpu.dynamic_rotate %1 by %c23_i32 dim 2 : vector<2x18x24x32xf32>, i32 -> vector<2x18x24x32xf32>
    %45 = arith.truncf %44 : vector<2x18x24x32xf32> to vector<2x18x24x32xbf16>
    %46 = vector.extract_strided_slice %45 {offsets = [0, 0, 0, 0], sizes = [2, 16, 16, 32], strides = [1, 1, 1, 1]} : vector<2x18x24x32xbf16> to vector<2x16x16x32xbf16>
    %47 = vector.shape_cast %46 : vector<2x16x16x32xbf16> to vector<512x32xbf16>
    %c2 = arith.constant 2 : index
    %c0_24 = arith.constant 0 : index
    %c0_25 = arith.constant 0 : index
    %48 = vector.load %arg2[%c2, %c0_24, %c0_25] : memref<9x32x128xbf16, #tpu.memory_space<vmem>>, vector<1x32x128xbf16>
    %49 = vector.shape_cast %48 : vector<1x32x128xbf16> to vector<32x128xbf16>
    %cst_26 = arith.constant dense<0.000000e+00> : vector<512x128xf32>
    %50 = tpu.matmul %47, %49, %cst_26 {dimension_numbers = #tpu.dot_dimension_numbers<[1], [0], [0], [1], [0, 0, 1, 1], [], []>} : vector<512x32xbf16>, vector<32x128xbf16>, vector<512x128xf32> -> vector<512x128xf32>
    %51 = arith.addf %43, %50 : vector<512x128xf32>
    %52 = vector.extract_strided_slice %45 {offsets = [0, 1, 0, 0], sizes = [2, 16, 16, 32], strides = [1, 1, 1, 1]} : vector<2x18x24x32xbf16> to vector<2x16x16x32xbf16>
    %53 = vector.shape_cast %52 : vector<2x16x16x32xbf16> to vector<512x32xbf16>
    %c5 = arith.constant 5 : index
    %c0_27 = arith.constant 0 : index
    %c0_28 = arith.constant 0 : index
    %54 = vector.load %arg2[%c5, %c0_27, %c0_28] : memref<9x32x128xbf16, #tpu.memory_space<vmem>>, vector<1x32x128xbf16>
    %55 = vector.shape_cast %54 : vector<1x32x128xbf16> to vector<32x128xbf16>
    %cst_29 = arith.constant dense<0.000000e+00> : vector<512x128xf32>
    %56 = tpu.matmul %53, %55, %cst_29 {dimension_numbers = #tpu.dot_dimension_numbers<[1], [0], [0], [1], [0, 0, 1, 1], [], []>} : vector<512x32xbf16>, vector<32x128xbf16>, vector<512x128xf32> -> vector<512x128xf32>
    %57 = arith.addf %51, %56 : vector<512x128xf32>
    %58 = vector.extract_strided_slice %45 {offsets = [0, 2, 0, 0], sizes = [2, 16, 16, 32], strides = [1, 1, 1, 1]} : vector<2x18x24x32xbf16> to vector<2x16x16x32xbf16>
    %59 = vector.shape_cast %58 : vector<2x16x16x32xbf16> to vector<512x32xbf16>
    %c8 = arith.constant 8 : index
    %c0_30 = arith.constant 0 : index
    %c0_31 = arith.constant 0 : index
    %60 = vector.load %arg2[%c8, %c0_30, %c0_31] : memref<9x32x128xbf16, #tpu.memory_space<vmem>>, vector<1x32x128xbf16>
    %61 = vector.shape_cast %60 : vector<1x32x128xbf16> to vector<32x128xbf16>
    %cst_32 = arith.constant dense<0.000000e+00> : vector<512x128xf32>
    %62 = tpu.matmul %59, %61, %cst_32 {dimension_numbers = #tpu.dot_dimension_numbers<[1], [0], [0], [1], [0, 0, 1, 1], [], []>} : vector<512x32xbf16>, vector<32x128xbf16>, vector<512x128xf32> -> vector<512x128xf32>
    %63 = arith.addf %57, %62 : vector<512x128xf32>
    %64 = vector.shape_cast %63 : vector<512x128xf32> to vector<2x256x128xf32>
    %c0_33 = arith.constant 0 : index
    %c0_34 = arith.constant 0 : index
    %c0_35 = arith.constant 0 : index
    %c0_36 = arith.constant 0 : index
    %65 = vector.load %arg4[%c0_33, %c0_34, %c0_35, %c0_36] : memref<1x2x256x128xf32, #tpu.memory_space<vmem>>, vector<1x2x256x128xf32>
    %66 = vector.shape_cast %65 : vector<1x2x256x128xf32> to vector<2x256x128xf32>
    %67 = vector.shape_cast %64 : vector<2x256x128xf32> to vector<1x2x256x128xf32>
    tpu.vector_store %arg4[%c0_33, %c0_34, %c0_35, %c0_36], %67 {strides = array<i32>} : memref<1x2x256x128xf32, #tpu.memory_space<vmem>>, vector<1x2x256x128xf32>,
    return
  }
  func.func @transform_0(%arg0: i32) -> (i32, i32, i32, i32, i32) {
    %c0_i32 = arith.constant 0 : i32
    %c0_i32_0 = arith.constant 0 : i32
    %c0_i32_1 = arith.constant 0 : i32
    %c0_i32_2 = arith.constant 0 : i32
    %c0_i32_3 = arith.constant 0 : i32
    return %arg0, %c0_i32, %c0_i32_0, %c0_i32_1, %c0_i32_2 : i32, i32, i32, i32, i32
  }
  func.func @transform_1(%arg0: i32) -> (i32, i32, i32) {
    %c0_i32 = arith.constant 0 : i32
    %c0_i32_0 = arith.constant 0 : i32
    %c0_i32_1 = arith.constant 0 : i32
    %c0_i32_2 = arith.constant 0 : i32
    return %c0_i32, %c0_i32_0, %c0_i32_1 : i32, i32, i32
  }
  func.func @transform_2(%arg0: i32) -> (i32, i32) {
    %c0_i32 = arith.constant 0 : i32
    %c0_i32_0 = arith.constant 0 : i32
    %c0_i32_1 = arith.constant 0 : i32
    return %c0_i32, %c0_i32_0 : i32, i32
  }
  func.func @transform_3(%arg0: i32) -> (i32, i32, i32, i32) {
    %c0_i32 = arith.constant 0 : i32
    %c0_i32_0 = arith.constant 0 : i32
    %c0_i32_1 = arith.constant 0 : i32
    %c0_i32_2 = arith.constant 0 : i32
    return %arg0, %c0_i32, %c0_i32_0, %c0_i32_1 : i32, i32, i32, i32
  }
}

</mosaic_0001>

<llo_original>
// kernel: convlstm_forward.4
$region0: #{convlstm_forward.4}
  #allocation0 [shape = 'u32[]', space=smem, size = 0x4, offset = 0x4, fixed_abs, tag = 'smem constant byte address 0x4 - core index']
  #allocation1 [shape = 'u32[72,128]{1,0:T(1,128)}', space=vmem, size = 0x9000, scoped, tag = 'internal scratch']
  %s0 = inlined_call_operand.vmem [shape: f32[8,2,18,24,4], index: 0, kind: input, shape index: {}]
  %s1 = inlined_call_operand.vmem [shape: bf16[9,4,128], index: 1, kind: input, shape index: {}]
  %s2 = inlined_call_operand.vmem [shape: f32[1,128], index: 2, kind: input, shape index: {}]
  %s3 = inlined_call_operand.vmem [shape: f32[8,2,256,128], index: 3, kind: output, shape index: {}]
  %s4 = sld [smem:[#allocation0]]
  $region45: #{convlstm_forward.4} parent=0
    _
  %s6 = ssub.s32 1, %s4
  %s7 = scalar_select 0, %s6, %s4
  loop: start=0, step=1, limit=10
  $region2: #{convlstm_forward.4} parent=0 // loop_pre_header
    _
  $region3: #{convlstm_forward.4} parent=0 // loop_header
    %s9 = sphi 0, %s13
    %p10 = scmp.ge.s32.totalorder %s9, 10
    %s19 = sphi 0, %s21
    %s22 = sphi 0, %s19
    %s23 = sphi 0, %s22
    %s39 = sphi 0, %s23
    %s43 = sphi 0, %s43
    %s45 = sphi 0, %s43
    %s46 = sphi 0, %s45
    %s60 = sphi 0, %s46
    %s64 = sphi 0, %s64
    %s66 = sphi 0, %s64
    %s67 = sphi 0, %s66
    %s81 = sphi 0, %s67
    %s87 = sphi 0, %s89
    %s90 = sphi 0, %s87
    %s91 = sphi 0, %s90
    %s107 = sphi 0, %s91
  $region4: #{convlstm_forward.4} parent=0 // loop_header_branch
    %12 = sbr.rel (%p10) target = $region8
  $region5: #{convlstm_forward.4} parent=0 // loop_body
    %s14 = ssub.s32 %s9, 1
    %s15 = ssub.s32 %s9, 2
    %s16 = sadd.s32 %s9, 1
    %s17 = ssub.s32 %s9, %s16
    %p18 = scmp.eq.s32.totalorder %s17, 0
    %s20 = sadd.s32 %s19, 1
    %s21 = scalar_select %p18, %s19, %s20
    %p24 = pneg %p18
    %p25 = scmp.eq.s32.totalorder %s9, 7
    %p26 = por %p24, %p25
    %p27 = scmp.ne.s32.totalorder %s19, %s22
    %p28 = scmp.eq.s32.totalorder %s9, 0
    %p29 = por %p27, %p28
    %p30 = scmp.ne.s32.totalorder %s19, %s22
    %p31 = scmp.eq.s32.totalorder %s14, 7
    %p32 = por %p30, %p31
    %p33 = scmp.ne.s32.totalorder %s22, %s23
    %p34 = scmp.eq.s32.totalorder %s14, 0
    %p35 = por %p33, %p34
    %p36 = scmp.ne.s32.totalorder %s22, %s23
    %p37 = scmp.eq.s32.totalorder %s15, 7
    %p38 = por %p36, %p37
    %p40 = scmp.ne.s32.totalorder %s23, %s39
    %p41 = scmp.eq.s32.totalorder %s15, 0
    %p42 = por %p40, %p41
    %s44 = sadd.s32 %s43, 1
    %p47 = scmp.eq.s32.totalorder %s9, 7
    %p48 = scmp.ne.s32.totalorder %s43, %s45
    %p49 = scmp.eq.s32.totalorder %s9, 0
    %p50 = por %p48, %p49
    %p51 = scmp.ne.s32.totalorder %s43, %s45
    %p52 = scmp.eq.s32.totalorder %s14, 7
    %p53 = por %p51, %p52
    %p54 = scmp.ne.s32.totalorder %s45, %s46
    %p55 = scmp.eq.s32.totalorder %s14, 0
    %p56 = por %p54, %p55
    %p57 = scmp.ne.s32.totalorder %s45, %s46
    %p58 = scmp.eq.s32.totalorder %s15, 7
    %p59 = por %p57, %p58
    %p61 = scmp.ne.s32.totalorder %s46, %s60
    %p62 = scmp.eq.s32.totalorder %s15, 0
    %p63 = por %p61, %p62
    %s65 = sadd.s32 %s64, 1
    %p68 = scmp.eq.s32.totalorder %s9, 7
    %p69 = scmp.ne.s32.totalorder %s64, %s66
    %p70 = scmp.eq.s32.totalorder %s9, 0
    %p71 = por %p69, %p70
    %p72 = scmp.ne.s32.totalorder %s64, %s66
    %p73 = scmp.eq.s32.totalorder %s14, 7
    %p74 = por %p72, %p73
    %p75 = scmp.ne.s32.totalorder %s66, %s67
    %p76 = scmp.eq.s32.totalorder %s14, 0
    %p77 = por %p75, %p76
    %p78 = scmp.ne.s32.totalorder %s66, %s67
    %p79 = scmp.eq.s32.totalorder %s15, 7
    %p80 = por %p78, %p79
    %p82 = scmp.ne.s32.totalorder %s67, %s81
    %p83 = scmp.eq.s32.totalorder %s15, 0
    %p84 = por %p82, %p83
    %s85 = ssub.s32 %s9, %s16
    %p86 = scmp.eq.s32.totalorder %s85, 0
    %s88 = sadd.s32 %s87, 1
    %s89 = scalar_select %p86, %s87, %s88
    %p92 = pneg %p86
    %p93 = scmp.eq.s32.totalorder %s9, 7
    %p94 = por %p92, %p93
    %p95 = scmp.ne.s32.totalorder %s87, %s90
    %p96 = scmp.eq.s32.totalorder %s9, 0
    %p97 = por %p95, %p96
    %p98 = scmp.ne.s32.totalorder %s87, %s90
    %p99 = scmp.eq.s32.totalorder %s14, 7
    %p100 = por %p98, %p99
    %p101 = scmp.ne.s32.totalorder %s90, %s91
    %p102 = scmp.eq.s32.totalorder %s14, 0
    %p103 = por %p101, %p102
    %p104 = scmp.ne.s32.totalorder %s90, %s91
    %p105 = scmp.eq.s32.totalorder %s15, 7
    %p106 = por %p104, %p105
    %p108 = scmp.ne.s32.totalorder %s91, %s107
    %p109 = scmp.eq.s32.totalorder %s15, 0
    %p110 = por %p108, %p109
    %p111 = scmp.le.s32.totalorder 1, %s9
    %p112 = scmp.lt.s32.totalorder %s9, 9
    %p113 = pnand %p111, %p112
    %p114 = pneg %p113
    // Predicated region
    $region9: #{convlstm_forward.4} parent=5 // pred_check
      _
    $region10: #{convlstm_forward.4} parent=5 // pred_check_branch
      %116 = sbr.rel (%p113) target = $region12
    $region11: #{convlstm_forward.4} parent=5 // pred_region
      %s117 = ssub.s32 %s9, 1
      // Predicated region
      $region13: #{convlstm_forward.4} parent=11 // pred_check
        %p118 = pneg %p56
      $region14: #{convlstm_forward.4} parent=11 // pred_check_branch
        %120 = sbr.rel (%p118) target = $region16
      $region15: #{convlstm_forward.4} parent=11 // pred_region
        _
      $region16: #{convlstm_forward.4} parent=11 // pred_fallthru
        _
      // Predicated region
      $region17: #{convlstm_forward.4} parent=11 // pred_check
        %p121 = pneg %p77
      $region18: #{convlstm_forward.4} parent=11 // pred_check_branch
        %123 = sbr.rel (%p121) target = $region20
      $region19: #{convlstm_forward.4} parent=11 // pred_region
        _
      $region20: #{convlstm_forward.4} parent=11 // pred_fallthru
        _
    $region12: #{convlstm_forward.4} parent=5 // pred_fallthru
      _
    %p124 = scmp.lt.s32.totalorder %s9, 8
    // Predicated region
    $region21: #{convlstm_forward.4} parent=5 // pred_check
      %p125 = pneg %p124
    $region22: #{convlstm_forward.4} parent=5 // pred_check_branch
      %127 = sbr.rel (%p125) target = $region24
    $region23: #{convlstm_forward.4} parent=5 // pred_region
      // Predicated region
      $region25: #{convlstm_forward.4} parent=23 // pred_check
        %p128 = pneg %p29
      $region26: #{convlstm_forward.4} parent=23 // pred_check_branch
        %130 = sbr.rel (%p128) target = $region28
      $region27: #{convlstm_forward.4} parent=23 // pred_region
        %p131 = scmp.lt.s32.totalorder %s9, 7
        %s132 = scalar_select %p131, %s9, 7
        %s133 = smul.addr %s132, 108
        %s134 = smul.addr %s133, 8
        %s135 = scalar_lea.vmem %s0, %s134
      $region28: #{convlstm_forward.4} parent=23 // pred_fallthru
        _
    $region24: #{convlstm_forward.4} parent=5 // pred_fallthru
      _
    %p136 = scmp.le.s32.totalorder 1, %s9
    %p137 = scmp.lt.s32.totalorder %s9, 9
    %p138 = pnand %p136, %p137
    %p139 = pneg %p138
    // Predicated region
    $region29: #{convlstm_forward.4} parent=5 // pred_check
      _
    $region30: #{convlstm_forward.4} parent=5 // pred_check_branch
      %141 = sbr.rel (%p138) target = $region32
    $region31: #{convlstm_forward.4} parent=5 // pred_region
      %s142 = ssub.s32 %s9, 1
      %p143 = scmp.lt.s32.totalorder %s14, 7
      %s144 = scalar_select %p143, %s14, 7
      %s145 = smul.addr %s144, 108
      %s146 = smul.addr %s145, 8
      %s147 = scalar_lea.vmem %s0, %s146
      %p148 = pneg %p35
      %p149 = pneg %p32
      %p150 = pneg %p56
      %p151 = pneg %p53
      %p152 = pneg %p77
      %p153 = pneg %p74
      %p154 = pneg %p103
      %p155 = pneg %p100
      %p156 = scmp.lt.s32.totalorder %s14, 7
      %s157 = scalar_select %p156, %s14, 7
      %s158 = smul.addr %s157, 64
      %s159 = smul.addr %s158, 8
      %s160 = scalar_lea.vmem %s3, %s159
      %p161 = scmp.lt.s32.totalorder %s14, 7
      %s162 = scalar_select %p161, %s14, 7
      %s163 = smul.addr %s162, 108
      %s164 = smul.addr %s163, 8
      %s165 = scalar_lea.vmem %s0, %s164
      %p166 = scmp.lt.s32.totalorder %s14, 7
      %s167 = scalar_select %p166, %s14, 7
      %s168 = smul.addr %s167, 64
      %s169 = smul.addr %s168, 8
      %s170 = scalar_lea.vmem %s3, %s169
      %v172 = vld [vmem:[%s165] sm:$0xff]
      %v173 = vld [vmem:[%s165 + $0x8] sm:$0xff]
      %v174 = vld [vmem:[%s165 + $0x10] sm:$0xff]
      %v175 = vld [vmem:[%s165 + $0x18] sm:$0xff]
      %v176 = vld [vmem:[%s165 + $0x20] sm:$0xff]
      %v177 = vld [vmem:[%s165 + $0x28] sm:$0xff]
      %v178 = vld [vmem:[%s165 + $0x30] sm:$0xff]
      %v179 = vld [vmem:[%s165 + $0x38] sm:$0xff]
      %v180 = vld [vmem:[%s165 + $0x40] sm:$0xff]
      %v181 = vld [vmem:[%s165 + $0x48] sm:$0xff]
      %v182 = vld [vmem:[%s165 + $0x50] sm:$0xff]
      %v183 = vld [vmem:[%s165 + $0x58] sm:$0xff]
      %v184 = vld [vmem:[%s165 + $0x60] sm:$0xff]
      %v185 = vld [vmem:[%s165 + $0x68] sm:$0xff]
      %v186 = vld [vmem:[%s165 + $0x70] sm:$0xff]
      %v187 = vld [vmem:[%s165 + $0x78] sm:$0xff]
      %v188 = vld [vmem:[%s165 + $0x80] sm:$0xff]
      %v189 = vld [vmem:[%s165 + $0x88] sm:$0xff]
      %v190 = vld [vmem:[%s165 + $0x90] sm:$0xff]
      %v191 = vld [vmem:[%s165 + $0x98] sm:$0xff]
      %v192 = vld [vmem:[%s165 + $0xa0] sm:$0xff]
      %v193 = vld [vmem:[%s165 + $0xa8] sm:$0xff]
      %v194 = vld [vmem:[%s165 + $0xb0] sm:$0xff]
      %v195 = vld [vmem:[%s165 + $0xb8] sm:$0xff]
      %v196 = vld [vmem:[%s165 + $0xc0] sm:$0xff]
      %v197 = vld [vmem:[%s165 + $0xc8] sm:$0xff]
      %v198 = vld [vmem:[%s165 + $0xd0] sm:$0xff]
      %v199 = vld [vmem:[%s165 + $0xd8] sm:$0xff]
      %v200 = vld [vmem:[%s165 + $0xe0] sm:$0xff]
      %v201 = vld [vmem:[%s165 + $0xe8] sm:$0xff]
      %v202 = vld [vmem:[%s165 + $0xf0] sm:$0xff]
      %v203 = vld [vmem:[%s165 + $0xf8] sm:$0xff]
      %v204 = vld [vmem:[%s165 + $0x100] sm:$0xff]
      %v205 = vld [vmem:[%s165 + $0x108] sm:$0xff]
      %v206 = vld [vmem:[%s165 + $0x110] sm:$0xff]
      %v207 = vld [vmem:[%s165 + $0x118] sm:$0xff]
      %v208 = vld [vmem:[%s165 + $0x120] sm:$0xff]
      %v209 = vld [vmem:[%s165 + $0x128] sm:$0xff]
      %v210 = vld [vmem:[%s165 + $0x130] sm:$0xff]
      %v211 = vld [vmem:[%s165 + $0x138] sm:$0xff]
      %v212 = vld [vmem:[%s165 + $0x140] sm:$0xff]
      %v213 = vld [vmem:[%s165 + $0x148] sm:$0xff]
      %v214 = vld [vmem:[%s165 + $0x150] sm:$0xff]
      %v215 = vld [vmem:[%s165 + $0x158] sm:$0xff]
      %v216 = vld [vmem:[%s165 + $0x160] sm:$0xff]
      %v217 = vld [vmem:[%s165 + $0x168] sm:$0xff]
      %v218 = vld [vmem:[%s165 + $0x170] sm:$0xff]
      %v219 = vld [vmem:[%s165 + $0x178] sm:$0xff]
      %v220 = vld [vmem:[%s165 + $0x180] sm:$0xff]
      %v221 = vld [vmem:[%s165 + $0x188] sm:$0xff]
      %v222 = vld [vmem:[%s165 + $0x190] sm:$0xff]
      %v223 = vld [vmem:[%s165 + $0x198] sm:$0xff]
      %v224 = vld [vmem:[%s165 + $0x1a0] sm:$0xff]
      %v225 = vld [vmem:[%s165 + $0x1a8] sm:$0xff]
      %v226 = vld [vmem:[%s165 + $0x1b0] sm:$0xff]
      %v227 = vld [vmem:[%s165 + $0x1b8] sm:$0xff]
      %v228 = vld [vmem:[%s165 + $0x1c0] sm:$0xff]
      %v229 = vld [vmem:[%s165 + $0x1c8] sm:$0xff]
      %v230 = vld [vmem:[%s165 + $0x1d0] sm:$0xff]
      %v231 = vld [vmem:[%s165 + $0x1d8] sm:$0xff]
      %v232 = vld [vmem:[%s165 + $0x1e0] sm:$0xff]
      %v233 = vld [vmem:[%s165 + $0x1e8] sm:$0xff]
      %v234 = vld [vmem:[%s165 + $0x1f0] sm:$0xff]
      %v235 = vld [vmem:[%s165 + $0x1f8] sm:$0xff]
      %v236 = vld [vmem:[%s165 + $0x200] sm:$0xff]
      %v237 = vld [vmem:[%s165 + $0x208] sm:$0xff]
      %v238 = vld [vmem:[%s165 + $0x210] sm:$0xff]
      %v239 = vld [vmem:[%s165 + $0x218] sm:$0xff]
      %v240 = vld [vmem:[%s165 + $0x220] sm:$0xff]
      %v241 = vld [vmem:[%s165 + $0x228] sm:$0xff]
      %v242 = vld [vmem:[%s165 + $0x230] sm:$0xff]
      %v243 = vld [vmem:[%s165 + $0x238] sm:$0xff]
      %v244 = vld [vmem:[%s165 + $0x240] sm:$0xff]
      %v245 = vld [vmem:[%s165 + $0x248] sm:$0xff]
      %v246 = vld [vmem:[%s165 + $0x250] sm:$0xff]
      %v247 = vld [vmem:[%s165 + $0x258] sm:$0xff]
      %v248 = vld [vmem:[%s165 + $0x260] sm:$0xff]
      %v249 = vld [vmem:[%s165 + $0x268] sm:$0xff]
      %v250 = vld [vmem:[%s165 + $0x270] sm:$0xff]
      %v251 = vld [vmem:[%s165 + $0x278] sm:$0xff]
      %v252 = vld [vmem:[%s165 + $0x280] sm:$0xff]
      %v253 = vld [vmem:[%s165 + $0x288] sm:$0xff]
      %v254 = vld [vmem:[%s165 + $0x290] sm:$0xff]
      %v255 = vld [vmem:[%s165 + $0x298] sm:$0xff]
      %v256 = vld [vmem:[%s165 + $0x2a0] sm:$0xff]
      %v257 = vld [vmem:[%s165 + $0x2a8] sm:$0xff]
      %v258 = vld [vmem:[%s165 + $0x2b0] sm:$0xff]
      %v259 = vld [vmem:[%s165 + $0x2b8] sm:$0xff]
      %v260 = vld [vmem:[%s165 + $0x2c0] sm:$0xff]
      %v261 = vld [vmem:[%s165 + $0x2c8] sm:$0xff]
      %v262 = vld [vmem:[%s165 + $0x2d0] sm:$0xff]
      %v263 = vld [vmem:[%s165 + $0x2d8] sm:$0xff]
      %v264 = vld [vmem:[%s165 + $0x2e0] sm:$0xff]
      %v265 = vld [vmem:[%s165 + $0x2e8] sm:$0xff]
      %v266 = vld [vmem:[%s165 + $0x2f0] sm:$0xff]
      %v267 = vld [vmem:[%s165 + $0x2f8] sm:$0xff]
      %v268 = vld [vmem:[%s165 + $0x300] sm:$0xff]
      %v269 = vld [vmem:[%s165 + $0x308] sm:$0xff]
      %v270 = vld [vmem:[%s165 + $0x310] sm:$0xff]
      %v271 = vld [vmem:[%s165 + $0x318] sm:$0xff]
      %v272 = vld [vmem:[%s165 + $0x320] sm:$0xff]
      %v273 = vld [vmem:[%s165 + $0x328] sm:$0xff]
      %v274 = vld [vmem:[%s165 + $0x330] sm:$0xff]
      %v275 = vld [vmem:[%s165 + $0x338] sm:$0xff]
      %v276 = vld [vmem:[%s165 + $0x340] sm:$0xff]
      %v277 = vld [vmem:[%s165 + $0x348] sm:$0xff]
      %v278 = vld [vmem:[%s165 + $0x350] sm:$0xff]
      %v279 = vld [vmem:[%s165 + $0x358] sm:$0xff]
      %v280 = vld [vmem:[%s2] sm:$0x1]
      %v282 = vperm.slane %v280, 0
      %v284 = vrot.slane %v172, 7
      %v285 = vrot.slane %v175, 7
      %v286 = vrot.slane %v178, 7
      %v287 = vrot.slane %v181, 7
      %v288 = vrot.slane %v184, 7
      %v289 = vrot.slane %v187, 7
      %v290 = vrot.slane %v190, 7
      %v291 = vrot.slane %v193, 7
      %v292 = vrot.slane %v196, 7
      %v293 = vrot.slane %v199, 7
      %v294 = vrot.slane %v202, 7
      %v295 = vrot.slane %v205, 7
      %v296 = vrot.slane %v208, 7
      %v297 = vrot.slane %v211, 7
      %v298 = vrot.slane %v214, 7
      %v299 = vrot.slane %v217, 7
      %v300 = vrot.slane %v220, 7
      %v301 = vrot.slane %v223, 7
      %v302 = vrot.slane %v226, 7
      %v303 = vrot.slane %v229, 7
      %v304 = vrot.slane %v232, 7
      %v305 = vrot.slane %v235, 7
      %v306 = vrot.slane %v238, 7
      %v307 = vrot.slane %v241, 7
      %v308 = vrot.slane %v244, 7
      %v309 = vrot.slane %v247, 7
      %v310 = vrot.slane %v250, 7
      %v311 = vrot.slane %v253, 7
      %v312 = vrot.slane %v256, 7
      %v313 = vrot.slane %v259, 7
      %v314 = vrot.slane %v262, 7
      %v315 = vrot.slane %v265, 7
      %v316 = vrot.slane %v268, 7
      %v317 = vrot.slane %v271, 7
      %v318 = vrot.slane %v274, 7
      %v319 = vrot.slane %v277, 7
      %v320 = vrot.slane %v173, 7
      %v321 = vrot.slane %v176, 7
      %v322 = vrot.slane %v179, 7
      %v323 = vrot.slane %v182, 7
      %v324 = vrot.slane %v185, 7
      %v325 = vrot.slane %v188, 7
      %v326 = vrot.slane %v191, 7
      %v327 = vrot.slane %v194, 7
      %v328 = vrot.slane %v197, 7
      %v329 = vrot.slane %v200, 7
      %v330 = vrot.slane %v203, 7
      %v331 = vrot.slane %v206, 7
      %v332 = vrot.slane %v209, 7
      %v333 = vrot.slane %v212, 7
      %v334 = vrot.slane %v215, 7
      %v335 = vrot.slane %v218, 7
      %v336 = vrot.slane %v221, 7
      %v337 = vrot.slane %v224, 7
      %v338 = vrot.slane %v227, 7
      %v339 = vrot.slane %v230, 7
      %v340 = vrot.slane %v233, 7
      %v341 = vrot.slane %v236, 7
      %v342 = vrot.slane %v239, 7
      %v343 = vrot.slane %v242, 7
      %v344 = vrot.slane %v245, 7
      %v345 = vrot.slane %v248, 7
      %v346 = vrot.slane %v251, 7
      %v347 = vrot.slane %v254, 7
      %v348 = vrot.slane %v257, 7
      %v349 = vrot.slane %v260, 7
      %v350 = vrot.slane %v263, 7
      %v351 = vrot.slane %v266, 7
      %v352 = vrot.slane %v269, 7
      %v353 = vrot.slane %v272, 7
      %v354 = vrot.slane %v275, 7
      %v355 = vrot.slane %v278, 7
      %v356 = vrot.slane %v174, 7
      %v357 = vrot.slane %v177, 7
      %v358 = vrot.slane %v180, 7
      %v359 = vrot.slane %v183, 7
      %v360 = vrot.slane %v186, 7
      %v361 = vrot.slane %v189, 7
      %v362 = vrot.slane %v192, 7
      %v363 = vrot.slane %v195, 7
      %v364 = vrot.slane %v198, 7
      %v365 = vrot.slane %v201, 7
      %v366 = vrot.slane %v204, 7
      %v367 = vrot.slane %v207, 7
      %v368 = vrot.slane %v210, 7
      %v369 = vrot.slane %v213, 7
      %v370 = vrot.slane %v216, 7
      %v371 = vrot.slane %v219, 7
      %v372 = vrot.slane %v222, 7
      %v373 = vrot.slane %v225, 7
      %v374 = vrot.slane %v228, 7
      %v375 = vrot.slane %v231, 7
      %v376 = vrot.slane %v234, 7
      %v377 = vrot.slane %v237, 7
      %v378 = vrot.slane %v240, 7
      %v379 = vrot.slane %v243, 7
      %v380 = vrot.slane %v246, 7
      %v381 = vrot.slane %v249, 7
      %v382 = vrot.slane %v252, 7
      %v383 = vrot.slane %v255, 7
      %v384 = vrot.slane %v258, 7
      %v385 = vrot.slane %v261, 7
      %v386 = vrot.slane %v264, 7
      %v387 = vrot.slane %v267, 7
      %v388 = vrot.slane %v270, 7
      %v389 = vrot.slane %v273, 7
      %v390 = vrot.slane %v276, 7
      %v391 = vrot.slane %v279, 7
      %v392 = vlaneseq
      %v393 = vshrl.u32 %v392, 7
      %vm394 = vcmp.lt.s32.totalorder %v393, 1
      %v395 = vsel %vm394, %v284, %v320
      %v396 = vsel %vm394, %v285, %v321
      %v397 = vsel %vm394, %v286, %v322
      %v398 = vsel %vm394, %v287, %v323
      %v399 = vsel %vm394, %v288, %v324
      %v400 = vsel %vm394, %v289, %v325
      %v401 = vsel %vm394, %v290, %v326
      %v402 = vsel %vm394, %v291, %v327
      %v403 = vsel %vm394, %v292, %v328
      %v404 = vsel %vm394, %v293, %v329
      %v405 = vsel %vm394, %v294, %v330
      %v406 = vsel %vm394, %v295, %v331
      %v407 = vsel %vm394, %v296, %v332
      %v408 = vsel %vm394, %v297, %v333
      %v409 = vsel %vm394, %v298, %v334
      %v410 = vsel %vm394, %v299, %v335
      %v411 = vsel %vm394, %v300, %v336
      %v412 = vsel %vm394, %v301, %v337
      %v413 = vsel %vm394, %v302, %v338
      %v414 = vsel %vm394, %v303, %v339
      %v415 = vsel %vm394, %v304, %v340
      %v416 = vsel %vm394, %v305, %v341
      %v417 = vsel %vm394, %v306, %v342
      %v418 = vsel %vm394, %v307, %v343
      %v419 = vsel %vm394, %v308, %v344
      %v420 = vsel %vm394, %v309, %v345
      %v421 = vsel %vm394, %v310, %v346
      %v422 = vsel %vm394, %v311, %v347
      %v423 = vsel %vm394, %v312, %v348
      %v424 = vsel %vm394, %v313, %v349
      %v425 = vsel %vm394, %v314, %v350
      %v426 = vsel %vm394, %v315, %v351
      %v427 = vsel %vm394, %v316, %v352
      %v428 = vsel %vm394, %v317, %v353
      %v429 = vsel %vm394, %v318, %v354
      %v430 = vsel %vm394, %v319, %v355
      %v431 = vsel %vm394, %v356, %v284
      %v432 = vsel %vm394, %v357, %v285
      %v433 = vsel %vm394, %v358, %v286
      %v434 = vsel %vm394, %v359, %v287
      %v435 = vsel %vm394, %v360, %v288
      %v436 = vsel %vm394, %v361, %v289
      %v437 = vsel %vm394, %v362, %v290
      %v438 = vsel %vm394, %v363, %v291
      %v439 = vsel %vm394, %v364, %v292
      %v440 = vsel %vm394, %v365, %v293
      %v441 = vsel %vm394, %v366, %v294
      %v442 = vsel %vm394, %v367, %v295
      %v443 = vsel %vm394, %v368, %v296
      %v444 = vsel %vm394, %v369, %v297
      %v445 = vsel %vm394, %v370, %v298
      %v446 = vsel %vm394, %v371, %v299
      %v447 = vsel %vm394, %v372, %v300
      %v448 = vsel %vm394, %v373, %v301
      %v449 = vsel %vm394, %v374, %v302
      %v450 = vsel %vm394, %v375, %v303
      %v451 = vsel %vm394, %v376, %v304
      %v452 = vsel %vm394, %v377, %v305
      %v453 = vsel %vm394, %v378, %v306
      %v454 = vsel %vm394, %v379, %v307
      %v455 = vsel %vm394, %v380, %v308
      %v456 = vsel %vm394, %v381, %v309
      %v457 = vsel %vm394, %v382, %v310
      %v458 = vsel %vm394, %v383, %v311
      %v459 = vsel %vm394, %v384, %v312
      %v460 = vsel %vm394, %v385, %v313
      %v461 = vsel %vm394, %v386, %v314
      %v462 = vsel %vm394, %v387, %v315
      %v463 = vsel %vm394, %v388, %v316
      %v464 = vsel %vm394, %v389, %v317
      %v465 = vsel %vm394, %v390, %v318
      %v466 = vsel %vm394, %v391, %v319
      %v467 = vpack.c.bf16 %v431, %v431
      %v468 = vpack.c.bf16 %v395, %v395
      %v469 = vpack.c.bf16 %v432, %v432
      %v470 = vpack.c.bf16 %v396, %v396
      %v471 = vpack.c.bf16 %v433, %v433
      %v472 = vpack.c.bf16 %v397, %v397
      %v473 = vpack.c.bf16 %v434, %v434
      %v474 = vpack.c.bf16 %v398, %v398
      %v475 = vpack.c.bf16 %v435, %v435
      %v476 = vpack.c.bf16 %v399, %v399
      %v477 = vpack.c.bf16 %v436, %v436
      %v478 = vpack.c.bf16 %v400, %v400
      %v479 = vpack.c.bf16 %v437, %v437
      %v480 = vpack.c.bf16 %v401, %v401
      %v481 = vpack.c.bf16 %v438, %v438
      %v482 = vpack.c.bf16 %v402, %v402
      %v483 = vpack.c.bf16 %v439, %v439
      %v484 = vpack.c.bf16 %v403, %v403
      %v485 = vpack.c.bf16 %v440, %v440
      %v486 = vpack.c.bf16 %v404, %v404
      %v487 = vpack.c.bf16 %v441, %v441
      %v488 = vpack.c.bf16 %v405, %v405
      %v489 = vpack.c.bf16 %v442, %v442
      %v490 = vpack.c.bf16 %v406, %v406
      %v491 = vpack.c.bf16 %v443, %v443
      %v492 = vpack.c.bf16 %v407, %v407
      %v493 = vpack.c.bf16 %v444, %v444
      %v494 = vpack.c.bf16 %v408, %v408
      %v495 = vpack.c.bf16 %v445, %v445
      %v496 = vpack.c.bf16 %v409, %v409
      %v497 = vpack.c.bf16 %v446, %v446
      %v498 = vpack.c.bf16 %v410, %v410
      %v499 = vpack.c.bf16 %v447, %v447
      %v500 = vpack.c.bf16 %v411, %v411
      %v501 = vpack.c.bf16 %v448, %v448
      %v502 = vpack.c.bf16 %v412, %v412
      %v503 = vpack.c.bf16 %v449, %v449
      %v504 = vpack.c.bf16 %v413, %v413
      %v505 = vpack.c.bf16 %v450, %v450
      %v506 = vpack.c.bf16 %v414, %v414
      %v507 = vpack.c.bf16 %v451, %v451
      %v508 = vpack.c.bf16 %v415, %v415
      %v509 = vpack.c.bf16 %v452, %v452
      %v510 = vpack.c.bf16 %v416, %v416
      %v511 = vpack.c.bf16 %v453, %v453
      %v512 = vpack.c.bf16 %v417, %v417
      %v513 = vpack.c.bf16 %v454, %v454
      %v514 = vpack.c.bf16 %v418, %v418
      %v515 = vpack.c.bf16 %v455, %v455
      %v516 = vpack.c.bf16 %v419, %v419
      %v517 = vpack.c.bf16 %v456, %v456
      %v518 = vpack.c.bf16 %v420, %v420
      %v519 = vpack.c.bf16 %v457, %v457
      %v520 = vpack.c.bf16 %v421, %v421
      %v521 = vpack.c.bf16 %v458, %v458
      %v522 = vpack.c.bf16 %v422, %v422
      %v523 = vpack.c.bf16 %v459, %v459
      %v524 = vpack.c.bf16 %v423, %v423
      %v525 = vpack.c.bf16 %v460, %v460
      %v526 = vpack.c.bf16 %v424, %v424
      %v527 = vpack.c.bf16 %v461, %v461
      %v528 = vpack.c.bf16 %v425, %v425
      %v529 = vpack.c.bf16 %v462, %v462
      %v530 = vpack.c.bf16 %v426, %v426
      %v531 = vpack.c.bf16 %v463, %v463
      %v532 = vpack.c.bf16 %v427, %v427
      %v533 = vpack.c.bf16 %v464, %v464
      %v534 = vpack.c.bf16 %v428, %v428
      %v535 = vpack.c.bf16 %v465, %v465
      %v536 = vpack.c.bf16 %v429, %v429
      %v537 = vpack.c.bf16 %v466, %v466
      %v538 = vpack.c.bf16 %v430, %v430
      %v539 = vld [vmem:[%s1] sm:$0x3]
      %v604 = vunpack.c.l.b16 %v467
      %v605 = vunpack.c.l.b16 %v468
      %v606 = vunpack.c.l.b16 %v469
      %v607 = vunpack.c.l.b16 %v470
      %v608 = vunpack.c.l.b16 %v471
      %v609 = vunpack.c.l.b16 %v472
      %v610 = vunpack.c.l.b16 %v473
      %v611 = vunpack.c.l.b16 %v474
      %v612 = vunpack.c.l.b16 %v475
      %v613 = vunpack.c.l.b16 %v476
      %v614 = vunpack.c.l.b16 %v477
      %v615 = vunpack.c.l.b16 %v478
      %v616 = vunpack.c.l.b16 %v479
      %v617 = vunpack.c.l.b16 %v480
      %v618 = vunpack.c.l.b16 %v481
      %v619 = vunpack.c.l.b16 %v482
      %v620 = vunpack.c.l.b16 %v483
      %v621 = vunpack.c.l.b16 %v484
      %v622 = vunpack.c.l.b16 %v485
      %v623 = vunpack.c.l.b16 %v486
      %v624 = vunpack.c.l.b16 %v487
      %v625 = vunpack.c.l.b16 %v488
      %v626 = vunpack.c.l.b16 %v489
      %v627 = vunpack.c.l.b16 %v490
      %v628 = vunpack.c.l.b16 %v491
      %v629 = vunpack.c.l.b16 %v492
      %v630 = vunpack.c.l.b16 %v493
      %v631 = vunpack.c.l.b16 %v494
      %v632 = vunpack.c.l.b16 %v495
      %v633 = vunpack.c.l.b16 %v496
      %v634 = vunpack.c.l.b16 %v497
      %v635 = vunpack.c.l.b16 %v498
      %v636 = vunpack.c.l.b16 %v503
      %v637 = vunpack.c.l.b16 %v504
      %v638 = vunpack.c.l.b16 %v505
      %v639 = vunpack.c.l.b16 %v506
      %v640 = vunpack.c.l.b16 %v507
      %v641 = vunpack.c.l.b16 %v508
      %v642 = vunpack.c.l.b16 %v509
      %v643 = vunpack.c.l.b16 %v510
      %v644 = vunpack.c.l.b16 %v511
      %v645 = vunpack.c.l.b16 %v512
      %v646 = vunpack.c.l.b16 %v513
      %v647 = vunpack.c.l.b16 %v514
      %v648 = vunpack.c.l.b16 %v515
      %v649 = vunpack.c.l.b16 %v516
      %v650 = vunpack.c.l.b16 %v517
      %v651 = vunpack.c.l.b16 %v518
      %v652 = vunpack.c.l.b16 %v519
      %v653 = vunpack.c.l.b16 %v520
      %v654 = vunpack.c.l.b16 %v521
      %v655 = vunpack.c.l.b16 %v522
      %v656 = vunpack.c.l.b16 %v523
      %v657 = vunpack.c.l.b16 %v524
      %v658 = vunpack.c.l.b16 %v525
      %v659 = vunpack.c.l.b16 %v526
      %v660 = vunpack.c.l.b16 %v527
      %v661 = vunpack.c.l.b16 %v528
      %v662 = vunpack.c.l.b16 %v529
      %v663 = vunpack.c.l.b16 %v530
      %v664 = vunpack.c.l.b16 %v531
      %v665 = vunpack.c.l.b16 %v532
      %v666 = vunpack.c.l.b16 %v533
      %v667 = vunpack.c.l.b16 %v534
      %v668 = vpack.c.b16 %v605, %v604
      %v669 = vpack.c.b16 %v607, %v606
      %v670 = vpack.c.b16 %v609, %v608
      %v671 = vpack.c.b16 %v611, %v610
      %v672 = vpack.c.b16 %v613, %v612
      %v673 = vpack.c.b16 %v615, %v614
      %v674 = vpack.c.b16 %v617, %v616
      %v675 = vpack.c.b16 %v619, %v618
      %v676 = vpack.c.b16 %v621, %v620
      %v677 = vpack.c.b16 %v623, %v622
      %v678 = vpack.c.b16 %v625, %v624
      %v679 = vpack.c.b16 %v627, %v626
      %v680 = vpack.c.b16 %v629, %v628
      %v681 = vpack.c.b16 %v631, %v630
      %v682 = vpack.c.b16 %v633, %v632
      %v683 = vpack.c.b16 %v635, %v634
      %v684 = vpack.c.b16 %v637, %v636
      %v685 = vpack.c.b16 %v639, %v638
      %v686 = vpack.c.b16 %v641, %v640
      %v687 = vpack.c.b16 %v643, %v642
      %v688 = vpack.c.b16 %v645, %v644
      %v689 = vpack.c.b16 %v647, %v646
      %v690 = vpack.c.b16 %v649, %v648
      %v691 = vpack.c.b16 %v651, %v650
      %v692 = vpack.c.b16 %v653, %v652
      %v693 = vpack.c.b16 %v655, %v654
      %v694 = vpack.c.b16 %v657, %v656
      %v695 = vpack.c.b16 %v659, %v658
      %v696 = vpack.c.b16 %v661, %v660
      %v697 = vpack.c.b16 %v663, %v662
      %v698 = vpack.c.b16 %v665, %v664
      %v699 = vpack.c.b16 %v667, %v666
      %vm700 = vcmask 31744
      %v702 = vsel %vm700, %v668, 0
      %v705 = vsel %vm700, %v669, 0
      %v708 = vsel %vm700, %v670, 0
      %v711 = vsel %vm700, %v671, 0
      %v714 = vsel %vm700, %v672, 0
      %v717 = vsel %vm700, %v673, 0
      %v720 = vsel %vm700, %v674, 0
      %v723 = vsel %vm700, %v675, 0
      %v726 = vsel %vm700, %v676, 0
      %v729 = vsel %vm700, %v677, 0
      %v732 = vsel %vm700, %v678, 0
      %v735 = vsel %vm700, %v679, 0
      %v738 = vsel %vm700, %v680, 0
      %v741 = vsel %vm700, %v681, 0
      %v744 = vsel %vm700, %v682, 0
      %v747 = vsel %vm700, %v683, 0
      %v750 = vsel %vm700, %v684, 0
      %v753 = vsel %vm700, %v685, 0
      %v756 = vsel %vm700, %v686, 0
      %v759 = vsel %vm700, %v687, 0
      %v762 = vsel %vm700, %v688, 0
      %v765 = vsel %vm700, %v689, 0
      %v768 = vsel %vm700, %v690, 0
      %v771 = vsel %vm700, %v691, 0
      %v774 = vsel %vm700, %v692, 0
      %v777 = vsel %vm700, %v693, 0
      %v780 = vsel %vm700, %v694, 0
      %v783 = vsel %vm700, %v695, 0
      %v786 = vsel %vm700, %v696, 0
      %v789 = vsel %vm700, %v697, 0
      %v792 = vsel %vm700, %v698, 0
      %v795 = vsel %vm700, %v699, 0
      %vm797 = vcmask 1041408
      %v799 = vsel %vm797, %v539, 0
      %801 = vmatpush.bf16.msra.mxu0 0
      %802 = vmatpush.bf16.msra.mxu0 0
      %803 = vmatpush.bf16.msra.mxu0 0
      %804 = vmatpush.bf16.msra.mxu0 0
      %805 = vmatpush.bf16.msra.mxu0 0
      %806 = vmatpush.bf16.msra.mxu0 0
      %807 = vmatpush.bf16.msra.mxu0 0
      %808 = vmatpush.bf16.msra.mxu0 %v799
      %809 = vmatmul.bf16.gmra.mxu0 %v702
      %v810 = vpop.f32.mrf.mxu0
      %v811 = vadd.f32 0.0, %v810
      %v812 = vpop.f32.mrf.mxu0
      %v813 = vadd.f32 0.0, %v812
      %814 = vmatmul.bf16.gmra.mxu0 %v705
      %v815 = vpop.f32.mrf.mxu0
      %v816 = vadd.f32 0.0, %v815
      %v817 = vpop.f32.mrf.mxu0
      %v818 = vadd.f32 0.0, %v817
      %819 = vmatmul.bf16.gmra.mxu0 %v708
      %v820 = vpop.f32.mrf.mxu0
      %v821 = vadd.f32 0.0, %v820
      %v822 = vpop.f32.mrf.mxu0
      %v823 = vadd.f32 0.0, %v822
      %824 = vmatmul.bf16.gmra.mxu0 %v711
      %v825 = vpop.f32.mrf.mxu0
      %v826 = vadd.f32 0.0, %v825
      %v827 = vpop.f32.mrf.mxu0
      %v828 = vadd.f32 0.0, %v827
      %829 = vmatmul.bf16.gmra.mxu0 %v714
      %v830 = vpop.f32.mrf.mxu0
      %v831 = vadd.f32 0.0, %v830
      %v832 = vpop.f32.mrf.mxu0
      %v833 = vadd.f32 0.0, %v832
      %834 = vmatmul.bf16.gmra.mxu0 %v717
      %v835 = vpop.f32.mrf.mxu0
      %v836 = vadd.f32 0.0, %v835
      %v837 = vpop.f32.mrf.mxu0
      %v838 = vadd.f32 0.0, %v837
      %839 = vmatmul.bf16.gmra.mxu0 %v720
      %v840 = vpop.f32.mrf.mxu0
      %v841 = vadd.f32 0.0, %v840
      %v842 = vpop.f32.mrf.mxu0
      %v843 = vadd.f32 0.0, %v842
      %844 = vmatmul.bf16.gmra.mxu0 %v723
      %v845 = vpop.f32.mrf.mxu0
      %v846 = vadd.f32 0.0, %v845
      %v847 = vpop.f32.mrf.mxu0
      %v848 = vadd.f32 0.0, %v847
      %849 = vmatmul.bf16.gmra.mxu0 %v726
      %v850 = vpop.f32.mrf.mxu0
      %v851 = vadd.f32 0.0, %v850
      %v852 = vpop.f32.mrf.mxu0
      %v853 = vadd.f32 0.0, %v852
      %854 = vmatmul.bf16.gmra.mxu0 %v729
      %v855 = vpop.f32.mrf.mxu0
      %v856 = vadd.f32 0.0, %v855
      %v857 = vpop.f32.mrf.mxu0
      %v858 = vadd.f32 0.0, %v857
      %859 = vmatmul.bf16.gmra.mxu0 %v732
      %v860 = vpop.f32.mrf.mxu0
      %v861 = vadd.f32 0.0, %v860
      %v862 = vpop.f32.mrf.mxu0
      %v863 = vadd.f32 0.0, %v862
      %864 = vmatmul.bf16.gmra.mxu0 %v735
      %v865 = vpop.f32.mrf.mxu0
      %v866 = vadd.f32 0.0, %v865
      %v867 = vpop.f32.mrf.mxu0
      %v868 = vadd.f32 0.0, %v867
      %869 = vmatmul.bf16.gmra.mxu0 %v738
      %v870 = vpop.f32.mrf.mxu0
      %v871 = vadd.f32 0.0, %v870
      %v872 = vpop.f32.mrf.mxu0
      %v873 = vadd.f32 0.0, %v872
      %874 = vmatmul.bf16.gmra.mxu0 %v741
      %v875 = vpop.f32.mrf.mxu0
      %v876 = vadd.f32 0.0, %v875
      %v877 = vpop.f32.mrf.mxu0
      %v878 = vadd.f32 0.0, %v877
      %879 = vmatmul.bf16.gmra.mxu0 %v744
      %v880 = vpop.f32.mrf.mxu0
      %v881 = vadd.f32 0.0, %v880
      %v882 = vpop.f32.mrf.mxu0
      %v883 = vadd.f32 0.0, %v882
      %884 = vmatmul.bf16.gmra.mxu0 %v747
      %v885 = vpop.f32.mrf.mxu0
      %v886 = vadd.f32 0.0, %v885
      %v887 = vpop.f32.mrf.mxu0
      %v888 = vadd.f32 0.0, %v887
      %889 = vmatmul.bf16.gmra.mxu0 %v750
      %v890 = vpop.f32.mrf.mxu0
      %v891 = vadd.f32 0.0, %v890
      %v892 = vpop.f32.mrf.mxu0
      %v893 = vadd.f32 0.0, %v892
      %894 = vmatmul.bf16.gmra.mxu0 %v753
      %v895 = vpop.f32.mrf.mxu0
      %v896 = vadd.f32 0.0, %v895
      %v897 = vpop.f32.mrf.mxu0
      %v898 = vadd.f32 0.0, %v897
      %899 = vmatmul.bf16.gmra.mxu0 %v756
      %v900 = vpop.f32.mrf.mxu0
      %v901 = vadd.f32 0.0, %v900
      %v902 = vpop.f32.mrf.mxu0
      %v903 = vadd.f32 0.0, %v902
      %904 = vmatmul.bf16.gmra.mxu0 %v759
      %v905 = vpop.f32.mrf.mxu0
      %v906 = vadd.f32 0.0, %v905
      %v907 = vpop.f32.mrf.mxu0
      %v908 = vadd.f32 0.0, %v907
      %909 = vmatmul.bf16.gmra.mxu0 %v762
      %v910 = vpop.f32.mrf.mxu0
      %v911 = vadd.f32 0.0, %v910
      %v912 = vpop.f32.mrf.mxu0
      %v913 = vadd.f32 0.0, %v912
      %914 = vmatmul.bf16.gmra.mxu0 %v765
      %v915 = vpop.f32.mrf.mxu0
      %v916 = vadd.f32 0.0, %v915
      %v917 = vpop.f32.mrf.mxu0
      %v918 = vadd.f32 0.0, %v917
      %919 = vmatmul.bf16.gmra.mxu0 %v768
      %v920 = vpop.f32.mrf.mxu0
      %v921 = vadd.f32 0.0, %v920
      %v922 = vpop.f32.mrf.mxu0
      %v923 = vadd.f32 0.0, %v922
      %924 = vmatmul.bf16.gmra.mxu0 %v771
      %v925 = vpop.f32.mrf.mxu0
      %v926 = vadd.f32 0.0, %v925
      %v927 = vpop.f32.mrf.mxu0
      %v928 = vadd.f32 0.0, %v927
      %929 = vmatmul.bf16.gmra.mxu0 %v774
      %v930 = vpop.f32.mrf.mxu0
      %v931 = vadd.f32 0.0, %v930
      %v932 = vpop.f32.mrf.mxu0
      %v933 = vadd.f32 0.0, %v932
      %934 = vmatmul.bf16.gmra.mxu0 %v777
      %v935 = vpop.f32.mrf.mxu0
      %v936 = vadd.f32 0.0, %v935
      %v937 = vpop.f32.mrf.mxu0
      %v938 = vadd.f32 0.0, %v937
      %939 = vmatmul.bf16.gmra.mxu0 %v780
      %v940 = vpop.f32.mrf.mxu0
      %v941 = vadd.f32 0.0, %v940
      %v942 = vpop.f32.mrf.mxu0
      %v943 = vadd.f32 0.0, %v942
      %944 = vmatmul.bf16.gmra.mxu0 %v783
      %v945 = vpop.f32.mrf.mxu0
      %v946 = vadd.f32 0.0, %v945
      %v947 = vpop.f32.mrf.mxu0
      %v948 = vadd.f32 0.0, %v947
      %949 = vmatmul.bf16.gmra.mxu0 %v786
      %v950 = vpop.f32.mrf.mxu0
      %v951 = vadd.f32 0.0, %v950
      %v952 = vpop.f32.mrf.mxu0
      %v953 = vadd.f32 0.0, %v952
      %954 = vmatmul.bf16.gmra.mxu0 %v789
      %v955 = vpop.f32.mrf.mxu0
      %v956 = vadd.f32 0.0, %v955
      %v957 = vpop.f32.mrf.mxu0
      %v958 = vadd.f32 0.0, %v957
      %959 = vmatmul.bf16.gmra.mxu0 %v792
      %v960 = vpop.f32.mrf.mxu0
      %v961 = vadd.f32 0.0, %v960
      %v962 = vpop.f32.mrf.mxu0
      %v963 = vadd.f32 0.0, %v962
      %964 = vmatmul.bf16.gmra.mxu0 %v795
      %v965 = vpop.f32.mrf.mxu0
      %v966 = vadd.f32 0.0, %v965
      %v967 = vpop.f32.mrf.mxu0
      %v968 = vadd.f32 0.0, %v967
      %969 = vdwg.mxu0
      %v970 = vadd.f32 %v282, %v811
      %v971 = vadd.f32 %v282, %v813
      %v972 = vadd.f32 %v282, %v816
      %v973 = vadd.f32 %v282, %v818
      %v974 = vadd.f32 %v282, %v821
      %v975 = vadd.f32 %v282, %v823
      %v976 = vadd.f32 %v282, %v826
      %v977 = vadd.f32 %v282, %v828
      %v978 = vadd.f32 %v282, %v831
      %v979 = vadd.f32 %v282, %v833
      %v980 = vadd.f32 %v282, %v836
      %v981 = vadd.f32 %v282, %v838
      %v982 = vadd.f32 %v282, %v841
      %v983 = vadd.f32 %v282, %v843
      %v984 = vadd.f32 %v282, %v846
      %v985 = vadd.f32 %v282, %v848
      %v986 = vadd.f32 %v282, %v851
      %v987 = vadd.f32 %v282, %v853
      %v988 = vadd.f32 %v282, %v856
      %v989 = vadd.f32 %v282, %v858
      %v990 = vadd.f32 %v282, %v861
      %v991 = vadd.f32 %v282, %v863
      %v992 = vadd.f32 %v282, %v866
      %v993 = vadd.f32 %v282, %v868
      %v994 = vadd.f32 %v282, %v871
      %v995 = vadd.f32 %v282, %v873
      %v996 = vadd.f32 %v282, %v876
      %v997 = vadd.f32 %v282, %v878
      %v998 = vadd.f32 %v282, %v881
      %v999 = vadd.f32 %v282, %v883
      %v1000 = vadd.f32 %v282, %v886
      %v1001 = vadd.f32 %v282, %v888
      %v1002 = vadd.f32 %v282, %v891
      %v1003 = vadd.f32 %v282, %v893
      %v1004 = vadd.f32 %v282, %v896
      %v1005 = vadd.f32 %v282, %v898
      %v1006 = vadd.f32 %v282, %v901
      %v1007 = vadd.f32 %v282, %v903
      %v1008 = vadd.f32 %v282, %v906
      %v1009 = vadd.f32 %v282, %v908
      %v1010 = vadd.f32 %v282, %v911
      %v1011 = vadd.f32 %v282, %v913
      %v1012 = vadd.f32 %v282, %v916
      %v1013 = vadd.f32 %v282, %v918
      %v1014 = vadd.f32 %v282, %v921
      %v1015 = vadd.f32 %v282, %v923
      %v1016 = vadd.f32 %v282, %v926
      %v1017 = vadd.f32 %v282, %v928
      %v1018 = vadd.f32 %v282, %v931
      %v1019 = vadd.f32 %v282, %v933
      %v1020 = vadd.f32 %v282, %v936
      %v1021 = vadd.f32 %v282, %v938
      %v1022 = vadd.f32 %v282, %v941
      %v1023 = vadd.f32 %v282, %v943
      %v1024 = vadd.f32 %v282, %v946
      %v1025 = vadd.f32 %v282, %v948
      %v1026 = vadd.f32 %v282, %v951
      %v1027 = vadd.f32 %v282, %v953
      %v1028 = vadd.f32 %v282, %v956
      %v1029 = vadd.f32 %v282, %v958
      %v1030 = vadd.f32 %v282, %v961
      %v1031 = vadd.f32 %v282, %v963
      %v1032 = vadd.f32 %v282, %v966
      %v1033 = vadd.f32 %v282, %v968
      %s1034 = scalar_lea.vmem %s1, 6
      %v1035 = vld [vmem:[%s1034] sm:$0x3]
      %v1040 = vunpack.c.l.b16 %v499
      %v1041 = vunpack.c.l.b16 %v500
      %v1042 = vunpack.c.l.b16 %v535
      %v1043 = vunpack.c.l.b16 %v536
      %v1044 = vpack.c.b16 %v1041, %v1040
      %v1045 = vpack.c.b16 %v1043, %v1042
      %v1047 = vsel %vm700, %v1044, 0
      %v1050 = vsel %vm700, %v1045, 0
      %v1053 = vsel %vm797, %v1035, 0
      %1055 = vmatpush.bf16.msra.mxu0 0
      %1056 = vmatpush.bf16.msra.mxu0 0
      %1057 = vmatpush.bf16.msra.mxu0 0
      %1058 = vmatpush.bf16.msra.mxu0 0
      %1059 = vmatpush.bf16.msra.mxu0 0
      %1060 = vmatpush.bf16.msra.mxu0 0
      %1061 = vmatpush.bf16.msra.mxu0 0
      %1062 = vmatpush.bf16.msra.mxu0 %v1053
      %1063 = vmatmul.bf16.gmra.mxu0 %v705
      %v1064 = vpop.f32.mrf.mxu0
      %v1065 = vadd.f32 0.0, %v1064
      %v1066 = vpop.f32.mrf.mxu0
      %v1067 = vadd.f32 0.0, %v1066
      %1068 = vmatmul.bf16.gmra.mxu0 %v708
      %v1069 = vpop.f32.mrf.mxu0
      %v1070 = vadd.f32 0.0, %v1069
      %v1071 = vpop.f32.mrf.mxu0
      %v1072 = vadd.f32 0.0, %v1071
      %1073 = vmatmul.bf16.gmra.mxu0 %v711
      %v1074 = vpop.f32.mrf.mxu0
      %v1075 = vadd.f32 0.0, %v1074
      %v1076 = vpop.f32.mrf.mxu0
      %v1077 = vadd.f32 0.0, %v1076
      %1078 = vmatmul.bf16.gmra.mxu0 %v714
      %v1079 = vpop.f32.mrf.mxu0
      %v1080 = vadd.f32 0.0, %v1079
      %v1081 = vpop.f32.mrf.mxu0
      %v1082 = vadd.f32 0.0, %v1081
      %1083 = vmatmul.bf16.gmra.mxu0 %v717
      %v1084 = vpop.f32.mrf.mxu0
      %v1085 = vadd.f32 0.0, %v1084
      %v1086 = vpop.f32.mrf.mxu0
      %v1087 = vadd.f32 0.0, %v1086
      %1088 = vmatmul.bf16.gmra.mxu0 %v720
      %v1089 = vpop.f32.mrf.mxu0
      %v1090 = vadd.f32 0.0, %v1089
      %v1091 = vpop.f32.mrf.mxu0
      %v1092 = vadd.f32 0.0, %v1091
      %1093 = vmatmul.bf16.gmra.mxu0 %v723
      %v1094 = vpop.f32.mrf.mxu0
      %v1095 = vadd.f32 0.0, %v1094
      %v1096 = vpop.f32.mrf.mxu0
      %v1097 = vadd.f32 0.0, %v1096
      %1098 = vmatmul.bf16.gmra.mxu0 %v726
      %v1099 = vpop.f32.mrf.mxu0
      %v1100 = vadd.f32 0.0, %v1099
      %v1101 = vpop.f32.mrf.mxu0
      %v1102 = vadd.f32 0.0, %v1101
      %1103 = vmatmul.bf16.gmra.mxu0 %v729
      %v1104 = vpop.f32.mrf.mxu0
      %v1105 = vadd.f32 0.0, %v1104
      %v1106 = vpop.f32.mrf.mxu0
      %v1107 = vadd.f32 0.0, %v1106
      %1108 = vmatmul.bf16.gmra.mxu0 %v732
      %v1109 = vpop.f32.mrf.mxu0
      %v1110 = vadd.f32 0.0, %v1109
      %v1111 = vpop.f32.mrf.mxu0
      %v1112 = vadd.f32 0.0, %v1111
      %1113 = vmatmul.bf16.gmra.mxu0 %v735
      %v1114 = vpop.f32.mrf.mxu0
      %v1115 = vadd.f32 0.0, %v1114
      %v1116 = vpop.f32.mrf.mxu0
      %v1117 = vadd.f32 0.0, %v1116
      %1118 = vmatmul.bf16.gmra.mxu0 %v738
      %v1119 = vpop.f32.mrf.mxu0
      %v1120 = vadd.f32 0.0, %v1119
      %v1121 = vpop.f32.mrf.mxu0
      %v1122 = vadd.f32 0.0, %v1121
      %1123 = vmatmul.bf16.gmra.mxu0 %v741
      %v1124 = vpop.f32.mrf.mxu0
      %v1125 = vadd.f32 0.0, %v1124
      %v1126 = vpop.f32.mrf.mxu0
      %v1127 = vadd.f32 0.0, %v1126
      %1128 = vmatmul.bf16.gmra.mxu0 %v744
      %v1129 = vpop.f32.mrf.mxu0
      %v1130 = vadd.f32 0.0, %v1129
      %v1131 = vpop.f32.mrf.mxu0
      %v1132 = vadd.f32 0.0, %v1131
      %1133 = vmatmul.bf16.gmra.mxu0 %v747
      %v1134 = vpop.f32.mrf.mxu0
      %v1135 = vadd.f32 0.0, %v1134
      %v1136 = vpop.f32.mrf.mxu0
      %v1137 = vadd.f32 0.0, %v1136
      %1138 = vmatmul.bf16.gmra.mxu0 %v1047
      %v1139 = vpop.f32.mrf.mxu0
      %v1140 = vadd.f32 0.0, %v1139
      %v1141 = vpop.f32.mrf.mxu0
      %v1142 = vadd.f32 0.0, %v1141
      %1143 = vmatmul.bf16.gmra.mxu0 %v753
      %v1144 = vpop.f32.mrf.mxu0
      %v1145 = vadd.f32 0.0, %v1144
      %v1146 = vpop.f32.mrf.mxu0
      %v1147 = vadd.f32 0.0, %v1146
      %1148 = vmatmul.bf16.gmra.mxu0 %v756
      %v1149 = vpop.f32.mrf.mxu0
      %v1150 = vadd.f32 0.0, %v1149
      %v1151 = vpop.f32.mrf.mxu0
      %v1152 = vadd.f32 0.0, %v1151
      %1153 = vmatmul.bf16.gmra.mxu0 %v759
      %v1154 = vpop.f32.mrf.mxu0
      %v1155 = vadd.f32 0.0, %v1154
      %v1156 = vpop.f32.mrf.mxu0
      %v1157 = vadd.f32 0.0, %v1156
      %1158 = vmatmul.bf16.gmra.mxu0 %v762
      %v1159 = vpop.f32.mrf.mxu0
      %v1160 = vadd.f32 0.0, %v1159
      %v1161 = vpop.f32.mrf.mxu0
      %v1162 = vadd.f32 0.0, %v1161
      %1163 = vmatmul.bf16.gmra.mxu0 %v765
      %v1164 = vpop.f32.mrf.mxu0
      %v1165 = vadd.f32 0.0, %v1164
      %v1166 = vpop.f32.mrf.mxu0
      %v1167 = vadd.f32 0.0, %v1166
      %1168 = vmatmul.bf16.gmra.mxu0 %v768
      %v1169 = vpop.f32.mrf.mxu0
      %v1170 = vadd.f32 0.0, %v1169
      %v1171 = vpop.f32.mrf.mxu0
      %v1172 = vadd.f32 0.0, %v1171
      %1173 = vmatmul.bf16.gmra.mxu0 %v771
      %v1174 = vpop.f32.mrf.mxu0
      %v1175 = vadd.f32 0.0, %v1174
      %v1176 = vpop.f32.mrf.mxu0
      %v1177 = vadd.f32 0.0, %v1176
      %1178 = vmatmul.bf16.gmra.mxu0 %v774
      %v1179 = vpop.f32.mrf.mxu0
      %v1180 = vadd.f32 0.0, %v1179
      %v1181 = vpop.f32.mrf.mxu0
      %v1182 = vadd.f32 0.0, %v1181
      %1183 = vmatmul.bf16.gmra.mxu0 %v777
      %v1184 = vpop.f32.mrf.mxu0
      %v1185 = vadd.f32 0.0, %v1184
      %v1186 = vpop.f32.mrf.mxu0
      %v1187 = vadd.f32 0.0, %v1186
      %1188 = vmatmul.bf16.gmra.mxu0 %v780
      %v1189 = vpop.f32.mrf.mxu0
      %v1190 = vadd.f32 0.0, %v1189
      %v1191 = vpop.f32.mrf.mxu0
      %v1192 = vadd.f32 0.0, %v1191
      %1193 = vmatmul.bf16.gmra.mxu0 %v783
      %v1194 = vpop.f32.mrf.mxu0
      %v1195 = vadd.f32 0.0, %v1194
      %v1196 = vpop.f32.mrf.mxu0
      %v1197 = vadd.f32 0.0, %v1196
      %1198 = vmatmul.bf16.gmra.mxu0 %v786
      %v1199 = vpop.f32.mrf.mxu0
      %v1200 = vadd.f32 0.0, %v1199
      %v1201 = vpop.f32.mrf.mxu0
      %v1202 = vadd.f32 0.0, %v1201
      %1203 = vmatmul.bf16.gmra.mxu0 %v789
      %v1204 = vpop.f32.mrf.mxu0
      %v1205 = vadd.f32 0.0, %v1204
      %v1206 = vpop.f32.mrf.mxu0
      %v1207 = vadd.f32 0.0, %v1206
      %1208 = vmatmul.bf16.gmra.mxu0 %v792
      %v1209 = vpop.f32.mrf.mxu0
      %v1210 = vadd.f32 0.0, %v1209
      %v1211 = vpop.f32.mrf.mxu0
      %v1212 = vadd.f32 0.0, %v1211
      %1213 = vmatmul.bf16.gmra.mxu0 %v795
      %v1214 = vpop.f32.mrf.mxu0
      %v1215 = vadd.f32 0.0, %v1214
      %v1216 = vpop.f32.mrf.mxu0
      %v1217 = vadd.f32 0.0, %v1216
      %1218 = vmatmul.bf16.gmra.mxu0 %v1050
      %v1219 = vpop.f32.mrf.mxu0
      %v1220 = vadd.f32 0.0, %v1219
      %v1221 = vpop.f32.mrf.mxu0
      %v1222 = vadd.f32 0.0, %v1221
      %1223 = vdwg.mxu0
      %v1224 = vadd.f32 %v970, %v1065
      %v1225 = vadd.f32 %v971, %v1067
      %v1226 = vadd.f32 %v972, %v1070
      %v1227 = vadd.f32 %v973, %v1072
      %v1228 = vadd.f32 %v974, %v1075
      %v1229 = vadd.f32 %v975, %v1077
      %v1230 = vadd.f32 %v976, %v1080
      %v1231 = vadd.f32 %v977, %v1082
      %v1232 = vadd.f32 %v978, %v1085
      %v1233 = vadd.f32 %v979, %v1087
      %v1234 = vadd.f32 %v980, %v1090
      %v1235 = vadd.f32 %v981, %v1092
      %v1236 = vadd.f32 %v982, %v1095
      %v1237 = vadd.f32 %v983, %v1097
      %v1238 = vadd.f32 %v984, %v1100
      %v1239 = vadd.f32 %v985, %v1102
      %v1240 = vadd.f32 %v986, %v1105
      %v1241 = vadd.f32 %v987, %v1107
      %v1242 = vadd.f32 %v988, %v1110
      %v1243 = vadd.f32 %v989, %v1112
      %v1244 = vadd.f32 %v990, %v1115
      %v1245 = vadd.f32 %v991, %v1117
      %v1246 = vadd.f32 %v992, %v1120
      %v1247 = vadd.f32 %v993, %v1122
      %v1248 = vadd.f32 %v994, %v1125
      %v1249 = vadd.f32 %v995, %v1127
      %v1250 = vadd.f32 %v996, %v1130
      %v1251 = vadd.f32 %v997, %v1132
      %v1252 = vadd.f32 %v998, %v1135
      %v1253 = vadd.f32 %v999, %v1137
      %v1254 = vadd.f32 %v1000, %v1140
      %v1255 = vadd.f32 %v1001, %v1142
      %v1256 = vadd.f32 %v1002, %v1145
      %v1257 = vadd.f32 %v1003, %v1147
      %v1258 = vadd.f32 %v1004, %v1150
      %v1259 = vadd.f32 %v1005, %v1152
      %v1260 = vadd.f32 %v1006, %v1155
      %v1261 = vadd.f32 %v1007, %v1157
      %v1262 = vadd.f32 %v1008, %v1160
      %v1263 = vadd.f32 %v1009, %v1162
      %v1264 = vadd.f32 %v1010, %v1165
      %v1265 = vadd.f32 %v1011, %v1167
      %v1266 = vadd.f32 %v1012, %v1170
      %v1267 = vadd.f32 %v1013, %v1172
      %v1268 = vadd.f32 %v1014, %v1175
      %v1269 = vadd.f32 %v1015, %v1177
      %v1270 = vadd.f32 %v1016, %v1180
      %v1271 = vadd.f32 %v1017, %v1182
      %v1272 = vadd.f32 %v1018, %v1185
      %v1273 = vadd.f32 %v1019, %v1187
      %v1274 = vadd.f32 %v1020, %v1190
      %v1275 = vadd.f32 %v1021, %v1192
      %v1276 = vadd.f32 %v1022, %v1195
      %v1277 = vadd.f32 %v1023, %v1197
      %v1278 = vadd.f32 %v1024, %v1200
      %v1279 = vadd.f32 %v1025, %v1202
      %v1280 = vadd.f32 %v1026, %v1205
      %v1281 = vadd.f32 %v1027, %v1207
      %v1282 = vadd.f32 %v1028, %v1210
      %v1283 = vadd.f32 %v1029, %v1212
      %v1284 = vadd.f32 %v1030, %v1215
      %v1285 = vadd.f32 %v1031, %v1217
      %v1286 = vadd.f32 %v1032, %v1220
      %v1287 = vadd.f32 %v1033, %v1222
      %s1288 = scalar_lea.vmem %s1, 12
      %v1289 = vld [vmem:[%s1288] sm:$0x3]
      %v1294 = vunpack.c.l.b16 %v501
      %v1295 = vunpack.c.l.b16 %v502
      %v1296 = vunpack.c.l.b16 %v537
      %v1297 = vunpack.c.l.b16 %v538
      %v1298 = vpack.c.b16 %v1295, %v1294
      %v1299 = vpack.c.b16 %v1297, %v1296
      %v1301 = vsel %vm700, %v1298, 0
      %v1304 = vsel %vm700, %v1299, 0
      %v1307 = vsel %vm797, %v1289, 0
      %1309 = vmatpush.bf16.msra.mxu0 0
      %1310 = vmatpush.bf16.msra.mxu0 0
      %1311 = vmatpush.bf16.msra.mxu0 0
      %1312 = vmatpush.bf16.msra.mxu0 0
      %1313 = vmatpush.bf16.msra.mxu0 0
      %1314 = vmatpush.bf16.msra.mxu0 0
      %1315 = vmatpush.bf16.msra.mxu0 0
      %1316 = vmatpush.bf16.msra.mxu0 %v1307
      %1317 = vmatmul.bf16.gmra.mxu0 %v708
      %v1318 = vpop.f32.mrf.mxu0
      %v1319 = vadd.f32 0.0, %v1318
      %v1320 = vpop.f32.mrf.mxu0
      %v1321 = vadd.f32 0.0, %v1320
      %1322 = vmatmul.bf16.gmra.mxu0 %v711
      %v1323 = vpop.f32.mrf.mxu0
      %v1324 = vadd.f32 0.0, %v1323
      %v1325 = vpop.f32.mrf.mxu0
      %v1326 = vadd.f32 0.0, %v1325
      %1327 = vmatmul.bf16.gmra.mxu0 %v714
      %v1328 = vpop.f32.mrf.mxu0
      %v1329 = vadd.f32 0.0, %v1328
      %v1330 = vpop.f32.mrf.mxu0
      %v1331 = vadd.f32 0.0, %v1330
      %1332 = vmatmul.bf16.gmra.mxu0 %v717
      %v1333 = vpop.f32.mrf.mxu0
      %v1334 = vadd.f32 0.0, %v1333
      %v1335 = vpop.f32.mrf.mxu0
      %v1336 = vadd.f32 0.0, %v1335
      %1337 = vmatmul.bf16.gmra.mxu0 %v720
      %v1338 = vpop.f32.mrf.mxu0
      %v1339 = vadd.f32 0.0, %v1338
      %v1340 = vpop.f32.mrf.mxu0
      %v1341 = vadd.f32 0.0, %v1340
      %1342 = vmatmul.bf16.gmra.mxu0 %v723
      %v1343 = vpop.f32.mrf.mxu0
      %v1344 = vadd.f32 0.0, %v1343
      %v1345 = vpop.f32.mrf.mxu0
      %v1346 = vadd.f32 0.0, %v1345
      %1347 = vmatmul.bf16.gmra.mxu0 %v726
      %v1348 = vpop.f32.mrf.mxu0
      %v1349 = vadd.f32 0.0, %v1348
      %v1350 = vpop.f32.mrf.mxu0
      %v1351 = vadd.f32 0.0, %v1350
      %1352 = vmatmul.bf16.gmra.mxu0 %v729
      %v1353 = vpop.f32.mrf.mxu0
      %v1354 = vadd.f32 0.0, %v1353
      %v1355 = vpop.f32.mrf.mxu0
      %v1356 = vadd.f32 0.0, %v1355
      %1357 = vmatmul.bf16.gmra.mxu0 %v732
      %v1358 = vpop.f32.mrf.mxu0
      %v1359 = vadd.f32 0.0, %v1358
      %v1360 = vpop.f32.mrf.mxu0
      %v1361 = vadd.f32 0.0, %v1360
      %1362 = vmatmul.bf16.gmra.mxu0 %v735
      %v1363 = vpop.f32.mrf.mxu0
      %v1364 = vadd.f32 0.0, %v1363
      %v1365 = vpop.f32.mrf.mxu0
      %v1366 = vadd.f32 0.0, %v1365
      %1367 = vmatmul.bf16.gmra.mxu0 %v738
      %v1368 = vpop.f32.mrf.mxu0
      %v1369 = vadd.f32 0.0, %v1368
      %v1370 = vpop.f32.mrf.mxu0
      %v1371 = vadd.f32 0.0, %v1370
      %1372 = vmatmul.bf16.gmra.mxu0 %v741
      %v1373 = vpop.f32.mrf.mxu0
      %v1374 = vadd.f32 0.0, %v1373
      %v1375 = vpop.f32.mrf.mxu0
      %v1376 = vadd.f32 0.0, %v1375
      %1377 = vmatmul.bf16.gmra.mxu0 %v744
      %v1378 = vpop.f32.mrf.mxu0
      %v1379 = vadd.f32 0.0, %v1378
      %v1380 = vpop.f32.mrf.mxu0
      %v1381 = vadd.f32 0.0, %v1380
      %1382 = vmatmul.bf16.gmra.mxu0 %v747
      %v1383 = vpop.f32.mrf.mxu0
      %v1384 = vadd.f32 0.0, %v1383
      %v1385 = vpop.f32.mrf.mxu0
      %v1386 = vadd.f32 0.0, %v1385
      %1387 = vmatmul.bf16.gmra.mxu0 %v1047
      %v1388 = vpop.f32.mrf.mxu0
      %v1389 = vadd.f32 0.0, %v1388
      %v1390 = vpop.f32.mrf.mxu0
      %v1391 = vadd.f32 0.0, %v1390
      %1392 = vmatmul.bf16.gmra.mxu0 %v1301
      %v1393 = vpop.f32.mrf.mxu0
      %v1394 = vadd.f32 0.0, %v1393
      %v1395 = vpop.f32.mrf.mxu0
      %v1396 = vadd.f32 0.0, %v1395
      %1397 = vmatmul.bf16.gmra.mxu0 %v756
      %v1398 = vpop.f32.mrf.mxu0
      %v1399 = vadd.f32 0.0, %v1398
      %v1400 = vpop.f32.mrf.mxu0
      %v1401 = vadd.f32 0.0, %v1400
      %1402 = vmatmul.bf16.gmra.mxu0 %v759
      %v1403 = vpop.f32.mrf.mxu0
      %v1404 = vadd.f32 0.0, %v1403
      %v1405 = vpop.f32.mrf.mxu0
      %v1406 = vadd.f32 0.0, %v1405
      %1407 = vmatmul.bf16.gmra.mxu0 %v762
      %v1408 = vpop.f32.mrf.mxu0
      %v1409 = vadd.f32 0.0, %v1408
      %v1410 = vpop.f32.mrf.mxu0
      %v1411 = vadd.f32 0.0, %v1410
      %1412 = vmatmul.bf16.gmra.mxu0 %v765
      %v1413 = vpop.f32.mrf.mxu0
      %v1414 = vadd.f32 0.0, %v1413
      %v1415 = vpop.f32.mrf.mxu0
      %v1416 = vadd.f32 0.0, %v1415
      %1417 = vmatmul.bf16.gmra.mxu0 %v768
      %v1418 = vpop.f32.mrf.mxu0
      %v1419 = vadd.f32 0.0, %v1418
      %v1420 = vpop.f32.mrf.mxu0
      %v1421 = vadd.f32 0.0, %v1420
      %1422 = vmatmul.bf16.gmra.mxu0 %v771
      %v1423 = vpop.f32.mrf.mxu0
      %v1424 = vadd.f32 0.0, %v1423
      %v1425 = vpop.f32.mrf.mxu0
      %v1426 = vadd.f32 0.0, %v1425
      %1427 = vmatmul.bf16.gmra.mxu0 %v774
      %v1428 = vpop.f32.mrf.mxu0
      %v1429 = vadd.f32 0.0, %v1428
      %v1430 = vpop.f32.mrf.mxu0
      %v1431 = vadd.f32 0.0, %v1430
      %1432 = vmatmul.bf16.gmra.mxu0 %v777
      %v1433 = vpop.f32.mrf.mxu0
      %v1434 = vadd.f32 0.0, %v1433
      %v1435 = vpop.f32.mrf.mxu0
      %v1436 = vadd.f32 0.0, %v1435
      %1437 = vmatmul.bf16.gmra.mxu0 %v780
      %v1438 = vpop.f32.mrf.mxu0
      %v1439 = vadd.f32 0.0, %v1438
      %v1440 = vpop.f32.mrf.mxu0
      %v1441 = vadd.f32 0.0, %v1440
      %1442 = vmatmul.bf16.gmra.mxu0 %v783
      %v1443 = vpop.f32.mrf.mxu0
      %v1444 = vadd.f32 0.0, %v1443
      %v1445 = vpop.f32.mrf.mxu0
      %v1446 = vadd.f32 0.0, %v1445
      %1447 = vmatmul.bf16.gmra.mxu0 %v786
      %v1448 = vpop.f32.mrf.mxu0
      %v1449 = vadd.f32 0.0, %v1448
      %v1450 = vpop.f32.mrf.mxu0
      %v1451 = vadd.f32 0.0, %v1450
      %1452 = vmatmul.bf16.gmra.mxu0 %v789
      %v1453 = vpop.f32.mrf.mxu0
      %v1454 = vadd.f32 0.0, %v1453
      %v1455 = vpop.f32.mrf.mxu0
      %v1456 = vadd.f32 0.0, %v1455
      %1457 = vmatmul.bf16.gmra.mxu0 %v792
      %v1458 = vpop.f32.mrf.mxu0
      %v1459 = vadd.f32 0.0, %v1458
      %v1460 = vpop.f32.mrf.mxu0
      %v1461 = vadd.f32 0.0, %v1460
      %1462 = vmatmul.bf16.gmra.mxu0 %v795
      %v1463 = vpop.f32.mrf.mxu0
      %v1464 = vadd.f32 0.0, %v1463
      %v1465 = vpop.f32.mrf.mxu0
      %v1466 = vadd.f32 0.0, %v1465
      %1467 = vmatmul.bf16.gmra.mxu0 %v1050
      %v1468 = vpop.f32.mrf.mxu0
      %v1469 = vadd.f32 0.0, %v1468
      %v1470 = vpop.f32.mrf.mxu0
      %v1471 = vadd.f32 0.0, %v1470
      %1472 = vmatmul.bf16.gmra.mxu0 %v1304
      %v1473 = vpop.f32.mrf.mxu0
      %v1474 = vadd.f32 0.0, %v1473
      %v1475 = vpop.f32.mrf.mxu0
      %v1476 = vadd.f32 0.0, %v1475
      %1477 = vdwg.mxu0
      %v1478 = vadd.f32 %v1224, %v1319
      %v1479 = vadd.f32 %v1225, %v1321
      %v1480 = vadd.f32 %v1226, %v1324
      %v1481 = vadd.f32 %v1227, %v1326
      %v1482 = vadd.f32 %v1228, %v1329
      %v1483 = vadd.f32 %v1229, %v1331
      %v1484 = vadd.f32 %v1230, %v1334
      %v1485 = vadd.f32 %v1231, %v1336
      %v1486 = vadd.f32 %v1232, %v1339
      %v1487 = vadd.f32 %v1233, %v1341
      %v1488 = vadd.f32 %v1234, %v1344
      %v1489 = vadd.f32 %v1235, %v1346
      %v1490 = vadd.f32 %v1236, %v1349
      %v1491 = vadd.f32 %v1237, %v1351
      %v1492 = vadd.f32 %v1238, %v1354
      %v1493 = vadd.f32 %v1239, %v1356
      %v1494 = vadd.f32 %v1240, %v1359
      %v1495 = vadd.f32 %v1241, %v1361
      %v1496 = vadd.f32 %v1242, %v1364
      %v1497 = vadd.f32 %v1243, %v1366
      %v1498 = vadd.f32 %v1244, %v1369
      %v1499 = vadd.f32 %v1245, %v1371
      %v1500 = vadd.f32 %v1246, %v1374
      %v1501 = vadd.f32 %v1247, %v1376
      %v1502 = vadd.f32 %v1248, %v1379
      %v1503 = vadd.f32 %v1249, %v1381
      %v1504 = vadd.f32 %v1250, %v1384
      %v1505 = vadd.f32 %v1251, %v1386
      %v1506 = vadd.f32 %v1252, %v1389
      %v1507 = vadd.f32 %v1253, %v1391
      %v1508 = vadd.f32 %v1254, %v1394
      %v1509 = vadd.f32 %v1255, %v1396
      %v1510 = vadd.f32 %v1256, %v1399
      %v1511 = vadd.f32 %v1257, %v1401
      %v1512 = vadd.f32 %v1258, %v1404
      %v1513 = vadd.f32 %v1259, %v1406
      %v1514 = vadd.f32 %v1260, %v1409
      %v1515 = vadd.f32 %v1261, %v1411
      %v1516 = vadd.f32 %v1262, %v1414
      %v1517 = vadd.f32 %v1263, %v1416
      %v1518 = vadd.f32 %v1264, %v1419
      %v1519 = vadd.f32 %v1265, %v1421
      %v1520 = vadd.f32 %v1266, %v1424
      %v1521 = vadd.f32 %v1267, %v1426
      %v1522 = vadd.f32 %v1268, %v1429
      %v1523 = vadd.f32 %v1269, %v1431
      %v1524 = vadd.f32 %v1270, %v1434
      %v1525 = vadd.f32 %v1271, %v1436
      %v1526 = vadd.f32 %v1272, %v1439
      %v1527 = vadd.f32 %v1273, %v1441
      %v1528 = vadd.f32 %v1274, %v1444
      %v1529 = vadd.f32 %v1275, %v1446
      %v1530 = vadd.f32 %v1276, %v1449
      %v1531 = vadd.f32 %v1277, %v1451
      %v1532 = vadd.f32 %v1278, %v1454
      %v1533 = vadd.f32 %v1279, %v1456
      %v1534 = vadd.f32 %v1280, %v1459
      %v1535 = vadd.f32 %v1281, %v1461
      %v1536 = vadd.f32 %v1282, %v1464
      %v1537 = vadd.f32 %v1283, %v1466
      %v1538 = vadd.f32 %v1284, %v1469
      %v1539 = vadd.f32 %v1285, %v1471
      %v1540 = vadd.f32 %v1286, %v1474
      %v1541 = vadd.f32 %v1287, %v1476
      %v1542 = vpack.c.bf16 %v172, %v172
      %v1543 = vpack.c.bf16 %v173, %v173
      %v1544 = vpack.c.bf16 %v175, %v175
      %v1545 = vpack.c.bf16 %v176, %v176
      %v1546 = vpack.c.bf16 %v178, %v178
      %v1547 = vpack.c.bf16 %v179, %v179
      %v1548 = vpack.c.bf16 %v181, %v181
      %v1549 = vpack.c.bf16 %v182, %v182
      %v1550 = vpack.c.bf16 %v184, %v184
      %v1551 = vpack.c.bf16 %v185, %v185
      %v1552 = vpack.c.bf16 %v187, %v187
      %v1553 = vpack.c.bf16 %v188, %v188
      %v1554 = vpack.c.bf16 %v190, %v190
      %v1555 = vpack.c.bf16 %v191, %v191
      %v1556 = vpack.c.bf16 %v193, %v193
      %v1557 = vpack.c.bf16 %v194, %v194
      %v1558 = vpack.c.bf16 %v196, %v196
      %v1559 = vpack.c.bf16 %v197, %v197
      %v1560 = vpack.c.bf16 %v199, %v199
      %v1561 = vpack.c.bf16 %v200, %v200
      %v1562 = vpack.c.bf16 %v202, %v202
      %v1563 = vpack.c.bf16 %v203, %v203
      %v1564 = vpack.c.bf16 %v205, %v205
      %v1565 = vpack.c.bf16 %v206, %v206
      %v1566 = vpack.c.bf16 %v208, %v208
      %v1567 = vpack.c.bf16 %v209, %v209
      %v1568 = vpack.c.bf16 %v211, %v211
      %v1569 = vpack.c.bf16 %v212, %v212
      %v1570 = vpack.c.bf16 %v214, %v214
      %v1571 = vpack.c.bf16 %v215, %v215
      %v1572 = vpack.c.bf16 %v217, %v217
      %v1573 = vpack.c.bf16 %v218, %v218
      %v1574 = vpack.c.bf16 %v220, %v220
      %v1575 = vpack.c.bf16 %v221, %v221
      %v1576 = vpack.c.bf16 %v223, %v223
      %v1577 = vpack.c.bf16 %v224, %v224
      %v1578 = vpack.c.bf16 %v226, %v226
      %v1579 = vpack.c.bf16 %v227, %v227
      %v1580 = vpack.c.bf16 %v229, %v229
      %v1581 = vpack.c.bf16 %v230, %v230
      %v1582 = vpack.c.bf16 %v232, %v232
      %v1583 = vpack.c.bf16 %v233, %v233
      %v1584 = vpack.c.bf16 %v235, %v235
      %v1585 = vpack.c.bf16 %v236, %v236
      %v1586 = vpack.c.bf16 %v238, %v238
      %v1587 = vpack.c.bf16 %v239, %v239
      %v1588 = vpack.c.bf16 %v241, %v241
      %v1589 = vpack.c.bf16 %v242, %v242
      %v1590 = vpack.c.bf16 %v244, %v244
      %v1591 = vpack.c.bf16 %v245, %v245
      %v1592 = vpack.c.bf16 %v247, %v247
      %v1593 = vpack.c.bf16 %v248, %v248
      %v1594 = vpack.c.bf16 %v250, %v250
      %v1595 = vpack.c.bf16 %v251, %v251
      %v1596 = vpack.c.bf16 %v253, %v253
      %v1597 = vpack.c.bf16 %v254, %v254
      %v1598 = vpack.c.bf16 %v256, %v256
      %v1599 = vpack.c.bf16 %v257, %v257
      %v1600 = vpack.c.bf16 %v259, %v259
      %v1601 = vpack.c.bf16 %v260, %v260
      %v1602 = vpack.c.bf16 %v262, %v262
      %v1603 = vpack.c.bf16 %v263, %v263
      %v1604 = vpack.c.bf16 %v265, %v265
      %v1605 = vpack.c.bf16 %v266, %v266
      %v1606 = vpack.c.bf16 %v268, %v268
      %v1607 = vpack.c.bf16 %v269, %v269
      %v1608 = vpack.c.bf16 %v271, %v271
      %v1609 = vpack.c.bf16 %v272, %v272
      %v1610 = vpack.c.bf16 %v274, %v274
      %v1611 = vpack.c.bf16 %v275, %v275
      %v1612 = vpack.c.bf16 %v277, %v277
      %v1613 = vpack.c.bf16 %v278, %v278
      %s1614 = scalar_lea.vmem %s1, 2
      %v1615 = vld [vmem:[%s1614] sm:$0x3]
      %v1680 = vunpack.c.l.b16 %v1542
      %v1681 = vunpack.c.l.b16 %v1543
      %v1682 = vunpack.c.l.b16 %v1544
      %v1683 = vunpack.c.l.b16 %v1545
      %v1684 = vunpack.c.l.b16 %v1546
      %v1685 = vunpack.c.l.b16 %v1547
      %v1686 = vunpack.c.l.b16 %v1548
      %v1687 = vunpack.c.l.b16 %v1549
      %v1688 = vunpack.c.l.b16 %v1550
      %v1689 = vunpack.c.l.b16 %v1551
      %v1690 = vunpack.c.l.b16 %v1552
      %v1691 = vunpack.c.l.b16 %v1553
      %v1692 = vunpack.c.l.b16 %v1554
      %v1693 = vunpack.c.l.b16 %v1555
      %v1694 = vunpack.c.l.b16 %v1556
      %v1695 = vunpack.c.l.b16 %v1557
      %v1696 = vunpack.c.l.b16 %v1558
      %v1697 = vunpack.c.l.b16 %v1559
      %v1698 = vunpack.c.l.b16 %v1560
      %v1699 = vunpack.c.l.b16 %v1561
      %v1700 = vunpack.c.l.b16 %v1562
      %v1701 = vunpack.c.l.b16 %v1563
      %v1702 = vunpack.c.l.b16 %v1564
      %v1703 = vunpack.c.l.b16 %v1565
      %v1704 = vunpack.c.l.b16 %v1566
      %v1705 = vunpack.c.l.b16 %v1567
      %v1706 = vunpack.c.l.b16 %v1568
      %v1707 = vunpack.c.l.b16 %v1569
      %v1708 = vunpack.c.l.b16 %v1570
      %v1709 = vunpack.c.l.b16 %v1571
      %v1710 = vunpack.c.l.b16 %v1572
      %v1711 = vunpack.c.l.b16 %v1573
      %v1712 = vunpack.c.l.b16 %v1578
      %v1713 = vunpack.c.l.b16 %v1579
      %v1714 = vunpack.c.l.b16 %v1580
      %v1715 = vunpack.c.l.b16 %v1581
      %v1716 = vunpack.c.l.b16 %v1582
      %v1717 = vunpack.c.l.b16 %v1583
      %v1718 = vunpack.c.l.b16 %v1584
      %v1719 = vunpack.c.l.b16 %v1585
      %v1720 = vunpack.c.l.b16 %v1586
      %v1721 = vunpack.c.l.b16 %v1587
      %v1722 = vunpack.c.l.b16 %v1588
      %v1723 = vunpack.c.l.b16 %v1589
      %v1724 = vunpack.c.l.b16 %v1590
      %v1725 = vunpack.c.l.b16 %v1591
      %v1726 = vunpack.c.l.b16 %v1592
      %v1727 = vunpack.c.l.b16 %v1593
      %v1728 = vunpack.c.l.b16 %v1594
      %v1729 = vunpack.c.l.b16 %v1595
      %v1730 = vunpack.c.l.b16 %v1596
      %v1731 = vunpack.c.l.b16 %v1597
      %v1732 = vunpack.c.l.b16 %v1598
      %v1733 = vunpack.c.l.b16 %v1599
      %v1734 = vunpack.c.l.b16 %v1600
      %v1735 = vunpack.c.l.b16 %v1601
      %v1736 = vunpack.c.l.b16 %v1602
      %v1737 = vunpack.c.l.b16 %v1603
      %v1738 = vunpack.c.l.b16 %v1604
      %v1739 = vunpack.c.l.b16 %v1605
      %v1740 = vunpack.c.l.b16 %v1606
      %v1741 = vunpack.c.l.b16 %v1607
      %v1742 = vunpack.c.l.b16 %v1608
      %v1743 = vunpack.c.l.b16 %v1609
      %v1744 = vpack.c.b16 %v1681, %v1680
      %v1745 = vpack.c.b16 %v1683, %v1682
      %v1746 = vpack.c.b16 %v1685, %v1684
      %v1747 = vpack.c.b16 %v1687, %v1686
      %v1748 = vpack.c.b16 %v1689, %v1688
      %v1749 = vpack.c.b16 %v1691, %v1690
      %v1750 = vpack.c.b16 %v1693, %v1692
      %v1751 = vpack.c.b16 %v1695, %v1694
      %v1752 = vpack.c.b16 %v1697, %v1696
      %v1753 = vpack.c.b16 %v1699, %v1698
      %v1754 = vpack.c.b16 %v1701, %v1700
      %v1755 = vpack.c.b16 %v1703, %v1702
      %v1756 = vpack.c.b16 %v1705, %v1704
      %v1757 = vpack.c.b16 %v1707, %v1706
      %v1758 = vpack.c.b16 %v1709, %v1708
      %v1759 = vpack.c.b16 %v1711, %v1710
      %v1760 = vpack.c.b16 %v1713, %v1712
      %v1761 = vpack.c.b16 %v1715, %v1714
      %v1762 = vpack.c.b16 %v1717, %v1716
      %v1763 = vpack.c.b16 %v1719, %v1718
      %v1764 = vpack.c.b16 %v1721, %v1720
      %v1765 = vpack.c.b16 %v1723, %v1722
      %v1766 = vpack.c.b16 %v1725, %v1724
      %v1767 = vpack.c.b16 %v1727, %v1726
      %v1768 = vpack.c.b16 %v1729, %v1728
      %v1769 = vpack.c.b16 %v1731, %v1730
      %v1770 = vpack.c.b16 %v1733, %v1732
      %v1771 = vpack.c.b16 %v1735, %v1734
      %v1772 = vpack.c.b16 %v1737, %v1736
      %v1773 = vpack.c.b16 %v1739, %v1738
      %v1774 = vpack.c.b16 %v1741, %v1740
      %v1775 = vpack.c.b16 %v1743, %v1742
      %v1777 = vsel %vm700, %v1744, 0
      %v1780 = vsel %vm700, %v1745, 0
      %v1783 = vsel %vm700, %v1746, 0
      %v1786 = vsel %vm700, %v1747, 0
      %v1789 = vsel %vm700, %v1748, 0
      %v1792 = vsel %vm700, %v1749, 0
      %v1795 = vsel %vm700, %v1750, 0
      %v1798 = vsel %vm700, %v1751, 0
      %v1801 = vsel %vm700, %v1752, 0
      %v1804 = vsel %vm700, %v1753, 0
      %v1807 = vsel %vm700, %v1754, 0
      %v1810 = vsel %vm700, %v1755, 0
      %v1813 = vsel %vm700, %v1756, 0
      %v1816 = vsel %vm700, %v1757, 0
      %v1819 = vsel %vm700, %v1758, 0
      %v1822 = vsel %vm700, %v1759, 0
      %v1825 = vsel %vm700, %v1760, 0
      %v1828 = vsel %vm700, %v1761, 0
      %v1831 = vsel %vm700, %v1762, 0
      %v1834 = vsel %vm700, %v1763, 0
      %v1837 = vsel %vm700, %v1764, 0
      %v1840 = vsel %vm700, %v1765, 0
      %v1843 = vsel %vm700, %v1766, 0
      %v1846 = vsel %vm700, %v1767, 0
      %v1849 = vsel %vm700, %v1768, 0
      %v1852 = vsel %vm700, %v1769, 0
      %v1855 = vsel %vm700, %v1770, 0
      %v1858 = vsel %vm700, %v1771, 0
      %v1861 = vsel %vm700, %v1772, 0
      %v1864 = vsel %vm700, %v1773, 0
      %v1867 = vsel %vm700, %v1774, 0
      %v1870 = vsel %vm700, %v1775, 0
      %v1873 = vsel %vm797, %v1615, 0
      %1875 = vmatpush.bf16.msra.mxu0 0
      %1876 = vmatpush.bf16.msra.mxu0 0
      %1877 = vmatpush.bf16.msra.mxu0 0
      %1878 = vmatpush.bf16.msra.mxu0 0
      %1879 = vmatpush.bf16.msra.mxu0 0
      %1880 = vmatpush.bf16.msra.mxu0 0
      %1881 = vmatpush.bf16.msra.mxu0 0
      %1882 = vmatpush.bf16.msra.mxu0 %v1873
      %1883 = vmatmul.bf16.gmra.mxu0 %v1777
      %v1884 = vpop.f32.mrf.mxu0
      %v1885 = vadd.f32 0.0, %v1884
      %v1886 = vpop.f32.mrf.mxu0
      %v1887 = vadd.f32 0.0, %v1886
      %1888 = vmatmul.bf16.gmra.mxu0 %v1780
      %v1889 = vpop.f32.mrf.mxu0
      %v1890 = vadd.f32 0.0, %v1889
      %v1891 = vpop.f32.mrf.mxu0
      %v1892 = vadd.f32 0.0, %v1891
      %1893 = vmatmul.bf16.gmra.mxu0 %v1783
      %v1894 = vpop.f32.mrf.mxu0
      %v1895 = vadd.f32 0.0, %v1894
      %v1896 = vpop.f32.mrf.mxu0
      %v1897 = vadd.f32 0.0, %v1896
      %1898 = vmatmul.bf16.gmra.mxu0 %v1786
      %v1899 = vpop.f32.mrf.mxu0
      %v1900 = vadd.f32 0.0, %v1899
      %v1901 = vpop.f32.mrf.mxu0
      %v1902 = vadd.f32 0.0, %v1901
      %1903 = vmatmul.bf16.gmra.mxu0 %v1789
      %v1904 = vpop.f32.mrf.mxu0
      %v1905 = vadd.f32 0.0, %v1904
      %v1906 = vpop.f32.mrf.mxu0
      %v1907 = vadd.f32 0.0, %v1906
      %1908 = vmatmul.bf16.gmra.mxu0 %v1792
      %v1909 = vpop.f32.mrf.mxu0
      %v1910 = vadd.f32 0.0, %v1909
      %v1911 = vpop.f32.mrf.mxu0
      %v1912 = vadd.f32 0.0, %v1911
      %1913 = vmatmul.bf16.gmra.mxu0 %v1795
      %v1914 = vpop.f32.mrf.mxu0
      %v1915 = vadd.f32 0.0, %v1914
      %v1916 = vpop.f32.mrf.mxu0
      %v1917 = vadd.f32 0.0, %v1916
      %1918 = vmatmul.bf16.gmra.mxu0 %v1798
      %v1919 = vpop.f32.mrf.mxu0
      %v1920 = vadd.f32 0.0, %v1919
      %v1921 = vpop.f32.mrf.mxu0
      %v1922 = vadd.f32 0.0, %v1921
      %1923 = vmatmul.bf16.gmra.mxu0 %v1801
      %v1924 = vpop.f32.mrf.mxu0
      %v1925 = vadd.f32 0.0, %v1924
      %v1926 = vpop.f32.mrf.mxu0
      %v1927 = vadd.f32 0.0, %v1926
      %1928 = vmatmul.bf16.gmra.mxu0 %v1804
      %v1929 = vpop.f32.mrf.mxu0
      %v1930 = vadd.f32 0.0, %v1929
      %v1931 = vpop.f32.mrf.mxu0
      %v1932 = vadd.f32 0.0, %v1931
      %1933 = vmatmul.bf16.gmra.mxu0 %v1807
      %v1934 = vpop.f32.mrf.mxu0
      %v1935 = vadd.f32 0.0, %v1934
      %v1936 = vpop.f32.mrf.mxu0
      %v1937 = vadd.f32 0.0, %v1936
      %1938 = vmatmul.bf16.gmra.mxu0 %v1810
      %v1939 = vpop.f32.mrf.mxu0
      %v1940 = vadd.f32 0.0, %v1939
      %v1941 = vpop.f32.mrf.mxu0
      %v1942 = vadd.f32 0.0, %v1941
      %1943 = vmatmul.bf16.gmra.mxu0 %v1813
      %v1944 = vpop.f32.mrf.mxu0
      %v1945 = vadd.f32 0.0, %v1944
      %v1946 = vpop.f32.mrf.mxu0
      %v1947 = vadd.f32 0.0, %v1946
      %1948 = vmatmul.bf16.gmra.mxu0 %v1816
      %v1949 = vpop.f32.mrf.mxu0
      %v1950 = vadd.f32 0.0, %v1949
      %v1951 = vpop.f32.mrf.mxu0
      %v1952 = vadd.f32 0.0, %v1951
      %1953 = vmatmul.bf16.gmra.mxu0 %v1819
      %v1954 = vpop.f32.mrf.mxu0
      %v1955 = vadd.f32 0.0, %v1954
      %v1956 = vpop.f32.mrf.mxu0
      %v1957 = vadd.f32 0.0, %v1956
      %1958 = vmatmul.bf16.gmra.mxu0 %v1822
      %v1959 = vpop.f32.mrf.mxu0
      %v1960 = vadd.f32 0.0, %v1959
      %v1961 = vpop.f32.mrf.mxu0
      %v1962 = vadd.f32 0.0, %v1961
      %1963 = vmatmul.bf16.gmra.mxu0 %v1825
      %v1964 = vpop.f32.mrf.mxu0
      %v1965 = vadd.f32 0.0, %v1964
      %v1966 = vpop.f32.mrf.mxu0
      %v1967 = vadd.f32 0.0, %v1966
      %1968 = vmatmul.bf16.gmra.mxu0 %v1828
      %v1969 = vpop.f32.mrf.mxu0
      %v1970 = vadd.f32 0.0, %v1969
      %v1971 = vpop.f32.mrf.mxu0
      %v1972 = vadd.f32 0.0, %v1971
      %1973 = vmatmul.bf16.gmra.mxu0 %v1831
      %v1974 = vpop.f32.mrf.mxu0
      %v1975 = vadd.f32 0.0, %v1974
      %v1976 = vpop.f32.mrf.mxu0
      %v1977 = vadd.f32 0.0, %v1976
      %1978 = vmatmul.bf16.gmra.mxu0 %v1834
      %v1979 = vpop.f32.mrf.mxu0
      %v1980 = vadd.f32 0.0, %v1979
      %v1981 = vpop.f32.mrf.mxu0
      %v1982 = vadd.f32 0.0, %v1981
      %1983 = vmatmul.bf16.gmra.mxu0 %v1837
      %v1984 = vpop.f32.mrf.mxu0
      %v1985 = vadd.f32 0.0, %v1984
      %v1986 = vpop.f32.mrf.mxu0
      %v1987 = vadd.f32 0.0, %v1986
      %1988 = vmatmul.bf16.gmra.mxu0 %v1840
      %v1989 = vpop.f32.mrf.mxu0
      %v1990 = vadd.f32 0.0, %v1989
      %v1991 = vpop.f32.mrf.mxu0
      %v1992 = vadd.f32 0.0, %v1991
      %1993 = vmatmul.bf16.gmra.mxu0 %v1843
      %v1994 = vpop.f32.mrf.mxu0
      %v1995 = vadd.f32 0.0, %v1994
      %v1996 = vpop.f32.mrf.mxu0
      %v1997 = vadd.f32 0.0, %v1996
      %1998 = vmatmul.bf16.gmra.mxu0 %v1846
      %v1999 = vpop.f32.mrf.mxu0
      %v2000 = vadd.f32 0.0, %v1999
      %v2001 = vpop.f32.mrf.mxu0
      %v2002 = vadd.f32 0.0, %v2001
      %2003 = vmatmul.bf16.gmra.mxu0 %v1849
      %v2004 = vpop.f32.mrf.mxu0
      %v2005 = vadd.f32 0.0, %v2004
      %v2006 = vpop.f32.mrf.mxu0
      %v2007 = vadd.f32 0.0, %v2006
      %2008 = vmatmul.bf16.gmra.mxu0 %v1852
      %v2009 = vpop.f32.mrf.mxu0
      %v2010 = vadd.f32 0.0, %v2009
      %v2011 = vpop.f32.mrf.mxu0
      %v2012 = vadd.f32 0.0, %v2011
      %2013 = vmatmul.bf16.gmra.mxu0 %v1855
      %v2014 = vpop.f32.mrf.mxu0
      %v2015 = vadd.f32 0.0, %v2014
      %v2016 = vpop.f32.mrf.mxu0
      %v2017 = vadd.f32 0.0, %v2016
      %2018 = vmatmul.bf16.gmra.mxu0 %v1858
      %v2019 = vpop.f32.mrf.mxu0
      %v2020 = vadd.f32 0.0, %v2019
      %v2021 = vpop.f32.mrf.mxu0
      %v2022 = vadd.f32 0.0, %v2021
      %2023 = vmatmul.bf16.gmra.mxu0 %v1861
      %v2024 = vpop.f32.mrf.mxu0
      %v2025 = vadd.f32 0.0, %v2024
      %v2026 = vpop.f32.mrf.mxu0
      %v2027 = vadd.f32 0.0, %v2026
      %2028 = vmatmul.bf16.gmra.mxu0 %v1864
      %v2029 = vpop.f32.mrf.mxu0
      %v2030 = vadd.f32 0.0, %v2029
      %v2031 = vpop.f32.mrf.mxu0
      %v2032 = vadd.f32 0.0, %v2031
      %2033 = vmatmul.bf16.gmra.mxu0 %v1867
      %v2034 = vpop.f32.mrf.mxu0
      %v2035 = vadd.f32 0.0, %v2034
      %v2036 = vpop.f32.mrf.mxu0
      %v2037 = vadd.f32 0.0, %v2036
      %2038 = vmatmul.bf16.gmra.mxu0 %v1870
      %v2039 = vpop.f32.mrf.mxu0
      %v2040 = vadd.f32 0.0, %v2039
      %v2041 = vpop.f32.mrf.mxu0
      %v2042 = vadd.f32 0.0, %v2041
      %2043 = vdwg.mxu0
      %v2044 = vadd.f32 %v1478, %v1885
      %v2045 = vadd.f32 %v1479, %v1887
      %v2046 = vadd.f32 %v1480, %v1890
      %v2047 = vadd.f32 %v1481, %v1892
      %v2048 = vadd.f32 %v1482, %v1895
      %v2049 = vadd.f32 %v1483, %v1897
      %v2050 = vadd.f32 %v1484, %v1900
      %v2051 = vadd.f32 %v1485, %v1902
      %v2052 = vadd.f32 %v1486, %v1905
      %v2053 = vadd.f32 %v1487, %v1907
      %v2054 = vadd.f32 %v1488, %v1910
      %v2055 = vadd.f32 %v1489, %v1912
      %v2056 = vadd.f32 %v1490, %v1915
      %v2057 = vadd.f32 %v1491, %v1917
      %v2058 = vadd.f32 %v1492, %v1920
      %v2059 = vadd.f32 %v1493, %v1922
      %v2060 = vadd.f32 %v1494, %v1925
      %v2061 = vadd.f32 %v1495, %v1927
      %v2062 = vadd.f32 %v1496, %v1930
      %v2063 = vadd.f32 %v1497, %v1932
      %v2064 = vadd.f32 %v1498, %v1935
      %v2065 = vadd.f32 %v1499, %v1937
      %v2066 = vadd.f32 %v1500, %v1940
      %v2067 = vadd.f32 %v1501, %v1942
      %v2068 = vadd.f32 %v1502, %v1945
      %v2069 = vadd.f32 %v1503, %v1947
      %v2070 = vadd.f32 %v1504, %v1950
      %v2071 = vadd.f32 %v1505, %v1952
      %v2072 = vadd.f32 %v1506, %v1955
      %v2073 = vadd.f32 %v1507, %v1957
      %v2074 = vadd.f32 %v1508, %v1960
      %v2075 = vadd.f32 %v1509, %v1962
      %v2076 = vadd.f32 %v1510, %v1965
      %v2077 = vadd.f32 %v1511, %v1967
      %v2078 = vadd.f32 %v1512, %v1970
      %v2079 = vadd.f32 %v1513, %v1972
      %v2080 = vadd.f32 %v1514, %v1975
      %v2081 = vadd.f32 %v1515, %v1977
      %v2082 = vadd.f32 %v1516, %v1980
      %v2083 = vadd.f32 %v1517, %v1982
      %v2084 = vadd.f32 %v1518, %v1985
      %v2085 = vadd.f32 %v1519, %v1987
      %v2086 = vadd.f32 %v1520, %v1990
      %v2087 = vadd.f32 %v1521, %v1992
      %v2088 = vadd.f32 %v1522, %v1995
      %v2089 = vadd.f32 %v1523, %v1997
      %v2090 = vadd.f32 %v1524, %v2000
      %v2091 = vadd.f32 %v1525, %v2002
      %v2092 = vadd.f32 %v1526, %v2005
      %v2093 = vadd.f32 %v1527, %v2007
      %v2094 = vadd.f32 %v1528, %v2010
      %v2095 = vadd.f32 %v1529, %v2012
      %v2096 = vadd.f32 %v1530, %v2015
      %v2097 = vadd.f32 %v1531, %v2017
      %v2098 = vadd.f32 %v1532, %v2020
      %v2099 = vadd.f32 %v1533, %v2022
      %v2100 = vadd.f32 %v1534, %v2025
      %v2101 = vadd.f32 %v1535, %v2027
      %v2102 = vadd.f32 %v1536, %v2030
      %v2103 = vadd.f32 %v1537, %v2032
      %v2104 = vadd.f32 %v1538, %v2035
      %v2105 = vadd.f32 %v1539, %v2037
      %v2106 = vadd.f32 %v1540, %v2040
      %v2107 = vadd.f32 %v1541, %v2042
      %s2108 = scalar_lea.vmem %s1, 8
      %v2109 = vld [vmem:[%s2108] sm:$0x3]
      %v2114 = vunpack.c.l.b16 %v1574
      %v2115 = vunpack.c.l.b16 %v1575
      %v2116 = vunpack.c.l.b16 %v1610
      %v2117 = vunpack.c.l.b16 %v1611
      %v2118 = vpack.c.b16 %v2115, %v2114
      %v2119 = vpack.c.b16 %v2117, %v2116
      %v2121 = vsel %vm700, %v2118, 0
      %v2124 = vsel %vm700, %v2119, 0
      %v2127 = vsel %vm797, %v2109, 0
      %2129 = vmatpush.bf16.msra.mxu0 0
      %2130 = vmatpush.bf16.msra.mxu0 0
      %2131 = vmatpush.bf16.msra.mxu0 0
      %2132 = vmatpush.bf16.msra.mxu0 0
      %2133 = vmatpush.bf16.msra.mxu0 0
      %2134 = vmatpush.bf16.msra.mxu0 0
      %2135 = vmatpush.bf16.msra.mxu0 0
      %2136 = vmatpush.bf16.msra.mxu0 %v2127
      %2137 = vmatmul.bf16.gmra.mxu0 %v1780
      %v2138 = vpop.f32.mrf.mxu0
      %v2139 = vadd.f32 0.0, %v2138
      %v2140 = vpop.f32.mrf.mxu0
      %v2141 = vadd.f32 0.0, %v2140
      %2142 = vmatmul.bf16.gmra.mxu0 %v1783
      %v2143 = vpop.f32.mrf.mxu0
      %v2144 = vadd.f32 0.0, %v2143
      %v2145 = vpop.f32.mrf.mxu0
      %v2146 = vadd.f32 0.0, %v2145
      %2147 = vmatmul.bf16.gmra.mxu0 %v1786
      %v2148 = vpop.f32.mrf.mxu0
      %v2149 = vadd.f32 0.0, %v2148
      %v2150 = vpop.f32.mrf.mxu0
      %v2151 = vadd.f32 0.0, %v2150
      %2152 = vmatmul.bf16.gmra.mxu0 %v1789
      %v2153 = vpop.f32.mrf.mxu0
      %v2154 = vadd.f32 0.0, %v2153
      %v2155 = vpop.f32.mrf.mxu0
      %v2156 = vadd.f32 0.0, %v2155
      %2157 = vmatmul.bf16.gmra.mxu0 %v1792
      %v2158 = vpop.f32.mrf.mxu0
      %v2159 = vadd.f32 0.0, %v2158
      %v2160 = vpop.f32.mrf.mxu0
      %v2161 = vadd.f32 0.0, %v2160
      %2162 = vmatmul.bf16.gmra.mxu0 %v1795
      %v2163 = vpop.f32.mrf.mxu0
      %v2164 = vadd.f32 0.0, %v2163
      %v2165 = vpop.f32.mrf.mxu0
      %v2166 = vadd.f32 0.0, %v2165
      %2167 = vmatmul.bf16.gmra.mxu0 %v1798
      %v2168 = vpop.f32.mrf.mxu0
      %v2169 = vadd.f32 0.0, %v2168
      %v2170 = vpop.f32.mrf.mxu0
      %v2171 = vadd.f32 0.0, %v2170
      %2172 = vmatmul.bf16.gmra.mxu0 %v1801
      %v2173 = vpop.f32.mrf.mxu0
      %v2174 = vadd.f32 0.0, %v2173
      %v2175 = vpop.f32.mrf.mxu0
      %v2176 = vadd.f32 0.0, %v2175
      %2177 = vmatmul.bf16.gmra.mxu0 %v1804
      %v2178 = vpop.f32.mrf.mxu0
      %v2179 = vadd.f32 0.0, %v2178
      %v2180 = vpop.f32.mrf.mxu0
      %v2181 = vadd.f32 0.0, %v2180
      %2182 = vmatmul.bf16.gmra.mxu0 %v1807
      %v2183 = vpop.f32.mrf.mxu0
      %v2184 = vadd.f32 0.0, %v2183
      %v2185 = vpop.f32.mrf.mxu0
      %v2186 = vadd.f32 0.0, %v2185
      %2187 = vmatmul.bf16.gmra.mxu0 %v1810
      %v2188 = vpop.f32.mrf.mxu0
      %v2189 = vadd.f32 0.0, %v2188
      %v2190 = vpop.f32.mrf.mxu0
      %v2191 = vadd.f32 0.0, %v2190
      %2192 = vmatmul.bf16.gmra.mxu0 %v1813
      %v2193 = vpop.f32.mrf.mxu0
      %v2194 = vadd.f32 0.0, %v2193
      %v2195 = vpop.f32.mrf.mxu0
      %v2196 = vadd.f32 0.0, %v2195
      %2197 = vmatmul.bf16.gmra.mxu0 %v1816
      %v2198 = vpop.f32.mrf.mxu0
      %v2199 = vadd.f32 0.0, %v2198
      %v2200 = vpop.f32.mrf.mxu0
      %v2201 = vadd.f32 0.0, %v2200
      %2202 = vmatmul.bf16.gmra.mxu0 %v1819
      %v2203 = vpop.f32.mrf.mxu0
      %v2204 = vadd.f32 0.0, %v2203
      %v2205 = vpop.f32.mrf.mxu0
      %v2206 = vadd.f32 0.0, %v2205
      %2207 = vmatmul.bf16.gmra.mxu0 %v1822
      %v2208 = vpop.f32.mrf.mxu0
      %v2209 = vadd.f32 0.0, %v2208
      %v2210 = vpop.f32.mrf.mxu0
      %v2211 = vadd.f32 0.0, %v2210
      %2212 = vmatmul.bf16.gmra.mxu0 %v2121
      %v2213 = vpop.f32.mrf.mxu0
      %v2214 = vadd.f32 0.0, %v2213
      %v2215 = vpop.f32.mrf.mxu0
      %v2216 = vadd.f32 0.0, %v2215
      %2217 = vmatmul.bf16.gmra.mxu0 %v1828
      %v2218 = vpop.f32.mrf.mxu0
      %v2219 = vadd.f32 0.0, %v2218
      %v2220 = vpop.f32.mrf.mxu0
      %v2221 = vadd.f32 0.0, %v2220
      %2222 = vmatmul.bf16.gmra.mxu0 %v1831
      %v2223 = vpop.f32.mrf.mxu0
      %v2224 = vadd.f32 0.0, %v2223
      %v2225 = vpop.f32.mrf.mxu0
      %v2226 = vadd.f32 0.0, %v2225
      %2227 = vmatmul.bf16.gmra.mxu0 %v1834
      %v2228 = vpop.f32.mrf.mxu0
      %v2229 = vadd.f32 0.0, %v2228
      %v2230 = vpop.f32.mrf.mxu0
      %v2231 = vadd.f32 0.0, %v2230
      %2232 = vmatmul.bf16.gmra.mxu0 %v1837
      %v2233 = vpop.f32.mrf.mxu0
      %v2234 = vadd.f32 0.0, %v2233
      %v2235 = vpop.f32.mrf.mxu0
      %v2236 = vadd.f32 0.0, %v2235
      %2237 = vmatmul.bf16.gmra.mxu0 %v1840
      %v2238 = vpop.f32.mrf.mxu0
      %v2239 = vadd.f32 0.0, %v2238
      %v2240 = vpop.f32.mrf.mxu0
      %v2241 = vadd.f32 0.0, %v2240
      %2242 = vmatmul.bf16.gmra.mxu0 %v1843
      %v2243 = vpop.f32.mrf.mxu0
      %v2244 = vadd.f32 0.0, %v2243
      %v2245 = vpop.f32.mrf.mxu0
      %v2246 = vadd.f32 0.0, %v2245
      %2247 = vmatmul.bf16.gmra.mxu0 %v1846
      %v2248 = vpop.f32.mrf.mxu0
      %v2249 = vadd.f32 0.0, %v2248
      %v2250 = vpop.f32.mrf.mxu0
      %v2251 = vadd.f32 0.0, %v2250
      %2252 = vmatmul.bf16.gmra.mxu0 %v1849
      %v2253 = vpop.f32.mrf.mxu0
      %v2254 = vadd.f32 0.0, %v2253
      %v2255 = vpop.f32.mrf.mxu0
      %v2256 = vadd.f32 0.0, %v2255
      %2257 = vmatmul.bf16.gmra.mxu0 %v1852
      %v2258 = vpop.f32.mrf.mxu0
      %v2259 = vadd.f32 0.0, %v2258
      %v2260 = vpop.f32.mrf.mxu0
      %v2261 = vadd.f32 0.0, %v2260
      %2262 = vmatmul.bf16.gmra.mxu0 %v1855
      %v2263 = vpop.f32.mrf.mxu0
      %v2264 = vadd.f32 0.0, %v2263
      %v2265 = vpop.f32.mrf.mxu0
      %v2266 = vadd.f32 0.0, %v2265
      %2267 = vmatmul.bf16.gmra.mxu0 %v1858
      %v2268 = vpop.f32.mrf.mxu0
      %v2269 = vadd.f32 0.0, %v2268
      %v2270 = vpop.f32.mrf.mxu0
      %v2271 = vadd.f32 0.0, %v2270
      %2272 = vmatmul.bf16.gmra.mxu0 %v1861
      %v2273 = vpop.f32.mrf.mxu0
      %v2274 = vadd.f32 0.0, %v2273
      %v2275 = vpop.f32.mrf.mxu0
      %v2276 = vadd.f32 0.0, %v2275
      %2277 = vmatmul.bf16.gmra.mxu0 %v1864
      %v2278 = vpop.f32.mrf.mxu0
      %v2279 = vadd.f32 0.0, %v2278
      %v2280 = vpop.f32.mrf.mxu0
      %v2281 = vadd.f32 0.0, %v2280
      %2282 = vmatmul.bf16.gmra.mxu0 %v1867
      %v2283 = vpop.f32.mrf.mxu0
      %v2284 = vadd.f32 0.0, %v2283
      %v2285 = vpop.f32.mrf.mxu0
      %v2286 = vadd.f32 0.0, %v2285
      %2287 = vmatmul.bf16.gmra.mxu0 %v1870
      %v2288 = vpop.f32.mrf.mxu0
      %v2289 = vadd.f32 0.0, %v2288
      %v2290 = vpop.f32.mrf.mxu0
      %v2291 = vadd.f32 0.0, %v2290
      %2292 = vmatmul.bf16.gmra.mxu0 %v2124
      %v2293 = vpop.f32.mrf.mxu0
      %v2294 = vadd.f32 0.0, %v2293
      %v2295 = vpop.f32.mrf.mxu0
      %v2296 = vadd.f32 0.0, %v2295
      %2297 = vdwg.mxu0
      %v2298 = vadd.f32 %v2044, %v2139
      %v2299 = vadd.f32 %v2045, %v2141
      %v2300 = vadd.f32 %v2046, %v2144
      %v2301 = vadd.f32 %v2047, %v2146
      %v2302 = vadd.f32 %v2048, %v2149
      %v2303 = vadd.f32 %v2049, %v2151
      %v2304 = vadd.f32 %v2050, %v2154
      %v2305 = vadd.f32 %v2051, %v2156
      %v2306 = vadd.f32 %v2052, %v2159
      %v2307 = vadd.f32 %v2053, %v2161
      %v2308 = vadd.f32 %v2054, %v2164
      %v2309 = vadd.f32 %v2055, %v2166
      %v2310 = vadd.f32 %v2056, %v2169
      %v2311 = vadd.f32 %v2057, %v2171
      %v2312 = vadd.f32 %v2058, %v2174
      %v2313 = vadd.f32 %v2059, %v2176
      %v2314 = vadd.f32 %v2060, %v2179
      %v2315 = vadd.f32 %v2061, %v2181
      %v2316 = vadd.f32 %v2062, %v2184
      %v2317 = vadd.f32 %v2063, %v2186
      %v2318 = vadd.f32 %v2064, %v2189
      %v2319 = vadd.f32 %v2065, %v2191
      %v2320 = vadd.f32 %v2066, %v2194
      %v2321 = vadd.f32 %v2067, %v2196
      %v2322 = vadd.f32 %v2068, %v2199
      %v2323 = vadd.f32 %v2069, %v2201
      %v2324 = vadd.f32 %v2070, %v2204
      %v2325 = vadd.f32 %v2071, %v2206
      %v2326 = vadd.f32 %v2072, %v2209
      %v2327 = vadd.f32 %v2073, %v2211
      %v2328 = vadd.f32 %v2074, %v2214
      %v2329 = vadd.f32 %v2075, %v2216
      %v2330 = vadd.f32 %v2076, %v2219
      %v2331 = vadd.f32 %v2077, %v2221
      %v2332 = vadd.f32 %v2078, %v2224
      %v2333 = vadd.f32 %v2079, %v2226
      %v2334 = vadd.f32 %v2080, %v2229
      %v2335 = vadd.f32 %v2081, %v2231
      %v2336 = vadd.f32 %v2082, %v2234
      %v2337 = vadd.f32 %v2083, %v2236
      %v2338 = vadd.f32 %v2084, %v2239
      %v2339 = vadd.f32 %v2085, %v2241
      %v2340 = vadd.f32 %v2086, %v2244
      %v2341 = vadd.f32 %v2087, %v2246
      %v2342 = vadd.f32 %v2088, %v2249
      %v2343 = vadd.f32 %v2089, %v2251
      %v2344 = vadd.f32 %v2090, %v2254
      %v2345 = vadd.f32 %v2091, %v2256
      %v2346 = vadd.f32 %v2092, %v2259
      %v2347 = vadd.f32 %v2093, %v2261
      %v2348 = vadd.f32 %v2094, %v2264
      %v2349 = vadd.f32 %v2095, %v2266
      %v2350 = vadd.f32 %v2096, %v2269
      %v2351 = vadd.f32 %v2097, %v2271
      %v2352 = vadd.f32 %v2098, %v2274
      %v2353 = vadd.f32 %v2099, %v2276
      %v2354 = vadd.f32 %v2100, %v2279
      %v2355 = vadd.f32 %v2101, %v2281
      %v2356 = vadd.f32 %v2102, %v2284
      %v2357 = vadd.f32 %v2103, %v2286
      %v2358 = vadd.f32 %v2104, %v2289
      %v2359 = vadd.f32 %v2105, %v2291
      %v2360 = vadd.f32 %v2106, %v2294
      %v2361 = vadd.f32 %v2107, %v2296
      %s2362 = scalar_lea.vmem %s1, 14
      %v2363 = vld [vmem:[%s2362] sm:$0x3]
      %v2368 = vunpack.c.l.b16 %v1576
      %v2369 = vunpack.c.l.b16 %v1577
      %v2370 = vunpack.c.l.b16 %v1612
      %v2371 = vunpack.c.l.b16 %v1613
      %v2372 = vpack.c.b16 %v2369, %v2368
      %v2373 = vpack.c.b16 %v2371, %v2370
      %v2375 = vsel %vm700, %v2372, 0
      %v2378 = vsel %vm700, %v2373, 0
      %v2381 = vsel %vm797, %v2363, 0
      %2383 = vmatpush.bf16.msra.mxu0 0
      %2384 = vmatpush.bf16.msra.mxu0 0
      %2385 = vmatpush.bf16.msra.mxu0 0
      %2386 = vmatpush.bf16.msra.mxu0 0
      %2387 = vmatpush.bf16.msra.mxu0 0
      %2388 = vmatpush.bf16.msra.mxu0 0
      %2389 = vmatpush.bf16.msra.mxu0 0
      %2390 = vmatpush.bf16.msra.mxu0 %v2381
      %2391 = vmatmul.bf16.gmra.mxu0 %v1783
      %v2392 = vpop.f32.mrf.mxu0
      %v2393 = vadd.f32 0.0, %v2392
      %v2394 = vpop.f32.mrf.mxu0
      %v2395 = vadd.f32 0.0, %v2394
      %2396 = vmatmul.bf16.gmra.mxu0 %v1786
      %v2397 = vpop.f32.mrf.mxu0
      %v2398 = vadd.f32 0.0, %v2397
      %v2399 = vpop.f32.mrf.mxu0
      %v2400 = vadd.f32 0.0, %v2399
      %2401 = vmatmul.bf16.gmra.mxu0 %v1789
      %v2402 = vpop.f32.mrf.mxu0
      %v2403 = vadd.f32 0.0, %v2402
      %v2404 = vpop.f32.mrf.mxu0
      %v2405 = vadd.f32 0.0, %v2404
      %2406 = vmatmul.bf16.gmra.mxu0 %v1792
      %v2407 = vpop.f32.mrf.mxu0
      %v2408 = vadd.f32 0.0, %v2407
      %v2409 = vpop.f32.mrf.mxu0
      %v2410 = vadd.f32 0.0, %v2409
      %2411 = vmatmul.bf16.gmra.mxu0 %v1795
      %v2412 = vpop.f32.mrf.mxu0
      %v2413 = vadd.f32 0.0, %v2412
      %v2414 = vpop.f32.mrf.mxu0
      %v2415 = vadd.f32 0.0, %v2414
      %2416 = vmatmul.bf16.gmra.mxu0 %v1798
      %v2417 = vpop.f32.mrf.mxu0
      %v2418 = vadd.f32 0.0, %v2417
      %v2419 = vpop.f32.mrf.mxu0
      %v2420 = vadd.f32 0.0, %v2419
      %2421 = vmatmul.bf16.gmra.mxu0 %v1801
      %v2422 = vpop.f32.mrf.mxu0
      %v2423 = vadd.f32 0.0, %v2422
      %v2424 = vpop.f32.mrf.mxu0
      %v2425 = vadd.f32 0.0, %v2424
      %2426 = vmatmul.bf16.gmra.mxu0 %v1804
      %v2427 = vpop.f32.mrf.mxu0
      %v2428 = vadd.f32 0.0, %v2427
      %v2429 = vpop.f32.mrf.mxu0
      %v2430 = vadd.f32 0.0, %v2429
      %2431 = vmatmul.bf16.gmra.mxu0 %v1807
      %v2432 = vpop.f32.mrf.mxu0
      %v2433 = vadd.f32 0.0, %v2432
      %v2434 = vpop.f32.mrf.mxu0
      %v2435 = vadd.f32 0.0, %v2434
      %2436 = vmatmul.bf16.gmra.mxu0 %v1810
      %v2437 = vpop.f32.mrf.mxu0
      %v2438 = vadd.f32 0.0, %v2437
      %v2439 = vpop.f32.mrf.mxu0
      %v2440 = vadd.f32 0.0, %v2439
      %2441 = vmatmul.bf16.gmra.mxu0 %v1813
      %v2442 = vpop.f32.mrf.mxu0
      %v2443 = vadd.f32 0.0, %v2442
      %v2444 = vpop.f32.mrf.mxu0
      %v2445 = vadd.f32 0.0, %v2444
      %2446 = vmatmul.bf16.gmra.mxu0 %v1816
      %v2447 = vpop.f32.mrf.mxu0
      %v2448 = vadd.f32 0.0, %v2447
      %v2449 = vpop.f32.mrf.mxu0
      %v2450 = vadd.f32 0.0, %v2449
      %2451 = vmatmul.bf16.gmra.mxu0 %v1819
      %v2452 = vpop.f32.mrf.mxu0
      %v2453 = vadd.f32 0.0, %v2452
      %v2454 = vpop.f32.mrf.mxu0
      %v2455 = vadd.f32 0.0, %v2454
      %2456 = vmatmul.bf16.gmra.mxu0 %v1822
      %v2457 = vpop.f32.mrf.mxu0
      %v2458 = vadd.f32 0.0, %v2457
      %v2459 = vpop.f32.mrf.mxu0
      %v2460 = vadd.f32 0.0, %v2459
      %2461 = vmatmul.bf16.gmra.mxu0 %v2121
      %v2462 = vpop.f32.mrf.mxu0
      %v2463 = vadd.f32 0.0, %v2462
      %v2464 = vpop.f32.mrf.mxu0
      %v2465 = vadd.f32 0.0, %v2464
      %2466 = vmatmul.bf16.gmra.mxu0 %v2375
      %v2467 = vpop.f32.mrf.mxu0
      %v2468 = vadd.f32 0.0, %v2467
      %v2469 = vpop.f32.mrf.mxu0
      %v2470 = vadd.f32 0.0, %v2469
      %2471 = vmatmul.bf16.gmra.mxu0 %v1831
      %v2472 = vpop.f32.mrf.mxu0
      %v2473 = vadd.f32 0.0, %v2472
      %v2474 = vpop.f32.mrf.mxu0
      %v2475 = vadd.f32 0.0, %v2474
      %2476 = vmatmul.bf16.gmra.mxu0 %v1834
      %v2477 = vpop.f32.mrf.mxu0
      %v2478 = vadd.f32 0.0, %v2477
      %v2479 = vpop.f32.mrf.mxu0
      %v2480 = vadd.f32 0.0, %v2479
      %2481 = vmatmul.bf16.gmra.mxu0 %v1837
      %v2482 = vpop.f32.mrf.mxu0
      %v2483 = vadd.f32 0.0, %v2482
      %v2484 = vpop.f32.mrf.mxu0
      %v2485 = vadd.f32 0.0, %v2484
      %2486 = vmatmul.bf16.gmra.mxu0 %v1840
      %v2487 = vpop.f32.mrf.mxu0
      %v2488 = vadd.f32 0.0, %v2487
      %v2489 = vpop.f32.mrf.mxu0
      %v2490 = vadd.f32 0.0, %v2489
      %2491 = vmatmul.bf16.gmra.mxu0 %v1843
      %v2492 = vpop.f32.mrf.mxu0
      %v2493 = vadd.f32 0.0, %v2492
      %v2494 = vpop.f32.mrf.mxu0
      %v2495 = vadd.f32 0.0, %v2494
      %2496 = vmatmul.bf16.gmra.mxu0 %v1846
      %v2497 = vpop.f32.mrf.mxu0
      %v2498 = vadd.f32 0.0, %v2497
      %v2499 = vpop.f32.mrf.mxu0
      %v2500 = vadd.f32 0.0, %v2499
      %2501 = vmatmul.bf16.gmra.mxu0 %v1849
      %v2502 = vpop.f32.mrf.mxu0
      %v2503 = vadd.f32 0.0, %v2502
      %v2504 = vpop.f32.mrf.mxu0
      %v2505 = vadd.f32 0.0, %v2504
      %2506 = vmatmul.bf16.gmra.mxu0 %v1852
      %v2507 = vpop.f32.mrf.mxu0
      %v2508 = vadd.f32 0.0, %v2507
      %v2509 = vpop.f32.mrf.mxu0
      %v2510 = vadd.f32 0.0, %v2509
      %2511 = vmatmul.bf16.gmra.mxu0 %v1855
      %v2512 = vpop.f32.mrf.mxu0
      %v2513 = vadd.f32 0.0, %v2512
      %v2514 = vpop.f32.mrf.mxu0
      %v2515 = vadd.f32 0.0, %v2514
      %2516 = vmatmul.bf16.gmra.mxu0 %v1858
      %v2517 = vpop.f32.mrf.mxu0
      %v2518 = vadd.f32 0.0, %v2517
      %v2519 = vpop.f32.mrf.mxu0
      %v2520 = vadd.f32 0.0, %v2519
      %2521 = vmatmul.bf16.gmra.mxu0 %v1861
      %v2522 = vpop.f32.mrf.mxu0
      %v2523 = vadd.f32 0.0, %v2522
      %v2524 = vpop.f32.mrf.mxu0
      %v2525 = vadd.f32 0.0, %v2524
      %2526 = vmatmul.bf16.gmra.mxu0 %v1864
      %v2527 = vpop.f32.mrf.mxu0
      %v2528 = vadd.f32 0.0, %v2527
      %v2529 = vpop.f32.mrf.mxu0
      %v2530 = vadd.f32 0.0, %v2529
      %2531 = vmatmul.bf16.gmra.mxu0 %v1867
      %v2532 = vpop.f32.mrf.mxu0
      %v2533 = vadd.f32 0.0, %v2532
      %v2534 = vpop.f32.mrf.mxu0
      %v2535 = vadd.f32 0.0, %v2534
      %2536 = vmatmul.bf16.gmra.mxu0 %v1870
      %v2537 = vpop.f32.mrf.mxu0
      %v2538 = vadd.f32 0.0, %v2537
      %v2539 = vpop.f32.mrf.mxu0
      %v2540 = vadd.f32 0.0, %v2539
      %2541 = vmatmul.bf16.gmra.mxu0 %v2124
      %v2542 = vpop.f32.mrf.mxu0
      %v2543 = vadd.f32 0.0, %v2542
      %v2544 = vpop.f32.mrf.mxu0
      %v2545 = vadd.f32 0.0, %v2544
      %2546 = vmatmul.bf16.gmra.mxu0 %v2378
      %v2547 = vpop.f32.mrf.mxu0
      %v2548 = vadd.f32 0.0, %v2547
      %v2549 = vpop.f32.mrf.mxu0
      %v2550 = vadd.f32 0.0, %v2549
      %2551 = vdwg.mxu0
      %v2552 = vadd.f32 %v2298, %v2393
      %v2553 = vadd.f32 %v2299, %v2395
      %v2554 = vadd.f32 %v2300, %v2398
      %v2555 = vadd.f32 %v2301, %v2400
      %v2556 = vadd.f32 %v2302, %v2403
      %v2557 = vadd.f32 %v2303, %v2405
      %v2558 = vadd.f32 %v2304, %v2408
      %v2559 = vadd.f32 %v2305, %v2410
      %v2560 = vadd.f32 %v2306, %v2413
      %v2561 = vadd.f32 %v2307, %v2415
      %v2562 = vadd.f32 %v2308, %v2418
      %v2563 = vadd.f32 %v2309, %v2420
      %v2564 = vadd.f32 %v2310, %v2423
      %v2565 = vadd.f32 %v2311, %v2425
      %v2566 = vadd.f32 %v2312, %v2428
      %v2567 = vadd.f32 %v2313, %v2430
      %v2568 = vadd.f32 %v2314, %v2433
      %v2569 = vadd.f32 %v2315, %v2435
      %v2570 = vadd.f32 %v2316, %v2438
      %v2571 = vadd.f32 %v2317, %v2440
      %v2572 = vadd.f32 %v2318, %v2443
      %v2573 = vadd.f32 %v2319, %v2445
      %v2574 = vadd.f32 %v2320, %v2448
      %v2575 = vadd.f32 %v2321, %v2450
      %v2576 = vadd.f32 %v2322, %v2453
      %v2577 = vadd.f32 %v2323, %v2455
      %v2578 = vadd.f32 %v2324, %v2458
      %v2579 = vadd.f32 %v2325, %v2460
      %v2580 = vadd.f32 %v2326, %v2463
      %v2581 = vadd.f32 %v2327, %v2465
      %v2582 = vadd.f32 %v2328, %v2468
      %v2583 = vadd.f32 %v2329, %v2470
      %v2584 = vadd.f32 %v2330, %v2473
      %v2585 = vadd.f32 %v2331, %v2475
      %v2586 = vadd.f32 %v2332, %v2478
      %v2587 = vadd.f32 %v2333, %v2480
      %v2588 = vadd.f32 %v2334, %v2483
      %v2589 = vadd.f32 %v2335, %v2485
      %v2590 = vadd.f32 %v2336, %v2488
      %v2591 = vadd.f32 %v2337, %v2490
      %v2592 = vadd.f32 %v2338, %v2493
      %v2593 = vadd.f32 %v2339, %v2495
      %v2594 = vadd.f32 %v2340, %v2498
      %v2595 = vadd.f32 %v2341, %v2500
      %v2596 = vadd.f32 %v2342, %v2503
      %v2597 = vadd.f32 %v2343, %v2505
      %v2598 = vadd.f32 %v2344, %v2508
      %v2599 = vadd.f32 %v2345, %v2510
      %v2600 = vadd.f32 %v2346, %v2513
      %v2601 = vadd.f32 %v2347, %v2515
      %v2602 = vadd.f32 %v2348, %v2518
      %v2603 = vadd.f32 %v2349, %v2520
      %v2604 = vadd.f32 %v2350, %v2523
      %v2605 = vadd.f32 %v2351, %v2525
      %v2606 = vadd.f32 %v2352, %v2528
      %v2607 = vadd.f32 %v2353, %v2530
      %v2608 = vadd.f32 %v2354, %v2533
      %v2609 = vadd.f32 %v2355, %v2535
      %v2610 = vadd.f32 %v2356, %v2538
      %v2611 = vadd.f32 %v2357, %v2540
      %v2612 = vadd.f32 %v2358, %v2543
      %v2613 = vadd.f32 %v2359, %v2545
      %v2614 = vadd.f32 %v2360, %v2548
      %v2615 = vadd.f32 %v2361, %v2550
      %v2616 = vrot.slane %v172, 1
      %v2617 = vrot.slane %v175, 1
      %v2618 = vrot.slane %v178, 1
      %v2619 = vrot.slane %v181, 1
      %v2620 = vrot.slane %v184, 1
      %v2621 = vrot.slane %v187, 1
      %v2622 = vrot.slane %v190, 1
      %v2623 = vrot.slane %v193, 1
      %v2624 = vrot.slane %v196, 1
      %v2625 = vrot.slane %v199, 1
      %v2626 = vrot.slane %v202, 1
      %v2627 = vrot.slane %v205, 1
      %v2628 = vrot.slane %v208, 1
      %v2629 = vrot.slane %v211, 1
      %v2630 = vrot.slane %v214, 1
      %v2631 = vrot.slane %v217, 1
      %v2632 = vrot.slane %v220, 1
      %v2633 = vrot.slane %v223, 1
      %v2634 = vrot.slane %v226, 1
      %v2635 = vrot.slane %v229, 1
      %v2636 = vrot.slane %v232, 1
      %v2637 = vrot.slane %v235, 1
      %v2638 = vrot.slane %v238, 1
      %v2639 = vrot.slane %v241, 1
      %v2640 = vrot.slane %v244, 1
      %v2641 = vrot.slane %v247, 1
      %v2642 = vrot.slane %v250, 1
      %v2643 = vrot.slane %v253, 1
      %v2644 = vrot.slane %v256, 1
      %v2645 = vrot.slane %v259, 1
      %v2646 = vrot.slane %v262, 1
      %v2647 = vrot.slane %v265, 1
      %v2648 = vrot.slane %v268, 1
      %v2649 = vrot.slane %v271, 1
      %v2650 = vrot.slane %v274, 1
      %v2651 = vrot.slane %v277, 1
      %v2652 = vrot.slane %v173, 1
      %v2653 = vrot.slane %v176, 1
      %v2654 = vrot.slane %v179, 1
      %v2655 = vrot.slane %v182, 1
      %v2656 = vrot.slane %v185, 1
      %v2657 = vrot.slane %v188, 1
      %v2658 = vrot.slane %v191, 1
      %v2659 = vrot.slane %v194, 1
      %v2660 = vrot.slane %v197, 1
      %v2661 = vrot.slane %v200, 1
      %v2662 = vrot.slane %v203, 1
      %v2663 = vrot.slane %v206, 1
      %v2664 = vrot.slane %v209, 1
      %v2665 = vrot.slane %v212, 1
      %v2666 = vrot.slane %v215, 1
      %v2667 = vrot.slane %v218, 1
      %v2668 = vrot.slane %v221, 1
      %v2669 = vrot.slane %v224, 1
      %v2670 = vrot.slane %v227, 1
      %v2671 = vrot.slane %v230, 1
      %v2672 = vrot.slane %v233, 1
      %v2673 = vrot.slane %v236, 1
      %v2674 = vrot.slane %v239, 1
      %v2675 = vrot.slane %v242, 1
      %v2676 = vrot.slane %v245, 1
      %v2677 = vrot.slane %v248, 1
      %v2678 = vrot.slane %v251, 1
      %v2679 = vrot.slane %v254, 1
      %v2680 = vrot.slane %v257, 1
      %v2681 = vrot.slane %v260, 1
      %v2682 = vrot.slane %v263, 1
      %v2683 = vrot.slane %v266, 1
      %v2684 = vrot.slane %v269, 1
      %v2685 = vrot.slane %v272, 1
      %v2686 = vrot.slane %v275, 1
      %v2687 = vrot.slane %v278, 1
      %v2688 = vrot.slane %v174, 1
      %v2689 = vrot.slane %v177, 1
      %v2690 = vrot.slane %v180, 1
      %v2691 = vrot.slane %v183, 1
      %v2692 = vrot.slane %v186, 1
      %v2693 = vrot.slane %v189, 1
      %v2694 = vrot.slane %v192, 1
      %v2695 = vrot.slane %v195, 1
      %v2696 = vrot.slane %v198, 1
      %v2697 = vrot.slane %v201, 1
      %v2698 = vrot.slane %v204, 1
      %v2699 = vrot.slane %v207, 1
      %v2700 = vrot.slane %v210, 1
      %v2701 = vrot.slane %v213, 1
      %v2702 = vrot.slane %v216, 1
      %v2703 = vrot.slane %v219, 1
      %v2704 = vrot.slane %v222, 1
      %v2705 = vrot.slane %v225, 1
      %v2706 = vrot.slane %v228, 1
      %v2707 = vrot.slane %v231, 1
      %v2708 = vrot.slane %v234, 1
      %v2709 = vrot.slane %v237, 1
      %v2710 = vrot.slane %v240, 1
      %v2711 = vrot.slane %v243, 1
      %v2712 = vrot.slane %v246, 1
      %v2713 = vrot.slane %v249, 1
      %v2714 = vrot.slane %v252, 1
      %v2715 = vrot.slane %v255, 1
      %v2716 = vrot.slane %v258, 1
      %v2717 = vrot.slane %v261, 1
      %v2718 = vrot.slane %v264, 1
      %v2719 = vrot.slane %v267, 1
      %v2720 = vrot.slane %v270, 1
      %v2721 = vrot.slane %v273, 1
      %v2722 = vrot.slane %v276, 1
      %v2723 = vrot.slane %v279, 1
      %vm2724 = vcmp.lt.s32.totalorder %v393, 7
      %v2725 = vsel %vm2724, %v2652, %v2688
      %v2726 = vsel %vm2724, %v2653, %v2689
      %v2727 = vsel %vm2724, %v2654, %v2690
      %v2728 = vsel %vm2724, %v2655, %v2691
      %v2729 = vsel %vm2724, %v2656, %v2692
      %v2730 = vsel %vm2724, %v2657, %v2693
      %v2731 = vsel %vm2724, %v2658, %v2694
      %v2732 = vsel %vm2724, %v2659, %v2695
      %v2733 = vsel %vm2724, %v2660, %v2696
      %v2734 = vsel %vm2724, %v2661, %v2697
      %v2735 = vsel %vm2724, %v2662, %v2698
      %v2736 = vsel %vm2724, %v2663, %v2699
      %v2737 = vsel %vm2724, %v2664, %v2700
      %v2738 = vsel %vm2724, %v2665, %v2701
      %v2739 = vsel %vm2724, %v2666, %v2702
      %v2740 = vsel %vm2724, %v2667, %v2703
      %v2741 = vsel %vm2724, %v2668, %v2704
      %v2742 = vsel %vm2724, %v2669, %v2705
      %v2743 = vsel %vm2724, %v2670, %v2706
      %v2744 = vsel %vm2724, %v2671, %v2707
      %v2745 = vsel %vm2724, %v2672, %v2708
      %v2746 = vsel %vm2724, %v2673, %v2709
      %v2747 = vsel %vm2724, %v2674, %v2710
      %v2748 = vsel %vm2724, %v2675, %v2711
      %v2749 = vsel %vm2724, %v2676, %v2712
      %v2750 = vsel %vm2724, %v2677, %v2713
      %v2751 = vsel %vm2724, %v2678, %v2714
      %v2752 = vsel %vm2724, %v2679, %v2715
      %v2753 = vsel %vm2724, %v2680, %v2716
      %v2754 = vsel %vm2724, %v2681, %v2717
      %v2755 = vsel %vm2724, %v2682, %v2718
      %v2756 = vsel %vm2724, %v2683, %v2719
      %v2757 = vsel %vm2724, %v2684, %v2720
      %v2758 = vsel %vm2724, %v2685, %v2721
      %v2759 = vsel %vm2724, %v2686, %v2722
      %v2760 = vsel %vm2724, %v2687, %v2723
      %v2761 = vsel %vm2724, %v2616, %v2652
      %v2762 = vsel %vm2724, %v2617, %v2653
      %v2763 = vsel %vm2724, %v2618, %v2654
      %v2764 = vsel %vm2724, %v2619, %v2655
      %v2765 = vsel %vm2724, %v2620, %v2656
      %v2766 = vsel %vm2724, %v2621, %v2657
      %v2767 = vsel %vm2724, %v2622, %v2658
      %v2768 = vsel %vm2724, %v2623, %v2659
      %v2769 = vsel %vm2724, %v2624, %v2660
      %v2770 = vsel %vm2724, %v2625, %v2661
      %v2771 = vsel %vm2724, %v2626, %v2662
      %v2772 = vsel %vm2724, %v2627, %v2663
      %v2773 = vsel %vm2724, %v2628, %v2664
      %v2774 = vsel %vm2724, %v2629, %v2665
      %v2775 = vsel %vm2724, %v2630, %v2666
      %v2776 = vsel %vm2724, %v2631, %v2667
      %v2777 = vsel %vm2724, %v2632, %v2668
      %v2778 = vsel %vm2724, %v2633, %v2669
      %v2779 = vsel %vm2724, %v2634, %v2670
      %v2780 = vsel %vm2724, %v2635, %v2671
      %v2781 = vsel %vm2724, %v2636, %v2672
      %v2782 = vsel %vm2724, %v2637, %v2673
      %v2783 = vsel %vm2724, %v2638, %v2674
      %v2784 = vsel %vm2724, %v2639, %v2675
      %v2785 = vsel %vm2724, %v2640, %v2676
      %v2786 = vsel %vm2724, %v2641, %v2677
      %v2787 = vsel %vm2724, %v2642, %v2678
      %v2788 = vsel %vm2724, %v2643, %v2679
      %v2789 = vsel %vm2724, %v2644, %v2680
      %v2790 = vsel %vm2724, %v2645, %v2681
      %v2791 = vsel %vm2724, %v2646, %v2682
      %v2792 = vsel %vm2724, %v2647, %v2683
      %v2793 = vsel %vm2724, %v2648, %v2684
      %v2794 = vsel %vm2724, %v2649, %v2685
      %v2795 = vsel %vm2724, %v2650, %v2686
      %v2796 = vsel %vm2724, %v2651, %v2687
      %v2797 = vpack.c.bf16 %v2761, %v2761
      %v2798 = vpack.c.bf16 %v2725, %v2725
      %v2799 = vpack.c.bf16 %v2762, %v2762
      %v2800 = vpack.c.bf16 %v2726, %v2726
      %v2801 = vpack.c.bf16 %v2763, %v2763
      %v2802 = vpack.c.bf16 %v2727, %v2727
      %v2803 = vpack.c.bf16 %v2764, %v2764
      %v2804 = vpack.c.bf16 %v2728, %v2728
      %v2805 = vpack.c.bf16 %v2765, %v2765
      %v2806 = vpack.c.bf16 %v2729, %v2729
      %v2807 = vpack.c.bf16 %v2766, %v2766
      %v2808 = vpack.c.bf16 %v2730, %v2730
      %v2809 = vpack.c.bf16 %v2767, %v2767
      %v2810 = vpack.c.bf16 %v2731, %v2731
      %v2811 = vpack.c.bf16 %v2768, %v2768
      %v2812 = vpack.c.bf16 %v2732, %v2732
      %v2813 = vpack.c.bf16 %v2769, %v2769
      %v2814 = vpack.c.bf16 %v2733, %v2733
      %v2815 = vpack.c.bf16 %v2770, %v2770
      %v2816 = vpack.c.bf16 %v2734, %v2734
      %v2817 = vpack.c.bf16 %v2771, %v2771
      %v2818 = vpack.c.bf16 %v2735, %v2735
      %v2819 = vpack.c.bf16 %v2772, %v2772
      %v2820 = vpack.c.bf16 %v2736, %v2736
      %v2821 = vpack.c.bf16 %v2773, %v2773
      %v2822 = vpack.c.bf16 %v2737, %v2737
      %v2823 = vpack.c.bf16 %v2774, %v2774
      %v2824 = vpack.c.bf16 %v2738, %v2738
      %v2825 = vpack.c.bf16 %v2775, %v2775
      %v2826 = vpack.c.bf16 %v2739, %v2739
      %v2827 = vpack.c.bf16 %v2776, %v2776
      %v2828 = vpack.c.bf16 %v2740, %v2740
      %v2829 = vpack.c.bf16 %v2777, %v2777
      %v2830 = vpack.c.bf16 %v2741, %v2741
      %v2831 = vpack.c.bf16 %v2778, %v2778
      %v2832 = vpack.c.bf16 %v2742, %v2742
      %v2833 = vpack.c.bf16 %v2779, %v2779
      %v2834 = vpack.c.bf16 %v2743, %v2743
      %v2835 = vpack.c.bf16 %v2780, %v2780
      %v2836 = vpack.c.bf16 %v2744, %v2744
      %v2837 = vpack.c.bf16 %v2781, %v2781
      %v2838 = vpack.c.bf16 %v2745, %v2745
      %v2839 = vpack.c.bf16 %v2782, %v2782
      %v2840 = vpack.c.bf16 %v2746, %v2746
      %v2841 = vpack.c.bf16 %v2783, %v2783
      %v2842 = vpack.c.bf16 %v2747, %v2747
      %v2843 = vpack.c.bf16 %v2784, %v2784
      %v2844 = vpack.c.bf16 %v2748, %v2748
      %v2845 = vpack.c.bf16 %v2785, %v2785
      %v2846 = vpack.c.bf16 %v2749, %v2749
      %v2847 = vpack.c.bf16 %v2786, %v2786
      %v2848 = vpack.c.bf16 %v2750, %v2750
      %v2849 = vpack.c.bf16 %v2787, %v2787
      %v2850 = vpack.c.bf16 %v2751, %v2751
      %v2851 = vpack.c.bf16 %v2788, %v2788
      %v2852 = vpack.c.bf16 %v2752, %v2752
      %v2853 = vpack.c.bf16 %v2789, %v2789
      %v2854 = vpack.c.bf16 %v2753, %v2753
      %v2855 = vpack.c.bf16 %v2790, %v2790
      %v2856 = vpack.c.bf16 %v2754, %v2754
      %v2857 = vpack.c.bf16 %v2791, %v2791
      %v2858 = vpack.c.bf16 %v2755, %v2755
      %v2859 = vpack.c.bf16 %v2792, %v2792
      %v2860 = vpack.c.bf16 %v2756, %v2756
      %v2861 = vpack.c.bf16 %v2793, %v2793
      %v2862 = vpack.c.bf16 %v2757, %v2757
      %v2863 = vpack.c.bf16 %v2794, %v2794
      %v2864 = vpack.c.bf16 %v2758, %v2758
      %v2865 = vpack.c.bf16 %v2795, %v2795
      %v2866 = vpack.c.bf16 %v2759, %v2759
      %v2867 = vpack.c.bf16 %v2796, %v2796
      %v2868 = vpack.c.bf16 %v2760, %v2760
      %s2869 = scalar_lea.vmem %s1, 4
      %v2870 = vld [vmem:[%s2869] sm:$0x3]
      %v2935 = vunpack.c.l.b16 %v2797
      %v2936 = vunpack.c.l.b16 %v2798
      %v2937 = vunpack.c.l.b16 %v2799
      %v2938 = vunpack.c.l.b16 %v2800
      %v2939 = vunpack.c.l.b16 %v2801
      %v2940 = vunpack.c.l.b16 %v2802
      %v2941 = vunpack.c.l.b16 %v2803
      %v2942 = vunpack.c.l.b16 %v2804
      %v2943 = vunpack.c.l.b16 %v2805
      %v2944 = vunpack.c.l.b16 %v2806
      %v2945 = vunpack.c.l.b16 %v2807
      %v2946 = vunpack.c.l.b16 %v2808
      %v2947 = vunpack.c.l.b16 %v2809
      %v2948 = vunpack.c.l.b16 %v2810
      %v2949 = vunpack.c.l.b16 %v2811
      %v2950 = vunpack.c.l.b16 %v2812
      %v2951 = vunpack.c.l.b16 %v2813
      %v2952 = vunpack.c.l.b16 %v2814
      %v2953 = vunpack.c.l.b16 %v2815
      %v2954 = vunpack.c.l.b16 %v2816
      %v2955 = vunpack.c.l.b16 %v2817
      %v2956 = vunpack.c.l.b16 %v2818
      %v2957 = vunpack.c.l.b16 %v2819
      %v2958 = vunpack.c.l.b16 %v2820
      %v2959 = vunpack.c.l.b16 %v2821
      %v2960 = vunpack.c.l.b16 %v2822
      %v2961 = vunpack.c.l.b16 %v2823
      %v2962 = vunpack.c.l.b16 %v2824
      %v2963 = vunpack.c.l.b16 %v2825
      %v2964 = vunpack.c.l.b16 %v2826
      %v2965 = vunpack.c.l.b16 %v2827
      %v2966 = vunpack.c.l.b16 %v2828
      %v2967 = vunpack.c.l.b16 %v2833
      %v2968 = vunpack.c.l.b16 %v2834
      %v2969 = vunpack.c.l.b16 %v2835
      %v2970 = vunpack.c.l.b16 %v2836
      %v2971 = vunpack.c.l.b16 %v2837
      %v2972 = vunpack.c.l.b16 %v2838
      %v2973 = vunpack.c.l.b16 %v2839
      %v2974 = vunpack.c.l.b16 %v2840
      %v2975 = vunpack.c.l.b16 %v2841
      %v2976 = vunpack.c.l.b16 %v2842
      %v2977 = vunpack.c.l.b16 %v2843
      %v2978 = vunpack.c.l.b16 %v2844
      %v2979 = vunpack.c.l.b16 %v2845
      %v2980 = vunpack.c.l.b16 %v2846
      %v2981 = vunpack.c.l.b16 %v2847
      %v2982 = vunpack.c.l.b16 %v2848
      %v2983 = vunpack.c.l.b16 %v2849
      %v2984 = vunpack.c.l.b16 %v2850
      %v2985 = vunpack.c.l.b16 %v2851
      %v2986 = vunpack.c.l.b16 %v2852
      %v2987 = vunpack.c.l.b16 %v2853
      %v2988 = vunpack.c.l.b16 %v2854
      %v2989 = vunpack.c.l.b16 %v2855
      %v2990 = vunpack.c.l.b16 %v2856
      %v2991 = vunpack.c.l.b16 %v2857
      %v2992 = vunpack.c.l.b16 %v2858
      %v2993 = vunpack.c.l.b16 %v2859
      %v2994 = vunpack.c.l.b16 %v2860
      %v2995 = vunpack.c.l.b16 %v2861
      %v2996 = vunpack.c.l.b16 %v2862
      %v2997 = vunpack.c.l.b16 %v2863
      %v2998 = vunpack.c.l.b16 %v2864
      %v2999 = vpack.c.b16 %v2936, %v2935
      %v3000 = vpack.c.b16 %v2938, %v2937
      %v3001 = vpack.c.b16 %v2940, %v2939
      %v3002 = vpack.c.b16 %v2942, %v2941
      %v3003 = vpack.c.b16 %v2944, %v2943
      %v3004 = vpack.c.b16 %v2946, %v2945
      %v3005 = vpack.c.b16 %v2948, %v2947
      %v3006 = vpack.c.b16 %v2950, %v2949
      %v3007 = vpack.c.b16 %v2952, %v2951
      %v3008 = vpack.c.b16 %v2954, %v2953
      %v3009 = vpack.c.b16 %v2956, %v2955
      %v3010 = vpack.c.b16 %v2958, %v2957
      %v3011 = vpack.c.b16 %v2960, %v2959
      %v3012 = vpack.c.b16 %v2962, %v2961
      %v3013 = vpack.c.b16 %v2964, %v2963
      %v3014 = vpack.c.b16 %v2966, %v2965
      %v3015 = vpack.c.b16 %v2968, %v2967
      %v3016 = vpack.c.b16 %v2970, %v2969
      %v3017 = vpack.c.b16 %v2972, %v2971
      %v3018 = vpack.c.b16 %v2974, %v2973
      %v3019 = vpack.c.b16 %v2976, %v2975
      %v3020 = vpack.c.b16 %v2978, %v2977
      %v3021 = vpack.c.b16 %v2980, %v2979
      %v3022 = vpack.c.b16 %v2982, %v2981
      %v3023 = vpack.c.b16 %v2984, %v2983
      %v3024 = vpack.c.b16 %v2986, %v2985
      %v3025 = vpack.c.b16 %v2988, %v2987
      %v3026 = vpack.c.b16 %v2990, %v2989
      %v3027 = vpack.c.b16 %v2992, %v2991
      %v3028 = vpack.c.b16 %v2994, %v2993
      %v3029 = vpack.c.b16 %v2996, %v2995
      %v3030 = vpack.c.b16 %v2998, %v2997
      %v3032 = vsel %vm700, %v2999, 0
      %v3035 = vsel %vm700, %v3000, 0
      %v3038 = vsel %vm700, %v3001, 0
      %v3041 = vsel %vm700, %v3002, 0
      %v3044 = vsel %vm700, %v3003, 0
      %v3047 = vsel %vm700, %v3004, 0
      %v3050 = vsel %vm700, %v3005, 0
      %v3053 = vsel %vm700, %v3006, 0
      %v3056 = vsel %vm700, %v3007, 0
      %v3059 = vsel %vm700, %v3008, 0
      %v3062 = vsel %vm700, %v3009, 0
      %v3065 = vsel %vm700, %v3010, 0
      %v3068 = vsel %vm700, %v3011, 0
      %v3071 = vsel %vm700, %v3012, 0
      %v3074 = vsel %vm700, %v3013, 0
      %v3077 = vsel %vm700, %v3014, 0
      %v3080 = vsel %vm700, %v3015, 0
      %v3083 = vsel %vm700, %v3016, 0
      %v3086 = vsel %vm700, %v3017, 0
      %v3089 = vsel %vm700, %v3018, 0
      %v3092 = vsel %vm700, %v3019, 0
      %v3095 = vsel %vm700, %v3020, 0
      %v3098 = vsel %vm700, %v3021, 0
      %v3101 = vsel %vm700, %v3022, 0
      %v3104 = vsel %vm700, %v3023, 0
      %v3107 = vsel %vm700, %v3024, 0
      %v3110 = vsel %vm700, %v3025, 0
      %v3113 = vsel %vm700, %v3026, 0
      %v3116 = vsel %vm700, %v3027, 0
      %v3119 = vsel %vm700, %v3028, 0
      %v3122 = vsel %vm700, %v3029, 0
      %v3125 = vsel %vm700, %v3030, 0
      %v3128 = vsel %vm797, %v2870, 0
      %3130 = vmatpush.bf16.msra.mxu0 0
      %3131 = vmatpush.bf16.msra.mxu0 0
      %3132 = vmatpush.bf16.msra.mxu0 0
      %3133 = vmatpush.bf16.msra.mxu0 0
      %3134 = vmatpush.bf16.msra.mxu0 0
      %3135 = vmatpush.bf16.msra.mxu0 0
      %3136 = vmatpush.bf16.msra.mxu0 0
      %3137 = vmatpush.bf16.msra.mxu0 %v3128
      %3138 = vmatmul.bf16.gmra.mxu0 %v3032
      %v3139 = vpop.f32.mrf.mxu0
      %v3140 = vadd.f32 0.0, %v3139
      %v3141 = vpop.f32.mrf.mxu0
      %v3142 = vadd.f32 0.0, %v3141
      %3143 = vmatmul.bf16.gmra.mxu0 %v3035
      %v3144 = vpop.f32.mrf.mxu0
      %v3145 = vadd.f32 0.0, %v3144
      %v3146 = vpop.f32.mrf.mxu0
      %v3147 = vadd.f32 0.0, %v3146
      %3148 = vmatmul.bf16.gmra.mxu0 %v3038
      %v3149 = vpop.f32.mrf.mxu0
      %v3150 = vadd.f32 0.0, %v3149
      %v3151 = vpop.f32.mrf.mxu0
      %v3152 = vadd.f32 0.0, %v3151
      %3153 = vmatmul.bf16.gmra.mxu0 %v3041
      %v3154 = vpop.f32.mrf.mxu0
      %v3155 = vadd.f32 0.0, %v3154
      %v3156 = vpop.f32.mrf.mxu0
      %v3157 = vadd.f32 0.0, %v3156
      %3158 = vmatmul.bf16.gmra.mxu0 %v3044
      %v3159 = vpop.f32.mrf.mxu0
      %v3160 = vadd.f32 0.0, %v3159
      %v3161 = vpop.f32.mrf.mxu0
      %v3162 = vadd.f32 0.0, %v3161
      %3163 = vmatmul.bf16.gmra.mxu0 %v3047
      %v3164 = vpop.f32.mrf.mxu0
      %v3165 = vadd.f32 0.0, %v3164
      %v3166 = vpop.f32.mrf.mxu0
      %v3167 = vadd.f32 0.0, %v3166
      %3168 = vmatmul.bf16.gmra.mxu0 %v3050
      %v3169 = vpop.f32.mrf.mxu0
      %v3170 = vadd.f32 0.0, %v3169
      %v3171 = vpop.f32.mrf.mxu0
      %v3172 = vadd.f32 0.0, %v3171
      %3173 = vmatmul.bf16.gmra.mxu0 %v3053
      %v3174 = vpop.f32.mrf.mxu0
      %v3175 = vadd.f32 0.0, %v3174
      %v3176 = vpop.f32.mrf.mxu0
      %v3177 = vadd.f32 0.0, %v3176
      %3178 = vmatmul.bf16.gmra.mxu0 %v3056
      %v3179 = vpop.f32.mrf.mxu0
      %v3180 = vadd.f32 0.0, %v3179
      %v3181 = vpop.f32.mrf.mxu0
      %v3182 = vadd.f32 0.0, %v3181
      %3183 = vmatmul.bf16.gmra.mxu0 %v3059
      %v3184 = vpop.f32.mrf.mxu0
      %v3185 = vadd.f32 0.0, %v3184
      %v3186 = vpop.f32.mrf.mxu0
      %v3187 = vadd.f32 0.0, %v3186
      %3188 = vmatmul.bf16.gmra.mxu0 %v3062
      %v3189 = vpop.f32.mrf.mxu0
      %v3190 = vadd.f32 0.0, %v3189
      %v3191 = vpop.f32.mrf.mxu0
      %v3192 = vadd.f32 0.0, %v3191
      %3193 = vmatmul.bf16.gmra.mxu0 %v3065
      %v3194 = vpop.f32.mrf.mxu0
      %v3195 = vadd.f32 0.0, %v3194
      %v3196 = vpop.f32.mrf.mxu0
      %v3197 = vadd.f32 0.0, %v3196
      %3198 = vmatmul.bf16.gmra.mxu0 %v3068
      %v3199 = vpop.f32.mrf.mxu0
      %v3200 = vadd.f32 0.0, %v3199
      %v3201 = vpop.f32.mrf.mxu0
      %v3202 = vadd.f32 0.0, %v3201
      %3203 = vmatmul.bf16.gmra.mxu0 %v3071
      %v3204 = vpop.f32.mrf.mxu0
      %v3205 = vadd.f32 0.0, %v3204
      %v3206 = vpop.f32.mrf.mxu0
      %v3207 = vadd.f32 0.0, %v3206
      %3208 = vmatmul.bf16.gmra.mxu0 %v3074
      %v3209 = vpop.f32.mrf.mxu0
      %v3210 = vadd.f32 0.0, %v3209
      %v3211 = vpop.f32.mrf.mxu0
      %v3212 = vadd.f32 0.0, %v3211
      %3213 = vmatmul.bf16.gmra.mxu0 %v3077
      %v3214 = vpop.f32.mrf.mxu0
      %v3215 = vadd.f32 0.0, %v3214
      %v3216 = vpop.f32.mrf.mxu0
      %v3217 = vadd.f32 0.0, %v3216
      %3218 = vmatmul.bf16.gmra.mxu0 %v3080
      %v3219 = vpop.f32.mrf.mxu0
      %v3220 = vadd.f32 0.0, %v3219
      %v3221 = vpop.f32.mrf.mxu0
      %v3222 = vadd.f32 0.0, %v3221
      %3223 = vmatmul.bf16.gmra.mxu0 %v3083
      %v3224 = vpop.f32.mrf.mxu0
      %v3225 = vadd.f32 0.0, %v3224
      %v3226 = vpop.f32.mrf.mxu0
      %v3227 = vadd.f32 0.0, %v3226
      %3228 = vmatmul.bf16.gmra.mxu0 %v3086
      %v3229 = vpop.f32.mrf.mxu0
      %v3230 = vadd.f32 0.0, %v3229
      %v3231 = vpop.f32.mrf.mxu0
      %v3232 = vadd.f32 0.0, %v3231
      %3233 = vmatmul.bf16.gmra.mxu0 %v3089
      %v3234 = vpop.f32.mrf.mxu0
      %v3235 = vadd.f32 0.0, %v3234
      %v3236 = vpop.f32.mrf.mxu0
      %v3237 = vadd.f32 0.0, %v3236
      %3238 = vmatmul.bf16.gmra.mxu0 %v3092
      %v3239 = vpop.f32.mrf.mxu0
      %v3240 = vadd.f32 0.0, %v3239
      %v3241 = vpop.f32.mrf.mxu0
      %v3242 = vadd.f32 0.0, %v3241
      %3243 = vmatmul.bf16.gmra.mxu0 %v3095
      %v3244 = vpop.f32.mrf.mxu0
      %v3245 = vadd.f32 0.0, %v3244
      %v3246 = vpop.f32.mrf.mxu0
      %v3247 = vadd.f32 0.0, %v3246
      %3248 = vmatmul.bf16.gmra.mxu0 %v3098
      %v3249 = vpop.f32.mrf.mxu0
      %v3250 = vadd.f32 0.0, %v3249
      %v3251 = vpop.f32.mrf.mxu0
      %v3252 = vadd.f32 0.0, %v3251
      %3253 = vmatmul.bf16.gmra.mxu0 %v3101
      %v3254 = vpop.f32.mrf.mxu0
      %v3255 = vadd.f32 0.0, %v3254
      %v3256 = vpop.f32.mrf.mxu0
      %v3257 = vadd.f32 0.0, %v3256
      %3258 = vmatmul.bf16.gmra.mxu0 %v3104
      %v3259 = vpop.f32.mrf.mxu0
      %v3260 = vadd.f32 0.0, %v3259
      %v3261 = vpop.f32.mrf.mxu0
      %v3262 = vadd.f32 0.0, %v3261
      %3263 = vmatmul.bf16.gmra.mxu0 %v3107
      %v3264 = vpop.f32.mrf.mxu0
      %v3265 = vadd.f32 0.0, %v3264
      %v3266 = vpop.f32.mrf.mxu0
      %v3267 = vadd.f32 0.0, %v3266
      %3268 = vmatmul.bf16.gmra.mxu0 %v3110
      %v3269 = vpop.f32.mrf.mxu0
      %v3270 = vadd.f32 0.0, %v3269
      %v3271 = vpop.f32.mrf.mxu0
      %v3272 = vadd.f32 0.0, %v3271
      %3273 = vmatmul.bf16.gmra.mxu0 %v3113
      %v3274 = vpop.f32.mrf.mxu0
      %v3275 = vadd.f32 0.0, %v3274
      %v3276 = vpop.f32.mrf.mxu0
      %v3277 = vadd.f32 0.0, %v3276
      %3278 = vmatmul.bf16.gmra.mxu0 %v3116
      %v3279 = vpop.f32.mrf.mxu0
      %v3280 = vadd.f32 0.0, %v3279
      %v3281 = vpop.f32.mrf.mxu0
      %v3282 = vadd.f32 0.0, %v3281
      %3283 = vmatmul.bf16.gmra.mxu0 %v3119
      %v3284 = vpop.f32.mrf.mxu0
      %v3285 = vadd.f32 0.0, %v3284
      %v3286 = vpop.f32.mrf.mxu0
      %v3287 = vadd.f32 0.0, %v3286
      %3288 = vmatmul.bf16.gmra.mxu0 %v3122
      %v3289 = vpop.f32.mrf.mxu0
      %v3290 = vadd.f32 0.0, %v3289
      %v3291 = vpop.f32.mrf.mxu0
      %v3292 = vadd.f32 0.0, %v3291
      %3293 = vmatmul.bf16.gmra.mxu0 %v3125
      %v3294 = vpop.f32.mrf.mxu0
      %v3295 = vadd.f32 0.0, %v3294
      %v3296 = vpop.f32.mrf.mxu0
      %v3297 = vadd.f32 0.0, %v3296
      %3298 = vdwg.mxu0
      %v3299 = vadd.f32 %v2552, %v3140
      %v3300 = vadd.f32 %v2553, %v3142
      %v3301 = vadd.f32 %v2554, %v3145
      %v3302 = vadd.f32 %v2555, %v3147
      %v3303 = vadd.f32 %v2556, %v3150
      %v3304 = vadd.f32 %v2557, %v3152
      %v3305 = vadd.f32 %v2558, %v3155
      %v3306 = vadd.f32 %v2559, %v3157
      %v3307 = vadd.f32 %v2560, %v3160
      %v3308 = vadd.f32 %v2561, %v3162
      %v3309 = vadd.f32 %v2562, %v3165
      %v3310 = vadd.f32 %v2563, %v3167
      %v3311 = vadd.f32 %v2564, %v3170
      %v3312 = vadd.f32 %v2565, %v3172
      %v3313 = vadd.f32 %v2566, %v3175
      %v3314 = vadd.f32 %v2567, %v3177
      %v3315 = vadd.f32 %v2568, %v3180
      %v3316 = vadd.f32 %v2569, %v3182
      %v3317 = vadd.f32 %v2570, %v3185
      %v3318 = vadd.f32 %v2571, %v3187
      %v3319 = vadd.f32 %v2572, %v3190
      %v3320 = vadd.f32 %v2573, %v3192
      %v3321 = vadd.f32 %v2574, %v3195
      %v3322 = vadd.f32 %v2575, %v3197
      %v3323 = vadd.f32 %v2576, %v3200
      %v3324 = vadd.f32 %v2577, %v3202
      %v3325 = vadd.f32 %v2578, %v3205
      %v3326 = vadd.f32 %v2579, %v3207
      %v3327 = vadd.f32 %v2580, %v3210
      %v3328 = vadd.f32 %v2581, %v3212
      %v3329 = vadd.f32 %v2582, %v3215
      %v3330 = vadd.f32 %v2583, %v3217
      %v3331 = vadd.f32 %v2584, %v3220
      %v3332 = vadd.f32 %v2585, %v3222
      %v3333 = vadd.f32 %v2586, %v3225
      %v3334 = vadd.f32 %v2587, %v3227
      %v3335 = vadd.f32 %v2588, %v3230
      %v3336 = vadd.f32 %v2589, %v3232
      %v3337 = vadd.f32 %v2590, %v3235
      %v3338 = vadd.f32 %v2591, %v3237
      %v3339 = vadd.f32 %v2592, %v3240
      %v3340 = vadd.f32 %v2593, %v3242
      %v3341 = vadd.f32 %v2594, %v3245
      %v3342 = vadd.f32 %v2595, %v3247
      %v3343 = vadd.f32 %v2596, %v3250
      %v3344 = vadd.f32 %v2597, %v3252
      %v3345 = vadd.f32 %v2598, %v3255
      %v3346 = vadd.f32 %v2599, %v3257
      %v3347 = vadd.f32 %v2600, %v3260
      %v3348 = vadd.f32 %v2601, %v3262
      %v3349 = vadd.f32 %v2602, %v3265
      %v3350 = vadd.f32 %v2603, %v3267
      %v3351 = vadd.f32 %v2604, %v3270
      %v3352 = vadd.f32 %v2605, %v3272
      %v3353 = vadd.f32 %v2606, %v3275
      %v3354 = vadd.f32 %v2607, %v3277
      %v3355 = vadd.f32 %v2608, %v3280
      %v3356 = vadd.f32 %v2609, %v3282
      %v3357 = vadd.f32 %v2610, %v3285
      %v3358 = vadd.f32 %v2611, %v3287
      %v3359 = vadd.f32 %v2612, %v3290
      %v3360 = vadd.f32 %v2613, %v3292
      %v3361 = vadd.f32 %v2614, %v3295
      %v3362 = vadd.f32 %v2615, %v3297
      %s3363 = scalar_lea.vmem %s1, 10
      %v3364 = vld [vmem:[%s3363] sm:$0x3]
      %v3369 = vunpack.c.l.b16 %v2829
      %v3370 = vunpack.c.l.b16 %v2830
      %v3371 = vunpack.c.l.b16 %v2865
      %v3372 = vunpack.c.l.b16 %v2866
      %v3373 = vpack.c.b16 %v3370, %v3369
      %v3374 = vpack.c.b16 %v3372, %v3371
      %v3376 = vsel %vm700, %v3373, 0
      %v3379 = vsel %vm700, %v3374, 0
      %v3382 = vsel %vm797, %v3364, 0
      %3384 = vmatpush.bf16.msra.mxu0 0
      %3385 = vmatpush.bf16.msra.mxu0 0
      %3386 = vmatpush.bf16.msra.mxu0 0
      %3387 = vmatpush.bf16.msra.mxu0 0
      %3388 = vmatpush.bf16.msra.mxu0 0
      %3389 = vmatpush.bf16.msra.mxu0 0
      %3390 = vmatpush.bf16.msra.mxu0 0
      %3391 = vmatpush.bf16.msra.mxu0 %v3382
      %3392 = vmatmul.bf16.gmra.mxu0 %v3035
      %v3393 = vpop.f32.mrf.mxu0
      %v3394 = vadd.f32 0.0, %v3393
      %v3395 = vpop.f32.mrf.mxu0
      %v3396 = vadd.f32 0.0, %v3395
      %3397 = vmatmul.bf16.gmra.mxu0 %v3038
      %v3398 = vpop.f32.mrf.mxu0
      %v3399 = vadd.f32 0.0, %v3398
      %v3400 = vpop.f32.mrf.mxu0
      %v3401 = vadd.f32 0.0, %v3400
      %3402 = vmatmul.bf16.gmra.mxu0 %v3041
      %v3403 = vpop.f32.mrf.mxu0
      %v3404 = vadd.f32 0.0, %v3403
      %v3405 = vpop.f32.mrf.mxu0
      %v3406 = vadd.f32 0.0, %v3405
      %3407 = vmatmul.bf16.gmra.mxu0 %v3044
      %v3408 = vpop.f32.mrf.mxu0
      %v3409 = vadd.f32 0.0, %v3408
      %v3410 = vpop.f32.mrf.mxu0
      %v3411 = vadd.f32 0.0, %v3410
      %3412 = vmatmul.bf16.gmra.mxu0 %v3047
      %v3413 = vpop.f32.mrf.mxu0
      %v3414 = vadd.f32 0.0, %v3413
      %v3415 = vpop.f32.mrf.mxu0
      %v3416 = vadd.f32 0.0, %v3415
      %3417 = vmatmul.bf16.gmra.mxu0 %v3050
      %v3418 = vpop.f32.mrf.mxu0
      %v3419 = vadd.f32 0.0, %v3418
      %v3420 = vpop.f32.mrf.mxu0
      %v3421 = vadd.f32 0.0, %v3420
      %3422 = vmatmul.bf16.gmra.mxu0 %v3053
      %v3423 = vpop.f32.mrf.mxu0
      %v3424 = vadd.f32 0.0, %v3423
      %v3425 = vpop.f32.mrf.mxu0
      %v3426 = vadd.f32 0.0, %v3425
      %3427 = vmatmul.bf16.gmra.mxu0 %v3056
      %v3428 = vpop.f32.mrf.mxu0
      %v3429 = vadd.f32 0.0, %v3428
      %v3430 = vpop.f32.mrf.mxu0
      %v3431 = vadd.f32 0.0, %v3430
      %3432 = vmatmul.bf16.gmra.mxu0 %v3059
      %v3433 = vpop.f32.mrf.mxu0
      %v3434 = vadd.f32 0.0, %v3433
      %v3435 = vpop.f32.mrf.mxu0
      %v3436 = vadd.f32 0.0, %v3435
      %3437 = vmatmul.bf16.gmra.mxu0 %v3062
      %v3438 = vpop.f32.mrf.mxu0
      %v3439 = vadd.f32 0.0, %v3438
      %v3440 = vpop.f32.mrf.mxu0
      %v3441 = vadd.f32 0.0, %v3440
      %3442 = vmatmul.bf16.gmra.mxu0 %v3065
      %v3443 = vpop.f32.mrf.mxu0
      %v3444 = vadd.f32 0.0, %v3443
      %v3445 = vpop.f32.mrf.mxu0
      %v3446 = vadd.f32 0.0, %v3445
      %3447 = vmatmul.bf16.gmra.mxu0 %v3068
      %v3448 = vpop.f32.mrf.mxu0
      %v3449 = vadd.f32 0.0, %v3448
      %v3450 = vpop.f32.mrf.mxu0
      %v3451 = vadd.f32 0.0, %v3450
      %3452 = vmatmul.bf16.gmra.mxu0 %v3071
      %v3453 = vpop.f32.mrf.mxu0
      %v3454 = vadd.f32 0.0, %v3453
      %v3455 = vpop.f32.mrf.mxu0
      %v3456 = vadd.f32 0.0, %v3455
      %3457 = vmatmul.bf16.gmra.mxu0 %v3074
      %v3458 = vpop.f32.mrf.mxu0
      %v3459 = vadd.f32 0.0, %v3458
      %v3460 = vpop.f32.mrf.mxu0
      %v3461 = vadd.f32 0.0, %v3460
      %3462 = vmatmul.bf16.gmra.mxu0 %v3077
      %v3463 = vpop.f32.mrf.mxu0
      %v3464 = vadd.f32 0.0, %v3463
      %v3465 = vpop.f32.mrf.mxu0
      %v3466 = vadd.f32 0.0, %v3465
      %3467 = vmatmul.bf16.gmra.mxu0 %v3376
      %v3468 = vpop.f32.mrf.mxu0
      %v3469 = vadd.f32 0.0, %v3468
      %v3470 = vpop.f32.mrf.mxu0
      %v3471 = vadd.f32 0.0, %v3470
      %3472 = vmatmul.bf16.gmra.mxu0 %v3083
      %v3473 = vpop.f32.mrf.mxu0
      %v3474 = vadd.f32 0.0, %v3473
      %v3475 = vpop.f32.mrf.mxu0
      %v3476 = vadd.f32 0.0, %v3475
      %3477 = vmatmul.bf16.gmra.mxu0 %v3086
      %v3478 = vpop.f32.mrf.mxu0
      %v3479 = vadd.f32 0.0, %v3478
      %v3480 = vpop.f32.mrf.mxu0
      %v3481 = vadd.f32 0.0, %v3480
      %3482 = vmatmul.bf16.gmra.mxu0 %v3089
      %v3483 = vpop.f32.mrf.mxu0
      %v3484 = vadd.f32 0.0, %v3483
      %v3485 = vpop.f32.mrf.mxu0
      %v3486 = vadd.f32 0.0, %v3485
      %3487 = vmatmul.bf16.gmra.mxu0 %v3092
      %v3488 = vpop.f32.mrf.mxu0
      %v3489 = vadd.f32 0.0, %v3488
      %v3490 = vpop.f32.mrf.mxu0
      %v3491 = vadd.f32 0.0, %v3490
      %3492 = vmatmul.bf16.gmra.mxu0 %v3095
      %v3493 = vpop.f32.mrf.mxu0
      %v3494 = vadd.f32 0.0, %v3493
      %v3495 = vpop.f32.mrf.mxu0
      %v3496 = vadd.f32 0.0, %v3495
      %3497 = vmatmul.bf16.gmra.mxu0 %v3098
      %v3498 = vpop.f32.mrf.mxu0
      %v3499 = vadd.f32 0.0, %v3498
      %v3500 = vpop.f32.mrf.mxu0
      %v3501 = vadd.f32 0.0, %v3500
      %3502 = vmatmul.bf16.gmra.mxu0 %v3101
      %v3503 = vpop.f32.mrf.mxu0
      %v3504 = vadd.f32 0.0, %v3503
      %v3505 = vpop.f32.mrf.mxu0
      %v3506 = vadd.f32 0.0, %v3505
      %3507 = vmatmul.bf16.gmra.mxu0 %v3104
      %v3508 = vpop.f32.mrf.mxu0
      %v3509 = vadd.f32 0.0, %v3508
      %v3510 = vpop.f32.mrf.mxu0
      %v3511 = vadd.f32 0.0, %v3510
      %3512 = vmatmul.bf16.gmra.mxu0 %v3107
      %v3513 = vpop.f32.mrf.mxu0
      %v3514 = vadd.f32 0.0, %v3513
      %v3515 = vpop.f32.mrf.mxu0
      %v3516 = vadd.f32 0.0, %v3515
      %3517 = vmatmul.bf16.gmra.mxu0 %v3110
      %v3518 = vpop.f32.mrf.mxu0
      %v3519 = vadd.f32 0.0, %v3518
      %v3520 = vpop.f32.mrf.mxu0
      %v3521 = vadd.f32 0.0, %v3520
      %3522 = vmatmul.bf16.gmra.mxu0 %v3113
      %v3523 = vpop.f32.mrf.mxu0
      %v3524 = vadd.f32 0.0, %v3523
      %v3525 = vpop.f32.mrf.mxu0
      %v3526 = vadd.f32 0.0, %v3525
      %3527 = vmatmul.bf16.gmra.mxu0 %v3116
      %v3528 = vpop.f32.mrf.mxu0
      %v3529 = vadd.f32 0.0, %v3528
      %v3530 = vpop.f32.mrf.mxu0
      %v3531 = vadd.f32 0.0, %v3530
      %3532 = vmatmul.bf16.gmra.mxu0 %v3119
      %v3533 = vpop.f32.mrf.mxu0
      %v3534 = vadd.f32 0.0, %v3533
      %v3535 = vpop.f32.mrf.mxu0
      %v3536 = vadd.f32 0.0, %v3535
      %3537 = vmatmul.bf16.gmra.mxu0 %v3122
      %v3538 = vpop.f32.mrf.mxu0
      %v3539 = vadd.f32 0.0, %v3538
      %v3540 = vpop.f32.mrf.mxu0
      %v3541 = vadd.f32 0.0, %v3540
      %3542 = vmatmul.bf16.gmra.mxu0 %v3125
      %v3543 = vpop.f32.mrf.mxu0
      %v3544 = vadd.f32 0.0, %v3543
      %v3545 = vpop.f32.mrf.mxu0
      %v3546 = vadd.f32 0.0, %v3545
      %3547 = vmatmul.bf16.gmra.mxu0 %v3379
      %v3548 = vpop.f32.mrf.mxu0
      %v3549 = vadd.f32 0.0, %v3548
      %v3550 = vpop.f32.mrf.mxu0
      %v3551 = vadd.f32 0.0, %v3550
      %3552 = vdwg.mxu0
      %v3553 = vadd.f32 %v3299, %v3394
      %v3554 = vadd.f32 %v3300, %v3396
      %v3555 = vadd.f32 %v3301, %v3399
      %v3556 = vadd.f32 %v3302, %v3401
      %v3557 = vadd.f32 %v3303, %v3404
      %v3558 = vadd.f32 %v3304, %v3406
      %v3559 = vadd.f32 %v3305, %v3409
      %v3560 = vadd.f32 %v3306, %v3411
      %v3561 = vadd.f32 %v3307, %v3414
      %v3562 = vadd.f32 %v3308, %v3416
      %v3563 = vadd.f32 %v3309, %v3419
      %v3564 = vadd.f32 %v3310, %v3421
      %v3565 = vadd.f32 %v3311, %v3424
      %v3566 = vadd.f32 %v3312, %v3426
      %v3567 = vadd.f32 %v3313, %v3429
      %v3568 = vadd.f32 %v3314, %v3431
      %v3569 = vadd.f32 %v3315, %v3434
      %v3570 = vadd.f32 %v3316, %v3436
      %v3571 = vadd.f32 %v3317, %v3439
      %v3572 = vadd.f32 %v3318, %v3441
      %v3573 = vadd.f32 %v3319, %v3444
      %v3574 = vadd.f32 %v3320, %v3446
      %v3575 = vadd.f32 %v3321, %v3449
      %v3576 = vadd.f32 %v3322, %v3451
      %v3577 = vadd.f32 %v3323, %v3454
      %v3578 = vadd.f32 %v3324, %v3456
      %v3579 = vadd.f32 %v3325, %v3459
      %v3580 = vadd.f32 %v3326, %v3461
      %v3581 = vadd.f32 %v3327, %v3464
      %v3582 = vadd.f32 %v3328, %v3466
      %v3583 = vadd.f32 %v3329, %v3469
      %v3584 = vadd.f32 %v3330, %v3471
      %v3585 = vadd.f32 %v3331, %v3474
      %v3586 = vadd.f32 %v3332, %v3476
      %v3587 = vadd.f32 %v3333, %v3479
      %v3588 = vadd.f32 %v3334, %v3481
      %v3589 = vadd.f32 %v3335, %v3484
      %v3590 = vadd.f32 %v3336, %v3486
      %v3591 = vadd.f32 %v3337, %v3489
      %v3592 = vadd.f32 %v3338, %v3491
      %v3593 = vadd.f32 %v3339, %v3494
      %v3594 = vadd.f32 %v3340, %v3496
      %v3595 = vadd.f32 %v3341, %v3499
      %v3596 = vadd.f32 %v3342, %v3501
      %v3597 = vadd.f32 %v3343, %v3504
      %v3598 = vadd.f32 %v3344, %v3506
      %v3599 = vadd.f32 %v3345, %v3509
      %v3600 = vadd.f32 %v3346, %v3511
      %v3601 = vadd.f32 %v3347, %v3514
      %v3602 = vadd.f32 %v3348, %v3516
      %v3603 = vadd.f32 %v3349, %v3519
      %v3604 = vadd.f32 %v3350, %v3521
      %v3605 = vadd.f32 %v3351, %v3524
      %v3606 = vadd.f32 %v3352, %v3526
      %v3607 = vadd.f32 %v3353, %v3529
      %v3608 = vadd.f32 %v3354, %v3531
      %v3609 = vadd.f32 %v3355, %v3534
      %v3610 = vadd.f32 %v3356, %v3536
      %v3611 = vadd.f32 %v3357, %v3539
      %v3612 = vadd.f32 %v3358, %v3541
      %v3613 = vadd.f32 %v3359, %v3544
      %v3614 = vadd.f32 %v3360, %v3546
      %v3615 = vadd.f32 %v3361, %v3549
      %v3616 = vadd.f32 %v3362, %v3551
      %s3617 = scalar_lea.vmem %s1, 16
      %v3618 = vld [vmem:[%s3617] sm:$0x3]
      %v3623 = vunpack.c.l.b16 %v2831
      %v3624 = vunpack.c.l.b16 %v2832
      %v3625 = vunpack.c.l.b16 %v2867
      %v3626 = vunpack.c.l.b16 %v2868
      %v3627 = vpack.c.b16 %v3624, %v3623
      %v3628 = vpack.c.b16 %v3626, %v3625
      %v3630 = vsel %vm700, %v3627, 0
      %v3633 = vsel %vm700, %v3628, 0
      %v3636 = vsel %vm797, %v3618, 0
      %3638 = vmatpush.bf16.msra.mxu0 0
      %3639 = vmatpush.bf16.msra.mxu0 0
      %3640 = vmatpush.bf16.msra.mxu0 0
      %3641 = vmatpush.bf16.msra.mxu0 0
      %3642 = vmatpush.bf16.msra.mxu0 0
      %3643 = vmatpush.bf16.msra.mxu0 0
      %3644 = vmatpush.bf16.msra.mxu0 0
      %3645 = vmatpush.bf16.msra.mxu0 %v3636
      %3646 = vmatmul.bf16.gmra.mxu0 %v3038
      %v3647 = vpop.f32.mrf.mxu0
      %v3648 = vadd.f32 0.0, %v3647
      %v3649 = vpop.f32.mrf.mxu0
      %v3650 = vadd.f32 0.0, %v3649
      %3651 = vmatmul.bf16.gmra.mxu0 %v3041
      %v3652 = vpop.f32.mrf.mxu0
      %v3653 = vadd.f32 0.0, %v3652
      %v3654 = vpop.f32.mrf.mxu0
      %v3655 = vadd.f32 0.0, %v3654
      %3656 = vmatmul.bf16.gmra.mxu0 %v3044
      %v3657 = vpop.f32.mrf.mxu0
      %v3658 = vadd.f32 0.0, %v3657
      %v3659 = vpop.f32.mrf.mxu0
      %v3660 = vadd.f32 0.0, %v3659
      %3661 = vmatmul.bf16.gmra.mxu0 %v3047
      %v3662 = vpop.f32.mrf.mxu0
      %v3663 = vadd.f32 0.0, %v3662
      %v3664 = vpop.f32.mrf.mxu0
      %v3665 = vadd.f32 0.0, %v3664
      %3666 = vmatmul.bf16.gmra.mxu0 %v3050
      %v3667 = vpop.f32.mrf.mxu0
      %v3668 = vadd.f32 0.0, %v3667
      %v3669 = vpop.f32.mrf.mxu0
      %v3670 = vadd.f32 0.0, %v3669
      %3671 = vmatmul.bf16.gmra.mxu0 %v3053
      %v3672 = vpop.f32.mrf.mxu0
      %v3673 = vadd.f32 0.0, %v3672
      %v3674 = vpop.f32.mrf.mxu0
      %v3675 = vadd.f32 0.0, %v3674
      %3676 = vmatmul.bf16.gmra.mxu0 %v3056
      %v3677 = vpop.f32.mrf.mxu0
      %v3678 = vadd.f32 0.0, %v3677
      %v3679 = vpop.f32.mrf.mxu0
      %v3680 = vadd.f32 0.0, %v3679
      %3681 = vmatmul.bf16.gmra.mxu0 %v3059
      %v3682 = vpop.f32.mrf.mxu0
      %v3683 = vadd.f32 0.0, %v3682
      %v3684 = vpop.f32.mrf.mxu0
      %v3685 = vadd.f32 0.0, %v3684
      %3686 = vmatmul.bf16.gmra.mxu0 %v3062
      %v3687 = vpop.f32.mrf.mxu0
      %v3688 = vadd.f32 0.0, %v3687
      %v3689 = vpop.f32.mrf.mxu0
      %v3690 = vadd.f32 0.0, %v3689
      %3691 = vmatmul.bf16.gmra.mxu0 %v3065
      %v3692 = vpop.f32.mrf.mxu0
      %v3693 = vadd.f32 0.0, %v3692
      %v3694 = vpop.f32.mrf.mxu0
      %v3695 = vadd.f32 0.0, %v3694
      %3696 = vmatmul.bf16.gmra.mxu0 %v3068
      %v3697 = vpop.f32.mrf.mxu0
      %v3698 = vadd.f32 0.0, %v3697
      %v3699 = vpop.f32.mrf.mxu0
      %v3700 = vadd.f32 0.0, %v3699
      %3701 = vmatmul.bf16.gmra.mxu0 %v3071
      %v3702 = vpop.f32.mrf.mxu0
      %v3703 = vadd.f32 0.0, %v3702
      %v3704 = vpop.f32.mrf.mxu0
      %v3705 = vadd.f32 0.0, %v3704
      %3706 = vmatmul.bf16.gmra.mxu0 %v3074
      %v3707 = vpop.f32.mrf.mxu0
      %v3708 = vadd.f32 0.0, %v3707
      %v3709 = vpop.f32.mrf.mxu0
      %v3710 = vadd.f32 0.0, %v3709
      %3711 = vmatmul.bf16.gmra.mxu0 %v3077
      %v3712 = vpop.f32.mrf.mxu0
      %v3713 = vadd.f32 0.0, %v3712
      %v3714 = vpop.f32.mrf.mxu0
      %v3715 = vadd.f32 0.0, %v3714
      %3716 = vmatmul.bf16.gmra.mxu0 %v3376
      %v3717 = vpop.f32.mrf.mxu0
      %v3718 = vadd.f32 0.0, %v3717
      %v3719 = vpop.f32.mrf.mxu0
      %v3720 = vadd.f32 0.0, %v3719
      %3721 = vmatmul.bf16.gmra.mxu0 %v3630
      %v3722 = vpop.f32.mrf.mxu0
      %v3723 = vadd.f32 0.0, %v3722
      %v3724 = vpop.f32.mrf.mxu0
      %v3725 = vadd.f32 0.0, %v3724
      %3726 = vmatmul.bf16.gmra.mxu0 %v3086
      %v3727 = vpop.f32.mrf.mxu0
      %v3728 = vadd.f32 0.0, %v3727
      %v3729 = vpop.f32.mrf.mxu0
      %v3730 = vadd.f32 0.0, %v3729
      %3731 = vmatmul.bf16.gmra.mxu0 %v3089
      %v3732 = vpop.f32.mrf.mxu0
      %v3733 = vadd.f32 0.0, %v3732
      %v3734 = vpop.f32.mrf.mxu0
      %v3735 = vadd.f32 0.0, %v3734
      %3736 = vmatmul.bf16.gmra.mxu0 %v3092
      %v3737 = vpop.f32.mrf.mxu0
      %v3738 = vadd.f32 0.0, %v3737
      %v3739 = vpop.f32.mrf.mxu0
      %v3740 = vadd.f32 0.0, %v3739
      %3741 = vmatmul.bf16.gmra.mxu0 %v3095
      %v3742 = vpop.f32.mrf.mxu0
      %v3743 = vadd.f32 0.0, %v3742
      %v3744 = vpop.f32.mrf.mxu0
      %v3745 = vadd.f32 0.0, %v3744
      %3746 = vmatmul.bf16.gmra.mxu0 %v3098
      %v3747 = vpop.f32.mrf.mxu0
      %v3748 = vadd.f32 0.0, %v3747
      %v3749 = vpop.f32.mrf.mxu0
      %v3750 = vadd.f32 0.0, %v3749
      %3751 = vmatmul.bf16.gmra.mxu0 %v3101
      %v3752 = vpop.f32.mrf.mxu0
      %v3753 = vadd.f32 0.0, %v3752
      %v3754 = vpop.f32.mrf.mxu0
      %v3755 = vadd.f32 0.0, %v3754
      %3756 = vmatmul.bf16.gmra.mxu0 %v3104
      %v3757 = vpop.f32.mrf.mxu0
      %v3758 = vadd.f32 0.0, %v3757
      %v3759 = vpop.f32.mrf.mxu0
      %v3760 = vadd.f32 0.0, %v3759
      %3761 = vmatmul.bf16.gmra.mxu0 %v3107
      %v3762 = vpop.f32.mrf.mxu0
      %v3763 = vadd.f32 0.0, %v3762
      %v3764 = vpop.f32.mrf.mxu0
      %v3765 = vadd.f32 0.0, %v3764
      %3766 = vmatmul.bf16.gmra.mxu0 %v3110
      %v3767 = vpop.f32.mrf.mxu0
      %v3768 = vadd.f32 0.0, %v3767
      %v3769 = vpop.f32.mrf.mxu0
      %v3770 = vadd.f32 0.0, %v3769
      %3771 = vmatmul.bf16.gmra.mxu0 %v3113
      %v3772 = vpop.f32.mrf.mxu0
      %v3773 = vadd.f32 0.0, %v3772
      %v3774 = vpop.f32.mrf.mxu0
      %v3775 = vadd.f32 0.0, %v3774
      %3776 = vmatmul.bf16.gmra.mxu0 %v3116
      %v3777 = vpop.f32.mrf.mxu0
      %v3778 = vadd.f32 0.0, %v3777
      %v3779 = vpop.f32.mrf.mxu0
      %v3780 = vadd.f32 0.0, %v3779
      %3781 = vmatmul.bf16.gmra.mxu0 %v3119
      %v3782 = vpop.f32.mrf.mxu0
      %v3783 = vadd.f32 0.0, %v3782
      %v3784 = vpop.f32.mrf.mxu0
      %v3785 = vadd.f32 0.0, %v3784
      %3786 = vmatmul.bf16.gmra.mxu0 %v3122
      %v3787 = vpop.f32.mrf.mxu0
      %v3788 = vadd.f32 0.0, %v3787
      %v3789 = vpop.f32.mrf.mxu0
      %v3790 = vadd.f32 0.0, %v3789
      %3791 = vmatmul.bf16.gmra.mxu0 %v3125
      %v3792 = vpop.f32.mrf.mxu0
      %v3793 = vadd.f32 0.0, %v3792
      %v3794 = vpop.f32.mrf.mxu0
      %v3795 = vadd.f32 0.0, %v3794
      %3796 = vmatmul.bf16.gmra.mxu0 %v3379
      %v3797 = vpop.f32.mrf.mxu0
      %v3798 = vadd.f32 0.0, %v3797
      %v3799 = vpop.f32.mrf.mxu0
      %v3800 = vadd.f32 0.0, %v3799
      %3801 = vmatmul.bf16.gmra.mxu0 %v3633
      %v3802 = vpop.f32.mrf.mxu0
      %v3803 = vadd.f32 0.0, %v3802
      %v3804 = vpop.f32.mrf.mxu0
      %v3805 = vadd.f32 0.0, %v3804
      %3806 = vdwg.mxu0
      %v3807 = vadd.f32 %v3553, %v3648
      %v3808 = vadd.f32 %v3554, %v3650
      %v3809 = vadd.f32 %v3555, %v3653
      %v3810 = vadd.f32 %v3556, %v3655
      %v3811 = vadd.f32 %v3557, %v3658
      %v3812 = vadd.f32 %v3558, %v3660
      %v3813 = vadd.f32 %v3559, %v3663
      %v3814 = vadd.f32 %v3560, %v3665
      %v3815 = vadd.f32 %v3561, %v3668
      %v3816 = vadd.f32 %v3562, %v3670
      %v3817 = vadd.f32 %v3563, %v3673
      %v3818 = vadd.f32 %v3564, %v3675
      %v3819 = vadd.f32 %v3565, %v3678
      %v3820 = vadd.f32 %v3566, %v3680
      %v3821 = vadd.f32 %v3567, %v3683
      %v3822 = vadd.f32 %v3568, %v3685
      %v3823 = vadd.f32 %v3569, %v3688
      %v3824 = vadd.f32 %v3570, %v3690
      %v3825 = vadd.f32 %v3571, %v3693
      %v3826 = vadd.f32 %v3572, %v3695
      %v3827 = vadd.f32 %v3573, %v3698
      %v3828 = vadd.f32 %v3574, %v3700
      %v3829 = vadd.f32 %v3575, %v3703
      %v3830 = vadd.f32 %v3576, %v3705
      %v3831 = vadd.f32 %v3577, %v3708
      %v3832 = vadd.f32 %v3578, %v3710
      %v3833 = vadd.f32 %v3579, %v3713
      %v3834 = vadd.f32 %v3580, %v3715
      %v3835 = vadd.f32 %v3581, %v3718
      %v3836 = vadd.f32 %v3582, %v3720
      %v3837 = vadd.f32 %v3583, %v3723
      %v3838 = vadd.f32 %v3584, %v3725
      %v3839 = vadd.f32 %v3585, %v3728
      %v3840 = vadd.f32 %v3586, %v3730
      %v3841 = vadd.f32 %v3587, %v3733
      %v3842 = vadd.f32 %v3588, %v3735
      %v3843 = vadd.f32 %v3589, %v3738
      %v3844 = vadd.f32 %v3590, %v3740
      %v3845 = vadd.f32 %v3591, %v3743
      %v3846 = vadd.f32 %v3592, %v3745
      %v3847 = vadd.f32 %v3593, %v3748
      %v3848 = vadd.f32 %v3594, %v3750
      %v3849 = vadd.f32 %v3595, %v3753
      %v3850 = vadd.f32 %v3596, %v3755
      %v3851 = vadd.f32 %v3597, %v3758
      %v3852 = vadd.f32 %v3598, %v3760
      %v3853 = vadd.f32 %v3599, %v3763
      %v3854 = vadd.f32 %v3600, %v3765
      %v3855 = vadd.f32 %v3601, %v3768
      %v3856 = vadd.f32 %v3602, %v3770
      %v3857 = vadd.f32 %v3603, %v3773
      %v3858 = vadd.f32 %v3604, %v3775
      %v3859 = vadd.f32 %v3605, %v3778
      %v3860 = vadd.f32 %v3606, %v3780
      %v3861 = vadd.f32 %v3607, %v3783
      %v3862 = vadd.f32 %v3608, %v3785
      %v3863 = vadd.f32 %v3609, %v3788
      %v3864 = vadd.f32 %v3610, %v3790
      %v3865 = vadd.f32 %v3611, %v3793
      %v3866 = vadd.f32 %v3612, %v3795
      %v3867 = vadd.f32 %v3613, %v3798
      %v3868 = vadd.f32 %v3614, %v3800
      %v3869 = vadd.f32 %v3615, %v3803
      %v3870 = vadd.f32 %v3616, %v3805
      %3871 = vst [vmem:[%s170] sm:$0xff] %v3807
      %3872 = vst [vmem:[%s170 + $0x8] sm:$0xff] %v3808
      %3873 = vst [vmem:[%s170 + $0x10] sm:$0xff] %v3809
      %3874 = vst [vmem:[%s170 + $0x18] sm:$0xff] %v3810
      %3875 = vst [vmem:[%s170 + $0x20] sm:$0xff] %v3811
      %3876 = vst [vmem:[%s170 + $0x28] sm:$0xff] %v3812
      %3877 = vst [vmem:[%s170 + $0x30] sm:$0xff] %v3813
      %3878 = vst [vmem:[%s170 + $0x38] sm:$0xff] %v3814
      %3879 = vst [vmem:[%s170 + $0x40] sm:$0xff] %v3815
      %3880 = vst [vmem:[%s170 + $0x48] sm:$0xff] %v3816
      %3881 = vst [vmem:[%s170 + $0x50] sm:$0xff] %v3817
      %3882 = vst [vmem:[%s170 + $0x58] sm:$0xff] %v3818
      %3883 = vst [vmem:[%s170 + $0x60] sm:$0xff] %v3819
      %3884 = vst [vmem:[%s170 + $0x68] sm:$0xff] %v3820
      %3885 = vst [vmem:[%s170 + $0x70] sm:$0xff] %v3821
      %3886 = vst [vmem:[%s170 + $0x78] sm:$0xff] %v3822
      %3887 = vst [vmem:[%s170 + $0x80] sm:$0xff] %v3823
      %3888 = vst [vmem:[%s170 + $0x88] sm:$0xff] %v3824
      %3889 = vst [vmem:[%s170 + $0x90] sm:$0xff] %v3825
      %3890 = vst [vmem:[%s170 + $0x98] sm:$0xff] %v3826
      %3891 = vst [vmem:[%s170 + $0xa0] sm:$0xff] %v3827
      %3892 = vst [vmem:[%s170 + $0xa8] sm:$0xff] %v3828
      %3893 = vst [vmem:[%s170 + $0xb0] sm:$0xff] %v3829
      %3894 = vst [vmem:[%s170 + $0xb8] sm:$0xff] %v3830
      %3895 = vst [vmem:[%s170 + $0xc0] sm:$0xff] %v3831
      %3896 = vst [vmem:[%s170 + $0xc8] sm:$0xff] %v3832
      %3897 = vst [vmem:[%s170 + $0xd0] sm:$0xff] %v3833
      %3898 = vst [vmem:[%s170 + $0xd8] sm:$0xff] %v3834
      %3899 = vst [vmem:[%s170 + $0xe0] sm:$0xff] %v3835
      %3900 = vst [vmem:[%s170 + $0xe8] sm:$0xff] %v3836
      %3901 = vst [vmem:[%s170 + $0xf0] sm:$0xff] %v3837
      %3902 = vst [vmem:[%s170 + $0xf8] sm:$0xff] %v3838
      %3903 = vst [vmem:[%s170 + $0x100] sm:$0xff] %v3839
      %3904 = vst [vmem:[%s170 + $0x108] sm:$0xff] %v3840
      %3905 = vst [vmem:[%s170 + $0x110] sm:$0xff] %v3841
      %3906 = vst [vmem:[%s170 + $0x118] sm:$0xff] %v3842
      %3907 = vst [vmem:[%s170 + $0x120] sm:$0xff] %v3843
      %3908 = vst [vmem:[%s170 + $0x128] sm:$0xff] %v3844
      %3909 = vst [vmem:[%s170 + $0x130] sm:$0xff] %v3845
      %3910 = vst [vmem:[%s170 + $0x138] sm:$0xff] %v3846
      %3911 = vst [vmem:[%s170 + $0x140] sm:$0xff] %v3847
      %3912 = vst [vmem:[%s170 + $0x148] sm:$0xff] %v3848
      %3913 = vst [vmem:[%s170 + $0x150] sm:$0xff] %v3849
      %3914 = vst [vmem:[%s170 + $0x158] sm:$0xff] %v3850
      %3915 = vst [vmem:[%s170 + $0x160] sm:$0xff] %v3851
      %3916 = vst [vmem:[%s170 + $0x168] sm:$0xff] %v3852
      %3917 = vst [vmem:[%s170 + $0x170] sm:$0xff] %v3853
      %3918 = vst [vmem:[%s170 + $0x178] sm:$0xff] %v3854
      %3919 = vst [vmem:[%s170 + $0x180] sm:$0xff] %v3855
      %3920 = vst [vmem:[%s170 + $0x188] sm:$0xff] %v3856
      %3921 = vst [vmem:[%s170 + $0x190] sm:$0xff] %v3857
      %3922 = vst [vmem:[%s170 + $0x198] sm:$0xff] %v3858
      %3923 = vst [vmem:[%s170 + $0x1a0] sm:$0xff] %v3859
      %3924 = vst [vmem:[%s170 + $0x1a8] sm:$0xff] %v3860
      %3925 = vst [vmem:[%s170 + $0x1b0] sm:$0xff] %v3861
      %3926 = vst [vmem:[%s170 + $0x1b8] sm:$0xff] %v3862
      %3927 = vst [vmem:[%s170 + $0x1c0] sm:$0xff] %v3863
      %3928 = vst [vmem:[%s170 + $0x1c8] sm:$0xff] %v3864
      %3929 = vst [vmem:[%s170 + $0x1d0] sm:$0xff] %v3865
      %3930 = vst [vmem:[%s170 + $0x1d8] sm:$0xff] %v3866
      %3931 = vst [vmem:[%s170 + $0x1e0] sm:$0xff] %v3867
      %3932 = vst [vmem:[%s170 + $0x1e8] sm:$0xff] %v3868
      %3933 = vst [vmem:[%s170 + $0x1f0] sm:$0xff] %v3869
      %3934 = vst [vmem:[%s170 + $0x1f8] sm:$0xff] %v3870
      %p3935 = scmp.lt.s32.totalorder %s14, 7
      %s3936 = scalar_select %p3935, %s14, 7
      %s3937 = smul.addr %s3936, 64
      %s3938 = smul.addr %s3937, 8
      %s3939 = scalar_lea.vmem %s3, %s3938
      // Predicated region
      $region33: #{convlstm_forward.4} parent=31 // pred_check
        %p3940 = pneg %p100
      $region34: #{convlstm_forward.4} parent=31 // pred_check_branch
        %3942 = sbr.rel (%p3940) target = $region36
      $region35: #{convlstm_forward.4} parent=31 // pred_region
        _
      $region36: #{convlstm_forward.4} parent=31 // pred_fallthru
        _
    $region32: #{convlstm_forward.4} parent=5 // pred_fallthru
      _
    %p3943 = scmp.le.s32.totalorder 2, %s9
    // Predicated region
    $region37: #{convlstm_forward.4} parent=5 // pred_check
      %p3944 = pneg %p3943
    $region38: #{convlstm_forward.4} parent=5 // pred_check_branch
      %3946 = sbr.rel (%p3944) target = $region40
    $region39: #{convlstm_forward.4} parent=5 // pred_region
      %s3947 = ssub.s32 %s9, 2
      // Predicated region
      $region41: #{convlstm_forward.4} parent=39 // pred_check
        %p3948 = pneg %p106
      $region42: #{convlstm_forward.4} parent=39 // pred_check_branch
        %3950 = sbr.rel (%p3948) target = $region44
      $region43: #{convlstm_forward.4} parent=39 // pred_region
        %p3951 = scmp.lt.s32.totalorder %s15, 7
        %s3952 = scalar_select %p3951, %s15, 7
        %s3953 = smul.addr %s3952, 64
        %s3954 = smul.addr %s3953, 8
        %s3955 = scalar_lea.vmem %s3, %s3954
      $region44: #{convlstm_forward.4} parent=39 // pred_fallthru
        _
    $region40: #{convlstm_forward.4} parent=5 // pred_fallthru
      _
  $region6: #{convlstm_forward.4} parent=0 // loop_footer
    %s13 = sadd.s32 1, %s9
  $region7: #{convlstm_forward.4} parent=0 // loop_footer_branch
    %8 = sbr.rel target = $region3
  $region8: #{convlstm_forward.4} parent=0 // loop_exit
    _

// kernel: convlstm_forward.5
$region0: #{convlstm_forward.5}
  #allocation0 [shape = 'u32[]', space=smem, size = 0x4, offset = 0x4, fixed_abs, tag = 'smem constant byte address 0x4 - core index']
  #allocation1 [shape = 'u32[72,128]{1,0:T(1,128)}', space=vmem, size = 0x9000, scoped, tag = 'internal scratch']
  #allocation2 [shape = 'f32[18,24,32]{2,1,0:T(8,128)}', space=vmem, size = 0x36000, scoped, tag = 'scratch operand']
  #allocation3 [shape = 'f32[256,32]{1,0:T(8,128)}', space=vmem, size = 0x20000, scoped, tag = 'scratch operand']
  %s0 = inlined_call_operand.vmem [shape: f32[8,2,256,128], index: 0, kind: input, shape index: {}]
  %s1 = inlined_call_operand.vmem [shape: bf16[9,32,128], index: 1, kind: input, shape index: {}]
  %s2 = inlined_call_operand.vmem [shape: f32[8,2,18,24,32], index: 2, kind: output, shape index: {0}]
  %s3 = inlined_call_operand.hbm [shape: f32[2,16,16,32], index: 3, kind: output, shape index: {1}]
  %4 = xla_tuple %s2, %s3
  %s5 = sld [smem:[#allocation0]]
  $region57: #{convlstm_forward.5} parent=0
    _
  %s7 = ssub.s32 1, %s5
  %s8 = scalar_select 0, %s7, %s5
  $region1: #{convlstm_forward.5} parent=0
    #allocation4 [shape = 'u8[262144]{0}', space=vmem, size = 0x40000, scoped, tag = 'output window, operand 1']
    #allocation5 [shape = 's32[2]{0}', space=sflag, size = 0x8, scoped, tag = 'scoped memory for convlstm_forward.5']
    %9 = vsyncpa [#allocation5], 0
    %s10 = scalar_lea.sflag [#allocation5], 1
    %11 = vsyncpa %s10, 0
    loop: start=0, step=1, limit=18
    $region2: #{convlstm_forward.5} parent=1 // loop_pre_header
      _
    $region3: #{convlstm_forward.5} parent=1 // loop_header
      %s13 = sphi 0, %s17
      %p14 = scmp.ge.s32.totalorder %s13, 18
      %s20 = sphi 0, %s32
      %s21 = sphi 0, %s28
      %s22 = sphi 0, %s20
      %s23 = sphi 0, %s21
      %s24 = sphi 0, %s22
      %s25 = sphi 0, %s23
      %s37 = sphi 0, %s39
      %s40 = sphi 0, %s37
      %s41 = sphi 0, %s40
      %s57 = sphi 0, %s41
      %s61 = sphi 0, %s61
      %s63 = sphi 0, %s61
      %s64 = sphi 0, %s63
      %s78 = sphi 0, %s64
      %s86 = sphi 0, %s88
      %s89 = sphi 0, %s86
      %s90 = sphi 0, %s89
      %s106 = sphi 0, %s90
      %s112 = sphi 0, %s114
      %s115 = sphi 0, %s112
      %s116 = sphi 0, %s115
      %s132 = sphi 0, %s116
    $region4: #{convlstm_forward.5} parent=1 // loop_header_branch
      %16 = sbr.rel (%p14) target = $region8
    $region5: #{convlstm_forward.5} parent=1 // loop_body
      %s18 = ssub.s32 %s13, 1
      %s19 = ssub.s32 %s13, 2
      %s26 = sadd.s32 1, %s21
      %p27 = scmp.ge.s32.totalorder %s26, 8
      %s28 = scalar_select %p27, 0, %s26
      %s29 = sadd.s32 1, %s20
      %s30 = scalar_select %p27, %s29, %s20
      %p31 = scmp.ge.s32.totalorder %s30, 2
      %s32 = scalar_select %p31, 0, %s30
      %s33 = ssub.s32 %s21, %s28
      %s34 = ssub.s32 %s20, %s32
      %s35 = sor.u32 %s33, %s34
      %p36 = scmp.eq.s32.totalorder %s35, 0
      %s38 = sadd.s32 %s37, 1
      %s39 = scalar_select %p36, %s37, %s38
      %p42 = pneg %p36
      %p43 = scmp.eq.s32.totalorder %s13, 15
      %p44 = por %p42, %p43
      %p45 = scmp.ne.s32.totalorder %s37, %s40
      %p46 = scmp.eq.s32.totalorder %s13, 0
      %p47 = por %p45, %p46
      %p48 = scmp.ne.s32.totalorder %s37, %s40
      %p49 = scmp.eq.s32.totalorder %s18, 15
      %p50 = por %p48, %p49
      %p51 = scmp.ne.s32.totalorder %s40, %s41
      %p52 = scmp.eq.s32.totalorder %s18, 0
      %p53 = por %p51, %p52
      %p54 = scmp.ne.s32.totalorder %s40, %s41
      %p55 = scmp.eq.s32.totalorder %s19, 15
      %p56 = por %p54, %p55
      %p58 = scmp.ne.s32.totalorder %s41, %s57
      %p59 = scmp.eq.s32.totalorder %s19, 0
      %p60 = por %p58, %p59
      %s62 = sadd.s32 %s61, 1
      %p65 = scmp.eq.s32.totalorder %s13, 15
      %p66 = scmp.ne.s32.totalorder %s61, %s63
      %p67 = scmp.eq.s32.totalorder %s13, 0
      %p68 = por %p66, %p67
      %p69 = scmp.ne.s32.totalorder %s61, %s63
      %p70 = scmp.eq.s32.totalorder %s18, 15
      %p71 = por %p69, %p70
      %p72 = scmp.ne.s32.totalorder %s63, %s64
      %p73 = scmp.eq.s32.totalorder %s18, 0
      %p74 = por %p72, %p73
      %p75 = scmp.ne.s32.totalorder %s63, %s64
      %p76 = scmp.eq.s32.totalorder %s19, 15
      %p77 = por %p75, %p76
      %p79 = scmp.ne.s32.totalorder %s64, %s78
      %p80 = scmp.eq.s32.totalorder %s19, 0
      %p81 = por %p79, %p80
      %s82 = ssub.s32 %s21, %s28
      %s83 = ssub.s32 %s20, %s32
      %s84 = sor.u32 %s82, %s83
      %p85 = scmp.eq.s32.totalorder %s84, 0
      %s87 = sadd.s32 %s86, 1
      %s88 = scalar_select %p85, %s86, %s87
      %p91 = pneg %p85
      %p92 = scmp.eq.s32.totalorder %s13, 15
      %p93 = por %p91, %p92
      %p94 = scmp.ne.s32.totalorder %s86, %s89
      %p95 = scmp.eq.s32.totalorder %s13, 0
      %p96 = por %p94, %p95
      %p97 = scmp.ne.s32.totalorder %s86, %s89
      %p98 = scmp.eq.s32.totalorder %s18, 15
      %p99 = por %p97, %p98
      %p100 = scmp.ne.s32.totalorder %s89, %s90
      %p101 = scmp.eq.s32.totalorder %s18, 0
      %p102 = por %p100, %p101
      %p103 = scmp.ne.s32.totalorder %s89, %s90
      %p104 = scmp.eq.s32.totalorder %s19, 15
      %p105 = por %p103, %p104
      %p107 = scmp.ne.s32.totalorder %s90, %s106
      %p108 = scmp.eq.s32.totalorder %s19, 0
      %p109 = por %p107, %p108
      %s110 = ssub.s32 %s20, %s32
      %p111 = scmp.eq.s32.totalorder %s110, 0
      %s113 = sadd.s32 %s112, 1
      %s114 = scalar_select %p111, %s112, %s113
      %p117 = pneg %p111
      %p118 = scmp.eq.s32.totalorder %s13, 15
      %p119 = por %p117, %p118
      %p120 = scmp.ne.s32.totalorder %s112, %s115
      %p121 = scmp.eq.s32.totalorder %s13, 0
      %p122 = por %p120, %p121
      %p123 = scmp.ne.s32.totalorder %s112, %s115
      %p124 = scmp.eq.s32.totalorder %s18, 15
      %p125 = por %p123, %p124
      %p126 = scmp.ne.s32.totalorder %s115, %s116
      %p127 = scmp.eq.s32.totalorder %s18, 0
      %p128 = por %p126, %p127
      %p129 = scmp.ne.s32.totalorder %s115, %s116
      %p130 = scmp.eq.s32.totalorder %s19, 15
      %p131 = por %p129, %p130
      %p133 = scmp.ne.s32.totalorder %s116, %s132
      %p134 = scmp.eq.s32.totalorder %s19, 0
      %p135 = por %p133, %p134
      %p136 = scmp.le.s32.totalorder 1, %s13
      %p137 = scmp.lt.s32.totalorder %s13, 17
      %p138 = pnand %p136, %p137
      %p139 = pneg %p138
      // Predicated region
      $region9: #{convlstm_forward.5} parent=5 // pred_check
        _
      $region10: #{convlstm_forward.5} parent=5 // pred_check_branch
        %141 = sbr.rel (%p138) target = $region12
      $region11: #{convlstm_forward.5} parent=5 // pred_region
        %s142 = ssub.s32 %s13, 1
        // Predicated region
        $region13: #{convlstm_forward.5} parent=11 // pred_check
          %p143 = pneg %p74
        $region14: #{convlstm_forward.5} parent=11 // pred_check_branch
          %145 = sbr.rel (%p143) target = $region16
        $region15: #{convlstm_forward.5} parent=11 // pred_region
          _
        $region16: #{convlstm_forward.5} parent=11 // pred_fallthru
          _
      $region12: #{convlstm_forward.5} parent=5 // pred_fallthru
        _
      %p146 = scmp.lt.s32.totalorder %s13, 16
      // Predicated region
      $region17: #{convlstm_forward.5} parent=5 // pred_check
        %p147 = pneg %p146
      $region18: #{convlstm_forward.5} parent=5 // pred_check_branch
        %149 = sbr.rel (%p147) target = $region20
      $region19: #{convlstm_forward.5} parent=5 // pred_region
        // Predicated region
        $region21: #{convlstm_forward.5} parent=19 // pred_check
          %p150 = pneg %p47
        $region22: #{convlstm_forward.5} parent=19 // pred_check_branch
          %152 = sbr.rel (%p150) target = $region24
        $region23: #{convlstm_forward.5} parent=19 // pred_region
          %p153 = scmp.lt.s32.totalorder %s21, 7
          %s154 = scalar_select %p153, %s21, 7
          %p155 = scmp.lt.s32.totalorder %s20, 1
          %s156 = scalar_select %p155, %s20, 1
          %s157 = smul.addr %s156, 32
          %s158 = smul.addr %s154, 64
          %s159 = sadd.s32 %s157, %s158
          %s160 = smul.addr %s159, 8
          %s161 = scalar_lea.vmem %s0, %s160
        $region24: #{convlstm_forward.5} parent=19 // pred_fallthru
          _
      $region20: #{convlstm_forward.5} parent=5 // pred_fallthru
        _
      %p162 = scmp.le.s32.totalorder 1, %s13
      %p163 = scmp.lt.s32.totalorder %s13, 17
      %p164 = pnand %p162, %p163
      %p165 = pneg %p164
      // Predicated region
      $region25: #{convlstm_forward.5} parent=5 // pred_check
        _
      $region26: #{convlstm_forward.5} parent=5 // pred_check_branch
        %167 = sbr.rel (%p164) target = $region28
      $region27: #{convlstm_forward.5} parent=5 // pred_region
        %s168 = ssub.s32 %s13, 1
        %p169 = scmp.lt.s32.totalorder %s23, 7
        %s170 = scalar_select %p169, %s23, 7
        %p171 = scmp.lt.s32.totalorder %s22, 1
        %s172 = scalar_select %p171, %s22, 1
        %s173 = smul.addr %s172, 32
        %s174 = smul.addr %s170, 64
        %s175 = sadd.s32 %s173, %s174
        %s176 = smul.addr %s175, 8
        %s177 = scalar_lea.vmem %s0, %s176
        %p178 = pneg %p53
        %p179 = pneg %p50
        %p180 = pneg %p74
        %p181 = pneg %p71
        %p182 = pneg %p102
        %p183 = pneg %p99
        %p184 = scmp.lt.s32.totalorder %s23, 7
        %s185 = scalar_select %p184, %s23, 7
        %p186 = scmp.lt.s32.totalorder %s22, 1
        %s187 = scalar_select %p186, %s22, 1
        %s188 = smul.addr %s187, 54
        %s189 = smul.addr %s185, 108
        %s190 = sadd.s32 %s188, %s189
        %s191 = smul.addr %s190, 8
        %s192 = scalar_lea.vmem %s2, %s191
        %p193 = pneg %p128
        %p194 = pneg %p125
        %s195 = sand.u32 %s115, 1
        %s196 = scalar_lea.sflag [#allocation5], %s195
        %s197 = sand.u32 %s115, 1
        %s198 = smul.addr %s197, 256
        %s199 = scalar_lea.vmem [#allocation4], %s198
        %p200 = scmp.lt.s32.totalorder %s23, 7
        %s201 = scalar_select %p200, %s23, 7
        %p202 = scmp.lt.s32.totalorder %s22, 1
        %s203 = scalar_select %p202, %s22, 1
        %s204 = smul.addr %s203, 32
        %s205 = smul.addr %s201, 64
        %s206 = sadd.s32 %s204, %s205
        %s207 = smul.addr %s206, 8
        %s208 = scalar_lea.vmem %s0, %s207
        %p209 = scmp.lt.s32.totalorder %s23, 7
        %s210 = scalar_select %p209, %s23, 7
        %p211 = scmp.lt.s32.totalorder %s22, 1
        %s212 = scalar_select %p211, %s22, 1
        %s213 = smul.addr %s212, 54
        %s214 = smul.addr %s210, 108
        %s215 = sadd.s32 %s213, %s214
        %s216 = smul.addr %s215, 8
        %s217 = scalar_lea.vmem %s2, %s216
        %p219 = scmp.eq.s32.totalorder %s23, 0
        // Predicated region
        $region29: #{convlstm_forward.5} parent=27 // pred_check
          %p220 = pneg %p219
        $region30: #{convlstm_forward.5} parent=27 // pred_check_branch
          %222 = sbr.rel (%p220) target = $region32
        $region31: #{convlstm_forward.5} parent=27 // pred_region
          %vm223 = vcmask 261120
          %224 = vst.msk [vmem:[#allocation2] sm:$0xff] %vm223, 0.0
          %225 = vst.msk [vmem:[#allocation2 + $0x8] sm:$0xff] %vm223, 0.0
          %226 = vst.msk [vmem:[#allocation2 + $0x10] sm:$0xff] %vm223, 0.0
          %227 = vst.msk [vmem:[#allocation2 + $0x18] sm:$0xff] %vm223, 0.0
          %228 = vst.msk [vmem:[#allocation2 + $0x20] sm:$0xff] %vm223, 0.0
          %229 = vst.msk [vmem:[#allocation2 + $0x28] sm:$0xff] %vm223, 0.0
          %230 = vst.msk [vmem:[#allocation2 + $0x30] sm:$0xff] %vm223, 0.0
          %231 = vst.msk [vmem:[#allocation2 + $0x38] sm:$0xff] %vm223, 0.0
          %232 = vst.msk [vmem:[#allocation2 + $0x40] sm:$0xff] %vm223, 0.0
          %233 = vst.msk [vmem:[#allocation2 + $0x48] sm:$0xff] %vm223, 0.0
          %234 = vst.msk [vmem:[#allocation2 + $0x50] sm:$0xff] %vm223, 0.0
          %235 = vst.msk [vmem:[#allocation2 + $0x58] sm:$0xff] %vm223, 0.0
          %236 = vst.msk [vmem:[#allocation2 + $0x60] sm:$0xff] %vm223, 0.0
          %237 = vst.msk [vmem:[#allocation2 + $0x68] sm:$0xff] %vm223, 0.0
          %238 = vst.msk [vmem:[#allocation2 + $0x70] sm:$0xff] %vm223, 0.0
          %239 = vst.msk [vmem:[#allocation2 + $0x78] sm:$0xff] %vm223, 0.0
          %240 = vst.msk [vmem:[#allocation2 + $0x80] sm:$0xff] %vm223, 0.0
          %241 = vst.msk [vmem:[#allocation2 + $0x88] sm:$0xff] %vm223, 0.0
          %242 = vst.msk [vmem:[#allocation2 + $0x90] sm:$0xff] %vm223, 0.0
          %243 = vst.msk [vmem:[#allocation2 + $0x98] sm:$0xff] %vm223, 0.0
          %244 = vst.msk [vmem:[#allocation2 + $0xa0] sm:$0xff] %vm223, 0.0
          %245 = vst.msk [vmem:[#allocation2 + $0xa8] sm:$0xff] %vm223, 0.0
          %246 = vst.msk [vmem:[#allocation2 + $0xb0] sm:$0xff] %vm223, 0.0
          %247 = vst.msk [vmem:[#allocation2 + $0xb8] sm:$0xff] %vm223, 0.0
          %248 = vst.msk [vmem:[#allocation2 + $0xc0] sm:$0xff] %vm223, 0.0
          %249 = vst.msk [vmem:[#allocation2 + $0xc8] sm:$0xff] %vm223, 0.0
          %250 = vst.msk [vmem:[#allocation2 + $0xd0] sm:$0xff] %vm223, 0.0
          %251 = vst.msk [vmem:[#allocation2 + $0xd8] sm:$0xff] %vm223, 0.0
          %252 = vst.msk [vmem:[#allocation2 + $0xe0] sm:$0xff] %vm223, 0.0
          %253 = vst.msk [vmem:[#allocation2 + $0xe8] sm:$0xff] %vm223, 0.0
          %254 = vst.msk [vmem:[#allocation2 + $0xf0] sm:$0xff] %vm223, 0.0
          %255 = vst.msk [vmem:[#allocation2 + $0xf8] sm:$0xff] %vm223, 0.0
          %256 = vst.msk [vmem:[#allocation2 + $0x100] sm:$0xff] %vm223, 0.0
          %257 = vst.msk [vmem:[#allocation2 + $0x108] sm:$0xff] %vm223, 0.0
          %258 = vst.msk [vmem:[#allocation2 + $0x110] sm:$0xff] %vm223, 0.0
          %259 = vst.msk [vmem:[#allocation2 + $0x118] sm:$0xff] %vm223, 0.0
          %260 = vst.msk [vmem:[#allocation2 + $0x120] sm:$0xff] %vm223, 0.0
          %261 = vst.msk [vmem:[#allocation2 + $0x128] sm:$0xff] %vm223, 0.0
          %262 = vst.msk [vmem:[#allocation2 + $0x130] sm:$0xff] %vm223, 0.0
          %263 = vst.msk [vmem:[#allocation2 + $0x138] sm:$0xff] %vm223, 0.0
          %264 = vst.msk [vmem:[#allocation2 + $0x140] sm:$0xff] %vm223, 0.0
          %265 = vst.msk [vmem:[#allocation2 + $0x148] sm:$0xff] %vm223, 0.0
          %266 = vst.msk [vmem:[#allocation2 + $0x150] sm:$0xff] %vm223, 0.0
          %267 = vst.msk [vmem:[#allocation2 + $0x158] sm:$0xff] %vm223, 0.0
          %268 = vst.msk [vmem:[#allocation2 + $0x160] sm:$0xff] %vm223, 0.0
          %269 = vst.msk [vmem:[#allocation2 + $0x168] sm:$0xff] %vm223, 0.0
          %270 = vst.msk [vmem:[#allocation2 + $0x170] sm:$0xff] %vm223, 0.0
          %271 = vst.msk [vmem:[#allocation2 + $0x178] sm:$0xff] %vm223, 0.0
          %272 = vst.msk [vmem:[#allocation2 + $0x180] sm:$0xff] %vm223, 0.0
          %273 = vst.msk [vmem:[#allocation2 + $0x188] sm:$0xff] %vm223, 0.0
          %274 = vst.msk [vmem:[#allocation2 + $0x190] sm:$0xff] %vm223, 0.0
          %275 = vst.msk [vmem:[#allocation2 + $0x198] sm:$0xff] %vm223, 0.0
          %276 = vst.msk [vmem:[#allocation2 + $0x1a0] sm:$0xff] %vm223, 0.0
          %277 = vst.msk [vmem:[#allocation2 + $0x1a8] sm:$0xff] %vm223, 0.0
          %278 = vst.msk [vmem:[#allocation3] sm:$0xff] %vm223, 0.0
          %279 = vst.msk [vmem:[#allocation3 + $0x8] sm:$0xff] %vm223, 0.0
          %280 = vst.msk [vmem:[#allocation3 + $0x10] sm:$0xff] %vm223, 0.0
          %281 = vst.msk [vmem:[#allocation3 + $0x18] sm:$0xff] %vm223, 0.0
          %282 = vst.msk [vmem:[#allocation3 + $0x20] sm:$0xff] %vm223, 0.0
          %283 = vst.msk [vmem:[#allocation3 + $0x28] sm:$0xff] %vm223, 0.0
          %284 = vst.msk [vmem:[#allocation3 + $0x30] sm:$0xff] %vm223, 0.0
          %285 = vst.msk [vmem:[#allocation3 + $0x38] sm:$0xff] %vm223, 0.0
          %286 = vst.msk [vmem:[#allocation3 + $0x40] sm:$0xff] %vm223, 0.0
          %287 = vst.msk [vmem:[#allocation3 + $0x48] sm:$0xff] %vm223, 0.0
          %288 = vst.msk [vmem:[#allocation3 + $0x50] sm:$0xff] %vm223, 0.0
          %289 = vst.msk [vmem:[#allocation3 + $0x58] sm:$0xff] %vm223, 0.0
          %290 = vst.msk [vmem:[#allocation3 + $0x60] sm:$0xff] %vm223, 0.0
          %291 = vst.msk [vmem:[#allocation3 + $0x68] sm:$0xff] %vm223, 0.0
          %292 = vst.msk [vmem:[#allocation3 + $0x70] sm:$0xff] %vm223, 0.0
          %293 = vst.msk [vmem:[#allocation3 + $0x78] sm:$0xff] %vm223, 0.0
          %294 = vst.msk [vmem:[#allocation3 + $0x80] sm:$0xff] %vm223, 0.0
          %295 = vst.msk [vmem:[#allocation3 + $0x88] sm:$0xff] %vm223, 0.0
          %296 = vst.msk [vmem:[#allocation3 + $0x90] sm:$0xff] %vm223, 0.0
          %297 = vst.msk [vmem:[#allocation3 + $0x98] sm:$0xff] %vm223, 0.0
          %298 = vst.msk [vmem:[#allocation3 + $0xa0] sm:$0xff] %vm223, 0.0
          %299 = vst.msk [vmem:[#allocation3 + $0xa8] sm:$0xff] %vm223, 0.0
          %300 = vst.msk [vmem:[#allocation3 + $0xb0] sm:$0xff] %vm223, 0.0
          %301 = vst.msk [vmem:[#allocation3 + $0xb8] sm:$0xff] %vm223, 0.0
          %302 = vst.msk [vmem:[#allocation3 + $0xc0] sm:$0xff] %vm223, 0.0
          %303 = vst.msk [vmem:[#allocation3 + $0xc8] sm:$0xff] %vm223, 0.0
          %304 = vst.msk [vmem:[#allocation3 + $0xd0] sm:$0xff] %vm223, 0.0
          %305 = vst.msk [vmem:[#allocation3 + $0xd8] sm:$0xff] %vm223, 0.0
          %306 = vst.msk [vmem:[#allocation3 + $0xe0] sm:$0xff] %vm223, 0.0
          %307 = vst.msk [vmem:[#allocation3 + $0xe8] sm:$0xff] %vm223, 0.0
          %308 = vst.msk [vmem:[#allocation3 + $0xf0] sm:$0xff] %vm223, 0.0
          %309 = vst.msk [vmem:[#allocation3 + $0xf8] sm:$0xff] %vm223, 0.0
        $region32: #{convlstm_forward.5} parent=27 // pred_fallthru
          _
        %v310 = vld [vmem:[%s208] sm:$0xff]
        %v311 = vld [vmem:[%s208 + $0x8] sm:$0xff]
        %v312 = vld [vmem:[%s208 + $0x10] sm:$0xff]
        %v313 = vld [vmem:[%s208 + $0x18] sm:$0xff]
        %v314 = vld [vmem:[%s208 + $0x20] sm:$0xff]
        %v315 = vld [vmem:[%s208 + $0x28] sm:$0xff]
        %v316 = vld [vmem:[%s208 + $0x30] sm:$0xff]
        %v317 = vld [vmem:[%s208 + $0x38] sm:$0xff]
        %v318 = vld [vmem:[%s208 + $0x40] sm:$0xff]
        %v319 = vld [vmem:[%s208 + $0x48] sm:$0xff]
        %v320 = vld [vmem:[%s208 + $0x50] sm:$0xff]
        %v321 = vld [vmem:[%s208 + $0x58] sm:$0xff]
        %v322 = vld [vmem:[%s208 + $0x60] sm:$0xff]
        %v323 = vld [vmem:[%s208 + $0x68] sm:$0xff]
        %v324 = vld [vmem:[%s208 + $0x70] sm:$0xff]
        %v325 = vld [vmem:[%s208 + $0x78] sm:$0xff]
        %v326 = vld [vmem:[%s208 + $0x80] sm:$0xff]
        %v327 = vld [vmem:[%s208 + $0x88] sm:$0xff]
        %v328 = vld [vmem:[%s208 + $0x90] sm:$0xff]
        %v329 = vld [vmem:[%s208 + $0x98] sm:$0xff]
        %v330 = vld [vmem:[%s208 + $0xa0] sm:$0xff]
        %v331 = vld [vmem:[%s208 + $0xa8] sm:$0xff]
        %v332 = vld [vmem:[%s208 + $0xb0] sm:$0xff]
        %v333 = vld [vmem:[%s208 + $0xb8] sm:$0xff]
        %v334 = vld [vmem:[%s208 + $0xc0] sm:$0xff]
        %v335 = vld [vmem:[%s208 + $0xc8] sm:$0xff]
        %v336 = vld [vmem:[%s208 + $0xd0] sm:$0xff]
        %v337 = vld [vmem:[%s208 + $0xd8] sm:$0xff]
        %v338 = vld [vmem:[%s208 + $0xe0] sm:$0xff]
        %v339 = vld [vmem:[%s208 + $0xe8] sm:$0xff]
        %v340 = vld [vmem:[%s208 + $0xf0] sm:$0xff]
        %v341 = vld [vmem:[%s208 + $0xf8] sm:$0xff]
        %v342 = vld [vmem:[#allocation2] sm:$0xff]
        %v343 = vld [vmem:[#allocation2 + $0x8] sm:$0xff]
        %v344 = vld [vmem:[#allocation2 + $0x10] sm:$0xff]
        %v345 = vld [vmem:[#allocation2 + $0x18] sm:$0xff]
        %v346 = vld [vmem:[#allocation2 + $0x20] sm:$0xff]
        %v347 = vld [vmem:[#allocation2 + $0x28] sm:$0xff]
        %v348 = vld [vmem:[#allocation2 + $0x30] sm:$0xff]
        %v349 = vld [vmem:[#allocation2 + $0x38] sm:$0xff]
        %v350 = vld [vmem:[#allocation2 + $0x40] sm:$0xff]
        %v351 = vld [vmem:[#allocation2 + $0x48] sm:$0xff]
        %v352 = vld [vmem:[#allocation2 + $0x50] sm:$0xff]
        %v353 = vld [vmem:[#allocation2 + $0x58] sm:$0xff]
        %v354 = vld [vmem:[#allocation2 + $0x60] sm:$0xff]
        %v355 = vld [vmem:[#allocation2 + $0x68] sm:$0xff]
        %v356 = vld [vmem:[#allocation2 + $0x70] sm:$0xff]
        %v357 = vld [vmem:[#allocation2 + $0x78] sm:$0xff]
        %v358 = vld [vmem:[#allocation2 + $0x80] sm:$0xff]
        %v359 = vld [vmem:[#allocation2 + $0x88] sm:$0xff]
        %v360 = vld [vmem:[#allocation2 + $0x90] sm:$0xff]
        %v361 = vld [vmem:[#allocation2 + $0x98] sm:$0xff]
        %v362 = vld [vmem:[#allocation2 + $0xa0] sm:$0xff]
        %v363 = vld [vmem:[#allocation2 + $0xa8] sm:$0xff]
        %v364 = vld [vmem:[#allocation2 + $0xb0] sm:$0xff]
        %v365 = vld [vmem:[#allocation2 + $0xb8] sm:$0xff]
        %v366 = vld [vmem:[#allocation2 + $0xc0] sm:$0xff]
        %v367 = vld [vmem:[#allocation2 + $0xc8] sm:$0xff]
        %v368 = vld [vmem:[#allocation2 + $0xd0] sm:$0xff]
        %v369 = vld [vmem:[#allocation2 + $0xd8] sm:$0xff]
        %v370 = vld [vmem:[#allocation2 + $0xe0] sm:$0xff]
        %v371 = vld [vmem:[#allocation2 + $0xe8] sm:$0xff]
        %v372 = vld [vmem:[#allocation2 + $0xf0] sm:$0xff]
        %v373 = vld [vmem:[#allocation2 + $0xf8] sm:$0xff]
        %v374 = vld [vmem:[#allocation2 + $0x100] sm:$0xff]
        %v375 = vld [vmem:[#allocation2 + $0x108] sm:$0xff]
        %v376 = vld [vmem:[#allocation2 + $0x110] sm:$0xff]
        %v377 = vld [vmem:[#allocation2 + $0x118] sm:$0xff]
        %v378 = vld [vmem:[#allocation2 + $0x120] sm:$0xff]
        %v379 = vld [vmem:[#allocation2 + $0x128] sm:$0xff]
        %v380 = vld [vmem:[#allocation2 + $0x130] sm:$0xff]
        %v381 = vld [vmem:[#allocation2 + $0x138] sm:$0xff]
        %v382 = vld [vmem:[#allocation2 + $0x140] sm:$0xff]
        %v383 = vld [vmem:[#allocation2 + $0x148] sm:$0xff]
        %v384 = vld [vmem:[#allocation2 + $0x150] sm:$0xff]
        %v385 = vld [vmem:[#allocation2 + $0x158] sm:$0xff]
        %v386 = vld [vmem:[#allocation2 + $0x160] sm:$0xff]
        %v387 = vld [vmem:[#allocation2 + $0x168] sm:$0xff]
        %v388 = vld [vmem:[#allocation2 + $0x170] sm:$0xff]
        %v389 = vld [vmem:[#allocation2 + $0x178] sm:$0xff]
        %v390 = vld [vmem:[#allocation2 + $0x180] sm:$0xff]
        %v391 = vld [vmem:[#allocation2 + $0x188] sm:$0xff]
        %v392 = vld [vmem:[#allocation2 + $0x190] sm:$0xff]
        %v393 = vld [vmem:[#allocation2 + $0x198] sm:$0xff]
        %v394 = vld [vmem:[#allocation2 + $0x1a0] sm:$0xff]
        %v395 = vld [vmem:[#allocation2 + $0x1a8] sm:$0xff]
        %v396 = vrot.slane %v342, 7
        %v397 = vrot.slane %v345, 7
        %v398 = vrot.slane %v348, 7
        %v399 = vrot.slane %v351, 7
        %v400 = vrot.slane %v354, 7
        %v401 = vrot.slane %v357, 7
        %v402 = vrot.slane %v360, 7
        %v403 = vrot.slane %v363, 7
        %v404 = vrot.slane %v366, 7
        %v405 = vrot.slane %v369, 7
        %v406 = vrot.slane %v372, 7
        %v407 = vrot.slane %v375, 7
        %v408 = vrot.slane %v378, 7
        %v409 = vrot.slane %v381, 7
        %v410 = vrot.slane %v384, 7
        %v411 = vrot.slane %v387, 7
        %v412 = vrot.slane %v390, 7
        %v413 = vrot.slane %v393, 7
        %v414 = vrot.slane %v343, 7
        %v415 = vrot.slane %v346, 7
        %v416 = vrot.slane %v349, 7
        %v417 = vrot.slane %v352, 7
        %v418 = vrot.slane %v355, 7
        %v419 = vrot.slane %v358, 7
        %v420 = vrot.slane %v361, 7
        %v421 = vrot.slane %v364, 7
        %v422 = vrot.slane %v367, 7
        %v423 = vrot.slane %v370, 7
        %v424 = vrot.slane %v373, 7
        %v425 = vrot.slane %v376, 7
        %v426 = vrot.slane %v379, 7
        %v427 = vrot.slane %v382, 7
        %v428 = vrot.slane %v385, 7
        %v429 = vrot.slane %v388, 7
        %v430 = vrot.slane %v391, 7
        %v431 = vrot.slane %v394, 7
        %v432 = vrot.slane %v344, 7
        %v433 = vrot.slane %v347, 7
        %v434 = vrot.slane %v350, 7
        %v435 = vrot.slane %v353, 7
        %v436 = vrot.slane %v356, 7
        %v437 = vrot.slane %v359, 7
        %v438 = vrot.slane %v362, 7
        %v439 = vrot.slane %v365, 7
        %v440 = vrot.slane %v368, 7
        %v441 = vrot.slane %v371, 7
        %v442 = vrot.slane %v374, 7
        %v443 = vrot.slane %v377, 7
        %v444 = vrot.slane %v380, 7
        %v445 = vrot.slane %v383, 7
        %v446 = vrot.slane %v386, 7
        %v447 = vrot.slane %v389, 7
        %v448 = vrot.slane %v392, 7
        %v449 = vrot.slane %v395, 7
        %v450 = vlaneseq
        %v451 = vshrl.u32 %v450, 7
        %vm452 = vcmp.lt.s32.totalorder %v451, 1
        %v453 = vsel %vm452, %v396, %v414
        %v454 = vsel %vm452, %v397, %v415
        %v455 = vsel %vm452, %v398, %v416
        %v456 = vsel %vm452, %v399, %v417
        %v457 = vsel %vm452, %v400, %v418
        %v458 = vsel %vm452, %v401, %v419
        %v459 = vsel %vm452, %v402, %v420
        %v460 = vsel %vm452, %v403, %v421
        %v461 = vsel %vm452, %v404, %v422
        %v462 = vsel %vm452, %v405, %v423
        %v463 = vsel %vm452, %v406, %v424
        %v464 = vsel %vm452, %v407, %v425
        %v465 = vsel %vm452, %v408, %v426
        %v466 = vsel %vm452, %v409, %v427
        %v467 = vsel %vm452, %v410, %v428
        %v468 = vsel %vm452, %v411, %v429
        %v469 = vsel %vm452, %v412, %v430
        %v470 = vsel %vm452, %v413, %v431
        %v471 = vsel %vm452, %v432, %v396
        %v472 = vsel %vm452, %v433, %v397
        %v473 = vsel %vm452, %v434, %v398
        %v474 = vsel %vm452, %v435, %v399
        %v475 = vsel %vm452, %v436, %v400
        %v476 = vsel %vm452, %v437, %v401
        %v477 = vsel %vm452, %v438, %v402
        %v478 = vsel %vm452, %v439, %v403
        %v479 = vsel %vm452, %v440, %v404
        %v480 = vsel %vm452, %v441, %v405
        %v481 = vsel %vm452, %v442, %v406
        %v482 = vsel %vm452, %v443, %v407
        %v483 = vsel %vm452, %v444, %v408
        %v484 = vsel %vm452, %v445, %v409
        %v485 = vsel %vm452, %v446, %v410
        %v486 = vsel %vm452, %v447, %v411
        %v487 = vsel %vm452, %v448, %v412
        %v488 = vsel %vm452, %v449, %v413
        %v489 = vpack.c.bf16 %v471, %v471
        %v490 = vpack.c.bf16 %v453, %v453
        %v491 = vpack.c.bf16 %v472, %v472
        %v492 = vpack.c.bf16 %v454, %v454
        %v493 = vpack.c.bf16 %v473, %v473
        %v494 = vpack.c.bf16 %v455, %v455
        %v495 = vpack.c.bf16 %v474, %v474
        %v496 = vpack.c.bf16 %v456, %v456
        %v497 = vpack.c.bf16 %v475, %v475
        %v498 = vpack.c.bf16 %v457, %v457
        %v499 = vpack.c.bf16 %v476, %v476
        %v500 = vpack.c.bf16 %v458, %v458
        %v501 = vpack.c.bf16 %v477, %v477
        %v502 = vpack.c.bf16 %v459, %v459
        %v503 = vpack.c.bf16 %v478, %v478
        %v504 = vpack.c.bf16 %v460, %v460
        %v505 = vpack.c.bf16 %v479, %v479
        %v506 = vpack.c.bf16 %v461, %v461
        %v507 = vpack.c.bf16 %v480, %v480
        %v508 = vpack.c.bf16 %v462, %v462
        %v509 = vpack.c.bf16 %v481, %v481
        %v510 = vpack.c.bf16 %v463, %v463
        %v511 = vpack.c.bf16 %v482, %v482
        %v512 = vpack.c.bf16 %v464, %v464
        %v513 = vpack.c.bf16 %v483, %v483
        %v514 = vpack.c.bf16 %v465, %v465
        %v515 = vpack.c.bf16 %v484, %v484
        %v516 = vpack.c.bf16 %v466, %v466
        %v517 = vpack.c.bf16 %v485, %v485
        %v518 = vpack.c.bf16 %v467, %v467
        %v519 = vpack.c.bf16 %v486, %v486
        %v520 = vpack.c.bf16 %v468, %v468
        %v521 = vpack.c.bf16 %v487, %v487
        %v522 = vpack.c.bf16 %v469, %v469
        %v523 = vpack.c.bf16 %v488, %v488
        %v524 = vpack.c.bf16 %v470, %v470
        %v525 = vld [vmem:[%s1] sm:$0xf]
        %v526 = vld [vmem:[%s1 + $0x4] sm:$0xf]
        %v527 = vld [vmem:[%s1 + $0x8] sm:$0xf]
        %v528 = vld [vmem:[%s1 + $0xc] sm:$0xf]
        %v561 = vunpack.c.l.b16 %v489
        %v562 = vunpack.c.l.b16 %v490
        %v563 = vunpack.c.l.b16 %v491
        %v564 = vunpack.c.l.b16 %v492
        %v565 = vunpack.c.l.b16 %v493
        %v566 = vunpack.c.l.b16 %v494
        %v567 = vunpack.c.l.b16 %v495
        %v568 = vunpack.c.l.b16 %v496
        %v569 = vunpack.c.l.b16 %v497
        %v570 = vunpack.c.l.b16 %v498
        %v571 = vunpack.c.l.b16 %v499
        %v572 = vunpack.c.l.b16 %v500
        %v573 = vunpack.c.l.b16 %v501
        %v574 = vunpack.c.l.b16 %v502
        %v575 = vunpack.c.l.b16 %v503
        %v576 = vunpack.c.l.b16 %v504
        %v577 = vunpack.c.l.b16 %v505
        %v578 = vunpack.c.l.b16 %v506
        %v579 = vunpack.c.l.b16 %v507
        %v580 = vunpack.c.l.b16 %v508
        %v581 = vunpack.c.l.b16 %v509
        %v582 = vunpack.c.l.b16 %v510
        %v583 = vunpack.c.l.b16 %v511
        %v584 = vunpack.c.l.b16 %v512
        %v585 = vunpack.c.l.b16 %v513
        %v586 = vunpack.c.l.b16 %v514
        %v587 = vunpack.c.l.b16 %v515
        %v588 = vunpack.c.l.b16 %v516
        %v589 = vunpack.c.l.b16 %v517
        %v590 = vunpack.c.l.b16 %v518
        %v591 = vunpack.c.l.b16 %v519
        %v592 = vunpack.c.l.b16 %v520
        %v593 = vpack.c.b16 %v562, %v561
        %v594 = vpack.c.b16 %v564, %v563
        %v595 = vpack.c.b16 %v566, %v565
        %v596 = vpack.c.b16 %v568, %v567
        %v597 = vpack.c.b16 %v570, %v569
        %v598 = vpack.c.b16 %v572, %v571
        %v599 = vpack.c.b16 %v574, %v573
        %v600 = vpack.c.b16 %v576, %v575
        %v601 = vpack.c.b16 %v578, %v577
        %v602 = vpack.c.b16 %v580, %v579
        %v603 = vpack.c.b16 %v582, %v581
        %v604 = vpack.c.b16 %v584, %v583
        %v605 = vpack.c.b16 %v586, %v585
        %v606 = vpack.c.b16 %v588, %v587
        %v607 = vpack.c.b16 %v590, %v589
        %v608 = vpack.c.b16 %v592, %v591
        %v613 = vunpack.c.l.b16 %v525
        %v614 = vunpack.c.l.b16 %v526
        %v615 = vunpack.c.l.b16 %v527
        %v616 = vunpack.c.l.b16 %v528
        %v617 = vpack.c.b16 %v614, %v613
        %v618 = vpack.c.b16 %v616, %v615
        %vm621 = vcmask 261120
        %v623 = vsel %vm621, %v593, 0
        %v626 = vsel %vm621, %v594, 0
        %v629 = vsel %vm621, %v595, 0
        %v632 = vsel %vm621, %v596, 0
        %v635 = vsel %vm621, %v597, 0
        %v638 = vsel %vm621, %v598, 0
        %v641 = vsel %vm621, %v599, 0
        %v644 = vsel %vm621, %v600, 0
        %v647 = vsel %vm621, %v601, 0
        %v650 = vsel %vm621, %v602, 0
        %v653 = vsel %vm621, %v603, 0
        %v656 = vsel %vm621, %v604, 0
        %v659 = vsel %vm621, %v605, 0
        %v662 = vsel %vm621, %v606, 0
        %v665 = vsel %vm621, %v607, 0
        %v668 = vsel %vm621, %v608, 0
        %670 = vmatpush.bf16.msra.mxu0 0
        %671 = vmatpush.bf16.msra.mxu0 0
        %672 = vmatpush.bf16.msra.mxu0 0
        %673 = vmatpush.bf16.msra.mxu0 0
        %674 = vmatpush.bf16.msra.mxu0 0
        %675 = vmatpush.bf16.msra.mxu0 0
        %676 = vmatpush.bf16.msra.mxu0 %v618
        %677 = vmatpush.bf16.msra.mxu0 %v617
        %678 = vmatmul.bf16.gmra.mxu0 %v623
        %v679 = vpop.f32.mrf.mxu0
        %v680 = vadd.f32 0.0, %v679
        %v681 = vpop.f32.mrf.mxu0
        %v682 = vadd.f32 0.0, %v681
        %683 = vmatmul.bf16.gmra.mxu0 %v626
        %v684 = vpop.f32.mrf.mxu0
        %v685 = vadd.f32 0.0, %v684
        %v686 = vpop.f32.mrf.mxu0
        %v687 = vadd.f32 0.0, %v686
        %688 = vmatmul.bf16.gmra.mxu0 %v629
        %v689 = vpop.f32.mrf.mxu0
        %v690 = vadd.f32 0.0, %v689
        %v691 = vpop.f32.mrf.mxu0
        %v692 = vadd.f32 0.0, %v691
        %693 = vmatmul.bf16.gmra.mxu0 %v632
        %v694 = vpop.f32.mrf.mxu0
        %v695 = vadd.f32 0.0, %v694
        %v696 = vpop.f32.mrf.mxu0
        %v697 = vadd.f32 0.0, %v696
        %698 = vmatmul.bf16.gmra.mxu0 %v635
        %v699 = vpop.f32.mrf.mxu0
        %v700 = vadd.f32 0.0, %v699
        %v701 = vpop.f32.mrf.mxu0
        %v702 = vadd.f32 0.0, %v701
        %703 = vmatmul.bf16.gmra.mxu0 %v638
        %v704 = vpop.f32.mrf.mxu0
        %v705 = vadd.f32 0.0, %v704
        %v706 = vpop.f32.mrf.mxu0
        %v707 = vadd.f32 0.0, %v706
        %708 = vmatmul.bf16.gmra.mxu0 %v641
        %v709 = vpop.f32.mrf.mxu0
        %v710 = vadd.f32 0.0, %v709
        %v711 = vpop.f32.mrf.mxu0
        %v712 = vadd.f32 0.0, %v711
        %713 = vmatmul.bf16.gmra.mxu0 %v644
        %v714 = vpop.f32.mrf.mxu0
        %v715 = vadd.f32 0.0, %v714
        %v716 = vpop.f32.mrf.mxu0
        %v717 = vadd.f32 0.0, %v716
        %718 = vmatmul.bf16.gmra.mxu0 %v647
        %v719 = vpop.f32.mrf.mxu0
        %v720 = vadd.f32 0.0, %v719
        %v721 = vpop.f32.mrf.mxu0
        %v722 = vadd.f32 0.0, %v721
        %723 = vmatmul.bf16.gmra.mxu0 %v650
        %v724 = vpop.f32.mrf.mxu0
        %v725 = vadd.f32 0.0, %v724
        %v726 = vpop.f32.mrf.mxu0
        %v727 = vadd.f32 0.0, %v726
        %728 = vmatmul.bf16.gmra.mxu0 %v653
        %v729 = vpop.f32.mrf.mxu0
        %v730 = vadd.f32 0.0, %v729
        %v731 = vpop.f32.mrf.mxu0
        %v732 = vadd.f32 0.0, %v731
        %733 = vmatmul.bf16.gmra.mxu0 %v656
        %v734 = vpop.f32.mrf.mxu0
        %v735 = vadd.f32 0.0, %v734
        %v736 = vpop.f32.mrf.mxu0
        %v737 = vadd.f32 0.0, %v736
        %738 = vmatmul.bf16.gmra.mxu0 %v659
        %v739 = vpop.f32.mrf.mxu0
        %v740 = vadd.f32 0.0, %v739
        %v741 = vpop.f32.mrf.mxu0
        %v742 = vadd.f32 0.0, %v741
        %743 = vmatmul.bf16.gmra.mxu0 %v662
        %v744 = vpop.f32.mrf.mxu0
        %v745 = vadd.f32 0.0, %v744
        %v746 = vpop.f32.mrf.mxu0
        %v747 = vadd.f32 0.0, %v746
        %748 = vmatmul.bf16.gmra.mxu0 %v665
        %v749 = vpop.f32.mrf.mxu0
        %v750 = vadd.f32 0.0, %v749
        %v751 = vpop.f32.mrf.mxu0
        %v752 = vadd.f32 0.0, %v751
        %753 = vmatmul.bf16.gmra.mxu0 %v668
        %v754 = vpop.f32.mrf.mxu0
        %v755 = vadd.f32 0.0, %v754
        %v756 = vpop.f32.mrf.mxu0
        %v757 = vadd.f32 0.0, %v756
        %758 = vdwg.mxu0
        %v759 = vadd.f32 %v310, %v680
        %v760 = vadd.f32 %v311, %v682
        %v761 = vadd.f32 %v312, %v685
        %v762 = vadd.f32 %v313, %v687
        %v763 = vadd.f32 %v314, %v690
        %v764 = vadd.f32 %v315, %v692
        %v765 = vadd.f32 %v316, %v695
        %v766 = vadd.f32 %v317, %v697
        %v767 = vadd.f32 %v318, %v700
        %v768 = vadd.f32 %v319, %v702
        %v769 = vadd.f32 %v320, %v705
        %v770 = vadd.f32 %v321, %v707
        %v771 = vadd.f32 %v322, %v710
        %v772 = vadd.f32 %v323, %v712
        %v773 = vadd.f32 %v324, %v715
        %v774 = vadd.f32 %v325, %v717
        %v775 = vadd.f32 %v326, %v720
        %v776 = vadd.f32 %v327, %v722
        %v777 = vadd.f32 %v328, %v725
        %v778 = vadd.f32 %v329, %v727
        %v779 = vadd.f32 %v330, %v730
        %v780 = vadd.f32 %v331, %v732
        %v781 = vadd.f32 %v332, %v735
        %v782 = vadd.f32 %v333, %v737
        %v783 = vadd.f32 %v334, %v740
        %v784 = vadd.f32 %v335, %v742
        %v785 = vadd.f32 %v336, %v745
        %v786 = vadd.f32 %v337, %v747
        %v787 = vadd.f32 %v338, %v750
        %v788 = vadd.f32 %v339, %v752
        %v789 = vadd.f32 %v340, %v755
        %v790 = vadd.f32 %v341, %v757
        %s791 = scalar_lea.vmem %s1, 48
        %v792 = vld [vmem:[%s791] sm:$0xf]
        %v793 = vld [vmem:[%s791 + $0x4] sm:$0xf]
        %v794 = vld [vmem:[%s791 + $0x8] sm:$0xf]
        %v795 = vld [vmem:[%s791 + $0xc] sm:$0xf]
        %v798 = vunpack.c.l.b16 %v521
        %v799 = vunpack.c.l.b16 %v522
        %v800 = vpack.c.b16 %v799, %v798
        %v805 = vunpack.c.l.b16 %v792
        %v806 = vunpack.c.l.b16 %v793
        %v807 = vunpack.c.l.b16 %v794
        %v808 = vunpack.c.l.b16 %v795
        %v809 = vpack.c.b16 %v806, %v805
        %v810 = vpack.c.b16 %v808, %v807
        %v814 = vsel %vm621, %v800, 0
        %816 = vmatpush.bf16.msra.mxu0 0
        %817 = vmatpush.bf16.msra.mxu0 0
        %818 = vmatpush.bf16.msra.mxu0 0
        %819 = vmatpush.bf16.msra.mxu0 0
        %820 = vmatpush.bf16.msra.mxu0 0
        %821 = vmatpush.bf16.msra.mxu0 0
        %822 = vmatpush.bf16.msra.mxu0 %v810
        %823 = vmatpush.bf16.msra.mxu0 %v809
        %824 = vmatmul.bf16.gmra.mxu0 %v626
        %v825 = vpop.f32.mrf.mxu0
        %v826 = vadd.f32 0.0, %v825
        %v827 = vpop.f32.mrf.mxu0
        %v828 = vadd.f32 0.0, %v827
        %829 = vmatmul.bf16.gmra.mxu0 %v629
        %v830 = vpop.f32.mrf.mxu0
        %v831 = vadd.f32 0.0, %v830
        %v832 = vpop.f32.mrf.mxu0
        %v833 = vadd.f32 0.0, %v832
        %834 = vmatmul.bf16.gmra.mxu0 %v632
        %v835 = vpop.f32.mrf.mxu0
        %v836 = vadd.f32 0.0, %v835
        %v837 = vpop.f32.mrf.mxu0
        %v838 = vadd.f32 0.0, %v837
        %839 = vmatmul.bf16.gmra.mxu0 %v635
        %v840 = vpop.f32.mrf.mxu0
        %v841 = vadd.f32 0.0, %v840
        %v842 = vpop.f32.mrf.mxu0
        %v843 = vadd.f32 0.0, %v842
        %844 = vmatmul.bf16.gmra.mxu0 %v638
        %v845 = vpop.f32.mrf.mxu0
        %v846 = vadd.f32 0.0, %v845
        %v847 = vpop.f32.mrf.mxu0
        %v848 = vadd.f32 0.0, %v847
        %849 = vmatmul.bf16.gmra.mxu0 %v641
        %v850 = vpop.f32.mrf.mxu0
        %v851 = vadd.f32 0.0, %v850
        %v852 = vpop.f32.mrf.mxu0
        %v853 = vadd.f32 0.0, %v852
        %854 = vmatmul.bf16.gmra.mxu0 %v644
        %v855 = vpop.f32.mrf.mxu0
        %v856 = vadd.f32 0.0, %v855
        %v857 = vpop.f32.mrf.mxu0
        %v858 = vadd.f32 0.0, %v857
        %859 = vmatmul.bf16.gmra.mxu0 %v647
        %v860 = vpop.f32.mrf.mxu0
        %v861 = vadd.f32 0.0, %v860
        %v862 = vpop.f32.mrf.mxu0
        %v863 = vadd.f32 0.0, %v862
        %864 = vmatmul.bf16.gmra.mxu0 %v650
        %v865 = vpop.f32.mrf.mxu0
        %v866 = vadd.f32 0.0, %v865
        %v867 = vpop.f32.mrf.mxu0
        %v868 = vadd.f32 0.0, %v867
        %869 = vmatmul.bf16.gmra.mxu0 %v653
        %v870 = vpop.f32.mrf.mxu0
        %v871 = vadd.f32 0.0, %v870
        %v872 = vpop.f32.mrf.mxu0
        %v873 = vadd.f32 0.0, %v872
        %874 = vmatmul.bf16.gmra.mxu0 %v656
        %v875 = vpop.f32.mrf.mxu0
        %v876 = vadd.f32 0.0, %v875
        %v877 = vpop.f32.mrf.mxu0
        %v878 = vadd.f32 0.0, %v877
        %879 = vmatmul.bf16.gmra.mxu0 %v659
        %v880 = vpop.f32.mrf.mxu0
        %v881 = vadd.f32 0.0, %v880
        %v882 = vpop.f32.mrf.mxu0
        %v883 = vadd.f32 0.0, %v882
        %884 = vmatmul.bf16.gmra.mxu0 %v662
        %v885 = vpop.f32.mrf.mxu0
        %v886 = vadd.f32 0.0, %v885
        %v887 = vpop.f32.mrf.mxu0
        %v888 = vadd.f32 0.0, %v887
        %889 = vmatmul.bf16.gmra.mxu0 %v665
        %v890 = vpop.f32.mrf.mxu0
        %v891 = vadd.f32 0.0, %v890
        %v892 = vpop.f32.mrf.mxu0
        %v893 = vadd.f32 0.0, %v892
        %894 = vmatmul.bf16.gmra.mxu0 %v668
        %v895 = vpop.f32.mrf.mxu0
        %v896 = vadd.f32 0.0, %v895
        %v897 = vpop.f32.mrf.mxu0
        %v898 = vadd.f32 0.0, %v897
        %899 = vmatmul.bf16.gmra.mxu0 %v814
        %v900 = vpop.f32.mrf.mxu0
        %v901 = vadd.f32 0.0, %v900
        %v902 = vpop.f32.mrf.mxu0
        %v903 = vadd.f32 0.0, %v902
        %904 = vdwg.mxu0
        %v905 = vadd.f32 %v759, %v826
        %v906 = vadd.f32 %v760, %v828
        %v907 = vadd.f32 %v761, %v831
        %v908 = vadd.f32 %v762, %v833
        %v909 = vadd.f32 %v763, %v836
        %v910 = vadd.f32 %v764, %v838
        %v911 = vadd.f32 %v765, %v841
        %v912 = vadd.f32 %v766, %v843
        %v913 = vadd.f32 %v767, %v846
        %v914 = vadd.f32 %v768, %v848
        %v915 = vadd.f32 %v769, %v851
        %v916 = vadd.f32 %v770, %v853
        %v917 = vadd.f32 %v771, %v856
        %v918 = vadd.f32 %v772, %v858
        %v919 = vadd.f32 %v773, %v861
        %v920 = vadd.f32 %v774, %v863
        %v921 = vadd.f32 %v775, %v866
        %v922 = vadd.f32 %v776, %v868
        %v923 = vadd.f32 %v777, %v871
        %v924 = vadd.f32 %v778, %v873
        %v925 = vadd.f32 %v779, %v876
        %v926 = vadd.f32 %v780, %v878
        %v927 = vadd.f32 %v781, %v881
        %v928 = vadd.f32 %v782, %v883
        %v929 = vadd.f32 %v783, %v886
        %v930 = vadd.f32 %v784, %v888
        %v931 = vadd.f32 %v785, %v891
        %v932 = vadd.f32 %v786, %v893
        %v933 = vadd.f32 %v787, %v896
        %v934 = vadd.f32 %v788, %v898
        %v935 = vadd.f32 %v789, %v901
        %v936 = vadd.f32 %v790, %v903
        %s937 = scalar_lea.vmem %s1, 96
        %v938 = vld [vmem:[%s937] sm:$0xf]
        %v939 = vld [vmem:[%s937 + $0x4] sm:$0xf]
        %v940 = vld [vmem:[%s937 + $0x8] sm:$0xf]
        %v941 = vld [vmem:[%s937 + $0xc] sm:$0xf]
        %v944 = vunpack.c.l.b16 %v523
        %v945 = vunpack.c.l.b16 %v524
        %v946 = vpack.c.b16 %v945, %v944
        %v951 = vunpack.c.l.b16 %v938
        %v952 = vunpack.c.l.b16 %v939
        %v953 = vunpack.c.l.b16 %v940
        %v954 = vunpack.c.l.b16 %v941
        %v955 = vpack.c.b16 %v952, %v951
        %v956 = vpack.c.b16 %v954, %v953
        %v960 = vsel %vm621, %v946, 0
        %962 = vmatpush.bf16.msra.mxu0 0
        %963 = vmatpush.bf16.msra.mxu0 0
        %964 = vmatpush.bf16.msra.mxu0 0
        %965 = vmatpush.bf16.msra.mxu0 0
        %966 = vmatpush.bf16.msra.mxu0 0
        %967 = vmatpush.bf16.msra.mxu0 0
        %968 = vmatpush.bf16.msra.mxu0 %v956
        %969 = vmatpush.bf16.msra.mxu0 %v955
        %970 = vmatmul.bf16.gmra.mxu0 %v629
        %v971 = vpop.f32.mrf.mxu0
        %v972 = vadd.f32 0.0, %v971
        %v973 = vpop.f32.mrf.mxu0
        %v974 = vadd.f32 0.0, %v973
        %975 = vmatmul.bf16.gmra.mxu0 %v632
        %v976 = vpop.f32.mrf.mxu0
        %v977 = vadd.f32 0.0, %v976
        %v978 = vpop.f32.mrf.mxu0
        %v979 = vadd.f32 0.0, %v978
        %980 = vmatmul.bf16.gmra.mxu0 %v635
        %v981 = vpop.f32.mrf.mxu0
        %v982 = vadd.f32 0.0, %v981
        %v983 = vpop.f32.mrf.mxu0
        %v984 = vadd.f32 0.0, %v983
        %985 = vmatmul.bf16.gmra.mxu0 %v638
        %v986 = vpop.f32.mrf.mxu0
        %v987 = vadd.f32 0.0, %v986
        %v988 = vpop.f32.mrf.mxu0
        %v989 = vadd.f32 0.0, %v988
        %990 = vmatmul.bf16.gmra.mxu0 %v641
        %v991 = vpop.f32.mrf.mxu0
        %v992 = vadd.f32 0.0, %v991
        %v993 = vpop.f32.mrf.mxu0
        %v994 = vadd.f32 0.0, %v993
        %995 = vmatmul.bf16.gmra.mxu0 %v644
        %v996 = vpop.f32.mrf.mxu0
        %v997 = vadd.f32 0.0, %v996
        %v998 = vpop.f32.mrf.mxu0
        %v999 = vadd.f32 0.0, %v998
        %1000 = vmatmul.bf16.gmra.mxu0 %v647
        %v1001 = vpop.f32.mrf.mxu0
        %v1002 = vadd.f32 0.0, %v1001
        %v1003 = vpop.f32.mrf.mxu0
        %v1004 = vadd.f32 0.0, %v1003
        %1005 = vmatmul.bf16.gmra.mxu0 %v650
        %v1006 = vpop.f32.mrf.mxu0
        %v1007 = vadd.f32 0.0, %v1006
        %v1008 = vpop.f32.mrf.mxu0
        %v1009 = vadd.f32 0.0, %v1008
        %1010 = vmatmul.bf16.gmra.mxu0 %v653
        %v1011 = vpop.f32.mrf.mxu0
        %v1012 = vadd.f32 0.0, %v1011
        %v1013 = vpop.f32.mrf.mxu0
        %v1014 = vadd.f32 0.0, %v1013
        %1015 = vmatmul.bf16.gmra.mxu0 %v656
        %v1016 = vpop.f32.mrf.mxu0
        %v1017 = vadd.f32 0.0, %v1016
        %v1018 = vpop.f32.mrf.mxu0
        %v1019 = vadd.f32 0.0, %v1018
        %1020 = vmatmul.bf16.gmra.mxu0 %v659
        %v1021 = vpop.f32.mrf.mxu0
        %v1022 = vadd.f32 0.0, %v1021
        %v1023 = vpop.f32.mrf.mxu0
        %v1024 = vadd.f32 0.0, %v1023
        %1025 = vmatmul.bf16.gmra.mxu0 %v662
        %v1026 = vpop.f32.mrf.mxu0
        %v1027 = vadd.f32 0.0, %v1026
        %v1028 = vpop.f32.mrf.mxu0
        %v1029 = vadd.f32 0.0, %v1028
        %1030 = vmatmul.bf16.gmra.mxu0 %v665
        %v1031 = vpop.f32.mrf.mxu0
        %v1032 = vadd.f32 0.0, %v1031
        %v1033 = vpop.f32.mrf.mxu0
        %v1034 = vadd.f32 0.0, %v1033
        %1035 = vmatmul.bf16.gmra.mxu0 %v668
        %v1036 = vpop.f32.mrf.mxu0
        %v1037 = vadd.f32 0.0, %v1036
        %v1038 = vpop.f32.mrf.mxu0
        %v1039 = vadd.f32 0.0, %v1038
        %1040 = vmatmul.bf16.gmra.mxu0 %v814
        %v1041 = vpop.f32.mrf.mxu0
        %v1042 = vadd.f32 0.0, %v1041
        %v1043 = vpop.f32.mrf.mxu0
        %v1044 = vadd.f32 0.0, %v1043
        %1045 = vmatmul.bf16.gmra.mxu0 %v960
        %v1046 = vpop.f32.mrf.mxu0
        %v1047 = vadd.f32 0.0, %v1046
        %v1048 = vpop.f32.mrf.mxu0
        %v1049 = vadd.f32 0.0, %v1048
        %1050 = vdwg.mxu0
        %v1051 = vadd.f32 %v905, %v972
        %v1052 = vadd.f32 %v906, %v974
        %v1053 = vadd.f32 %v907, %v977
        %v1054 = vadd.f32 %v908, %v979
        %v1055 = vadd.f32 %v909, %v982
        %v1056 = vadd.f32 %v910, %v984
        %v1057 = vadd.f32 %v911, %v987
        %v1058 = vadd.f32 %v912, %v989
        %v1059 = vadd.f32 %v913, %v992
        %v1060 = vadd.f32 %v914, %v994
        %v1061 = vadd.f32 %v915, %v997
        %v1062 = vadd.f32 %v916, %v999
        %v1063 = vadd.f32 %v917, %v1002
        %v1064 = vadd.f32 %v918, %v1004
        %v1065 = vadd.f32 %v919, %v1007
        %v1066 = vadd.f32 %v920, %v1009
        %v1067 = vadd.f32 %v921, %v1012
        %v1068 = vadd.f32 %v922, %v1014
        %v1069 = vadd.f32 %v923, %v1017
        %v1070 = vadd.f32 %v924, %v1019
        %v1071 = vadd.f32 %v925, %v1022
        %v1072 = vadd.f32 %v926, %v1024
        %v1073 = vadd.f32 %v927, %v1027
        %v1074 = vadd.f32 %v928, %v1029
        %v1075 = vadd.f32 %v929, %v1032
        %v1076 = vadd.f32 %v930, %v1034
        %v1077 = vadd.f32 %v931, %v1037
        %v1078 = vadd.f32 %v932, %v1039
        %v1079 = vadd.f32 %v933, %v1042
        %v1080 = vadd.f32 %v934, %v1044
        %v1081 = vadd.f32 %v935, %v1047
        %v1082 = vadd.f32 %v936, %v1049
        %v1083 = vpack.c.bf16 %v342, %v342
        %v1084 = vpack.c.bf16 %v343, %v343
        %v1085 = vpack.c.bf16 %v345, %v345
        %v1086 = vpack.c.bf16 %v346, %v346
        %v1087 = vpack.c.bf16 %v348, %v348
        %v1088 = vpack.c.bf16 %v349, %v349
        %v1089 = vpack.c.bf16 %v351, %v351
        %v1090 = vpack.c.bf16 %v352, %v352
        %v1091 = vpack.c.bf16 %v354, %v354
        %v1092 = vpack.c.bf16 %v355, %v355
        %v1093 = vpack.c.bf16 %v357, %v357
        %v1094 = vpack.c.bf16 %v358, %v358
        %v1095 = vpack.c.bf16 %v360, %v360
        %v1096 = vpack.c.bf16 %v361, %v361
        %v1097 = vpack.c.bf16 %v363, %v363
        %v1098 = vpack.c.bf16 %v364, %v364
        %v1099 = vpack.c.bf16 %v366, %v366
        %v1100 = vpack.c.bf16 %v367, %v367
        %v1101 = vpack.c.bf16 %v369, %v369
        %v1102 = vpack.c.bf16 %v370, %v370
        %v1103 = vpack.c.bf16 %v372, %v372
        %v1104 = vpack.c.bf16 %v373, %v373
        %v1105 = vpack.c.bf16 %v375, %v375
        %v1106 = vpack.c.bf16 %v376, %v376
        %v1107 = vpack.c.bf16 %v378, %v378
        %v1108 = vpack.c.bf16 %v379, %v379
        %v1109 = vpack.c.bf16 %v381, %v381
        %v1110 = vpack.c.bf16 %v382, %v382
        %v1111 = vpack.c.bf16 %v384, %v384
        %v1112 = vpack.c.bf16 %v385, %v385
        %v1113 = vpack.c.bf16 %v387, %v387
        %v1114 = vpack.c.bf16 %v388, %v388
        %v1115 = vpack.c.bf16 %v390, %v390
        %v1116 = vpack.c.bf16 %v391, %v391
        %v1117 = vpack.c.bf16 %v393, %v393
        %v1118 = vpack.c.bf16 %v394, %v394
        %s1119 = scalar_lea.vmem %s1, 16
        %v1120 = vld [vmem:[%s1119] sm:$0xf]
        %v1121 = vld [vmem:[%s1119 + $0x4] sm:$0xf]
        %v1122 = vld [vmem:[%s1119 + $0x8] sm:$0xf]
        %v1123 = vld [vmem:[%s1119 + $0xc] sm:$0xf]
        %v1156 = vunpack.c.l.b16 %v1083
        %v1157 = vunpack.c.l.b16 %v1084
        %v1158 = vunpack.c.l.b16 %v1085
        %v1159 = vunpack.c.l.b16 %v1086
        %v1160 = vunpack.c.l.b16 %v1087
        %v1161 = vunpack.c.l.b16 %v1088
        %v1162 = vunpack.c.l.b16 %v1089
        %v1163 = vunpack.c.l.b16 %v1090
        %v1164 = vunpack.c.l.b16 %v1091
        %v1165 = vunpack.c.l.b16 %v1092
        %v1166 = vunpack.c.l.b16 %v1093
        %v1167 = vunpack.c.l.b16 %v1094
        %v1168 = vunpack.c.l.b16 %v1095
        %v1169 = vunpack.c.l.b16 %v1096
        %v1170 = vunpack.c.l.b16 %v1097
        %v1171 = vunpack.c.l.b16 %v1098
        %v1172 = vunpack.c.l.b16 %v1099
        %v1173 = vunpack.c.l.b16 %v1100
        %v1174 = vunpack.c.l.b16 %v1101
        %v1175 = vunpack.c.l.b16 %v1102
        %v1176 = vunpack.c.l.b16 %v1103
        %v1177 = vunpack.c.l.b16 %v1104
        %v1178 = vunpack.c.l.b16 %v1105
        %v1179 = vunpack.c.l.b16 %v1106
        %v1180 = vunpack.c.l.b16 %v1107
        %v1181 = vunpack.c.l.b16 %v1108
        %v1182 = vunpack.c.l.b16 %v1109
        %v1183 = vunpack.c.l.b16 %v1110
        %v1184 = vunpack.c.l.b16 %v1111
        %v1185 = vunpack.c.l.b16 %v1112
        %v1186 = vunpack.c.l.b16 %v1113
        %v1187 = vunpack.c.l.b16 %v1114
        %v1188 = vpack.c.b16 %v1157, %v1156
        %v1189 = vpack.c.b16 %v1159, %v1158
        %v1190 = vpack.c.b16 %v1161, %v1160
        %v1191 = vpack.c.b16 %v1163, %v1162
        %v1192 = vpack.c.b16 %v1165, %v1164
        %v1193 = vpack.c.b16 %v1167, %v1166
        %v1194 = vpack.c.b16 %v1169, %v1168
        %v1195 = vpack.c.b16 %v1171, %v1170
        %v1196 = vpack.c.b16 %v1173, %v1172
        %v1197 = vpack.c.b16 %v1175, %v1174
        %v1198 = vpack.c.b16 %v1177, %v1176
        %v1199 = vpack.c.b16 %v1179, %v1178
        %v1200 = vpack.c.b16 %v1181, %v1180
        %v1201 = vpack.c.b16 %v1183, %v1182
        %v1202 = vpack.c.b16 %v1185, %v1184
        %v1203 = vpack.c.b16 %v1187, %v1186
        %v1208 = vunpack.c.l.b16 %v1120
        %v1209 = vunpack.c.l.b16 %v1121
        %v1210 = vunpack.c.l.b16 %v1122
        %v1211 = vunpack.c.l.b16 %v1123
        %v1212 = vpack.c.b16 %v1209, %v1208
        %v1213 = vpack.c.b16 %v1211, %v1210
        %v1217 = vsel %vm621, %v1188, 0
        %v1220 = vsel %vm621, %v1189, 0
        %v1223 = vsel %vm621, %v1190, 0
        %v1226 = vsel %vm621, %v1191, 0
        %v1229 = vsel %vm621, %v1192, 0
        %v1232 = vsel %vm621, %v1193, 0
        %v1235 = vsel %vm621, %v1194, 0
        %v1238 = vsel %vm621, %v1195, 0
        %v1241 = vsel %vm621, %v1196, 0
        %v1244 = vsel %vm621, %v1197, 0
        %v1247 = vsel %vm621, %v1198, 0
        %v1250 = vsel %vm621, %v1199, 0
        %v1253 = vsel %vm621, %v1200, 0
        %v1256 = vsel %vm621, %v1201, 0
        %v1259 = vsel %vm621, %v1202, 0
        %v1262 = vsel %vm621, %v1203, 0
        %1264 = vmatpush.bf16.msra.mxu0 0
        %1265 = vmatpush.bf16.msra.mxu0 0
        %1266 = vmatpush.bf16.msra.mxu0 0
        %1267 = vmatpush.bf16.msra.mxu0 0
        %1268 = vmatpush.bf16.msra.mxu0 0
        %1269 = vmatpush.bf16.msra.mxu0 0
        %1270 = vmatpush.bf16.msra.mxu0 %v1213
        %1271 = vmatpush.bf16.msra.mxu0 %v1212
        %1272 = vmatmul.bf16.gmra.mxu0 %v1217
        %v1273 = vpop.f32.mrf.mxu0
        %v1274 = vadd.f32 0.0, %v1273
        %v1275 = vpop.f32.mrf.mxu0
        %v1276 = vadd.f32 0.0, %v1275
        %1277 = vmatmul.bf16.gmra.mxu0 %v1220
        %v1278 = vpop.f32.mrf.mxu0
        %v1279 = vadd.f32 0.0, %v1278
        %v1280 = vpop.f32.mrf.mxu0
        %v1281 = vadd.f32 0.0, %v1280
        %1282 = vmatmul.bf16.gmra.mxu0 %v1223
        %v1283 = vpop.f32.mrf.mxu0
        %v1284 = vadd.f32 0.0, %v1283
        %v1285 = vpop.f32.mrf.mxu0
        %v1286 = vadd.f32 0.0, %v1285
        %1287 = vmatmul.bf16.gmra.mxu0 %v1226
        %v1288 = vpop.f32.mrf.mxu0
        %v1289 = vadd.f32 0.0, %v1288
        %v1290 = vpop.f32.mrf.mxu0
        %v1291 = vadd.f32 0.0, %v1290
        %1292 = vmatmul.bf16.gmra.mxu0 %v1229
        %v1293 = vpop.f32.mrf.mxu0
        %v1294 = vadd.f32 0.0, %v1293
        %v1295 = vpop.f32.mrf.mxu0
        %v1296 = vadd.f32 0.0, %v1295
        %1297 = vmatmul.bf16.gmra.mxu0 %v1232
        %v1298 = vpop.f32.mrf.mxu0
        %v1299 = vadd.f32 0.0, %v1298
        %v1300 = vpop.f32.mrf.mxu0
        %v1301 = vadd.f32 0.0, %v1300
        %1302 = vmatmul.bf16.gmra.mxu0 %v1235
        %v1303 = vpop.f32.mrf.mxu0
        %v1304 = vadd.f32 0.0, %v1303
        %v1305 = vpop.f32.mrf.mxu0
        %v1306 = vadd.f32 0.0, %v1305
        %1307 = vmatmul.bf16.gmra.mxu0 %v1238
        %v1308 = vpop.f32.mrf.mxu0
        %v1309 = vadd.f32 0.0, %v1308
        %v1310 = vpop.f32.mrf.mxu0
        %v1311 = vadd.f32 0.0, %v1310
        %1312 = vmatmul.bf16.gmra.mxu0 %v1241
        %v1313 = vpop.f32.mrf.mxu0
        %v1314 = vadd.f32 0.0, %v1313
        %v1315 = vpop.f32.mrf.mxu0
        %v1316 = vadd.f32 0.0, %v1315
        %1317 = vmatmul.bf16.gmra.mxu0 %v1244
        %v1318 = vpop.f32.mrf.mxu0
        %v1319 = vadd.f32 0.0, %v1318
        %v1320 = vpop.f32.mrf.mxu0
        %v1321 = vadd.f32 0.0, %v1320
        %1322 = vmatmul.bf16.gmra.mxu0 %v1247
        %v1323 = vpop.f32.mrf.mxu0
        %v1324 = vadd.f32 0.0, %v1323
        %v1325 = vpop.f32.mrf.mxu0
        %v1326 = vadd.f32 0.0, %v1325
        %1327 = vmatmul.bf16.gmra.mxu0 %v1250
        %v1328 = vpop.f32.mrf.mxu0
        %v1329 = vadd.f32 0.0, %v1328
        %v1330 = vpop.f32.mrf.mxu0
        %v1331 = vadd.f32 0.0, %v1330
        %1332 = vmatmul.bf16.gmra.mxu0 %v1253
        %v1333 = vpop.f32.mrf.mxu0
        %v1334 = vadd.f32 0.0, %v1333
        %v1335 = vpop.f32.mrf.mxu0
        %v1336 = vadd.f32 0.0, %v1335
        %1337 = vmatmul.bf16.gmra.mxu0 %v1256
        %v1338 = vpop.f32.mrf.mxu0
        %v1339 = vadd.f32 0.0, %v1338
        %v1340 = vpop.f32.mrf.mxu0
        %v1341 = vadd.f32 0.0, %v1340
        %1342 = vmatmul.bf16.gmra.mxu0 %v1259
        %v1343 = vpop.f32.mrf.mxu0
        %v1344 = vadd.f32 0.0, %v1343
        %v1345 = vpop.f32.mrf.mxu0
        %v1346 = vadd.f32 0.0, %v1345
        %1347 = vmatmul.bf16.gmra.mxu0 %v1262
        %v1348 = vpop.f32.mrf.mxu0
        %v1349 = vadd.f32 0.0, %v1348
        %v1350 = vpop.f32.mrf.mxu0
        %v1351 = vadd.f32 0.0, %v1350
        %1352 = vdwg.mxu0
        %v1353 = vadd.f32 %v1051, %v1274
        %v1354 = vadd.f32 %v1052, %v1276
        %v1355 = vadd.f32 %v1053, %v1279
        %v1356 = vadd.f32 %v1054, %v1281
        %v1357 = vadd.f32 %v1055, %v1284
        %v1358 = vadd.f32 %v1056, %v1286
        %v1359 = vadd.f32 %v1057, %v1289
        %v1360 = vadd.f32 %v1058, %v1291
        %v1361 = vadd.f32 %v1059, %v1294
        %v1362 = vadd.f32 %v1060, %v1296
        %v1363 = vadd.f32 %v1061, %v1299
        %v1364 = vadd.f32 %v1062, %v1301
        %v1365 = vadd.f32 %v1063, %v1304
        %v1366 = vadd.f32 %v1064, %v1306
        %v1367 = vadd.f32 %v1065, %v1309
        %v1368 = vadd.f32 %v1066, %v1311
        %v1369 = vadd.f32 %v1067, %v1314
        %v1370 = vadd.f32 %v1068, %v1316
        %v1371 = vadd.f32 %v1069, %v1319
        %v1372 = vadd.f32 %v1070, %v1321
        %v1373 = vadd.f32 %v1071, %v1324
        %v1374 = vadd.f32 %v1072, %v1326
        %v1375 = vadd.f32 %v1073, %v1329
        %v1376 = vadd.f32 %v1074, %v1331
        %v1377 = vadd.f32 %v1075, %v1334
        %v1378 = vadd.f32 %v1076, %v1336
        %v1379 = vadd.f32 %v1077, %v1339
        %v1380 = vadd.f32 %v1078, %v1341
        %v1381 = vadd.f32 %v1079, %v1344
        %v1382 = vadd.f32 %v1080, %v1346
        %v1383 = vadd.f32 %v1081, %v1349
        %v1384 = vadd.f32 %v1082, %v1351
        %s1385 = scalar_lea.vmem %s1, 64
        %v1386 = vld [vmem:[%s1385] sm:$0xf]
        %v1387 = vld [vmem:[%s1385 + $0x4] sm:$0xf]
        %v1388 = vld [vmem:[%s1385 + $0x8] sm:$0xf]
        %v1389 = vld [vmem:[%s1385 + $0xc] sm:$0xf]
        %v1392 = vunpack.c.l.b16 %v1115
        %v1393 = vunpack.c.l.b16 %v1116
        %v1394 = vpack.c.b16 %v1393, %v1392
        %v1399 = vunpack.c.l.b16 %v1386
        %v1400 = vunpack.c.l.b16 %v1387
        %v1401 = vunpack.c.l.b16 %v1388
        %v1402 = vunpack.c.l.b16 %v1389
        %v1403 = vpack.c.b16 %v1400, %v1399
        %v1404 = vpack.c.b16 %v1402, %v1401
        %v1408 = vsel %vm621, %v1394, 0
        %1410 = vmatpush.bf16.msra.mxu0 0
        %1411 = vmatpush.bf16.msra.mxu0 0
        %1412 = vmatpush.bf16.msra.mxu0 0
        %1413 = vmatpush.bf16.msra.mxu0 0
        %1414 = vmatpush.bf16.msra.mxu0 0
        %1415 = vmatpush.bf16.msra.mxu0 0
        %1416 = vmatpush.bf16.msra.mxu0 %v1404
        %1417 = vmatpush.bf16.msra.mxu0 %v1403
        %1418 = vmatmul.bf16.gmra.mxu0 %v1220
        %v1419 = vpop.f32.mrf.mxu0
        %v1420 = vadd.f32 0.0, %v1419
        %v1421 = vpop.f32.mrf.mxu0
        %v1422 = vadd.f32 0.0, %v1421
        %1423 = vmatmul.bf16.gmra.mxu0 %v1223
        %v1424 = vpop.f32.mrf.mxu0
        %v1425 = vadd.f32 0.0, %v1424
        %v1426 = vpop.f32.mrf.mxu0
        %v1427 = vadd.f32 0.0, %v1426
        %1428 = vmatmul.bf16.gmra.mxu0 %v1226
        %v1429 = vpop.f32.mrf.mxu0
        %v1430 = vadd.f32 0.0, %v1429
        %v1431 = vpop.f32.mrf.mxu0
        %v1432 = vadd.f32 0.0, %v1431
        %1433 = vmatmul.bf16.gmra.mxu0 %v1229
        %v1434 = vpop.f32.mrf.mxu0
        %v1435 = vadd.f32 0.0, %v1434
        %v1436 = vpop.f32.mrf.mxu0
        %v1437 = vadd.f32 0.0, %v1436
        %1438 = vmatmul.bf16.gmra.mxu0 %v1232
        %v1439 = vpop.f32.mrf.mxu0
        %v1440 = vadd.f32 0.0, %v1439
        %v1441 = vpop.f32.mrf.mxu0
        %v1442 = vadd.f32 0.0, %v1441
        %1443 = vmatmul.bf16.gmra.mxu0 %v1235
        %v1444 = vpop.f32.mrf.mxu0
        %v1445 = vadd.f32 0.0, %v1444
        %v1446 = vpop.f32.mrf.mxu0
        %v1447 = vadd.f32 0.0, %v1446
        %1448 = vmatmul.bf16.gmra.mxu0 %v1238
        %v1449 = vpop.f32.mrf.mxu0
        %v1450 = vadd.f32 0.0, %v1449
        %v1451 = vpop.f32.mrf.mxu0
        %v1452 = vadd.f32 0.0, %v1451
        %1453 = vmatmul.bf16.gmra.mxu0 %v1241
        %v1454 = vpop.f32.mrf.mxu0
        %v1455 = vadd.f32 0.0, %v1454
        %v1456 = vpop.f32.mrf.mxu0
        %v1457 = vadd.f32 0.0, %v1456
        %1458 = vmatmul.bf16.gmra.mxu0 %v1244
        %v1459 = vpop.f32.mrf.mxu0
        %v1460 = vadd.f32 0.0, %v1459
        %v1461 = vpop.f32.mrf.mxu0
        %v1462 = vadd.f32 0.0, %v1461
        %1463 = vmatmul.bf16.gmra.mxu0 %v1247
        %v1464 = vpop.f32.mrf.mxu0
        %v1465 = vadd.f32 0.0, %v1464
        %v1466 = vpop.f32.mrf.mxu0
        %v1467 = vadd.f32 0.0, %v1466
        %1468 = vmatmul.bf16.gmra.mxu0 %v1250
        %v1469 = vpop.f32.mrf.mxu0
        %v1470 = vadd.f32 0.0, %v1469
        %v1471 = vpop.f32.mrf.mxu0
        %v1472 = vadd.f32 0.0, %v1471
        %1473 = vmatmul.bf16.gmra.mxu0 %v1253
        %v1474 = vpop.f32.mrf.mxu0
        %v1475 = vadd.f32 0.0, %v1474
        %v1476 = vpop.f32.mrf.mxu0
        %v1477 = vadd.f32 0.0, %v1476
        %1478 = vmatmul.bf16.gmra.mxu0 %v1256
        %v1479 = vpop.f32.mrf.mxu0
        %v1480 = vadd.f32 0.0, %v1479
        %v1481 = vpop.f32.mrf.mxu0
        %v1482 = vadd.f32 0.0, %v1481
        %1483 = vmatmul.bf16.gmra.mxu0 %v1259
        %v1484 = vpop.f32.mrf.mxu0
        %v1485 = vadd.f32 0.0, %v1484
        %v1486 = vpop.f32.mrf.mxu0
        %v1487 = vadd.f32 0.0, %v1486
        %1488 = vmatmul.bf16.gmra.mxu0 %v1262
        %v1489 = vpop.f32.mrf.mxu0
        %v1490 = vadd.f32 0.0, %v1489
        %v1491 = vpop.f32.mrf.mxu0
        %v1492 = vadd.f32 0.0, %v1491
        %1493 = vmatmul.bf16.gmra.mxu0 %v1408
        %v1494 = vpop.f32.mrf.mxu0
        %v1495 = vadd.f32 0.0, %v1494
        %v1496 = vpop.f32.mrf.mxu0
        %v1497 = vadd.f32 0.0, %v1496
        %1498 = vdwg.mxu0
        %v1499 = vadd.f32 %v1353, %v1420
        %v1500 = vadd.f32 %v1354, %v1422
        %v1501 = vadd.f32 %v1355, %v1425
        %v1502 = vadd.f32 %v1356, %v1427
        %v1503 = vadd.f32 %v1357, %v1430
        %v1504 = vadd.f32 %v1358, %v1432
        %v1505 = vadd.f32 %v1359, %v1435
        %v1506 = vadd.f32 %v1360, %v1437
        %v1507 = vadd.f32 %v1361, %v1440
        %v1508 = vadd.f32 %v1362, %v1442
        %v1509 = vadd.f32 %v1363, %v1445
        %v1510 = vadd.f32 %v1364, %v1447
        %v1511 = vadd.f32 %v1365, %v1450
        %v1512 = vadd.f32 %v1366, %v1452
        %v1513 = vadd.f32 %v1367, %v1455
        %v1514 = vadd.f32 %v1368, %v1457
        %v1515 = vadd.f32 %v1369, %v1460
        %v1516 = vadd.f32 %v1370, %v1462
        %v1517 = vadd.f32 %v1371, %v1465
        %v1518 = vadd.f32 %v1372, %v1467
        %v1519 = vadd.f32 %v1373, %v1470
        %v1520 = vadd.f32 %v1374, %v1472
        %v1521 = vadd.f32 %v1375, %v1475
        %v1522 = vadd.f32 %v1376, %v1477
        %v1523 = vadd.f32 %v1377, %v1480
        %v1524 = vadd.f32 %v1378, %v1482
        %v1525 = vadd.f32 %v1379, %v1485
        %v1526 = vadd.f32 %v1380, %v1487
        %v1527 = vadd.f32 %v1381, %v1490
        %v1528 = vadd.f32 %v1382, %v1492
        %v1529 = vadd.f32 %v1383, %v1495
        %v1530 = vadd.f32 %v1384, %v1497
        %s1531 = scalar_lea.vmem %s1, 112
        %v1532 = vld [vmem:[%s1531] sm:$0xf]
        %v1533 = vld [vmem:[%s1531 + $0x4] sm:$0xf]
        %v1534 = vld [vmem:[%s1531 + $0x8] sm:$0xf]
        %v1535 = vld [vmem:[%s1531 + $0xc] sm:$0xf]
        %v1538 = vunpack.c.l.b16 %v1117
        %v1539 = vunpack.c.l.b16 %v1118
        %v1540 = vpack.c.b16 %v1539, %v1538
        %v1545 = vunpack.c.l.b16 %v1532
        %v1546 = vunpack.c.l.b16 %v1533
        %v1547 = vunpack.c.l.b16 %v1534
        %v1548 = vunpack.c.l.b16 %v1535
        %v1549 = vpack.c.b16 %v1546, %v1545
        %v1550 = vpack.c.b16 %v1548, %v1547
        %v1554 = vsel %vm621, %v1540, 0
        %1556 = vmatpush.bf16.msra.mxu0 0
        %1557 = vmatpush.bf16.msra.mxu0 0
        %1558 = vmatpush.bf16.msra.mxu0 0
        %1559 = vmatpush.bf16.msra.mxu0 0
        %1560 = vmatpush.bf16.msra.mxu0 0
        %1561 = vmatpush.bf16.msra.mxu0 0
        %1562 = vmatpush.bf16.msra.mxu0 %v1550
        %1563 = vmatpush.bf16.msra.mxu0 %v1549
        %1564 = vmatmul.bf16.gmra.mxu0 %v1223
        %v1565 = vpop.f32.mrf.mxu0
        %v1566 = vadd.f32 0.0, %v1565
        %v1567 = vpop.f32.mrf.mxu0
        %v1568 = vadd.f32 0.0, %v1567
        %1569 = vmatmul.bf16.gmra.mxu0 %v1226
        %v1570 = vpop.f32.mrf.mxu0
        %v1571 = vadd.f32 0.0, %v1570
        %v1572 = vpop.f32.mrf.mxu0
        %v1573 = vadd.f32 0.0, %v1572
        %1574 = vmatmul.bf16.gmra.mxu0 %v1229
        %v1575 = vpop.f32.mrf.mxu0
        %v1576 = vadd.f32 0.0, %v1575
        %v1577 = vpop.f32.mrf.mxu0
        %v1578 = vadd.f32 0.0, %v1577
        %1579 = vmatmul.bf16.gmra.mxu0 %v1232
        %v1580 = vpop.f32.mrf.mxu0
        %v1581 = vadd.f32 0.0, %v1580
        %v1582 = vpop.f32.mrf.mxu0
        %v1583 = vadd.f32 0.0, %v1582
        %1584 = vmatmul.bf16.gmra.mxu0 %v1235
        %v1585 = vpop.f32.mrf.mxu0
        %v1586 = vadd.f32 0.0, %v1585
        %v1587 = vpop.f32.mrf.mxu0
        %v1588 = vadd.f32 0.0, %v1587
        %1589 = vmatmul.bf16.gmra.mxu0 %v1238
        %v1590 = vpop.f32.mrf.mxu0
        %v1591 = vadd.f32 0.0, %v1590
        %v1592 = vpop.f32.mrf.mxu0
        %v1593 = vadd.f32 0.0, %v1592
        %1594 = vmatmul.bf16.gmra.mxu0 %v1241
        %v1595 = vpop.f32.mrf.mxu0
        %v1596 = vadd.f32 0.0, %v1595
        %v1597 = vpop.f32.mrf.mxu0
        %v1598 = vadd.f32 0.0, %v1597
        %1599 = vmatmul.bf16.gmra.mxu0 %v1244
        %v1600 = vpop.f32.mrf.mxu0
        %v1601 = vadd.f32 0.0, %v1600
        %v1602 = vpop.f32.mrf.mxu0
        %v1603 = vadd.f32 0.0, %v1602
        %1604 = vmatmul.bf16.gmra.mxu0 %v1247
        %v1605 = vpop.f32.mrf.mxu0
        %v1606 = vadd.f32 0.0, %v1605
        %v1607 = vpop.f32.mrf.mxu0
        %v1608 = vadd.f32 0.0, %v1607
        %1609 = vmatmul.bf16.gmra.mxu0 %v1250
        %v1610 = vpop.f32.mrf.mxu0
        %v1611 = vadd.f32 0.0, %v1610
        %v1612 = vpop.f32.mrf.mxu0
        %v1613 = vadd.f32 0.0, %v1612
        %1614 = vmatmul.bf16.gmra.mxu0 %v1253
        %v1615 = vpop.f32.mrf.mxu0
        %v1616 = vadd.f32 0.0, %v1615
        %v1617 = vpop.f32.mrf.mxu0
        %v1618 = vadd.f32 0.0, %v1617
        %1619 = vmatmul.bf16.gmra.mxu0 %v1256
        %v1620 = vpop.f32.mrf.mxu0
        %v1621 = vadd.f32 0.0, %v1620
        %v1622 = vpop.f32.mrf.mxu0
        %v1623 = vadd.f32 0.0, %v1622
        %1624 = vmatmul.bf16.gmra.mxu0 %v1259
        %v1625 = vpop.f32.mrf.mxu0
        %v1626 = vadd.f32 0.0, %v1625
        %v1627 = vpop.f32.mrf.mxu0
        %v1628 = vadd.f32 0.0, %v1627
        %1629 = vmatmul.bf16.gmra.mxu0 %v1262
        %v1630 = vpop.f32.mrf.mxu0
        %v1631 = vadd.f32 0.0, %v1630
        %v1632 = vpop.f32.mrf.mxu0
        %v1633 = vadd.f32 0.0, %v1632
        %1634 = vmatmul.bf16.gmra.mxu0 %v1408
        %v1635 = vpop.f32.mrf.mxu0
        %v1636 = vadd.f32 0.0, %v1635
        %v1637 = vpop.f32.mrf.mxu0
        %v1638 = vadd.f32 0.0, %v1637
        %1639 = vmatmul.bf16.gmra.mxu0 %v1554
        %v1640 = vpop.f32.mrf.mxu0
        %v1641 = vadd.f32 0.0, %v1640
        %v1642 = vpop.f32.mrf.mxu0
        %v1643 = vadd.f32 0.0, %v1642
        %1644 = vdwg.mxu0
        %v1645 = vadd.f32 %v1499, %v1566
        %v1646 = vadd.f32 %v1500, %v1568
        %v1647 = vadd.f32 %v1501, %v1571
        %v1648 = vadd.f32 %v1502, %v1573
        %v1649 = vadd.f32 %v1503, %v1576
        %v1650 = vadd.f32 %v1504, %v1578
        %v1651 = vadd.f32 %v1505, %v1581
        %v1652 = vadd.f32 %v1506, %v1583
        %v1653 = vadd.f32 %v1507, %v1586
        %v1654 = vadd.f32 %v1508, %v1588
        %v1655 = vadd.f32 %v1509, %v1591
        %v1656 = vadd.f32 %v1510, %v1593
        %v1657 = vadd.f32 %v1511, %v1596
        %v1658 = vadd.f32 %v1512, %v1598
        %v1659 = vadd.f32 %v1513, %v1601
        %v1660 = vadd.f32 %v1514, %v1603
        %v1661 = vadd.f32 %v1515, %v1606
        %v1662 = vadd.f32 %v1516, %v1608
        %v1663 = vadd.f32 %v1517, %v1611
        %v1664 = vadd.f32 %v1518, %v1613
        %v1665 = vadd.f32 %v1519, %v1616
        %v1666 = vadd.f32 %v1520, %v1618
        %v1667 = vadd.f32 %v1521, %v1621
        %v1668 = vadd.f32 %v1522, %v1623
        %v1669 = vadd.f32 %v1523, %v1626
        %v1670 = vadd.f32 %v1524, %v1628
        %v1671 = vadd.f32 %v1525, %v1631
        %v1672 = vadd.f32 %v1526, %v1633
        %v1673 = vadd.f32 %v1527, %v1636
        %v1674 = vadd.f32 %v1528, %v1638
        %v1675 = vadd.f32 %v1529, %v1641
        %v1676 = vadd.f32 %v1530, %v1643
        %v1677 = vrot.slane %v342, 1
        %v1678 = vrot.slane %v345, 1
        %v1679 = vrot.slane %v348, 1
        %v1680 = vrot.slane %v351, 1
        %v1681 = vrot.slane %v354, 1
        %v1682 = vrot.slane %v357, 1
        %v1683 = vrot.slane %v360, 1
        %v1684 = vrot.slane %v363, 1
        %v1685 = vrot.slane %v366, 1
        %v1686 = vrot.slane %v369, 1
        %v1687 = vrot.slane %v372, 1
        %v1688 = vrot.slane %v375, 1
        %v1689 = vrot.slane %v378, 1
        %v1690 = vrot.slane %v381, 1
        %v1691 = vrot.slane %v384, 1
        %v1692 = vrot.slane %v387, 1
        %v1693 = vrot.slane %v390, 1
        %v1694 = vrot.slane %v393, 1
        %v1695 = vrot.slane %v343, 1
        %v1696 = vrot.slane %v346, 1
        %v1697 = vrot.slane %v349, 1
        %v1698 = vrot.slane %v352, 1
        %v1699 = vrot.slane %v355, 1
        %v1700 = vrot.slane %v358, 1
        %v1701 = vrot.slane %v361, 1
        %v1702 = vrot.slane %v364, 1
        %v1703 = vrot.slane %v367, 1
        %v1704 = vrot.slane %v370, 1
        %v1705 = vrot.slane %v373, 1
        %v1706 = vrot.slane %v376, 1
        %v1707 = vrot.slane %v379, 1
        %v1708 = vrot.slane %v382, 1
        %v1709 = vrot.slane %v385, 1
        %v1710 = vrot.slane %v388, 1
        %v1711 = vrot.slane %v391, 1
        %v1712 = vrot.slane %v394, 1
        %v1713 = vrot.slane %v344, 1
        %v1714 = vrot.slane %v347, 1
        %v1715 = vrot.slane %v350, 1
        %v1716 = vrot.slane %v353, 1
        %v1717 = vrot.slane %v356, 1
        %v1718 = vrot.slane %v359, 1
        %v1719 = vrot.slane %v362, 1
        %v1720 = vrot.slane %v365, 1
        %v1721 = vrot.slane %v368, 1
        %v1722 = vrot.slane %v371, 1
        %v1723 = vrot.slane %v374, 1
        %v1724 = vrot.slane %v377, 1
        %v1725 = vrot.slane %v380, 1
        %v1726 = vrot.slane %v383, 1
        %v1727 = vrot.slane %v386, 1
        %v1728 = vrot.slane %v389, 1
        %v1729 = vrot.slane %v392, 1
        %v1730 = vrot.slane %v395, 1
        %vm1731 = vcmp.lt.s32.totalorder %v451, 7
        %v1732 = vsel %vm1731, %v1695, %v1713
        %v1733 = vsel %vm1731, %v1696, %v1714
        %v1734 = vsel %vm1731, %v1697, %v1715
        %v1735 = vsel %vm1731, %v1698, %v1716
        %v1736 = vsel %vm1731, %v1699, %v1717
        %v1737 = vsel %vm1731, %v1700, %v1718
        %v1738 = vsel %vm1731, %v1701, %v1719
        %v1739 = vsel %vm1731, %v1702, %v1720
        %v1740 = vsel %vm1731, %v1703, %v1721
        %v1741 = vsel %vm1731, %v1704, %v1722
        %v1742 = vsel %vm1731, %v1705, %v1723
        %v1743 = vsel %vm1731, %v1706, %v1724
        %v1744 = vsel %vm1731, %v1707, %v1725
        %v1745 = vsel %vm1731, %v1708, %v1726
        %v1746 = vsel %vm1731, %v1709, %v1727
        %v1747 = vsel %vm1731, %v1710, %v1728
        %v1748 = vsel %vm1731, %v1711, %v1729
        %v1749 = vsel %vm1731, %v1712, %v1730
        %v1750 = vsel %vm1731, %v1677, %v1695
        %v1751 = vsel %vm1731, %v1678, %v1696
        %v1752 = vsel %vm1731, %v1679, %v1697
        %v1753 = vsel %vm1731, %v1680, %v1698
        %v1754 = vsel %vm1731, %v1681, %v1699
        %v1755 = vsel %vm1731, %v1682, %v1700
        %v1756 = vsel %vm1731, %v1683, %v1701
        %v1757 = vsel %vm1731, %v1684, %v1702
        %v1758 = vsel %vm1731, %v1685, %v1703
        %v1759 = vsel %vm1731, %v1686, %v1704
        %v1760 = vsel %vm1731, %v1687, %v1705
        %v1761 = vsel %vm1731, %v1688, %v1706
        %v1762 = vsel %vm1731, %v1689, %v1707
        %v1763 = vsel %vm1731, %v1690, %v1708
        %v1764 = vsel %vm1731, %v1691, %v1709
        %v1765 = vsel %vm1731, %v1692, %v1710
        %v1766 = vsel %vm1731, %v1693, %v1711
        %v1767 = vsel %vm1731, %v1694, %v1712
        %v1768 = vpack.c.bf16 %v1750, %v1750
        %v1769 = vpack.c.bf16 %v1732, %v1732
        %v1770 = vpack.c.bf16 %v1751, %v1751
        %v1771 = vpack.c.bf16 %v1733, %v1733
        %v1772 = vpack.c.bf16 %v1752, %v1752
        %v1773 = vpack.c.bf16 %v1734, %v1734
        %v1774 = vpack.c.bf16 %v1753, %v1753
        %v1775 = vpack.c.bf16 %v1735, %v1735
        %v1776 = vpack.c.bf16 %v1754, %v1754
        %v1777 = vpack.c.bf16 %v1736, %v1736
        %v1778 = vpack.c.bf16 %v1755, %v1755
        %v1779 = vpack.c.bf16 %v1737, %v1737
        %v1780 = vpack.c.bf16 %v1756, %v1756
        %v1781 = vpack.c.bf16 %v1738, %v1738
        %v1782 = vpack.c.bf16 %v1757, %v1757
        %v1783 = vpack.c.bf16 %v1739, %v1739
        %v1784 = vpack.c.bf16 %v1758, %v1758
        %v1785 = vpack.c.bf16 %v1740, %v1740
        %v1786 = vpack.c.bf16 %v1759, %v1759
        %v1787 = vpack.c.bf16 %v1741, %v1741
        %v1788 = vpack.c.bf16 %v1760, %v1760
        %v1789 = vpack.c.bf16 %v1742, %v1742
        %v1790 = vpack.c.bf16 %v1761, %v1761
        %v1791 = vpack.c.bf16 %v1743, %v1743
        %v1792 = vpack.c.bf16 %v1762, %v1762
        %v1793 = vpack.c.bf16 %v1744, %v1744
        %v1794 = vpack.c.bf16 %v1763, %v1763
        %v1795 = vpack.c.bf16 %v1745, %v1745
        %v1796 = vpack.c.bf16 %v1764, %v1764
        %v1797 = vpack.c.bf16 %v1746, %v1746
        %v1798 = vpack.c.bf16 %v1765, %v1765
        %v1799 = vpack.c.bf16 %v1747, %v1747
        %v1800 = vpack.c.bf16 %v1766, %v1766
        %v1801 = vpack.c.bf16 %v1748, %v1748
        %v1802 = vpack.c.bf16 %v1767, %v1767
        %v1803 = vpack.c.bf16 %v1749, %v1749
        %s1804 = scalar_lea.vmem %s1, 32
        %v1805 = vld [vmem:[%s1804] sm:$0xf]
        %v1806 = vld [vmem:[%s1804 + $0x4] sm:$0xf]
        %v1807 = vld [vmem:[%s1804 + $0x8] sm:$0xf]
        %v1808 = vld [vmem:[%s1804 + $0xc] sm:$0xf]
        %v1841 = vunpack.c.l.b16 %v1768
        %v1842 = vunpack.c.l.b16 %v1769
        %v1843 = vunpack.c.l.b16 %v1770
        %v1844 = vunpack.c.l.b16 %v1771
        %v1845 = vunpack.c.l.b16 %v1772
        %v1846 = vunpack.c.l.b16 %v1773
        %v1847 = vunpack.c.l.b16 %v1774
        %v1848 = vunpack.c.l.b16 %v1775
        %v1849 = vunpack.c.l.b16 %v1776
        %v1850 = vunpack.c.l.b16 %v1777
        %v1851 = vunpack.c.l.b16 %v1778
        %v1852 = vunpack.c.l.b16 %v1779
        %v1853 = vunpack.c.l.b16 %v1780
        %v1854 = vunpack.c.l.b16 %v1781
        %v1855 = vunpack.c.l.b16 %v1782
        %v1856 = vunpack.c.l.b16 %v1783
        %v1857 = vunpack.c.l.b16 %v1784
        %v1858 = vunpack.c.l.b16 %v1785
        %v1859 = vunpack.c.l.b16 %v1786
        %v1860 = vunpack.c.l.b16 %v1787
        %v1861 = vunpack.c.l.b16 %v1788
        %v1862 = vunpack.c.l.b16 %v1789
        %v1863 = vunpack.c.l.b16 %v1790
        %v1864 = vunpack.c.l.b16 %v1791
        %v1865 = vunpack.c.l.b16 %v1792
        %v1866 = vunpack.c.l.b16 %v1793
        %v1867 = vunpack.c.l.b16 %v1794
        %v1868 = vunpack.c.l.b16 %v1795
        %v1869 = vunpack.c.l.b16 %v1796
        %v1870 = vunpack.c.l.b16 %v1797
        %v1871 = vunpack.c.l.b16 %v1798
        %v1872 = vunpack.c.l.b16 %v1799
        %v1873 = vpack.c.b16 %v1842, %v1841
        %v1874 = vpack.c.b16 %v1844, %v1843
        %v1875 = vpack.c.b16 %v1846, %v1845
        %v1876 = vpack.c.b16 %v1848, %v1847
        %v1877 = vpack.c.b16 %v1850, %v1849
        %v1878 = vpack.c.b16 %v1852, %v1851
        %v1879 = vpack.c.b16 %v1854, %v1853
        %v1880 = vpack.c.b16 %v1856, %v1855
        %v1881 = vpack.c.b16 %v1858, %v1857
        %v1882 = vpack.c.b16 %v1860, %v1859
        %v1883 = vpack.c.b16 %v1862, %v1861
        %v1884 = vpack.c.b16 %v1864, %v1863
        %v1885 = vpack.c.b16 %v1866, %v1865
        %v1886 = vpack.c.b16 %v1868, %v1867
        %v1887 = vpack.c.b16 %v1870, %v1869
        %v1888 = vpack.c.b16 %v1872, %v1871
        %v1893 = vunpack.c.l.b16 %v1805
        %v1894 = vunpack.c.l.b16 %v1806
        %v1895 = vunpack.c.l.b16 %v1807
        %v1896 = vunpack.c.l.b16 %v1808
        %v1897 = vpack.c.b16 %v1894, %v1893
        %v1898 = vpack.c.b16 %v1896, %v1895
        %v1902 = vsel %vm621, %v1873, 0
        %v1905 = vsel %vm621, %v1874, 0
        %v1908 = vsel %vm621, %v1875, 0
        %v1911 = vsel %vm621, %v1876, 0
        %v1914 = vsel %vm621, %v1877, 0
        %v1917 = vsel %vm621, %v1878, 0
        %v1920 = vsel %vm621, %v1879, 0
        %v1923 = vsel %vm621, %v1880, 0
        %v1926 = vsel %vm621, %v1881, 0
        %v1929 = vsel %vm621, %v1882, 0
        %v1932 = vsel %vm621, %v1883, 0
        %v1935 = vsel %vm621, %v1884, 0
        %v1938 = vsel %vm621, %v1885, 0
        %v1941 = vsel %vm621, %v1886, 0
        %v1944 = vsel %vm621, %v1887, 0
        %v1947 = vsel %vm621, %v1888, 0
        %1949 = vmatpush.bf16.msra.mxu0 0
        %1950 = vmatpush.bf16.msra.mxu0 0
        %1951 = vmatpush.bf16.msra.mxu0 0
        %1952 = vmatpush.bf16.msra.mxu0 0
        %1953 = vmatpush.bf16.msra.mxu0 0
        %1954 = vmatpush.bf16.msra.mxu0 0
        %1955 = vmatpush.bf16.msra.mxu0 %v1898
        %1956 = vmatpush.bf16.msra.mxu0 %v1897
        %1957 = vmatmul.bf16.gmra.mxu0 %v1902
        %v1958 = vpop.f32.mrf.mxu0
        %v1959 = vadd.f32 0.0, %v1958
        %v1960 = vpop.f32.mrf.mxu0
        %v1961 = vadd.f32 0.0, %v1960
        %1962 = vmatmul.bf16.gmra.mxu0 %v1905
        %v1963 = vpop.f32.mrf.mxu0
        %v1964 = vadd.f32 0.0, %v1963
        %v1965 = vpop.f32.mrf.mxu0
        %v1966 = vadd.f32 0.0, %v1965
        %1967 = vmatmul.bf16.gmra.mxu0 %v1908
        %v1968 = vpop.f32.mrf.mxu0
        %v1969 = vadd.f32 0.0, %v1968
        %v1970 = vpop.f32.mrf.mxu0
        %v1971 = vadd.f32 0.0, %v1970
        %1972 = vmatmul.bf16.gmra.mxu0 %v1911
        %v1973 = vpop.f32.mrf.mxu0
        %v1974 = vadd.f32 0.0, %v1973
        %v1975 = vpop.f32.mrf.mxu0
        %v1976 = vadd.f32 0.0, %v1975
        %1977 = vmatmul.bf16.gmra.mxu0 %v1914
        %v1978 = vpop.f32.mrf.mxu0
        %v1979 = vadd.f32 0.0, %v1978
        %v1980 = vpop.f32.mrf.mxu0
        %v1981 = vadd.f32 0.0, %v1980
        %1982 = vmatmul.bf16.gmra.mxu0 %v1917
        %v1983 = vpop.f32.mrf.mxu0
        %v1984 = vadd.f32 0.0, %v1983
        %v1985 = vpop.f32.mrf.mxu0
        %v1986 = vadd.f32 0.0, %v1985
        %1987 = vmatmul.bf16.gmra.mxu0 %v1920
        %v1988 = vpop.f32.mrf.mxu0
        %v1989 = vadd.f32 0.0, %v1988
        %v1990 = vpop.f32.mrf.mxu0
        %v1991 = vadd.f32 0.0, %v1990
        %1992 = vmatmul.bf16.gmra.mxu0 %v1923
        %v1993 = vpop.f32.mrf.mxu0
        %v1994 = vadd.f32 0.0, %v1993
        %v1995 = vpop.f32.mrf.mxu0
        %v1996 = vadd.f32 0.0, %v1995
        %1997 = vmatmul.bf16.gmra.mxu0 %v1926
        %v1998 = vpop.f32.mrf.mxu0
        %v1999 = vadd.f32 0.0, %v1998
        %v2000 = vpop.f32.mrf.mxu0
        %v2001 = vadd.f32 0.0, %v2000
        %2002 = vmatmul.bf16.gmra.mxu0 %v1929
        %v2003 = vpop.f32.mrf.mxu0
        %v2004 = vadd.f32 0.0, %v2003
        %v2005 = vpop.f32.mrf.mxu0
        %v2006 = vadd.f32 0.0, %v2005
        %2007 = vmatmul.bf16.gmra.mxu0 %v1932
        %v2008 = vpop.f32.mrf.mxu0
        %v2009 = vadd.f32 0.0, %v2008
        %v2010 = vpop.f32.mrf.mxu0
        %v2011 = vadd.f32 0.0, %v2010
        %2012 = vmatmul.bf16.gmra.mxu0 %v1935
        %v2013 = vpop.f32.mrf.mxu0
        %v2014 = vadd.f32 0.0, %v2013
        %v2015 = vpop.f32.mrf.mxu0
        %v2016 = vadd.f32 0.0, %v2015
        %2017 = vmatmul.bf16.gmra.mxu0 %v1938
        %v2018 = vpop.f32.mrf.mxu0
        %v2019 = vadd.f32 0.0, %v2018
        %v2020 = vpop.f32.mrf.mxu0
        %v2021 = vadd.f32 0.0, %v2020
        %2022 = vmatmul.bf16.gmra.mxu0 %v1941
        %v2023 = vpop.f32.mrf.mxu0
        %v2024 = vadd.f32 0.0, %v2023
        %v2025 = vpop.f32.mrf.mxu0
        %v2026 = vadd.f32 0.0, %v2025
        %2027 = vmatmul.bf16.gmra.mxu0 %v1944
        %v2028 = vpop.f32.mrf.mxu0
        %v2029 = vadd.f32 0.0, %v2028
        %v2030 = vpop.f32.mrf.mxu0
        %v2031 = vadd.f32 0.0, %v2030
        %2032 = vmatmul.bf16.gmra.mxu0 %v1947
        %v2033 = vpop.f32.mrf.mxu0
        %v2034 = vadd.f32 0.0, %v2033
        %v2035 = vpop.f32.mrf.mxu0
        %v2036 = vadd.f32 0.0, %v2035
        %2037 = vdwg.mxu0
        %v2038 = vadd.f32 %v1645, %v1959
        %v2039 = vadd.f32 %v1646, %v1961
        %v2040 = vadd.f32 %v1647, %v1964
        %v2041 = vadd.f32 %v1648, %v1966
        %v2042 = vadd.f32 %v1649, %v1969
        %v2043 = vadd.f32 %v1650, %v1971
        %v2044 = vadd.f32 %v1651, %v1974
        %v2045 = vadd.f32 %v1652, %v1976
        %v2046 = vadd.f32 %v1653, %v1979
        %v2047 = vadd.f32 %v1654, %v1981
        %v2048 = vadd.f32 %v1655, %v1984
        %v2049 = vadd.f32 %v1656, %v1986
        %v2050 = vadd.f32 %v1657, %v1989
        %v2051 = vadd.f32 %v1658, %v1991
        %v2052 = vadd.f32 %v1659, %v1994
        %v2053 = vadd.f32 %v1660, %v1996
        %v2054 = vadd.f32 %v1661, %v1999
        %v2055 = vadd.f32 %v1662, %v2001
        %v2056 = vadd.f32 %v1663, %v2004
        %v2057 = vadd.f32 %v1664, %v2006
        %v2058 = vadd.f32 %v1665, %v2009
        %v2059 = vadd.f32 %v1666, %v2011
        %v2060 = vadd.f32 %v1667, %v2014
        %v2061 = vadd.f32 %v1668, %v2016
        %v2062 = vadd.f32 %v1669, %v2019
        %v2063 = vadd.f32 %v1670, %v2021
        %v2064 = vadd.f32 %v1671, %v2024
        %v2065 = vadd.f32 %v1672, %v2026
        %v2066 = vadd.f32 %v1673, %v2029
        %v2067 = vadd.f32 %v1674, %v2031
        %v2068 = vadd.f32 %v1675, %v2034
        %v2069 = vadd.f32 %v1676, %v2036
        %s2070 = scalar_lea.vmem %s1, 80
        %v2071 = vld [vmem:[%s2070] sm:$0xf]
        %v2072 = vld [vmem:[%s2070 + $0x4] sm:$0xf]
        %v2073 = vld [vmem:[%s2070 + $0x8] sm:$0xf]
        %v2074 = vld [vmem:[%s2070 + $0xc] sm:$0xf]
        %v2077 = vunpack.c.l.b16 %v1800
        %v2078 = vunpack.c.l.b16 %v1801
        %v2079 = vpack.c.b16 %v2078, %v2077
        %v2084 = vunpack.c.l.b16 %v2071
        %v2085 = vunpack.c.l.b16 %v2072
        %v2086 = vunpack.c.l.b16 %v2073
        %v2087 = vunpack.c.l.b16 %v2074
        %v2088 = vpack.c.b16 %v2085, %v2084
        %v2089 = vpack.c.b16 %v2087, %v2086
        %v2093 = vsel %vm621, %v2079, 0
        %2095 = vmatpush.bf16.msra.mxu0 0
        %2096 = vmatpush.bf16.msra.mxu0 0
        %2097 = vmatpush.bf16.msra.mxu0 0
        %2098 = vmatpush.bf16.msra.mxu0 0
        %2099 = vmatpush.bf16.msra.mxu0 0
        %2100 = vmatpush.bf16.msra.mxu0 0
        %2101 = vmatpush.bf16.msra.mxu0 %v2089
        %2102 = vmatpush.bf16.msra.mxu0 %v2088
        %2103 = vmatmul.bf16.gmra.mxu0 %v1905
        %v2104 = vpop.f32.mrf.mxu0
        %v2105 = vadd.f32 0.0, %v2104
        %v2106 = vpop.f32.mrf.mxu0
        %v2107 = vadd.f32 0.0, %v2106
        %2108 = vmatmul.bf16.gmra.mxu0 %v1908
        %v2109 = vpop.f32.mrf.mxu0
        %v2110 = vadd.f32 0.0, %v2109
        %v2111 = vpop.f32.mrf.mxu0
        %v2112 = vadd.f32 0.0, %v2111
        %2113 = vmatmul.bf16.gmra.mxu0 %v1911
        %v2114 = vpop.f32.mrf.mxu0
        %v2115 = vadd.f32 0.0, %v2114
        %v2116 = vpop.f32.mrf.mxu0
        %v2117 = vadd.f32 0.0, %v2116
        %2118 = vmatmul.bf16.gmra.mxu0 %v1914
        %v2119 = vpop.f32.mrf.mxu0
        %v2120 = vadd.f32 0.0, %v2119
        %v2121 = vpop.f32.mrf.mxu0
        %v2122 = vadd.f32 0.0, %v2121
        %2123 = vmatmul.bf16.gmra.mxu0 %v1917
        %v2124 = vpop.f32.mrf.mxu0
        %v2125 = vadd.f32 0.0, %v2124
        %v2126 = vpop.f32.mrf.mxu0
        %v2127 = vadd.f32 0.0, %v2126
        %2128 = vmatmul.bf16.gmra.mxu0 %v1920
        %v2129 = vpop.f32.mrf.mxu0
        %v2130 = vadd.f32 0.0, %v2129
        %v2131 = vpop.f32.mrf.mxu0
        %v2132 = vadd.f32 0.0, %v2131
        %2133 = vmatmul.bf16.gmra.mxu0 %v1923
        %v2134 = vpop.f32.mrf.mxu0
        %v2135 = vadd.f32 0.0, %v2134
        %v2136 = vpop.f32.mrf.mxu0
        %v2137 = vadd.f32 0.0, %v2136
        %2138 = vmatmul.bf16.gmra.mxu0 %v1926
        %v2139 = vpop.f32.mrf.mxu0
        %v2140 = vadd.f32 0.0, %v2139
        %v2141 = vpop.f32.mrf.mxu0
        %v2142 = vadd.f32 0.0, %v2141
        %2143 = vmatmul.bf16.gmra.mxu0 %v1929
        %v2144 = vpop.f32.mrf.mxu0
        %v2145 = vadd.f32 0.0, %v2144
        %v2146 = vpop.f32.mrf.mxu0
        %v2147 = vadd.f32 0.0, %v2146
        %2148 = vmatmul.bf16.gmra.mxu0 %v1932
        %v2149 = vpop.f32.mrf.mxu0
        %v2150 = vadd.f32 0.0, %v2149
        %v2151 = vpop.f32.mrf.mxu0
        %v2152 = vadd.f32 0.0, %v2151
        %2153 = vmatmul.bf16.gmra.mxu0 %v1935
        %v2154 = vpop.f32.mrf.mxu0
        %v2155 = vadd.f32 0.0, %v2154
        %v2156 = vpop.f32.mrf.mxu0
        %v2157 = vadd.f32 0.0, %v2156
        %2158 = vmatmul.bf16.gmra.mxu0 %v1938
        %v2159 = vpop.f32.mrf.mxu0
        %v2160 = vadd.f32 0.0, %v2159
        %v2161 = vpop.f32.mrf.mxu0
        %v2162 = vadd.f32 0.0, %v2161
        %2163 = vmatmul.bf16.gmra.mxu0 %v1941
        %v2164 = vpop.f32.mrf.mxu0
        %v2165 = vadd.f32 0.0, %v2164
        %v2166 = vpop.f32.mrf.mxu0
        %v2167 = vadd.f32 0.0, %v2166
        %2168 = vmatmul.bf16.gmra.mxu0 %v1944
        %v2169 = vpop.f32.mrf.mxu0
        %v2170 = vadd.f32 0.0, %v2169
        %v2171 = vpop.f32.mrf.mxu0
        %v2172 = vadd.f32 0.0, %v2171
        %2173 = vmatmul.bf16.gmra.mxu0 %v1947
        %v2174 = vpop.f32.mrf.mxu0
        %v2175 = vadd.f32 0.0, %v2174
        %v2176 = vpop.f32.mrf.mxu0
        %v2177 = vadd.f32 0.0, %v2176
        %2178 = vmatmul.bf16.gmra.mxu0 %v2093
        %v2179 = vpop.f32.mrf.mxu0
        %v2180 = vadd.f32 0.0, %v2179
        %v2181 = vpop.f32.mrf.mxu0
        %v2182 = vadd.f32 0.0, %v2181
        %2183 = vdwg.mxu0
        %v2184 = vadd.f32 %v2038, %v2105
        %v2185 = vadd.f32 %v2039, %v2107
        %v2186 = vadd.f32 %v2040, %v2110
        %v2187 = vadd.f32 %v2041, %v2112
        %v2188 = vadd.f32 %v2042, %v2115
        %v2189 = vadd.f32 %v2043, %v2117
        %v2190 = vadd.f32 %v2044, %v2120
        %v2191 = vadd.f32 %v2045, %v2122
        %v2192 = vadd.f32 %v2046, %v2125
        %v2193 = vadd.f32 %v2047, %v2127
        %v2194 = vadd.f32 %v2048, %v2130
        %v2195 = vadd.f32 %v2049, %v2132
        %v2196 = vadd.f32 %v2050, %v2135
        %v2197 = vadd.f32 %v2051, %v2137
        %v2198 = vadd.f32 %v2052, %v2140
        %v2199 = vadd.f32 %v2053, %v2142
        %v2200 = vadd.f32 %v2054, %v2145
        %v2201 = vadd.f32 %v2055, %v2147
        %v2202 = vadd.f32 %v2056, %v2150
        %v2203 = vadd.f32 %v2057, %v2152
        %v2204 = vadd.f32 %v2058, %v2155
        %v2205 = vadd.f32 %v2059, %v2157
        %v2206 = vadd.f32 %v2060, %v2160
        %v2207 = vadd.f32 %v2061, %v2162
        %v2208 = vadd.f32 %v2062, %v2165
        %v2209 = vadd.f32 %v2063, %v2167
        %v2210 = vadd.f32 %v2064, %v2170
        %v2211 = vadd.f32 %v2065, %v2172
        %v2212 = vadd.f32 %v2066, %v2175
        %v2213 = vadd.f32 %v2067, %v2177
        %v2214 = vadd.f32 %v2068, %v2180
        %v2215 = vadd.f32 %v2069, %v2182
        %s2216 = scalar_lea.vmem %s1, 128
        %v2217 = vld [vmem:[%s2216] sm:$0xf]
        %v2218 = vld [vmem:[%s2216 + $0x4] sm:$0xf]
        %v2219 = vld [vmem:[%s2216 + $0x8] sm:$0xf]
        %v2220 = vld [vmem:[%s2216 + $0xc] sm:$0xf]
        %v2223 = vunpack.c.l.b16 %v1802
        %v2224 = vunpack.c.l.b16 %v1803
        %v2225 = vpack.c.b16 %v2224, %v2223
        %v2230 = vunpack.c.l.b16 %v2217
        %v2231 = vunpack.c.l.b16 %v2218
        %v2232 = vunpack.c.l.b16 %v2219
        %v2233 = vunpack.c.l.b16 %v2220
        %v2234 = vpack.c.b16 %v2231, %v2230
        %v2235 = vpack.c.b16 %v2233, %v2232
        %v2239 = vsel %vm621, %v2225, 0
        %2241 = vmatpush.bf16.msra.mxu0 0
        %2242 = vmatpush.bf16.msra.mxu0 0
        %2243 = vmatpush.bf16.msra.mxu0 0
        %2244 = vmatpush.bf16.msra.mxu0 0
        %2245 = vmatpush.bf16.msra.mxu0 0
        %2246 = vmatpush.bf16.msra.mxu0 0
        %2247 = vmatpush.bf16.msra.mxu0 %v2235
        %2248 = vmatpush.bf16.msra.mxu0 %v2234
        %2249 = vmatmul.bf16.gmra.mxu0 %v1908
        %v2250 = vpop.f32.mrf.mxu0
        %v2251 = vadd.f32 0.0, %v2250
        %v2252 = vpop.f32.mrf.mxu0
        %v2253 = vadd.f32 0.0, %v2252
        %2254 = vmatmul.bf16.gmra.mxu0 %v1911
        %v2255 = vpop.f32.mrf.mxu0
        %v2256 = vadd.f32 0.0, %v2255
        %v2257 = vpop.f32.mrf.mxu0
        %v2258 = vadd.f32 0.0, %v2257
        %2259 = vmatmul.bf16.gmra.mxu0 %v1914
        %v2260 = vpop.f32.mrf.mxu0
        %v2261 = vadd.f32 0.0, %v2260
        %v2262 = vpop.f32.mrf.mxu0
        %v2263 = vadd.f32 0.0, %v2262
        %2264 = vmatmul.bf16.gmra.mxu0 %v1917
        %v2265 = vpop.f32.mrf.mxu0
        %v2266 = vadd.f32 0.0, %v2265
        %v2267 = vpop.f32.mrf.mxu0
        %v2268 = vadd.f32 0.0, %v2267
        %2269 = vmatmul.bf16.gmra.mxu0 %v1920
        %v2270 = vpop.f32.mrf.mxu0
        %v2271 = vadd.f32 0.0, %v2270
        %v2272 = vpop.f32.mrf.mxu0
        %v2273 = vadd.f32 0.0, %v2272
        %2274 = vmatmul.bf16.gmra.mxu0 %v1923
        %v2275 = vpop.f32.mrf.mxu0
        %v2276 = vadd.f32 0.0, %v2275
        %v2277 = vpop.f32.mrf.mxu0
        %v2278 = vadd.f32 0.0, %v2277
        %2279 = vmatmul.bf16.gmra.mxu0 %v1926
        %v2280 = vpop.f32.mrf.mxu0
        %v2281 = vadd.f32 0.0, %v2280
        %v2282 = vpop.f32.mrf.mxu0
        %v2283 = vadd.f32 0.0, %v2282
        %2284 = vmatmul.bf16.gmra.mxu0 %v1929
        %v2285 = vpop.f32.mrf.mxu0
        %v2286 = vadd.f32 0.0, %v2285
        %v2287 = vpop.f32.mrf.mxu0
        %v2288 = vadd.f32 0.0, %v2287
        %2289 = vmatmul.bf16.gmra.mxu0 %v1932
        %v2290 = vpop.f32.mrf.mxu0
        %v2291 = vadd.f32 0.0, %v2290
        %v2292 = vpop.f32.mrf.mxu0
        %v2293 = vadd.f32 0.0, %v2292
        %2294 = vmatmul.bf16.gmra.mxu0 %v1935
        %v2295 = vpop.f32.mrf.mxu0
        %v2296 = vadd.f32 0.0, %v2295
        %v2297 = vpop.f32.mrf.mxu0
        %v2298 = vadd.f32 0.0, %v2297
        %2299 = vmatmul.bf16.gmra.mxu0 %v1938
        %v2300 = vpop.f32.mrf.mxu0
        %v2301 = vadd.f32 0.0, %v2300
        %v2302 = vpop.f32.mrf.mxu0
        %v2303 = vadd.f32 0.0, %v2302
        %2304 = vmatmul.bf16.gmra.mxu0 %v1941
        %v2305 = vpop.f32.mrf.mxu0
        %v2306 = vadd.f32 0.0, %v2305
        %v2307 = vpop.f32.mrf.mxu0
        %v2308 = vadd.f32 0.0, %v2307
        %2309 = vmatmul.bf16.gmra.mxu0 %v1944
        %v2310 = vpop.f32.mrf.mxu0
        %v2311 = vadd.f32 0.0, %v2310
        %v2312 = vpop.f32.mrf.mxu0
        %v2313 = vadd.f32 0.0, %v2312
        %2314 = vmatmul.bf16.gmra.mxu0 %v1947
        %v2315 = vpop.f32.mrf.mxu0
        %v2316 = vadd.f32 0.0, %v2315
        %v2317 = vpop.f32.mrf.mxu0
        %v2318 = vadd.f32 0.0, %v2317
        %2319 = vmatmul.bf16.gmra.mxu0 %v2093
        %v2320 = vpop.f32.mrf.mxu0
        %v2321 = vadd.f32 0.0, %v2320
        %v2322 = vpop.f32.mrf.mxu0
        %v2323 = vadd.f32 0.0, %v2322
        %2324 = vmatmul.bf16.gmra.mxu0 %v2239
        %v2325 = vpop.f32.mrf.mxu0
        %v2326 = vadd.f32 0.0, %v2325
        %v2327 = vpop.f32.mrf.mxu0
        %v2328 = vadd.f32 0.0, %v2327
        %2329 = vdwg.mxu0
        %v2330 = vadd.f32 %v2184, %v2251
        %v2331 = vadd.f32 %v2185, %v2253
        %v2332 = vadd.f32 %v2186, %v2256
        %v2333 = vadd.f32 %v2187, %v2258
        %v2334 = vadd.f32 %v2188, %v2261
        %v2335 = vadd.f32 %v2189, %v2263
        %v2336 = vadd.f32 %v2190, %v2266
        %v2337 = vadd.f32 %v2191, %v2268
        %v2338 = vadd.f32 %v2192, %v2271
        %v2339 = vadd.f32 %v2193, %v2273
        %v2340 = vadd.f32 %v2194, %v2276
        %v2341 = vadd.f32 %v2195, %v2278
        %v2342 = vadd.f32 %v2196, %v2281
        %v2343 = vadd.f32 %v2197, %v2283
        %v2344 = vadd.f32 %v2198, %v2286
        %v2345 = vadd.f32 %v2199, %v2288
        %v2346 = vadd.f32 %v2200, %v2291
        %v2347 = vadd.f32 %v2201, %v2293
        %v2348 = vadd.f32 %v2202, %v2296
        %v2349 = vadd.f32 %v2203, %v2298
        %v2350 = vadd.f32 %v2204, %v2301
        %v2351 = vadd.f32 %v2205, %v2303
        %v2352 = vadd.f32 %v2206, %v2306
        %v2353 = vadd.f32 %v2207, %v2308
        %v2354 = vadd.f32 %v2208, %v2311
        %v2355 = vadd.f32 %v2209, %v2313
        %v2356 = vadd.f32 %v2210, %v2316
        %v2357 = vadd.f32 %v2211, %v2318
        %v2358 = vadd.f32 %v2212, %v2321
        %v2359 = vadd.f32 %v2213, %v2323
        %v2360 = vadd.f32 %v2214, %v2326
        %v2361 = vadd.f32 %v2215, %v2328
        %v2362 = vlaneseq
        %v2363 = vand.u32 %v2362, 127
        %vm2364 = vcmp.ge.s32.totalorder %v2363, 96
        %v2365 = vmul.f32 %v2330, 0.5
        %v2366 = vmul.f32 %v2331, 0.5
        %v2367 = vmul.f32 %v2332, 0.5
        %v2368 = vmul.f32 %v2333, 0.5
        %v2369 = vmul.f32 %v2334, 0.5
        %v2370 = vmul.f32 %v2335, 0.5
        %v2371 = vmul.f32 %v2336, 0.5
        %v2372 = vmul.f32 %v2337, 0.5
        %v2373 = vmul.f32 %v2338, 0.5
        %v2374 = vmul.f32 %v2339, 0.5
        %v2375 = vmul.f32 %v2340, 0.5
        %v2376 = vmul.f32 %v2341, 0.5
        %v2377 = vmul.f32 %v2342, 0.5
        %v2378 = vmul.f32 %v2343, 0.5
        %v2379 = vmul.f32 %v2344, 0.5
        %v2380 = vmul.f32 %v2345, 0.5
        %v2381 = vmul.f32 %v2346, 0.5
        %v2382 = vmul.f32 %v2347, 0.5
        %v2383 = vmul.f32 %v2348, 0.5
        %v2384 = vmul.f32 %v2349, 0.5
        %v2385 = vmul.f32 %v2350, 0.5
        %v2386 = vmul.f32 %v2351, 0.5
        %v2387 = vmul.f32 %v2352, 0.5
        %v2388 = vmul.f32 %v2353, 0.5
        %v2389 = vmul.f32 %v2354, 0.5
        %v2390 = vmul.f32 %v2355, 0.5
        %v2391 = vmul.f32 %v2356, 0.5
        %v2392 = vmul.f32 %v2357, 0.5
        %v2393 = vmul.f32 %v2358, 0.5
        %v2394 = vmul.f32 %v2359, 0.5
        %v2395 = vmul.f32 %v2360, 0.5
        %v2396 = vmul.f32 %v2361, 0.5
        %v2397 = vsel %vm2364, %v2330, %v2365
        %v2398 = vsel %vm2364, %v2331, %v2366
        %v2399 = vsel %vm2364, %v2332, %v2367
        %v2400 = vsel %vm2364, %v2333, %v2368
        %v2401 = vsel %vm2364, %v2334, %v2369
        %v2402 = vsel %vm2364, %v2335, %v2370
        %v2403 = vsel %vm2364, %v2336, %v2371
        %v2404 = vsel %vm2364, %v2337, %v2372
        %v2405 = vsel %vm2364, %v2338, %v2373
        %v2406 = vsel %vm2364, %v2339, %v2374
        %v2407 = vsel %vm2364, %v2340, %v2375
        %v2408 = vsel %vm2364, %v2341, %v2376
        %v2409 = vsel %vm2364, %v2342, %v2377
        %v2410 = vsel %vm2364, %v2343, %v2378
        %v2411 = vsel %vm2364, %v2344, %v2379
        %v2412 = vsel %vm2364, %v2345, %v2380
        %v2413 = vsel %vm2364, %v2346, %v2381
        %v2414 = vsel %vm2364, %v2347, %v2382
        %v2415 = vsel %vm2364, %v2348, %v2383
        %v2416 = vsel %vm2364, %v2349, %v2384
        %v2417 = vsel %vm2364, %v2350, %v2385
        %v2418 = vsel %vm2364, %v2351, %v2386
        %v2419 = vsel %vm2364, %v2352, %v2387
        %v2420 = vsel %vm2364, %v2353, %v2388
        %v2421 = vsel %vm2364, %v2354, %v2389
        %v2422 = vsel %vm2364, %v2355, %v2390
        %v2423 = vsel %vm2364, %v2356, %v2391
        %v2424 = vsel %vm2364, %v2357, %v2392
        %v2425 = vsel %vm2364, %v2358, %v2393
        %v2426 = vsel %vm2364, %v2359, %v2394
        %v2427 = vsel %vm2364, %v2360, %v2395
        %v2428 = vsel %vm2364, %v2361, %v2396
        %v2429 = vtanh.pop %v2397
        %v2430 = vtanh.pop %v2398
        %v2431 = vtanh.pop %v2399
        %v2432 = vtanh.pop %v2400
        %v2433 = vtanh.pop %v2401
        %v2434 = vtanh.pop %v2402
        %v2435 = vtanh.pop %v2403
        %v2436 = vtanh.pop %v2404
        %v2437 = vtanh.pop %v2405
        %v2438 = vtanh.pop %v2406
        %v2439 = vtanh.pop %v2407
        %v2440 = vtanh.pop %v2408
        %v2441 = vtanh.pop %v2409
        %v2442 = vtanh.pop %v2410
        %v2443 = vtanh.pop %v2411
        %v2444 = vtanh.pop %v2412
        %v2445 = vtanh.pop %v2413
        %v2446 = vtanh.pop %v2414
        %v2447 = vtanh.pop %v2415
        %v2448 = vtanh.pop %v2416
        %v2449 = vtanh.pop %v2417
        %v2450 = vtanh.pop %v2418
        %v2451 = vtanh.pop %v2419
        %v2452 = vtanh.pop %v2420
        %v2453 = vtanh.pop %v2421
        %v2454 = vtanh.pop %v2422
        %v2455 = vtanh.pop %v2423
        %v2456 = vtanh.pop %v2424
        %v2457 = vtanh.pop %v2425
        %v2458 = vtanh.pop %v2426
        %v2459 = vtanh.pop %v2427
        %v2460 = vtanh.pop %v2428
        %v2461 = vmul.f32 %v2429, 0.5
        %v2462 = vmul.f32 %v2430, 0.5
        %v2463 = vmul.f32 %v2431, 0.5
        %v2464 = vmul.f32 %v2432, 0.5
        %v2465 = vmul.f32 %v2433, 0.5
        %v2466 = vmul.f32 %v2434, 0.5
        %v2467 = vmul.f32 %v2435, 0.5
        %v2468 = vmul.f32 %v2436, 0.5
        %v2469 = vmul.f32 %v2437, 0.5
        %v2470 = vmul.f32 %v2438, 0.5
        %v2471 = vmul.f32 %v2439, 0.5
        %v2472 = vmul.f32 %v2440, 0.5
        %v2473 = vmul.f32 %v2441, 0.5
        %v2474 = vmul.f32 %v2442, 0.5
        %v2475 = vmul.f32 %v2443, 0.5
        %v2476 = vmul.f32 %v2444, 0.5
        %v2477 = vmul.f32 %v2445, 0.5
        %v2478 = vmul.f32 %v2446, 0.5
        %v2479 = vmul.f32 %v2447, 0.5
        %v2480 = vmul.f32 %v2448, 0.5
        %v2481 = vmul.f32 %v2449, 0.5
        %v2482 = vmul.f32 %v2450, 0.5
        %v2483 = vmul.f32 %v2451, 0.5
        %v2484 = vmul.f32 %v2452, 0.5
        %v2485 = vmul.f32 %v2453, 0.5
        %v2486 = vmul.f32 %v2454, 0.5
        %v2487 = vmul.f32 %v2455, 0.5
        %v2488 = vmul.f32 %v2456, 0.5
        %v2489 = vmul.f32 %v2457, 0.5
        %v2490 = vmul.f32 %v2458, 0.5
        %v2491 = vmul.f32 %v2459, 0.5
        %v2492 = vmul.f32 %v2460, 0.5
        %v2493 = vadd.f32 %v2461, 0.5
        %v2494 = vadd.f32 %v2462, 0.5
        %v2495 = vadd.f32 %v2463, 0.5
        %v2496 = vadd.f32 %v2464, 0.5
        %v2497 = vadd.f32 %v2465, 0.5
        %v2498 = vadd.f32 %v2466, 0.5
        %v2499 = vadd.f32 %v2467, 0.5
        %v2500 = vadd.f32 %v2468, 0.5
        %v2501 = vadd.f32 %v2469, 0.5
        %v2502 = vadd.f32 %v2470, 0.5
        %v2503 = vadd.f32 %v2471, 0.5
        %v2504 = vadd.f32 %v2472, 0.5
        %v2505 = vadd.f32 %v2473, 0.5
        %v2506 = vadd.f32 %v2474, 0.5
        %v2507 = vadd.f32 %v2475, 0.5
        %v2508 = vadd.f32 %v2476, 0.5
        %v2509 = vadd.f32 %v2477, 0.5
        %v2510 = vadd.f32 %v2478, 0.5
        %v2511 = vadd.f32 %v2479, 0.5
        %v2512 = vadd.f32 %v2480, 0.5
        %v2513 = vadd.f32 %v2481, 0.5
        %v2514 = vadd.f32 %v2482, 0.5
        %v2515 = vadd.f32 %v2483, 0.5
        %v2516 = vadd.f32 %v2484, 0.5
        %v2517 = vadd.f32 %v2485, 0.5
        %v2518 = vadd.f32 %v2486, 0.5
        %v2519 = vadd.f32 %v2487, 0.5
        %v2520 = vadd.f32 %v2488, 0.5
        %v2521 = vadd.f32 %v2489, 0.5
        %v2522 = vadd.f32 %v2490, 0.5
        %v2523 = vadd.f32 %v2491, 0.5
        %v2524 = vadd.f32 %v2492, 0.5
        %v2525 = vsel %vm2364, %v2429, %v2493
        %v2526 = vsel %vm2364, %v2430, %v2494
        %v2527 = vsel %vm2364, %v2431, %v2495
        %v2528 = vsel %vm2364, %v2432, %v2496
        %v2529 = vsel %vm2364, %v2433, %v2497
        %v2530 = vsel %vm2364, %v2434, %v2498
        %v2531 = vsel %vm2364, %v2435, %v2499
        %v2532 = vsel %vm2364, %v2436, %v2500
        %v2533 = vsel %vm2364, %v2437, %v2501
        %v2534 = vsel %vm2364, %v2438, %v2502
        %v2535 = vsel %vm2364, %v2439, %v2503
        %v2536 = vsel %vm2364, %v2440, %v2504
        %v2537 = vsel %vm2364, %v2441, %v2505
        %v2538 = vsel %vm2364, %v2442, %v2506
        %v2539 = vsel %vm2364, %v2443, %v2507
        %v2540 = vsel %vm2364, %v2444, %v2508
        %v2541 = vsel %vm2364, %v2445, %v2509
        %v2542 = vsel %vm2364, %v2446, %v2510
        %v2543 = vsel %vm2364, %v2447, %v2511
        %v2544 = vsel %vm2364, %v2448, %v2512
        %v2545 = vsel %vm2364, %v2449, %v2513
        %v2546 = vsel %vm2364, %v2450, %v2514
        %v2547 = vsel %vm2364, %v2451, %v2515
        %v2548 = vsel %vm2364, %v2452, %v2516
        %v2549 = vsel %vm2364, %v2453, %v2517
        %v2550 = vsel %vm2364, %v2454, %v2518
        %v2551 = vsel %vm2364, %v2455, %v2519
        %v2552 = vsel %vm2364, %v2456, %v2520
        %v2553 = vsel %vm2364, %v2457, %v2521
        %v2554 = vsel %vm2364, %v2458, %v2522
        %v2555 = vsel %vm2364, %v2459, %v2523
        %v2556 = vsel %vm2364, %v2460, %v2524
        %v2557 = vld [vmem:[#allocation3] sm:$0xff]
        %v2558 = vld [vmem:[#allocation3 + $0x8] sm:$0xff]
        %v2559 = vld [vmem:[#allocation3 + $0x10] sm:$0xff]
        %v2560 = vld [vmem:[#allocation3 + $0x18] sm:$0xff]
        %v2561 = vld [vmem:[#allocation3 + $0x20] sm:$0xff]
        %v2562 = vld [vmem:[#allocation3 + $0x28] sm:$0xff]
        %v2563 = vld [vmem:[#allocation3 + $0x30] sm:$0xff]
        %v2564 = vld [vmem:[#allocation3 + $0x38] sm:$0xff]
        %v2565 = vld [vmem:[#allocation3 + $0x40] sm:$0xff]
        %v2566 = vld [vmem:[#allocation3 + $0x48] sm:$0xff]
        %v2567 = vld [vmem:[#allocation3 + $0x50] sm:$0xff]
        %v2568 = vld [vmem:[#allocation3 + $0x58] sm:$0xff]
        %v2569 = vld [vmem:[#allocation3 + $0x60] sm:$0xff]
        %v2570 = vld [vmem:[#allocation3 + $0x68] sm:$0xff]
        %v2571 = vld [vmem:[#allocation3 + $0x70] sm:$0xff]
        %v2572 = vld [vmem:[#allocation3 + $0x78] sm:$0xff]
        %v2573 = vld [vmem:[#allocation3 + $0x80] sm:$0xff]
        %v2574 = vld [vmem:[#allocation3 + $0x88] sm:$0xff]
        %v2575 = vld [vmem:[#allocation3 + $0x90] sm:$0xff]
        %v2576 = vld [vmem:[#allocation3 + $0x98] sm:$0xff]
        %v2577 = vld [vmem:[#allocation3 + $0xa0] sm:$0xff]
        %v2578 = vld [vmem:[#allocation3 + $0xa8] sm:$0xff]
        %v2579 = vld [vmem:[#allocation3 + $0xb0] sm:$0xff]
        %v2580 = vld [vmem:[#allocation3 + $0xb8] sm:$0xff]
        %v2581 = vld [vmem:[#allocation3 + $0xc0] sm:$0xff]
        %v2582 = vld [vmem:[#allocation3 + $0xc8] sm:$0xff]
        %v2583 = vld [vmem:[#allocation3 + $0xd0] sm:$0xff]
        %v2584 = vld [vmem:[#allocation3 + $0xd8] sm:$0xff]
        %v2585 = vld [vmem:[#allocation3 + $0xe0] sm:$0xff]
        %v2586 = vld [vmem:[#allocation3 + $0xe8] sm:$0xff]
        %v2587 = vld [vmem:[#allocation3 + $0xf0] sm:$0xff]
        %v2588 = vld [vmem:[#allocation3 + $0xf8] sm:$0xff]
        %2621 = vrot.lane.b32.xlu0 %v2557, 32
        %v2622 = vpop.permute.xlu0 %2621
        %2623 = vrot.lane.b32.xlu0 %v2558, 32
        %v2624 = vpop.permute.xlu0 %2623
        %2625 = vrot.lane.b32.xlu0 %v2559, 32
        %v2626 = vpop.permute.xlu0 %2625
        %2627 = vrot.lane.b32.xlu0 %v2560, 32
        %v2628 = vpop.permute.xlu0 %2627
        %2629 = vrot.lane.b32.xlu0 %v2561, 32
        %v2630 = vpop.permute.xlu0 %2629
        %2631 = vrot.lane.b32.xlu0 %v2562, 32
        %v2632 = vpop.permute.xlu0 %2631
        %2633 = vrot.lane.b32.xlu0 %v2563, 32
        %v2634 = vpop.permute.xlu0 %2633
        %2635 = vrot.lane.b32.xlu0 %v2564, 32
        %v2636 = vpop.permute.xlu0 %2635
        %2637 = vrot.lane.b32.xlu0 %v2565, 32
        %v2638 = vpop.permute.xlu0 %2637
        %2639 = vrot.lane.b32.xlu0 %v2566, 32
        %v2640 = vpop.permute.xlu0 %2639
        %2641 = vrot.lane.b32.xlu0 %v2567, 32
        %v2642 = vpop.permute.xlu0 %2641
        %2643 = vrot.lane.b32.xlu0 %v2568, 32
        %v2644 = vpop.permute.xlu0 %2643
        %2645 = vrot.lane.b32.xlu0 %v2569, 32
        %v2646 = vpop.permute.xlu0 %2645
        %2647 = vrot.lane.b32.xlu0 %v2570, 32
        %v2648 = vpop.permute.xlu0 %2647
        %2649 = vrot.lane.b32.xlu0 %v2571, 32
        %v2650 = vpop.permute.xlu0 %2649
        %2651 = vrot.lane.b32.xlu0 %v2572, 32
        %v2652 = vpop.permute.xlu0 %2651
        %2653 = vrot.lane.b32.xlu0 %v2573, 32
        %v2654 = vpop.permute.xlu0 %2653
        %2655 = vrot.lane.b32.xlu0 %v2574, 32
        %v2656 = vpop.permute.xlu0 %2655
        %2657 = vrot.lane.b32.xlu0 %v2575, 32
        %v2658 = vpop.permute.xlu0 %2657
        %2659 = vrot.lane.b32.xlu0 %v2576, 32
        %v2660 = vpop.permute.xlu0 %2659
        %2661 = vrot.lane.b32.xlu0 %v2577, 32
        %v2662 = vpop.permute.xlu0 %2661
        %2663 = vrot.lane.b32.xlu0 %v2578, 32
        %v2664 = vpop.permute.xlu0 %2663
        %2665 = vrot.lane.b32.xlu0 %v2579, 32
        %v2666 = vpop.permute.xlu0 %2665
        %2667 = vrot.lane.b32.xlu0 %v2580, 32
        %v2668 = vpop.permute.xlu0 %2667
        %2669 = vrot.lane.b32.xlu0 %v2581, 32
        %v2670 = vpop.permute.xlu0 %2669
        %2671 = vrot.lane.b32.xlu0 %v2582, 32
        %v2672 = vpop.permute.xlu0 %2671
        %2673 = vrot.lane.b32.xlu0 %v2583, 32
        %v2674 = vpop.permute.xlu0 %2673
        %2675 = vrot.lane.b32.xlu0 %v2584, 32
        %v2676 = vpop.permute.xlu0 %2675
        %2677 = vrot.lane.b32.xlu0 %v2585, 32
        %v2678 = vpop.permute.xlu0 %2677
        %2679 = vrot.lane.b32.xlu0 %v2586, 32
        %v2680 = vpop.permute.xlu0 %2679
        %2681 = vrot.lane.b32.xlu0 %v2587, 32
        %v2682 = vpop.permute.xlu0 %2681
        %2683 = vrot.lane.b32.xlu0 %v2588, 32
        %v2684 = vpop.permute.xlu0 %2683
        %v2717 = vmul.f32 %v2525, %v2622
        %v2718 = vmul.f32 %v2526, %v2624
        %v2719 = vmul.f32 %v2527, %v2626
        %v2720 = vmul.f32 %v2528, %v2628
        %v2721 = vmul.f32 %v2529, %v2630
        %v2722 = vmul.f32 %v2530, %v2632
        %v2723 = vmul.f32 %v2531, %v2634
        %v2724 = vmul.f32 %v2532, %v2636
        %v2725 = vmul.f32 %v2533, %v2638
        %v2726 = vmul.f32 %v2534, %v2640
        %v2727 = vmul.f32 %v2535, %v2642
        %v2728 = vmul.f32 %v2536, %v2644
        %v2729 = vmul.f32 %v2537, %v2646
        %v2730 = vmul.f32 %v2538, %v2648
        %v2731 = vmul.f32 %v2539, %v2650
        %v2732 = vmul.f32 %v2540, %v2652
        %v2733 = vmul.f32 %v2541, %v2654
        %v2734 = vmul.f32 %v2542, %v2656
        %v2735 = vmul.f32 %v2543, %v2658
        %v2736 = vmul.f32 %v2544, %v2660
        %v2737 = vmul.f32 %v2545, %v2662
        %v2738 = vmul.f32 %v2546, %v2664
        %v2739 = vmul.f32 %v2547, %v2666
        %v2740 = vmul.f32 %v2548, %v2668
        %v2741 = vmul.f32 %v2549, %v2670
        %v2742 = vmul.f32 %v2550, %v2672
        %v2743 = vmul.f32 %v2551, %v2674
        %v2744 = vmul.f32 %v2552, %v2676
        %v2745 = vmul.f32 %v2553, %v2678
        %v2746 = vmul.f32 %v2554, %v2680
        %v2747 = vmul.f32 %v2555, %v2682
        %v2748 = vmul.f32 %v2556, %v2684
        %2781 = vrot.lane.b32.xlu0 %v2525, 32
        %v2782 = vpop.permute.xlu0 %2781
        %2783 = vrot.lane.b32.xlu0 %v2526, 32
        %v2784 = vpop.permute.xlu0 %2783
        %2785 = vrot.lane.b32.xlu0 %v2527, 32
        %v2786 = vpop.permute.xlu0 %2785
        %2787 = vrot.lane.b32.xlu0 %v2528, 32
        %v2788 = vpop.permute.xlu0 %2787
        %2789 = vrot.lane.b32.xlu0 %v2529, 32
        %v2790 = vpop.permute.xlu0 %2789
        %2791 = vrot.lane.b32.xlu0 %v2530, 32
        %v2792 = vpop.permute.xlu0 %2791
        %2793 = vrot.lane.b32.xlu0 %v2531, 32
        %v2794 = vpop.permute.xlu0 %2793
        %2795 = vrot.lane.b32.xlu0 %v2532, 32
        %v2796 = vpop.permute.xlu0 %2795
        %2797 = vrot.lane.b32.xlu0 %v2533, 32
        %v2798 = vpop.permute.xlu0 %2797
        %2799 = vrot.lane.b32.xlu0 %v2534, 32
        %v2800 = vpop.permute.xlu0 %2799
        %2801 = vrot.lane.b32.xlu0 %v2535, 32
        %v2802 = vpop.permute.xlu0 %2801
        %2803 = vrot.lane.b32.xlu0 %v2536, 32
        %v2804 = vpop.permute.xlu0 %2803
        %2805 = vrot.lane.b32.xlu0 %v2537, 32
        %v2806 = vpop.permute.xlu0 %2805
        %2807 = vrot.lane.b32.xlu0 %v2538, 32
        %v2808 = vpop.permute.xlu0 %2807
        %2809 = vrot.lane.b32.xlu0 %v2539, 32
        %v2810 = vpop.permute.xlu0 %2809
        %2811 = vrot.lane.b32.xlu0 %v2540, 32
        %v2812 = vpop.permute.xlu0 %2811
        %2813 = vrot.lane.b32.xlu0 %v2541, 32
        %v2814 = vpop.permute.xlu0 %2813
        %2815 = vrot.lane.b32.xlu0 %v2542, 32
        %v2816 = vpop.permute.xlu0 %2815
        %2817 = vrot.lane.b32.xlu0 %v2543, 32
        %v2818 = vpop.permute.xlu0 %2817
        %2819 = vrot.lane.b32.xlu0 %v2544, 32
        %v2820 = vpop.permute.xlu0 %2819
        %2821 = vrot.lane.b32.xlu0 %v2545, 32
        %v2822 = vpop.permute.xlu0 %2821
        %2823 = vrot.lane.b32.xlu0 %v2546, 32
        %v2824 = vpop.permute.xlu0 %2823
        %2825 = vrot.lane.b32.xlu0 %v2547, 32
        %v2826 = vpop.permute.xlu0 %2825
        %2827 = vrot.lane.b32.xlu0 %v2548, 32
        %v2828 = vpop.permute.xlu0 %2827
        %2829 = vrot.lane.b32.xlu0 %v2549, 32
        %v2830 = vpop.permute.xlu0 %2829
        %2831 = vrot.lane.b32.xlu0 %v2550, 32
        %v2832 = vpop.permute.xlu0 %2831
        %2833 = vrot.lane.b32.xlu0 %v2551, 32
        %v2834 = vpop.permute.xlu0 %2833
        %2835 = vrot.lane.b32.xlu0 %v2552, 32
        %v2836 = vpop.permute.xlu0 %2835
        %2837 = vrot.lane.b32.xlu0 %v2553, 32
        %v2838 = vpop.permute.xlu0 %2837
        %2839 = vrot.lane.b32.xlu0 %v2554, 32
        %v2840 = vpop.permute.xlu0 %2839
        %2841 = vrot.lane.b32.xlu0 %v2555, 32
        %v2842 = vpop.permute.xlu0 %2841
        %2843 = vrot.lane.b32.xlu0 %v2556, 32
        %v2844 = vpop.permute.xlu0 %2843
        %v2877 = vmul.f32 %v2525, %v2782
        %v2878 = vmul.f32 %v2526, %v2784
        %v2879 = vmul.f32 %v2527, %v2786
        %v2880 = vmul.f32 %v2528, %v2788
        %v2881 = vmul.f32 %v2529, %v2790
        %v2882 = vmul.f32 %v2530, %v2792
        %v2883 = vmul.f32 %v2531, %v2794
        %v2884 = vmul.f32 %v2532, %v2796
        %v2885 = vmul.f32 %v2533, %v2798
        %v2886 = vmul.f32 %v2534, %v2800
        %v2887 = vmul.f32 %v2535, %v2802
        %v2888 = vmul.f32 %v2536, %v2804
        %v2889 = vmul.f32 %v2537, %v2806
        %v2890 = vmul.f32 %v2538, %v2808
        %v2891 = vmul.f32 %v2539, %v2810
        %v2892 = vmul.f32 %v2540, %v2812
        %v2893 = vmul.f32 %v2541, %v2814
        %v2894 = vmul.f32 %v2542, %v2816
        %v2895 = vmul.f32 %v2543, %v2818
        %v2896 = vmul.f32 %v2544, %v2820
        %v2897 = vmul.f32 %v2545, %v2822
        %v2898 = vmul.f32 %v2546, %v2824
        %v2899 = vmul.f32 %v2547, %v2826
        %v2900 = vmul.f32 %v2548, %v2828
        %v2901 = vmul.f32 %v2549, %v2830
        %v2902 = vmul.f32 %v2550, %v2832
        %v2903 = vmul.f32 %v2551, %v2834
        %v2904 = vmul.f32 %v2552, %v2836
        %v2905 = vmul.f32 %v2553, %v2838
        %v2906 = vmul.f32 %v2554, %v2840
        %v2907 = vmul.f32 %v2555, %v2842
        %v2908 = vmul.f32 %v2556, %v2844
        %2941 = vrot.lane.b32.xlu0 %v2877, 32
        %v2942 = vpop.permute.xlu0 %2941
        %2943 = vrot.lane.b32.xlu0 %v2878, 32
        %v2944 = vpop.permute.xlu0 %2943
        %2945 = vrot.lane.b32.xlu0 %v2879, 32
        %v2946 = vpop.permute.xlu0 %2945
        %2947 = vrot.lane.b32.xlu0 %v2880, 32
        %v2948 = vpop.permute.xlu0 %2947
        %2949 = vrot.lane.b32.xlu0 %v2881, 32
        %v2950 = vpop.permute.xlu0 %2949
        %2951 = vrot.lane.b32.xlu0 %v2882, 32
        %v2952 = vpop.permute.xlu0 %2951
        %2953 = vrot.lane.b32.xlu0 %v2883, 32
        %v2954 = vpop.permute.xlu0 %2953
        %2955 = vrot.lane.b32.xlu0 %v2884, 32
        %v2956 = vpop.permute.xlu0 %2955
        %2957 = vrot.lane.b32.xlu0 %v2885, 32
        %v2958 = vpop.permute.xlu0 %2957
        %2959 = vrot.lane.b32.xlu0 %v2886, 32
        %v2960 = vpop.permute.xlu0 %2959
        %2961 = vrot.lane.b32.xlu0 %v2887, 32
        %v2962 = vpop.permute.xlu0 %2961
        %2963 = vrot.lane.b32.xlu0 %v2888, 32
        %v2964 = vpop.permute.xlu0 %2963
        %2965 = vrot.lane.b32.xlu0 %v2889, 32
        %v2966 = vpop.permute.xlu0 %2965
        %2967 = vrot.lane.b32.xlu0 %v2890, 32
        %v2968 = vpop.permute.xlu0 %2967
        %2969 = vrot.lane.b32.xlu0 %v2891, 32
        %v2970 = vpop.permute.xlu0 %2969
        %2971 = vrot.lane.b32.xlu0 %v2892, 32
        %v2972 = vpop.permute.xlu0 %2971
        %2973 = vrot.lane.b32.xlu0 %v2893, 32
        %v2974 = vpop.permute.xlu0 %2973
        %2975 = vrot.lane.b32.xlu0 %v2894, 32
        %v2976 = vpop.permute.xlu0 %2975
        %2977 = vrot.lane.b32.xlu0 %v2895, 32
        %v2978 = vpop.permute.xlu0 %2977
        %2979 = vrot.lane.b32.xlu0 %v2896, 32
        %v2980 = vpop.permute.xlu0 %2979
        %2981 = vrot.lane.b32.xlu0 %v2897, 32
        %v2982 = vpop.permute.xlu0 %2981
        %2983 = vrot.lane.b32.xlu0 %v2898, 32
        %v2984 = vpop.permute.xlu0 %2983
        %2985 = vrot.lane.b32.xlu0 %v2899, 32
        %v2986 = vpop.permute.xlu0 %2985
        %2987 = vrot.lane.b32.xlu0 %v2900, 32
        %v2988 = vpop.permute.xlu0 %2987
        %2989 = vrot.lane.b32.xlu0 %v2901, 32
        %v2990 = vpop.permute.xlu0 %2989
        %2991 = vrot.lane.b32.xlu0 %v2902, 32
        %v2992 = vpop.permute.xlu0 %2991
        %2993 = vrot.lane.b32.xlu0 %v2903, 32
        %v2994 = vpop.permute.xlu0 %2993
        %2995 = vrot.lane.b32.xlu0 %v2904, 32
        %v2996 = vpop.permute.xlu0 %2995
        %2997 = vrot.lane.b32.xlu0 %v2905, 32
        %v2998 = vpop.permute.xlu0 %2997
        %2999 = vrot.lane.b32.xlu0 %v2906, 32
        %v3000 = vpop.permute.xlu0 %2999
        %3001 = vrot.lane.b32.xlu0 %v2907, 32
        %v3002 = vpop.permute.xlu0 %3001
        %3003 = vrot.lane.b32.xlu0 %v2908, 32
        %v3004 = vpop.permute.xlu0 %3003
        %v3037 = vadd.f32 %v2717, %v2942
        %v3038 = vadd.f32 %v2718, %v2944
        %v3039 = vadd.f32 %v2719, %v2946
        %v3040 = vadd.f32 %v2720, %v2948
        %v3041 = vadd.f32 %v2721, %v2950
        %v3042 = vadd.f32 %v2722, %v2952
        %v3043 = vadd.f32 %v2723, %v2954
        %v3044 = vadd.f32 %v2724, %v2956
        %v3045 = vadd.f32 %v2725, %v2958
        %v3046 = vadd.f32 %v2726, %v2960
        %v3047 = vadd.f32 %v2727, %v2962
        %v3048 = vadd.f32 %v2728, %v2964
        %v3049 = vadd.f32 %v2729, %v2966
        %v3050 = vadd.f32 %v2730, %v2968
        %v3051 = vadd.f32 %v2731, %v2970
        %v3052 = vadd.f32 %v2732, %v2972
        %v3053 = vadd.f32 %v2733, %v2974
        %v3054 = vadd.f32 %v2734, %v2976
        %v3055 = vadd.f32 %v2735, %v2978
        %v3056 = vadd.f32 %v2736, %v2980
        %v3057 = vadd.f32 %v2737, %v2982
        %v3058 = vadd.f32 %v2738, %v2984
        %v3059 = vadd.f32 %v2739, %v2986
        %v3060 = vadd.f32 %v2740, %v2988
        %v3061 = vadd.f32 %v2741, %v2990
        %v3062 = vadd.f32 %v2742, %v2992
        %v3063 = vadd.f32 %v2743, %v2994
        %v3064 = vadd.f32 %v2744, %v2996
        %v3065 = vadd.f32 %v2745, %v2998
        %v3066 = vadd.f32 %v2746, %v3000
        %v3067 = vadd.f32 %v2747, %v3002
        %v3068 = vadd.f32 %v2748, %v3004
        %v3069 = vtanh.pop %v3037
        %v3070 = vtanh.pop %v3038
        %v3071 = vtanh.pop %v3039
        %v3072 = vtanh.pop %v3040
        %v3073 = vtanh.pop %v3041
        %v3074 = vtanh.pop %v3042
        %v3075 = vtanh.pop %v3043
        %v3076 = vtanh.pop %v3044
        %v3077 = vtanh.pop %v3045
        %v3078 = vtanh.pop %v3046
        %v3079 = vtanh.pop %v3047
        %v3080 = vtanh.pop %v3048
        %v3081 = vtanh.pop %v3049
        %v3082 = vtanh.pop %v3050
        %v3083 = vtanh.pop %v3051
        %v3084 = vtanh.pop %v3052
        %v3085 = vtanh.pop %v3053
        %v3086 = vtanh.pop %v3054
        %v3087 = vtanh.pop %v3055
        %v3088 = vtanh.pop %v3056
        %v3089 = vtanh.pop %v3057
        %v3090 = vtanh.pop %v3058
        %v3091 = vtanh.pop %v3059
        %v3092 = vtanh.pop %v3060
        %v3093 = vtanh.pop %v3061
        %v3094 = vtanh.pop %v3062
        %v3095 = vtanh.pop %v3063
        %v3096 = vtanh.pop %v3064
        %v3097 = vtanh.pop %v3065
        %v3098 = vtanh.pop %v3066
        %v3099 = vtanh.pop %v3067
        %v3100 = vtanh.pop %v3068
        %3133 = vrot.lane.b32.xlu0 %v3069, 32
        %v3134 = vpop.permute.xlu0 %3133
        %3135 = vrot.lane.b32.xlu0 %v3070, 32
        %v3136 = vpop.permute.xlu0 %3135
        %3137 = vrot.lane.b32.xlu0 %v3071, 32
        %v3138 = vpop.permute.xlu0 %3137
        %3139 = vrot.lane.b32.xlu0 %v3072, 32
        %v3140 = vpop.permute.xlu0 %3139
        %3141 = vrot.lane.b32.xlu0 %v3073, 32
        %v3142 = vpop.permute.xlu0 %3141
        %3143 = vrot.lane.b32.xlu0 %v3074, 32
        %v3144 = vpop.permute.xlu0 %3143
        %3145 = vrot.lane.b32.xlu0 %v3075, 32
        %v3146 = vpop.permute.xlu0 %3145
        %3147 = vrot.lane.b32.xlu0 %v3076, 32
        %v3148 = vpop.permute.xlu0 %3147
        %3149 = vrot.lane.b32.xlu0 %v3077, 32
        %v3150 = vpop.permute.xlu0 %3149
        %3151 = vrot.lane.b32.xlu0 %v3078, 32
        %v3152 = vpop.permute.xlu0 %3151
        %3153 = vrot.lane.b32.xlu0 %v3079, 32
        %v3154 = vpop.permute.xlu0 %3153
        %3155 = vrot.lane.b32.xlu0 %v3080, 32
        %v3156 = vpop.permute.xlu0 %3155
        %3157 = vrot.lane.b32.xlu0 %v3081, 32
        %v3158 = vpop.permute.xlu0 %3157
        %3159 = vrot.lane.b32.xlu0 %v3082, 32
        %v3160 = vpop.permute.xlu0 %3159
        %3161 = vrot.lane.b32.xlu0 %v3083, 32
        %v3162 = vpop.permute.xlu0 %3161
        %3163 = vrot.lane.b32.xlu0 %v3084, 32
        %v3164 = vpop.permute.xlu0 %3163
        %3165 = vrot.lane.b32.xlu0 %v3085, 32
        %v3166 = vpop.permute.xlu0 %3165
        %3167 = vrot.lane.b32.xlu0 %v3086, 32
        %v3168 = vpop.permute.xlu0 %3167
        %3169 = vrot.lane.b32.xlu0 %v3087, 32
        %v3170 = vpop.permute.xlu0 %3169
        %3171 = vrot.lane.b32.xlu0 %v3088, 32
        %v3172 = vpop.permute.xlu0 %3171
        %3173 = vrot.lane.b32.xlu0 %v3089, 32
        %v3174 = vpop.permute.xlu0 %3173
        %3175 = vrot.lane.b32.xlu0 %v3090, 32
        %v3176 = vpop.permute.xlu0 %3175
        %3177 = vrot.lane.b32.xlu0 %v3091, 32
        %v3178 = vpop.permute.xlu0 %3177
        %3179 = vrot.lane.b32.xlu0 %v3092, 32
        %v3180 = vpop.permute.xlu0 %3179
        %3181 = vrot.lane.b32.xlu0 %v3093, 32
        %v3182 = vpop.permute.xlu0 %3181
        %3183 = vrot.lane.b32.xlu0 %v3094, 32
        %v3184 = vpop.permute.xlu0 %3183
        %3185 = vrot.lane.b32.xlu0 %v3095, 32
        %v3186 = vpop.permute.xlu0 %3185
        %3187 = vrot.lane.b32.xlu0 %v3096, 32
        %v3188 = vpop.permute.xlu0 %3187
        %3189 = vrot.lane.b32.xlu0 %v3097, 32
        %v3190 = vpop.permute.xlu0 %3189
        %3191 = vrot.lane.b32.xlu0 %v3098, 32
        %v3192 = vpop.permute.xlu0 %3191
        %3193 = vrot.lane.b32.xlu0 %v3099, 32
        %v3194 = vpop.permute.xlu0 %3193
        %3195 = vrot.lane.b32.xlu0 %v3100, 32
        %v3196 = vpop.permute.xlu0 %3195
        %v3229 = vmul.f32 %v2525, %v3134
        %v3230 = vmul.f32 %v2526, %v3136
        %v3231 = vmul.f32 %v2527, %v3138
        %v3232 = vmul.f32 %v2528, %v3140
        %v3233 = vmul.f32 %v2529, %v3142
        %v3234 = vmul.f32 %v2530, %v3144
        %v3235 = vmul.f32 %v2531, %v3146
        %v3236 = vmul.f32 %v2532, %v3148
        %v3237 = vmul.f32 %v2533, %v3150
        %v3238 = vmul.f32 %v2534, %v3152
        %v3239 = vmul.f32 %v2535, %v3154
        %v3240 = vmul.f32 %v2536, %v3156
        %v3241 = vmul.f32 %v2537, %v3158
        %v3242 = vmul.f32 %v2538, %v3160
        %v3243 = vmul.f32 %v2539, %v3162
        %v3244 = vmul.f32 %v2540, %v3164
        %v3245 = vmul.f32 %v2541, %v3166
        %v3246 = vmul.f32 %v2542, %v3168
        %v3247 = vmul.f32 %v2543, %v3170
        %v3248 = vmul.f32 %v2544, %v3172
        %v3249 = vmul.f32 %v2545, %v3174
        %v3250 = vmul.f32 %v2546, %v3176
        %v3251 = vmul.f32 %v2547, %v3178
        %v3252 = vmul.f32 %v2548, %v3180
        %v3253 = vmul.f32 %v2549, %v3182
        %v3254 = vmul.f32 %v2550, %v3184
        %v3255 = vmul.f32 %v2551, %v3186
        %v3256 = vmul.f32 %v2552, %v3188
        %v3257 = vmul.f32 %v2553, %v3190
        %v3258 = vmul.f32 %v2554, %v3192
        %v3259 = vmul.f32 %v2555, %v3194
        %v3260 = vmul.f32 %v2556, %v3196
        %3293 = vrot.lane.b32.xlu0 %v3037, 96
        %v3294 = vpop.permute.xlu0 %3293
        %3295 = vrot.lane.b32.xlu0 %v3038, 96
        %v3296 = vpop.permute.xlu0 %3295
        %3297 = vrot.lane.b32.xlu0 %v3039, 96
        %v3298 = vpop.permute.xlu0 %3297
        %3299 = vrot.lane.b32.xlu0 %v3040, 96
        %v3300 = vpop.permute.xlu0 %3299
        %3301 = vrot.lane.b32.xlu0 %v3041, 96
        %v3302 = vpop.permute.xlu0 %3301
        %3303 = vrot.lane.b32.xlu0 %v3042, 96
        %v3304 = vpop.permute.xlu0 %3303
        %3305 = vrot.lane.b32.xlu0 %v3043, 96
        %v3306 = vpop.permute.xlu0 %3305
        %3307 = vrot.lane.b32.xlu0 %v3044, 96
        %v3308 = vpop.permute.xlu0 %3307
        %3309 = vrot.lane.b32.xlu0 %v3045, 96
        %v3310 = vpop.permute.xlu0 %3309
        %3311 = vrot.lane.b32.xlu0 %v3046, 96
        %v3312 = vpop.permute.xlu0 %3311
        %3313 = vrot.lane.b32.xlu0 %v3047, 96
        %v3314 = vpop.permute.xlu0 %3313
        %3315 = vrot.lane.b32.xlu0 %v3048, 96
        %v3316 = vpop.permute.xlu0 %3315
        %3317 = vrot.lane.b32.xlu0 %v3049, 96
        %v3318 = vpop.permute.xlu0 %3317
        %3319 = vrot.lane.b32.xlu0 %v3050, 96
        %v3320 = vpop.permute.xlu0 %3319
        %3321 = vrot.lane.b32.xlu0 %v3051, 96
        %v3322 = vpop.permute.xlu0 %3321
        %3323 = vrot.lane.b32.xlu0 %v3052, 96
        %v3324 = vpop.permute.xlu0 %3323
        %3325 = vrot.lane.b32.xlu0 %v3053, 96
        %v3326 = vpop.permute.xlu0 %3325
        %3327 = vrot.lane.b32.xlu0 %v3054, 96
        %v3328 = vpop.permute.xlu0 %3327
        %3329 = vrot.lane.b32.xlu0 %v3055, 96
        %v3330 = vpop.permute.xlu0 %3329
        %3331 = vrot.lane.b32.xlu0 %v3056, 96
        %v3332 = vpop.permute.xlu0 %3331
        %3333 = vrot.lane.b32.xlu0 %v3057, 96
        %v3334 = vpop.permute.xlu0 %3333
        %3335 = vrot.lane.b32.xlu0 %v3058, 96
        %v3336 = vpop.permute.xlu0 %3335
        %3337 = vrot.lane.b32.xlu0 %v3059, 96
        %v3338 = vpop.permute.xlu0 %3337
        %3339 = vrot.lane.b32.xlu0 %v3060, 96
        %v3340 = vpop.permute.xlu0 %3339
        %3341 = vrot.lane.b32.xlu0 %v3061, 96
        %v3342 = vpop.permute.xlu0 %3341
        %3343 = vrot.lane.b32.xlu0 %v3062, 96
        %v3344 = vpop.permute.xlu0 %3343
        %3345 = vrot.lane.b32.xlu0 %v3063, 96
        %v3346 = vpop.permute.xlu0 %3345
        %3347 = vrot.lane.b32.xlu0 %v3064, 96
        %v3348 = vpop.permute.xlu0 %3347
        %3349 = vrot.lane.b32.xlu0 %v3065, 96
        %v3350 = vpop.permute.xlu0 %3349
        %3351 = vrot.lane.b32.xlu0 %v3066, 96
        %v3352 = vpop.permute.xlu0 %3351
        %3353 = vrot.lane.b32.xlu0 %v3067, 96
        %v3354 = vpop.permute.xlu0 %3353
        %3355 = vrot.lane.b32.xlu0 %v3068, 96
        %v3356 = vpop.permute.xlu0 %3355
        %3389 = vst.msk [vmem:[#allocation3] sm:$0xff] %vm621, %v3294
        %3390 = vst.msk [vmem:[#allocation3 + $0x8] sm:$0xff] %vm621, %v3296
        %3391 = vst.msk [vmem:[#allocation3 + $0x10] sm:$0xff] %vm621, %v3298
        %3392 = vst.msk [vmem:[#allocation3 + $0x18] sm:$0xff] %vm621, %v3300
        %3393 = vst.msk [vmem:[#allocation3 + $0x20] sm:$0xff] %vm621, %v3302
        %3394 = vst.msk [vmem:[#allocation3 + $0x28] sm:$0xff] %vm621, %v3304
        %3395 = vst.msk [vmem:[#allocation3 + $0x30] sm:$0xff] %vm621, %v3306
        %3396 = vst.msk [vmem:[#allocation3 + $0x38] sm:$0xff] %vm621, %v3308
        %3397 = vst.msk [vmem:[#allocation3 + $0x40] sm:$0xff] %vm621, %v3310
        %3398 = vst.msk [vmem:[#allocation3 + $0x48] sm:$0xff] %vm621, %v3312
        %3399 = vst.msk [vmem:[#allocation3 + $0x50] sm:$0xff] %vm621, %v3314
        %3400 = vst.msk [vmem:[#allocation3 + $0x58] sm:$0xff] %vm621, %v3316
        %3401 = vst.msk [vmem:[#allocation3 + $0x60] sm:$0xff] %vm621, %v3318
        %3402 = vst.msk [vmem:[#allocation3 + $0x68] sm:$0xff] %vm621, %v3320
        %3403 = vst.msk [vmem:[#allocation3 + $0x70] sm:$0xff] %vm621, %v3322
        %3404 = vst.msk [vmem:[#allocation3 + $0x78] sm:$0xff] %vm621, %v3324
        %3405 = vst.msk [vmem:[#allocation3 + $0x80] sm:$0xff] %vm621, %v3326
        %3406 = vst.msk [vmem:[#allocation3 + $0x88] sm:$0xff] %vm621, %v3328
        %3407 = vst.msk [vmem:[#allocation3 + $0x90] sm:$0xff] %vm621, %v3330
        %3408 = vst.msk [vmem:[#allocation3 + $0x98] sm:$0xff] %vm621, %v3332
        %3409 = vst.msk [vmem:[#allocation3 + $0xa0] sm:$0xff] %vm621, %v3334
        %3410 = vst.msk [vmem:[#allocation3 + $0xa8] sm:$0xff] %vm621, %v3336
        %3411 = vst.msk [vmem:[#allocation3 + $0xb0] sm:$0xff] %vm621, %v3338
        %3412 = vst.msk [vmem:[#allocation3 + $0xb8] sm:$0xff] %vm621, %v3340
        %3413 = vst.msk [vmem:[#allocation3 + $0xc0] sm:$0xff] %vm621, %v3342
        %3414 = vst.msk [vmem:[#allocation3 + $0xc8] sm:$0xff] %vm621, %v3344
        %3415 = vst.msk [vmem:[#allocation3 + $0xd0] sm:$0xff] %vm621, %v3346
        %3416 = vst.msk [vmem:[#allocation3 + $0xd8] sm:$0xff] %vm621, %v3348
        %3417 = vst.msk [vmem:[#allocation3 + $0xe0] sm:$0xff] %vm621, %v3350
        %3418 = vst.msk [vmem:[#allocation3 + $0xe8] sm:$0xff] %vm621, %v3352
        %3419 = vst.msk [vmem:[#allocation3 + $0xf0] sm:$0xff] %vm621, %v3354
        %3420 = vst.msk [vmem:[#allocation3 + $0xf8] sm:$0xff] %vm621, %v3356
        %3453 = vrot.lane.b32.xlu0 %v3229, 64
        %v3454 = vpop.permute.xlu0 %3453
        %3455 = vrot.lane.b32.xlu0 %v3230, 64
        %v3456 = vpop.permute.xlu0 %3455
        %3457 = vrot.lane.b32.xlu0 %v3231, 64
        %v3458 = vpop.permute.xlu0 %3457
        %3459 = vrot.lane.b32.xlu0 %v3232, 64
        %v3460 = vpop.permute.xlu0 %3459
        %3461 = vrot.lane.b32.xlu0 %v3233, 64
        %v3462 = vpop.permute.xlu0 %3461
        %3463 = vrot.lane.b32.xlu0 %v3234, 64
        %v3464 = vpop.permute.xlu0 %3463
        %3465 = vrot.lane.b32.xlu0 %v3235, 64
        %v3466 = vpop.permute.xlu0 %3465
        %3467 = vrot.lane.b32.xlu0 %v3236, 64
        %v3468 = vpop.permute.xlu0 %3467
        %3469 = vrot.lane.b32.xlu0 %v3237, 64
        %v3470 = vpop.permute.xlu0 %3469
        %3471 = vrot.lane.b32.xlu0 %v3238, 64
        %v3472 = vpop.permute.xlu0 %3471
        %3473 = vrot.lane.b32.xlu0 %v3239, 64
        %v3474 = vpop.permute.xlu0 %3473
        %3475 = vrot.lane.b32.xlu0 %v3240, 64
        %v3476 = vpop.permute.xlu0 %3475
        %3477 = vrot.lane.b32.xlu0 %v3241, 64
        %v3478 = vpop.permute.xlu0 %3477
        %3479 = vrot.lane.b32.xlu0 %v3242, 64
        %v3480 = vpop.permute.xlu0 %3479
        %3481 = vrot.lane.b32.xlu0 %v3243, 64
        %v3482 = vpop.permute.xlu0 %3481
        %3483 = vrot.lane.b32.xlu0 %v3244, 64
        %v3484 = vpop.permute.xlu0 %3483
        %3485 = vrot.lane.b32.xlu0 %v3245, 64
        %v3486 = vpop.permute.xlu0 %3485
        %3487 = vrot.lane.b32.xlu0 %v3246, 64
        %v3488 = vpop.permute.xlu0 %3487
        %3489 = vrot.lane.b32.xlu0 %v3247, 64
        %v3490 = vpop.permute.xlu0 %3489
        %3491 = vrot.lane.b32.xlu0 %v3248, 64
        %v3492 = vpop.permute.xlu0 %3491
        %3493 = vrot.lane.b32.xlu0 %v3249, 64
        %v3494 = vpop.permute.xlu0 %3493
        %3495 = vrot.lane.b32.xlu0 %v3250, 64
        %v3496 = vpop.permute.xlu0 %3495
        %3497 = vrot.lane.b32.xlu0 %v3251, 64
        %v3498 = vpop.permute.xlu0 %3497
        %3499 = vrot.lane.b32.xlu0 %v3252, 64
        %v3500 = vpop.permute.xlu0 %3499
        %3501 = vrot.lane.b32.xlu0 %v3253, 64
        %v3502 = vpop.permute.xlu0 %3501
        %3503 = vrot.lane.b32.xlu0 %v3254, 64
        %v3504 = vpop.permute.xlu0 %3503
        %3505 = vrot.lane.b32.xlu0 %v3255, 64
        %v3506 = vpop.permute.xlu0 %3505
        %3507 = vrot.lane.b32.xlu0 %v3256, 64
        %v3508 = vpop.permute.xlu0 %3507
        %3509 = vrot.lane.b32.xlu0 %v3257, 64
        %v3510 = vpop.permute.xlu0 %3509
        %3511 = vrot.lane.b32.xlu0 %v3258, 64
        %v3512 = vpop.permute.xlu0 %3511
        %3513 = vrot.lane.b32.xlu0 %v3259, 64
        %v3514 = vpop.permute.xlu0 %3513
        %3515 = vrot.lane.b32.xlu0 %v3260, 64
        %v3516 = vpop.permute.xlu0 %3515
        %s3549 = scalar_lea.vmem [#allocation2], 24
        %3550 = vst.msk [vmem:[%s3549] sm:$0xff] %vm621, %v3454
        %3551 = vst.msk [vmem:[%s3549 + $0x8] sm:$0xff] %vm621, %v3456
        %3552 = vst.msk [vmem:[%s3549 + $0x18] sm:$0xff] %vm621, %v3458
        %3553 = vst.msk [vmem:[%s3549 + $0x20] sm:$0xff] %vm621, %v3460
        %3554 = vst.msk [vmem:[%s3549 + $0x30] sm:$0xff] %vm621, %v3462
        %3555 = vst.msk [vmem:[%s3549 + $0x38] sm:$0xff] %vm621, %v3464
        %3556 = vst.msk [vmem:[%s3549 + $0x48] sm:$0xff] %vm621, %v3466
        %3557 = vst.msk [vmem:[%s3549 + $0x50] sm:$0xff] %vm621, %v3468
        %3558 = vst.msk [vmem:[%s3549 + $0x60] sm:$0xff] %vm621, %v3470
        %3559 = vst.msk [vmem:[%s3549 + $0x68] sm:$0xff] %vm621, %v3472
        %3560 = vst.msk [vmem:[%s3549 + $0x78] sm:$0xff] %vm621, %v3474
        %3561 = vst.msk [vmem:[%s3549 + $0x80] sm:$0xff] %vm621, %v3476
        %3562 = vst.msk [vmem:[%s3549 + $0x90] sm:$0xff] %vm621, %v3478
        %3563 = vst.msk [vmem:[%s3549 + $0x98] sm:$0xff] %vm621, %v3480
        %3564 = vst.msk [vmem:[%s3549 + $0xa8] sm:$0xff] %vm621, %v3482
        %3565 = vst.msk [vmem:[%s3549 + $0xb0] sm:$0xff] %vm621, %v3484
        %3566 = vst.msk [vmem:[%s3549 + $0xc0] sm:$0xff] %vm621, %v3486
        %3567 = vst.msk [vmem:[%s3549 + $0xc8] sm:$0xff] %vm621, %v3488
        %3568 = vst.msk [vmem:[%s3549 + $0xd8] sm:$0xff] %vm621, %v3490
        %3569 = vst.msk [vmem:[%s3549 + $0xe0] sm:$0xff] %vm621, %v3492
        %3570 = vst.msk [vmem:[%s3549 + $0xf0] sm:$0xff] %vm621, %v3494
        %3571 = vst.msk [vmem:[%s3549 + $0xf8] sm:$0xff] %vm621, %v3496
        %3572 = vst.msk [vmem:[%s3549 + $0x108] sm:$0xff] %vm621, %v3498
        %3573 = vst.msk [vmem:[%s3549 + $0x110] sm:$0xff] %vm621, %v3500
        %3574 = vst.msk [vmem:[%s3549 + $0x120] sm:$0xff] %vm621, %v3502
        %3575 = vst.msk [vmem:[%s3549 + $0x128] sm:$0xff] %vm621, %v3504
        %3576 = vst.msk [vmem:[%s3549 + $0x138] sm:$0xff] %vm621, %v3506
        %3577 = vst.msk [vmem:[%s3549 + $0x140] sm:$0xff] %vm621, %v3508
        %3578 = vst.msk [vmem:[%s3549 + $0x150] sm:$0xff] %vm621, %v3510
        %3579 = vst.msk [vmem:[%s3549 + $0x158] sm:$0xff] %vm621, %v3512
        %3580 = vst.msk [vmem:[%s3549 + $0x168] sm:$0xff] %vm621, %v3514
        %3581 = vst.msk [vmem:[%s3549 + $0x170] sm:$0xff] %vm621, %v3516
        %v3582 = vld [vmem:[#allocation2] sm:$0xff]
        %v3583 = vld [vmem:[#allocation2 + $0x8] sm:$0xff]
        %v3584 = vld [vmem:[#allocation2 + $0x10] sm:$0xff]
        %v3585 = vld [vmem:[#allocation2 + $0x18] sm:$0xff]
        %v3586 = vld [vmem:[#allocation2 + $0x20] sm:$0xff]
        %v3587 = vld [vmem:[#allocation2 + $0x28] sm:$0xff]
        %v3588 = vld [vmem:[#allocation2 + $0x30] sm:$0xff]
        %v3589 = vld [vmem:[#allocation2 + $0x38] sm:$0xff]
        %v3590 = vld [vmem:[#allocation2 + $0x40] sm:$0xff]
        %v3591 = vld [vmem:[#allocation2 + $0x48] sm:$0xff]
        %v3592 = vld [vmem:[#allocation2 + $0x50] sm:$0xff]
        %v3593 = vld [vmem:[#allocation2 + $0x58] sm:$0xff]
        %v3594 = vld [vmem:[#allocation2 + $0x60] sm:$0xff]
        %v3595 = vld [vmem:[#allocation2 + $0x68] sm:$0xff]
        %v3596 = vld [vmem:[#allocation2 + $0x70] sm:$0xff]
        %v3597 = vld [vmem:[#allocation2 + $0x78] sm:$0xff]
        %v3598 = vld [vmem:[#allocation2 + $0x80] sm:$0xff]
        %v3599 = vld [vmem:[#allocation2 + $0x88] sm:$0xff]
        %v3600 = vld [vmem:[#allocation2 + $0x90] sm:$0xff]
        %v3601 = vld [vmem:[#allocation2 + $0x98] sm:$0xff]
        %v3602 = vld [vmem:[#allocation2 + $0xa0] sm:$0xff]
        %v3603 = vld [vmem:[#allocation2 + $0xa8] sm:$0xff]
        %v3604 = vld [vmem:[#allocation2 + $0xb0] sm:$0xff]
        %v3605 = vld [vmem:[#allocation2 + $0xb8] sm:$0xff]
        %v3606 = vld [vmem:[#allocation2 + $0xc0] sm:$0xff]
        %v3607 = vld [vmem:[#allocation2 + $0xc8] sm:$0xff]
        %v3608 = vld [vmem:[#allocation2 + $0xd0] sm:$0xff]
        %v3609 = vld [vmem:[#allocation2 + $0xd8] sm:$0xff]
        %v3610 = vld [vmem:[#allocation2 + $0xe0] sm:$0xff]
        %v3611 = vld [vmem:[#allocation2 + $0xe8] sm:$0xff]
        %v3612 = vld [vmem:[#allocation2 + $0xf0] sm:$0xff]
        %v3613 = vld [vmem:[#allocation2 + $0xf8] sm:$0xff]
        %v3614 = vld [vmem:[#allocation2 + $0x100] sm:$0xff]
        %v3615 = vld [vmem:[#allocation2 + $0x108] sm:$0xff]
        %v3616 = vld [vmem:[#allocation2 + $0x110] sm:$0xff]
        %v3617 = vld [vmem:[#allocation2 + $0x118] sm:$0xff]
        %v3618 = vld [vmem:[#allocation2 + $0x120] sm:$0xff]
        %v3619 = vld [vmem:[#allocation2 + $0x128] sm:$0xff]
        %v3620 = vld [vmem:[#allocation2 + $0x130] sm:$0xff]
        %v3621 = vld [vmem:[#allocation2 + $0x138] sm:$0xff]
        %v3622 = vld [vmem:[#allocation2 + $0x140] sm:$0xff]
        %v3623 = vld [vmem:[#allocation2 + $0x148] sm:$0xff]
        %v3624 = vld [vmem:[#allocation2 + $0x150] sm:$0xff]
        %v3625 = vld [vmem:[#allocation2 + $0x158] sm:$0xff]
        %v3626 = vld [vmem:[#allocation2 + $0x160] sm:$0xff]
        %v3627 = vld [vmem:[#allocation2 + $0x168] sm:$0xff]
        %v3628 = vld [vmem:[#allocation2 + $0x170] sm:$0xff]
        %v3629 = vld [vmem:[#allocation2 + $0x178] sm:$0xff]
        %v3630 = vld [vmem:[#allocation2 + $0x180] sm:$0xff]
        %v3631 = vld [vmem:[#allocation2 + $0x188] sm:$0xff]
        %v3632 = vld [vmem:[#allocation2 + $0x190] sm:$0xff]
        %v3633 = vld [vmem:[#allocation2 + $0x198] sm:$0xff]
        %v3634 = vld [vmem:[#allocation2 + $0x1a0] sm:$0xff]
        %v3635 = vld [vmem:[#allocation2 + $0x1a8] sm:$0xff]
        %3636 = vst.msk [vmem:[%s217] sm:$0xff] %vm621, %v3582
        %3637 = vst.msk [vmem:[%s217 + $0x8] sm:$0xff] %vm621, %v3583
        %3638 = vst.msk [vmem:[%s217 + $0x10] sm:$0xff] %vm621, %v3584
        %3639 = vst.msk [vmem:[%s217 + $0x18] sm:$0xff] %vm621, %v3585
        %3640 = vst.msk [vmem:[%s217 + $0x20] sm:$0xff] %vm621, %v3586
        %3641 = vst.msk [vmem:[%s217 + $0x28] sm:$0xff] %vm621, %v3587
        %3642 = vst.msk [vmem:[%s217 + $0x30] sm:$0xff] %vm621, %v3588
        %3643 = vst.msk [vmem:[%s217 + $0x38] sm:$0xff] %vm621, %v3589
        %3644 = vst.msk [vmem:[%s217 + $0x40] sm:$0xff] %vm621, %v3590
        %3645 = vst.msk [vmem:[%s217 + $0x48] sm:$0xff] %vm621, %v3591
        %3646 = vst.msk [vmem:[%s217 + $0x50] sm:$0xff] %vm621, %v3592
        %3647 = vst.msk [vmem:[%s217 + $0x58] sm:$0xff] %vm621, %v3593
        %3648 = vst.msk [vmem:[%s217 + $0x60] sm:$0xff] %vm621, %v3594
        %3649 = vst.msk [vmem:[%s217 + $0x68] sm:$0xff] %vm621, %v3595
        %3650 = vst.msk [vmem:[%s217 + $0x70] sm:$0xff] %vm621, %v3596
        %3651 = vst.msk [vmem:[%s217 + $0x78] sm:$0xff] %vm621, %v3597
        %3652 = vst.msk [vmem:[%s217 + $0x80] sm:$0xff] %vm621, %v3598
        %3653 = vst.msk [vmem:[%s217 + $0x88] sm:$0xff] %vm621, %v3599
        %3654 = vst.msk [vmem:[%s217 + $0x90] sm:$0xff] %vm621, %v3600
        %3655 = vst.msk [vmem:[%s217 + $0x98] sm:$0xff] %vm621, %v3601
        %3656 = vst.msk [vmem:[%s217 + $0xa0] sm:$0xff] %vm621, %v3602
        %3657 = vst.msk [vmem:[%s217 + $0xa8] sm:$0xff] %vm621, %v3603
        %3658 = vst.msk [vmem:[%s217 + $0xb0] sm:$0xff] %vm621, %v3604
        %3659 = vst.msk [vmem:[%s217 + $0xb8] sm:$0xff] %vm621, %v3605
        %3660 = vst.msk [vmem:[%s217 + $0xc0] sm:$0xff] %vm621, %v3606
        %3661 = vst.msk [vmem:[%s217 + $0xc8] sm:$0xff] %vm621, %v3607
        %3662 = vst.msk [vmem:[%s217 + $0xd0] sm:$0xff] %vm621, %v3608
        %3663 = vst.msk [vmem:[%s217 + $0xd8] sm:$0xff] %vm621, %v3609
        %3664 = vst.msk [vmem:[%s217 + $0xe0] sm:$0xff] %vm621, %v3610
        %3665 = vst.msk [vmem:[%s217 + $0xe8] sm:$0xff] %vm621, %v3611
        %3666 = vst.msk [vmem:[%s217 + $0xf0] sm:$0xff] %vm621, %v3612
        %3667 = vst.msk [vmem:[%s217 + $0xf8] sm:$0xff] %vm621, %v3613
        %3668 = vst.msk [vmem:[%s217 + $0x100] sm:$0xff] %vm621, %v3614
        %3669 = vst.msk [vmem:[%s217 + $0x108] sm:$0xff] %vm621, %v3615
        %3670 = vst.msk [vmem:[%s217 + $0x110] sm:$0xff] %vm621, %v3616
        %3671 = vst.msk [vmem:[%s217 + $0x118] sm:$0xff] %vm621, %v3617
        %3672 = vst.msk [vmem:[%s217 + $0x120] sm:$0xff] %vm621, %v3618
        %3673 = vst.msk [vmem:[%s217 + $0x128] sm:$0xff] %vm621, %v3619
        %3674 = vst.msk [vmem:[%s217 + $0x130] sm:$0xff] %vm621, %v3620
        %3675 = vst.msk [vmem:[%s217 + $0x138] sm:$0xff] %vm621, %v3621
        %3676 = vst.msk [vmem:[%s217 + $0x140] sm:$0xff] %vm621, %v3622
        %3677 = vst.msk [vmem:[%s217 + $0x148] sm:$0xff] %vm621, %v3623
        %3678 = vst.msk [vmem:[%s217 + $0x150] sm:$0xff] %vm621, %v3624
        %3679 = vst.msk [vmem:[%s217 + $0x158] sm:$0xff] %vm621, %v3625
        %3680 = vst.msk [vmem:[%s217 + $0x160] sm:$0xff] %vm621, %v3626
        %3681 = vst.msk [vmem:[%s217 + $0x168] sm:$0xff] %vm621, %v3627
        %3682 = vst.msk [vmem:[%s217 + $0x170] sm:$0xff] %vm621, %v3628
        %3683 = vst.msk [vmem:[%s217 + $0x178] sm:$0xff] %vm621, %v3629
        %3684 = vst.msk [vmem:[%s217 + $0x180] sm:$0xff] %vm621, %v3630
        %3685 = vst.msk [vmem:[%s217 + $0x188] sm:$0xff] %vm621, %v3631
        %3686 = vst.msk [vmem:[%s217 + $0x190] sm:$0xff] %vm621, %v3632
        %3687 = vst.msk [vmem:[%s217 + $0x198] sm:$0xff] %vm621, %v3633
        %3688 = vst.msk [vmem:[%s217 + $0x1a0] sm:$0xff] %vm621, %v3634
        %3689 = vst.msk [vmem:[%s217 + $0x1a8] sm:$0xff] %vm621, %v3635
        %p3690 = scmp.eq.s32.totalorder %s23, 7
        // Predicated region
        $region33: #{convlstm_forward.5} parent=27 // pred_check
          %p3691 = pneg %p3690
        $region34: #{convlstm_forward.5} parent=27 // pred_check_branch
          %3693 = sbr.rel (%p3691) target = $region36
        $region35: #{convlstm_forward.5} parent=27 // pred_region
          %3694 = vst.msk [vmem:[%s199] sm:$0xff] %vm621, %v3294
          %3695 = vst.msk [vmem:[%s199 + $0x8] sm:$0xff] %vm621, %v3296
          %3696 = vst.msk [vmem:[%s199 + $0x10] sm:$0xff] %vm621, %v3298
          %3697 = vst.msk [vmem:[%s199 + $0x18] sm:$0xff] %vm621, %v3300
          %3698 = vst.msk [vmem:[%s199 + $0x20] sm:$0xff] %vm621, %v3302
          %3699 = vst.msk [vmem:[%s199 + $0x28] sm:$0xff] %vm621, %v3304
          %3700 = vst.msk [vmem:[%s199 + $0x30] sm:$0xff] %vm621, %v3306
          %3701 = vst.msk [vmem:[%s199 + $0x38] sm:$0xff] %vm621, %v3308
          %3702 = vst.msk [vmem:[%s199 + $0x40] sm:$0xff] %vm621, %v3310
          %3703 = vst.msk [vmem:[%s199 + $0x48] sm:$0xff] %vm621, %v3312
          %3704 = vst.msk [vmem:[%s199 + $0x50] sm:$0xff] %vm621, %v3314
          %3705 = vst.msk [vmem:[%s199 + $0x58] sm:$0xff] %vm621, %v3316
          %3706 = vst.msk [vmem:[%s199 + $0x60] sm:$0xff] %vm621, %v3318
          %3707 = vst.msk [vmem:[%s199 + $0x68] sm:$0xff] %vm621, %v3320
          %3708 = vst.msk [vmem:[%s199 + $0x70] sm:$0xff] %vm621, %v3322
          %3709 = vst.msk [vmem:[%s199 + $0x78] sm:$0xff] %vm621, %v3324
          %3710 = vst.msk [vmem:[%s199 + $0x80] sm:$0xff] %vm621, %v3326
          %3711 = vst.msk [vmem:[%s199 + $0x88] sm:$0xff] %vm621, %v3328
          %3712 = vst.msk [vmem:[%s199 + $0x90] sm:$0xff] %vm621, %v3330
          %3713 = vst.msk [vmem:[%s199 + $0x98] sm:$0xff] %vm621, %v3332
          %3714 = vst.msk [vmem:[%s199 + $0xa0] sm:$0xff] %vm621, %v3334
          %3715 = vst.msk [vmem:[%s199 + $0xa8] sm:$0xff] %vm621, %v3336
          %3716 = vst.msk [vmem:[%s199 + $0xb0] sm:$0xff] %vm621, %v3338
          %3717 = vst.msk [vmem:[%s199 + $0xb8] sm:$0xff] %vm621, %v3340
          %3718 = vst.msk [vmem:[%s199 + $0xc0] sm:$0xff] %vm621, %v3342
          %3719 = vst.msk [vmem:[%s199 + $0xc8] sm:$0xff] %vm621, %v3344
          %3720 = vst.msk [vmem:[%s199 + $0xd0] sm:$0xff] %vm621, %v3346
          %3721 = vst.msk [vmem:[%s199 + $0xd8] sm:$0xff] %vm621, %v3348
          %3722 = vst.msk [vmem:[%s199 + $0xe0] sm:$0xff] %vm621, %v3350
          %3723 = vst.msk [vmem:[%s199 + $0xe8] sm:$0xff] %vm621, %v3352
          %3724 = vst.msk [vmem:[%s199 + $0xf0] sm:$0xff] %vm621, %v3354
          %3725 = vst.msk [vmem:[%s199 + $0xf8] sm:$0xff] %vm621, %v3356
        $region36: #{convlstm_forward.5} parent=27 // pred_fallthru
          _
        %p3726 = scmp.lt.s32.totalorder %s23, 7
        %s3727 = scalar_select %p3726, %s23, 7
        %p3728 = scmp.lt.s32.totalorder %s22, 1
        %s3729 = scalar_select %p3728, %s22, 1
        %s3730 = smul.addr %s3729, 54
        %s3731 = smul.addr %s3727, 108
        %s3732 = sadd.s32 %s3730, %s3731
        %s3733 = smul.addr %s3732, 8
        %s3734 = scalar_lea.vmem %s2, %s3733
        %s3735 = sand.u32 %s115, 1
        %s3736 = scalar_lea.sflag [#allocation5], %s3735
        %s3737 = sand.u32 %s115, 1
        %s3738 = smul.addr %s3737, 256
        %s3739 = scalar_lea.vmem [#allocation4], %s3738
        // Predicated region
        $region37: #{convlstm_forward.5} parent=27 // pred_check
          %p3740 = pneg %p99
        $region38: #{convlstm_forward.5} parent=27 // pred_check_branch
          %3742 = sbr.rel (%p3740) target = $region40
        $region39: #{convlstm_forward.5} parent=27 // pred_region
          _
        $region40: #{convlstm_forward.5} parent=27 // pred_fallthru
          _
        // Predicated region
        $region41: #{convlstm_forward.5} parent=27 // pred_check
          %p3743 = pneg %p125
        $region42: #{convlstm_forward.5} parent=27 // pred_check_branch
          %3745 = sbr.rel (%p3743) target = $region44
        $region43: #{convlstm_forward.5} parent=27 // pred_region
          %3747 = vsyncadd %s3736, 0
          %s3748 = smul.addr %s22, 32
          %s3749 = smul.addr %s3748, 8
          %s3750 = scalar_lea.hbm %s3, %s3749
          %s3751 = sshll.u32 %s3739, 4
          %s3752 = int_to_ptr.vmem [resolvable:$true] %s3751
          %s3753 = sshll.u32 %s3750, 4
          %s3754 = int_to_ptr.hbm [resolvable:$true] %s3753
          %3759 = dma.vmem_to_hbm [thread:$0]  %s3752, 4096, %s3754, %s3736, 128, 128, 8
        $region44: #{convlstm_forward.5} parent=27 // pred_fallthru
          _
      $region28: #{convlstm_forward.5} parent=5 // pred_fallthru
        _
      %p3760 = scmp.le.s32.totalorder 2, %s13
      // Predicated region
      $region45: #{convlstm_forward.5} parent=5 // pred_check
        %p3761 = pneg %p3760
      $region46: #{convlstm_forward.5} parent=5 // pred_check_branch
        %3763 = sbr.rel (%p3761) target = $region48
      $region47: #{convlstm_forward.5} parent=5 // pred_region
        %s3764 = ssub.s32 %s13, 2
        // Predicated region
        $region49: #{convlstm_forward.5} parent=47 // pred_check
          %p3765 = pneg %p105
        $region50: #{convlstm_forward.5} parent=47 // pred_check_branch
          %3767 = sbr.rel (%p3765) target = $region52
        $region51: #{convlstm_forward.5} parent=47 // pred_region
          %p3768 = scmp.lt.s32.totalorder %s25, 7
          %s3769 = scalar_select %p3768, %s25, 7
          %p3770 = scmp.lt.s32.totalorder %s24, 1
          %s3771 = scalar_select %p3770, %s24, 1
          %s3772 = smul.addr %s3771, 54
          %s3773 = smul.addr %s3769, 108
          %s3774 = sadd.s32 %s3772, %s3773
          %s3775 = smul.addr %s3774, 8
          %s3776 = scalar_lea.vmem %s2, %s3775
        $region52: #{convlstm_forward.5} parent=47 // pred_fallthru
          _
        // Predicated region
        $region53: #{convlstm_forward.5} parent=47 // pred_check
          %p3777 = pneg %p131
        $region54: #{convlstm_forward.5} parent=47 // pred_check_branch
          %3779 = sbr.rel (%p3777) target = $region56
        $region55: #{convlstm_forward.5} parent=47 // pred_region
          %s3780 = sand.u32 %s116, 1
          %s3781 = scalar_lea.sflag [#allocation5], %s3780
          %s3782 = sand.u32 %s116, 1
          %s3783 = smul.addr %s3782, 256
          %s3784 = scalar_lea.vmem [#allocation4], %s3783
          %3786 = dma.done %s3781, 4096
        $region56: #{convlstm_forward.5} parent=47 // pred_fallthru
          _
      $region48: #{convlstm_forward.5} parent=5 // pred_fallthru
        _
    $region6: #{convlstm_forward.5} parent=1 // loop_footer
      %s17 = sadd.s32 1, %s13
    $region7: #{convlstm_forward.5} parent=1 // loop_footer_branch
      %12 = sbr.rel target = $region3
    $region8: #{convlstm_forward.5} parent=1 // loop_exit
      _
    %3787 = vsyncpa [#allocation5], 1
    %s3788 = scalar_lea.sflag [#allocation5], 1
    %3789 = vsyncpa %s3788, 1

// kernel: convlstm_forward.6
$region0: #{convlstm_forward.6}
  #allocation0 [shape = 'u32[]', space=smem, size = 0x4, offset = 0x4, fixed_abs, tag = 'smem constant byte address 0x4 - core index']
  #allocation1 [shape = 'u32[72,128]{1,0:T(1,128)}', space=vmem, size = 0x9000, scoped, tag = 'internal scratch']
  %s0 = inlined_call_operand.vmem [shape: f32[8,2,18,24,32], index: 0, kind: input, shape index: {}]
  %s1 = inlined_call_operand.vmem [shape: bf16[9,32,128], index: 1, kind: input, shape index: {}]
  %s2 = inlined_call_operand.vmem [shape: f32[1,128], index: 2, kind: input, shape index: {}]
  %s3 = inlined_call_operand.vmem [shape: f32[8,2,256,128], index: 3, kind: output, shape index: {}]
  %s4 = sld [smem:[#allocation0]]
  $region45: #{convlstm_forward.6} parent=0
    _
  %s6 = ssub.s32 1, %s4
  %s7 = scalar_select 0, %s6, %s4
  loop: start=0, step=1, limit=10
  $region2: #{convlstm_forward.6} parent=0 // loop_pre_header
    _
  $region3: #{convlstm_forward.6} parent=0 // loop_header
    %s9 = sphi 0, %s13
    %p10 = scmp.ge.s32.totalorder %s9, 10
    %s19 = sphi 0, %s21
    %s22 = sphi 0, %s19
    %s23 = sphi 0, %s22
    %s39 = sphi 0, %s23
    %s43 = sphi 0, %s43
    %s45 = sphi 0, %s43
    %s46 = sphi 0, %s45
    %s60 = sphi 0, %s46
    %s64 = sphi 0, %s64
    %s66 = sphi 0, %s64
    %s67 = sphi 0, %s66
    %s81 = sphi 0, %s67
    %s87 = sphi 0, %s89
    %s90 = sphi 0, %s87
    %s91 = sphi 0, %s90
    %s107 = sphi 0, %s91
  $region4: #{convlstm_forward.6} parent=0 // loop_header_branch
    %12 = sbr.rel (%p10) target = $region8
  $region5: #{convlstm_forward.6} parent=0 // loop_body
    %s14 = ssub.s32 %s9, 1
    %s15 = ssub.s32 %s9, 2
    %s16 = sadd.s32 %s9, 1
    %s17 = ssub.s32 %s9, %s16
    %p18 = scmp.eq.s32.totalorder %s17, 0
    %s20 = sadd.s32 %s19, 1
    %s21 = scalar_select %p18, %s19, %s20
    %p24 = pneg %p18
    %p25 = scmp.eq.s32.totalorder %s9, 7
    %p26 = por %p24, %p25
    %p27 = scmp.ne.s32.totalorder %s19, %s22
    %p28 = scmp.eq.s32.totalorder %s9, 0
    %p29 = por %p27, %p28
    %p30 = scmp.ne.s32.totalorder %s19, %s22
    %p31 = scmp.eq.s32.totalorder %s14, 7
    %p32 = por %p30, %p31
    %p33 = scmp.ne.s32.totalorder %s22, %s23
    %p34 = scmp.eq.s32.totalorder %s14, 0
    %p35 = por %p33, %p34
    %p36 = scmp.ne.s32.totalorder %s22, %s23
    %p37 = scmp.eq.s32.totalorder %s15, 7
    %p38 = por %p36, %p37
    %p40 = scmp.ne.s32.totalorder %s23, %s39
    %p41 = scmp.eq.s32.totalorder %s15, 0
    %p42 = por %p40, %p41
    %s44 = sadd.s32 %s43, 1
    %p47 = scmp.eq.s32.totalorder %s9, 7
    %p48 = scmp.ne.s32.totalorder %s43, %s45
    %p49 = scmp.eq.s32.totalorder %s9, 0
    %p50 = por %p48, %p49
    %p51 = scmp.ne.s32.totalorder %s43, %s45
    %p52 = scmp.eq.s32.totalorder %s14, 7
    %p53 = por %p51, %p52
    %p54 = scmp.ne.s32.totalorder %s45, %s46
    %p55 = scmp.eq.s32.totalorder %s14, 0
    %p56 = por %p54, %p55
    %p57 = scmp.ne.s32.totalorder %s45, %s46
    %p58 = scmp.eq.s32.totalorder %s15, 7
    %p59 = por %p57, %p58
    %p61 = scmp.ne.s32.totalorder %s46, %s60
    %p62 = scmp.eq.s32.totalorder %s15, 0
    %p63 = por %p61, %p62
    %s65 = sadd.s32 %s64, 1
    %p68 = scmp.eq.s32.totalorder %s9, 7
    %p69 = scmp.ne.s32.totalorder %s64, %s66
    %p70 = scmp.eq.s32.totalorder %s9, 0
    %p71 = por %p69, %p70
    %p72 = scmp.ne.s32.totalorder %s64, %s66
    %p73 = scmp.eq.s32.totalorder %s14, 7
    %p74 = por %p72, %p73
    %p75 = scmp.ne.s32.totalorder %s66, %s67
    %p76 = scmp.eq.s32.totalorder %s14, 0
    %p77 = por %p75, %p76
    %p78 = scmp.ne.s32.totalorder %s66, %s67
    %p79 = scmp.eq.s32.totalorder %s15, 7
    %p80 = por %p78, %p79
    %p82 = scmp.ne.s32.totalorder %s67, %s81
    %p83 = scmp.eq.s32.totalorder %s15, 0
    %p84 = por %p82, %p83
    %s85 = ssub.s32 %s9, %s16
    %p86 = scmp.eq.s32.totalorder %s85, 0
    %s88 = sadd.s32 %s87, 1
    %s89 = scalar_select %p86, %s87, %s88
    %p92 = pneg %p86
    %p93 = scmp.eq.s32.totalorder %s9, 7
    %p94 = por %p92, %p93
    %p95 = scmp.ne.s32.totalorder %s87, %s90
    %p96 = scmp.eq.s32.totalorder %s9, 0
    %p97 = por %p95, %p96
    %p98 = scmp.ne.s32.totalorder %s87, %s90
    %p99 = scmp.eq.s32.totalorder %s14, 7
    %p100 = por %p98, %p99
    %p101 = scmp.ne.s32.totalorder %s90, %s91
    %p102 = scmp.eq.s32.totalorder %s14, 0
    %p103 = por %p101, %p102
    %p104 = scmp.ne.s32.totalorder %s90, %s91
    %p105 = scmp.eq.s32.totalorder %s15, 7
    %p106 = por %p104, %p105
    %p108 = scmp.ne.s32.totalorder %s91, %s107
    %p109 = scmp.eq.s32.totalorder %s15, 0
    %p110 = por %p108, %p109
    %p111 = scmp.le.s32.totalorder 1, %s9
    %p112 = scmp.lt.s32.totalorder %s9, 9
    %p113 = pnand %p111, %p112
    %p114 = pneg %p113
    // Predicated region
    $region9: #{convlstm_forward.6} parent=5 // pred_check
      _
    $region10: #{convlstm_forward.6} parent=5 // pred_check_branch
      %116 = sbr.rel (%p113) target = $region12
    $region11: #{convlstm_forward.6} parent=5 // pred_region
      %s117 = ssub.s32 %s9, 1
      // Predicated region
      $region13: #{convlstm_forward.6} parent=11 // pred_check
        %p118 = pneg %p56
      $region14: #{convlstm_forward.6} parent=11 // pred_check_branch
        %120 = sbr.rel (%p118) target = $region16
      $region15: #{convlstm_forward.6} parent=11 // pred_region
        _
      $region16: #{convlstm_forward.6} parent=11 // pred_fallthru
        _
      // Predicated region
      $region17: #{convlstm_forward.6} parent=11 // pred_check
        %p121 = pneg %p77
      $region18: #{convlstm_forward.6} parent=11 // pred_check_branch
        %123 = sbr.rel (%p121) target = $region20
      $region19: #{convlstm_forward.6} parent=11 // pred_region
        _
      $region20: #{convlstm_forward.6} parent=11 // pred_fallthru
        _
    $region12: #{convlstm_forward.6} parent=5 // pred_fallthru
      _
    %p124 = scmp.lt.s32.totalorder %s9, 8
    // Predicated region
    $region21: #{convlstm_forward.6} parent=5 // pred_check
      %p125 = pneg %p124
    $region22: #{convlstm_forward.6} parent=5 // pred_check_branch
      %127 = sbr.rel (%p125) target = $region24
    $region23: #{convlstm_forward.6} parent=5 // pred_region
      // Predicated region
      $region25: #{convlstm_forward.6} parent=23 // pred_check
        %p128 = pneg %p29
      $region26: #{convlstm_forward.6} parent=23 // pred_check_branch
        %130 = sbr.rel (%p128) target = $region28
      $region27: #{convlstm_forward.6} parent=23 // pred_region
        %p131 = scmp.lt.s32.totalorder %s9, 7
        %s132 = scalar_select %p131, %s9, 7
        %s133 = smul.addr %s132, 108
        %s134 = smul.addr %s133, 8
        %s135 = scalar_lea.vmem %s0, %s134
      $region28: #{convlstm_forward.6} parent=23 // pred_fallthru
        _
    $region24: #{convlstm_forward.6} parent=5 // pred_fallthru
      _
    %p136 = scmp.le.s32.totalorder 1, %s9
    %p137 = scmp.lt.s32.totalorder %s9, 9
    %p138 = pnand %p136, %p137
    %p139 = pneg %p138
    // Predicated region
    $region29: #{convlstm_forward.6} parent=5 // pred_check
      _
    $region30: #{convlstm_forward.6} parent=5 // pred_check_branch
      %141 = sbr.rel (%p138) target = $region32
    $region31: #{convlstm_forward.6} parent=5 // pred_region
      %s142 = ssub.s32 %s9, 1
      %p143 = scmp.lt.s32.totalorder %s14, 7
      %s144 = scalar_select %p143, %s14, 7
      %s145 = smul.addr %s144, 108
      %s146 = smul.addr %s145, 8
      %s147 = scalar_lea.vmem %s0, %s146
      %p148 = pneg %p35
      %p149 = pneg %p32
      %p150 = pneg %p56
      %p151 = pneg %p53
      %p152 = pneg %p77
      %p153 = pneg %p74
      %p154 = pneg %p103
      %p155 = pneg %p100
      %p156 = scmp.lt.s32.totalorder %s14, 7
      %s157 = scalar_select %p156, %s14, 7
      %s158 = smul.addr %s157, 64
      %s159 = smul.addr %s158, 8
      %s160 = scalar_lea.vmem %s3, %s159
      %p161 = scmp.lt.s32.totalorder %s14, 7
      %s162 = scalar_select %p161, %s14, 7
      %s163 = smul.addr %s162, 108
      %s164 = smul.addr %s163, 8
      %s165 = scalar_lea.vmem %s0, %s164
      %p166 = scmp.lt.s32.totalorder %s14, 7
      %s167 = scalar_select %p166, %s14, 7
      %s168 = smul.addr %s167, 64
      %s169 = smul.addr %s168, 8
      %s170 = scalar_lea.vmem %s3, %s169
      %v172 = vld [vmem:[%s165] sm:$0xff]
      %v173 = vld [vmem:[%s165 + $0x8] sm:$0xff]
      %v174 = vld [vmem:[%s165 + $0x10] sm:$0xff]
      %v175 = vld [vmem:[%s165 + $0x18] sm:$0xff]
      %v176 = vld [vmem:[%s165 + $0x20] sm:$0xff]
      %v177 = vld [vmem:[%s165 + $0x28] sm:$0xff]
      %v178 = vld [vmem:[%s165 + $0x30] sm:$0xff]
      %v179 = vld [vmem:[%s165 + $0x38] sm:$0xff]
      %v180 = vld [vmem:[%s165 + $0x40] sm:$0xff]
      %v181 = vld [vmem:[%s165 + $0x48] sm:$0xff]
      %v182 = vld [vmem:[%s165 + $0x50] sm:$0xff]
      %v183 = vld [vmem:[%s165 + $0x58] sm:$0xff]
      %v184 = vld [vmem:[%s165 + $0x60] sm:$0xff]
      %v185 = vld [vmem:[%s165 + $0x68] sm:$0xff]
      %v186 = vld [vmem:[%s165 + $0x70] sm:$0xff]
      %v187 = vld [vmem:[%s165 + $0x78] sm:$0xff]
      %v188 = vld [vmem:[%s165 + $0x80] sm:$0xff]
      %v189 = vld [vmem:[%s165 + $0x88] sm:$0xff]
      %v190 = vld [vmem:[%s165 + $0x90] sm:$0xff]
      %v191 = vld [vmem:[%s165 + $0x98] sm:$0xff]
      %v192 = vld [vmem:[%s165 + $0xa0] sm:$0xff]
      %v193 = vld [vmem:[%s165 + $0xa8] sm:$0xff]
      %v194 = vld [vmem:[%s165 + $0xb0] sm:$0xff]
      %v195 = vld [vmem:[%s165 + $0xb8] sm:$0xff]
      %v196 = vld [vmem:[%s165 + $0xc0] sm:$0xff]
      %v197 = vld [vmem:[%s165 + $0xc8] sm:$0xff]
      %v198 = vld [vmem:[%s165 + $0xd0] sm:$0xff]
      %v199 = vld [vmem:[%s165 + $0xd8] sm:$0xff]
      %v200 = vld [vmem:[%s165 + $0xe0] sm:$0xff]
      %v201 = vld [vmem:[%s165 + $0xe8] sm:$0xff]
      %v202 = vld [vmem:[%s165 + $0xf0] sm:$0xff]
      %v203 = vld [vmem:[%s165 + $0xf8] sm:$0xff]
      %v204 = vld [vmem:[%s165 + $0x100] sm:$0xff]
      %v205 = vld [vmem:[%s165 + $0x108] sm:$0xff]
      %v206 = vld [vmem:[%s165 + $0x110] sm:$0xff]
      %v207 = vld [vmem:[%s165 + $0x118] sm:$0xff]
      %v208 = vld [vmem:[%s165 + $0x120] sm:$0xff]
      %v209 = vld [vmem:[%s165 + $0x128] sm:$0xff]
      %v210 = vld [vmem:[%s165 + $0x130] sm:$0xff]
      %v211 = vld [vmem:[%s165 + $0x138] sm:$0xff]
      %v212 = vld [vmem:[%s165 + $0x140] sm:$0xff]
      %v213 = vld [vmem:[%s165 + $0x148] sm:$0xff]
      %v214 = vld [vmem:[%s165 + $0x150] sm:$0xff]
      %v215 = vld [vmem:[%s165 + $0x158] sm:$0xff]
      %v216 = vld [vmem:[%s165 + $0x160] sm:$0xff]
      %v217 = vld [vmem:[%s165 + $0x168] sm:$0xff]
      %v218 = vld [vmem:[%s165 + $0x170] sm:$0xff]
      %v219 = vld [vmem:[%s165 + $0x178] sm:$0xff]
      %v220 = vld [vmem:[%s165 + $0x180] sm:$0xff]
      %v221 = vld [vmem:[%s165 + $0x188] sm:$0xff]
      %v222 = vld [vmem:[%s165 + $0x190] sm:$0xff]
      %v223 = vld [vmem:[%s165 + $0x198] sm:$0xff]
      %v224 = vld [vmem:[%s165 + $0x1a0] sm:$0xff]
      %v225 = vld [vmem:[%s165 + $0x1a8] sm:$0xff]
      %v226 = vld [vmem:[%s165 + $0x1b0] sm:$0xff]
      %v227 = vld [vmem:[%s165 + $0x1b8] sm:$0xff]
      %v228 = vld [vmem:[%s165 + $0x1c0] sm:$0xff]
      %v229 = vld [vmem:[%s165 + $0x1c8] sm:$0xff]
      %v230 = vld [vmem:[%s165 + $0x1d0] sm:$0xff]
      %v231 = vld [vmem:[%s165 + $0x1d8] sm:$0xff]
      %v232 = vld [vmem:[%s165 + $0x1e0] sm:$0xff]
      %v233 = vld [vmem:[%s165 + $0x1e8] sm:$0xff]
      %v234 = vld [vmem:[%s165 + $0x1f0] sm:$0xff]
      %v235 = vld [vmem:[%s165 + $0x1f8] sm:$0xff]
      %v236 = vld [vmem:[%s165 + $0x200] sm:$0xff]
      %v237 = vld [vmem:[%s165 + $0x208] sm:$0xff]
      %v238 = vld [vmem:[%s165 + $0x210] sm:$0xff]
      %v239 = vld [vmem:[%s165 + $0x218] sm:$0xff]
      %v240 = vld [vmem:[%s165 + $0x220] sm:$0xff]
      %v241 = vld [vmem:[%s165 + $0x228] sm:$0xff]
      %v242 = vld [vmem:[%s165 + $0x230] sm:$0xff]
      %v243 = vld [vmem:[%s165 + $0x238] sm:$0xff]
      %v244 = vld [vmem:[%s165 + $0x240] sm:$0xff]
      %v245 = vld [vmem:[%s165 + $0x248] sm:$0xff]
      %v246 = vld [vmem:[%s165 + $0x250] sm:$0xff]
      %v247 = vld [vmem:[%s165 + $0x258] sm:$0xff]
      %v248 = vld [vmem:[%s165 + $0x260] sm:$0xff]
      %v249 = vld [vmem:[%s165 + $0x268] sm:$0xff]
      %v250 = vld [vmem:[%s165 + $0x270] sm:$0xff]
      %v251 = vld [vmem:[%s165 + $0x278] sm:$0xff]
      %v252 = vld [vmem:[%s165 + $0x280] sm:$0xff]
      %v253 = vld [vmem:[%s165 + $0x288] sm:$0xff]
      %v254 = vld [vmem:[%s165 + $0x290] sm:$0xff]
      %v255 = vld [vmem:[%s165 + $0x298] sm:$0xff]
      %v256 = vld [vmem:[%s165 + $0x2a0] sm:$0xff]
      %v257 = vld [vmem:[%s165 + $0x2a8] sm:$0xff]
      %v258 = vld [vmem:[%s165 + $0x2b0] sm:$0xff]
      %v259 = vld [vmem:[%s165 + $0x2b8] sm:$0xff]
      %v260 = vld [vmem:[%s165 + $0x2c0] sm:$0xff]
      %v261 = vld [vmem:[%s165 + $0x2c8] sm:$0xff]
      %v262 = vld [vmem:[%s165 + $0x2d0] sm:$0xff]
      %v263 = vld [vmem:[%s165 + $0x2d8] sm:$0xff]
      %v264 = vld [vmem:[%s165 + $0x2e0] sm:$0xff]
      %v265 = vld [vmem:[%s165 + $0x2e8] sm:$0xff]
      %v266 = vld [vmem:[%s165 + $0x2f0] sm:$0xff]
      %v267 = vld [vmem:[%s165 + $0x2f8] sm:$0xff]
      %v268 = vld [vmem:[%s165 + $0x300] sm:$0xff]
      %v269 = vld [vmem:[%s165 + $0x308] sm:$0xff]
      %v270 = vld [vmem:[%s165 + $0x310] sm:$0xff]
      %v271 = vld [vmem:[%s165 + $0x318] sm:$0xff]
      %v272 = vld [vmem:[%s165 + $0x320] sm:$0xff]
      %v273 = vld [vmem:[%s165 + $0x328] sm:$0xff]
      %v274 = vld [vmem:[%s165 + $0x330] sm:$0xff]
      %v275 = vld [vmem:[%s165 + $0x338] sm:$0xff]
      %v276 = vld [vmem:[%s165 + $0x340] sm:$0xff]
      %v277 = vld [vmem:[%s165 + $0x348] sm:$0xff]
      %v278 = vld [vmem:[%s165 + $0x350] sm:$0xff]
      %v279 = vld [vmem:[%s165 + $0x358] sm:$0xff]
      %v280 = vld [vmem:[%s2] sm:$0x1]
      %v282 = vperm.slane %v280, 0
      %v284 = vrot.slane %v172, 7
      %v285 = vrot.slane %v175, 7
      %v286 = vrot.slane %v178, 7
      %v287 = vrot.slane %v181, 7
      %v288 = vrot.slane %v184, 7
      %v289 = vrot.slane %v187, 7
      %v290 = vrot.slane %v190, 7
      %v291 = vrot.slane %v193, 7
      %v292 = vrot.slane %v196, 7
      %v293 = vrot.slane %v199, 7
      %v294 = vrot.slane %v202, 7
      %v295 = vrot.slane %v205, 7
      %v296 = vrot.slane %v208, 7
      %v297 = vrot.slane %v211, 7
      %v298 = vrot.slane %v214, 7
      %v299 = vrot.slane %v217, 7
      %v300 = vrot.slane %v220, 7
      %v301 = vrot.slane %v223, 7
      %v302 = vrot.slane %v226, 7
      %v303 = vrot.slane %v229, 7
      %v304 = vrot.slane %v232, 7
      %v305 = vrot.slane %v235, 7
      %v306 = vrot.slane %v238, 7
      %v307 = vrot.slane %v241, 7
      %v308 = vrot.slane %v244, 7
      %v309 = vrot.slane %v247, 7
      %v310 = vrot.slane %v250, 7
      %v311 = vrot.slane %v253, 7
      %v312 = vrot.slane %v256, 7
      %v313 = vrot.slane %v259, 7
      %v314 = vrot.slane %v262, 7
      %v315 = vrot.slane %v265, 7
      %v316 = vrot.slane %v268, 7
      %v317 = vrot.slane %v271, 7
      %v318 = vrot.slane %v274, 7
      %v319 = vrot.slane %v277, 7
      %v320 = vrot.slane %v173, 7
      %v321 = vrot.slane %v176, 7
      %v322 = vrot.slane %v179, 7
      %v323 = vrot.slane %v182, 7
      %v324 = vrot.slane %v185, 7
      %v325 = vrot.slane %v188, 7
      %v326 = vrot.slane %v191, 7
      %v327 = vrot.slane %v194, 7
      %v328 = vrot.slane %v197, 7
      %v329 = vrot.slane %v200, 7
      %v330 = vrot.slane %v203, 7
      %v331 = vrot.slane %v206, 7
      %v332 = vrot.slane %v209, 7
      %v333 = vrot.slane %v212, 7
      %v334 = vrot.slane %v215, 7
      %v335 = vrot.slane %v218, 7
      %v336 = vrot.slane %v221, 7
      %v337 = vrot.slane %v224, 7
      %v338 = vrot.slane %v227, 7
      %v339 = vrot.slane %v230, 7
      %v340 = vrot.slane %v233, 7
      %v341 = vrot.slane %v236, 7
      %v342 = vrot.slane %v239, 7
      %v343 = vrot.slane %v242, 7
      %v344 = vrot.slane %v245, 7
      %v345 = vrot.slane %v248, 7
      %v346 = vrot.slane %v251, 7
      %v347 = vrot.slane %v254, 7
      %v348 = vrot.slane %v257, 7
      %v349 = vrot.slane %v260, 7
      %v350 = vrot.slane %v263, 7
      %v351 = vrot.slane %v266, 7
      %v352 = vrot.slane %v269, 7
      %v353 = vrot.slane %v272, 7
      %v354 = vrot.slane %v275, 7
      %v355 = vrot.slane %v278, 7
      %v356 = vrot.slane %v174, 7
      %v357 = vrot.slane %v177, 7
      %v358 = vrot.slane %v180, 7
      %v359 = vrot.slane %v183, 7
      %v360 = vrot.slane %v186, 7
      %v361 = vrot.slane %v189, 7
      %v362 = vrot.slane %v192, 7
      %v363 = vrot.slane %v195, 7
      %v364 = vrot.slane %v198, 7
      %v365 = vrot.slane %v201, 7
      %v366 = vrot.slane %v204, 7
      %v367 = vrot.slane %v207, 7
      %v368 = vrot.slane %v210, 7
      %v369 = vrot.slane %v213, 7
      %v370 = vrot.slane %v216, 7
      %v371 = vrot.slane %v219, 7
      %v372 = vrot.slane %v222, 7
      %v373 = vrot.slane %v225, 7
      %v374 = vrot.slane %v228, 7
      %v375 = vrot.slane %v231, 7
      %v376 = vrot.slane %v234, 7
      %v377 = vrot.slane %v237, 7
      %v378 = vrot.slane %v240, 7
      %v379 = vrot.slane %v243, 7
      %v380 = vrot.slane %v246, 7
      %v381 = vrot.slane %v249, 7
      %v382 = vrot.slane %v252, 7
      %v383 = vrot.slane %v255, 7
      %v384 = vrot.slane %v258, 7
      %v385 = vrot.slane %v261, 7
      %v386 = vrot.slane %v264, 7
      %v387 = vrot.slane %v267, 7
      %v388 = vrot.slane %v270, 7
      %v389 = vrot.slane %v273, 7
      %v390 = vrot.slane %v276, 7
      %v391 = vrot.slane %v279, 7
      %v392 = vlaneseq
      %v393 = vshrl.u32 %v392, 7
      %vm394 = vcmp.lt.s32.totalorder %v393, 1
      %v395 = vsel %vm394, %v284, %v320
      %v396 = vsel %vm394, %v285, %v321
      %v397 = vsel %vm394, %v286, %v322
      %v398 = vsel %vm394, %v287, %v323
      %v399 = vsel %vm394, %v288, %v324
      %v400 = vsel %vm394, %v289, %v325
      %v401 = vsel %vm394, %v290, %v326
      %v402 = vsel %vm394, %v291, %v327
      %v403 = vsel %vm394, %v292, %v328
      %v404 = vsel %vm394, %v293, %v329
      %v405 = vsel %vm394, %v294, %v330
      %v406 = vsel %vm394, %v295, %v331
      %v407 = vsel %vm394, %v296, %v332
      %v408 = vsel %vm394, %v297, %v333
      %v409 = vsel %vm394, %v298, %v334
      %v410 = vsel %vm394, %v299, %v335
      %v411 = vsel %vm394, %v300, %v336
      %v412 = vsel %vm394, %v301, %v337
      %v413 = vsel %vm394, %v302, %v338
      %v414 = vsel %vm394, %v303, %v339
      %v415 = vsel %vm394, %v304, %v340
      %v416 = vsel %vm394, %v305, %v341
      %v417 = vsel %vm394, %v306, %v342
      %v418 = vsel %vm394, %v307, %v343
      %v419 = vsel %vm394, %v308, %v344
      %v420 = vsel %vm394, %v309, %v345
      %v421 = vsel %vm394, %v310, %v346
      %v422 = vsel %vm394, %v311, %v347
      %v423 = vsel %vm394, %v312, %v348
      %v424 = vsel %vm394, %v313, %v349
      %v425 = vsel %vm394, %v314, %v350
      %v426 = vsel %vm394, %v315, %v351
      %v427 = vsel %vm394, %v316, %v352
      %v428 = vsel %vm394, %v317, %v353
      %v429 = vsel %vm394, %v318, %v354
      %v430 = vsel %vm394, %v319, %v355
      %v431 = vsel %vm394, %v356, %v284
      %v432 = vsel %vm394, %v357, %v285
      %v433 = vsel %vm394, %v358, %v286
      %v434 = vsel %vm394, %v359, %v287
      %v435 = vsel %vm394, %v360, %v288
      %v436 = vsel %vm394, %v361, %v289
      %v437 = vsel %vm394, %v362, %v290
      %v438 = vsel %vm394, %v363, %v291
      %v439 = vsel %vm394, %v364, %v292
      %v440 = vsel %vm394, %v365, %v293
      %v441 = vsel %vm394, %v366, %v294
      %v442 = vsel %vm394, %v367, %v295
      %v443 = vsel %vm394, %v368, %v296
      %v444 = vsel %vm394, %v369, %v297
      %v445 = vsel %vm394, %v370, %v298
      %v446 = vsel %vm394, %v371, %v299
      %v447 = vsel %vm394, %v372, %v300
      %v448 = vsel %vm394, %v373, %v301
      %v449 = vsel %vm394, %v374, %v302
      %v450 = vsel %vm394, %v375, %v303
      %v451 = vsel %vm394, %v376, %v304
      %v452 = vsel %vm394, %v377, %v305
      %v453 = vsel %vm394, %v378, %v306
      %v454 = vsel %vm394, %v379, %v307
      %v455 = vsel %vm394, %v380, %v308
      %v456 = vsel %vm394, %v381, %v309
      %v457 = vsel %vm394, %v382, %v310
      %v458 = vsel %vm394, %v383, %v311
      %v459 = vsel %vm394, %v384, %v312
      %v460 = vsel %vm394, %v385, %v313
      %v461 = vsel %vm394, %v386, %v314
      %v462 = vsel %vm394, %v387, %v315
      %v463 = vsel %vm394, %v388, %v316
      %v464 = vsel %vm394, %v389, %v317
      %v465 = vsel %vm394, %v390, %v318
      %v466 = vsel %vm394, %v391, %v319
      %v467 = vpack.c.bf16 %v431, %v431
      %v468 = vpack.c.bf16 %v395, %v395
      %v469 = vpack.c.bf16 %v432, %v432
      %v470 = vpack.c.bf16 %v396, %v396
      %v471 = vpack.c.bf16 %v433, %v433
      %v472 = vpack.c.bf16 %v397, %v397
      %v473 = vpack.c.bf16 %v434, %v434
      %v474 = vpack.c.bf16 %v398, %v398
      %v475 = vpack.c.bf16 %v435, %v435
      %v476 = vpack.c.bf16 %v399, %v399
      %v477 = vpack.c.bf16 %v436, %v436
      %v478 = vpack.c.bf16 %v400, %v400
      %v479 = vpack.c.bf16 %v437, %v437
      %v480 = vpack.c.bf16 %v401, %v401
      %v481 = vpack.c.bf16 %v438, %v438
      %v482 = vpack.c.bf16 %v402, %v402
      %v483 = vpack.c.bf16 %v439, %v439
      %v484 = vpack.c.bf16 %v403, %v403
      %v485 = vpack.c.bf16 %v440, %v440
      %v486 = vpack.c.bf16 %v404, %v404
      %v487 = vpack.c.bf16 %v441, %v441
      %v488 = vpack.c.bf16 %v405, %v405
      %v489 = vpack.c.bf16 %v442, %v442
      %v490 = vpack.c.bf16 %v406, %v406
      %v491 = vpack.c.bf16 %v443, %v443
      %v492 = vpack.c.bf16 %v407, %v407
      %v493 = vpack.c.bf16 %v444, %v444
      %v494 = vpack.c.bf16 %v408, %v408
      %v495 = vpack.c.bf16 %v445, %v445
      %v496 = vpack.c.bf16 %v409, %v409
      %v497 = vpack.c.bf16 %v446, %v446
      %v498 = vpack.c.bf16 %v410, %v410
      %v499 = vpack.c.bf16 %v447, %v447
      %v500 = vpack.c.bf16 %v411, %v411
      %v501 = vpack.c.bf16 %v448, %v448
      %v502 = vpack.c.bf16 %v412, %v412
      %v503 = vpack.c.bf16 %v449, %v449
      %v504 = vpack.c.bf16 %v413, %v413
      %v505 = vpack.c.bf16 %v450, %v450
      %v506 = vpack.c.bf16 %v414, %v414
      %v507 = vpack.c.bf16 %v451, %v451
      %v508 = vpack.c.bf16 %v415, %v415
      %v509 = vpack.c.bf16 %v452, %v452
      %v510 = vpack.c.bf16 %v416, %v416
      %v511 = vpack.c.bf16 %v453, %v453
      %v512 = vpack.c.bf16 %v417, %v417
      %v513 = vpack.c.bf16 %v454, %v454
      %v514 = vpack.c.bf16 %v418, %v418
      %v515 = vpack.c.bf16 %v455, %v455
      %v516 = vpack.c.bf16 %v419, %v419
      %v517 = vpack.c.bf16 %v456, %v456
      %v518 = vpack.c.bf16 %v420, %v420
      %v519 = vpack.c.bf16 %v457, %v457
      %v520 = vpack.c.bf16 %v421, %v421
      %v521 = vpack.c.bf16 %v458, %v458
      %v522 = vpack.c.bf16 %v422, %v422
      %v523 = vpack.c.bf16 %v459, %v459
      %v524 = vpack.c.bf16 %v423, %v423
      %v525 = vpack.c.bf16 %v460, %v460
      %v526 = vpack.c.bf16 %v424, %v424
      %v527 = vpack.c.bf16 %v461, %v461
      %v528 = vpack.c.bf16 %v425, %v425
      %v529 = vpack.c.bf16 %v462, %v462
      %v530 = vpack.c.bf16 %v426, %v426
      %v531 = vpack.c.bf16 %v463, %v463
      %v532 = vpack.c.bf16 %v427, %v427
      %v533 = vpack.c.bf16 %v464, %v464
      %v534 = vpack.c.bf16 %v428, %v428
      %v535 = vpack.c.bf16 %v465, %v465
      %v536 = vpack.c.bf16 %v429, %v429
      %v537 = vpack.c.bf16 %v466, %v466
      %v538 = vpack.c.bf16 %v430, %v430
      %v539 = vld [vmem:[%s1] sm:$0xf]
      %v540 = vld [vmem:[%s1 + $0x4] sm:$0xf]
      %v541 = vld [vmem:[%s1 + $0x8] sm:$0xf]
      %v542 = vld [vmem:[%s1 + $0xc] sm:$0xf]
      %v607 = vunpack.c.l.b16 %v467
      %v608 = vunpack.c.l.b16 %v468
      %v609 = vunpack.c.l.b16 %v469
      %v610 = vunpack.c.l.b16 %v470
      %v611 = vunpack.c.l.b16 %v471
      %v612 = vunpack.c.l.b16 %v472
      %v613 = vunpack.c.l.b16 %v473
      %v614 = vunpack.c.l.b16 %v474
      %v615 = vunpack.c.l.b16 %v475
      %v616 = vunpack.c.l.b16 %v476
      %v617 = vunpack.c.l.b16 %v477
      %v618 = vunpack.c.l.b16 %v478
      %v619 = vunpack.c.l.b16 %v479
      %v620 = vunpack.c.l.b16 %v480
      %v621 = vunpack.c.l.b16 %v481
      %v622 = vunpack.c.l.b16 %v482
      %v623 = vunpack.c.l.b16 %v483
      %v624 = vunpack.c.l.b16 %v484
      %v625 = vunpack.c.l.b16 %v485
      %v626 = vunpack.c.l.b16 %v486
      %v627 = vunpack.c.l.b16 %v487
      %v628 = vunpack.c.l.b16 %v488
      %v629 = vunpack.c.l.b16 %v489
      %v630 = vunpack.c.l.b16 %v490
      %v631 = vunpack.c.l.b16 %v491
      %v632 = vunpack.c.l.b16 %v492
      %v633 = vunpack.c.l.b16 %v493
      %v634 = vunpack.c.l.b16 %v494
      %v635 = vunpack.c.l.b16 %v495
      %v636 = vunpack.c.l.b16 %v496
      %v637 = vunpack.c.l.b16 %v497
      %v638 = vunpack.c.l.b16 %v498
      %v639 = vunpack.c.l.b16 %v503
      %v640 = vunpack.c.l.b16 %v504
      %v641 = vunpack.c.l.b16 %v505
      %v642 = vunpack.c.l.b16 %v506
      %v643 = vunpack.c.l.b16 %v507
      %v644 = vunpack.c.l.b16 %v508
      %v645 = vunpack.c.l.b16 %v509
      %v646 = vunpack.c.l.b16 %v510
      %v647 = vunpack.c.l.b16 %v511
      %v648 = vunpack.c.l.b16 %v512
      %v649 = vunpack.c.l.b16 %v513
      %v650 = vunpack.c.l.b16 %v514
      %v651 = vunpack.c.l.b16 %v515
      %v652 = vunpack.c.l.b16 %v516
      %v653 = vunpack.c.l.b16 %v517
      %v654 = vunpack.c.l.b16 %v518
      %v655 = vunpack.c.l.b16 %v519
      %v656 = vunpack.c.l.b16 %v520
      %v657 = vunpack.c.l.b16 %v521
      %v658 = vunpack.c.l.b16 %v522
      %v659 = vunpack.c.l.b16 %v523
      %v660 = vunpack.c.l.b16 %v524
      %v661 = vunpack.c.l.b16 %v525
      %v662 = vunpack.c.l.b16 %v526
      %v663 = vunpack.c.l.b16 %v527
      %v664 = vunpack.c.l.b16 %v528
      %v665 = vunpack.c.l.b16 %v529
      %v666 = vunpack.c.l.b16 %v530
      %v667 = vunpack.c.l.b16 %v531
      %v668 = vunpack.c.l.b16 %v532
      %v669 = vunpack.c.l.b16 %v533
      %v670 = vunpack.c.l.b16 %v534
      %v671 = vpack.c.b16 %v608, %v607
      %v672 = vpack.c.b16 %v610, %v609
      %v673 = vpack.c.b16 %v612, %v611
      %v674 = vpack.c.b16 %v614, %v613
      %v675 = vpack.c.b16 %v616, %v615
      %v676 = vpack.c.b16 %v618, %v617
      %v677 = vpack.c.b16 %v620, %v619
      %v678 = vpack.c.b16 %v622, %v621
      %v679 = vpack.c.b16 %v624, %v623
      %v680 = vpack.c.b16 %v626, %v625
      %v681 = vpack.c.b16 %v628, %v627
      %v682 = vpack.c.b16 %v630, %v629
      %v683 = vpack.c.b16 %v632, %v631
      %v684 = vpack.c.b16 %v634, %v633
      %v685 = vpack.c.b16 %v636, %v635
      %v686 = vpack.c.b16 %v638, %v637
      %v687 = vpack.c.b16 %v640, %v639
      %v688 = vpack.c.b16 %v642, %v641
      %v689 = vpack.c.b16 %v644, %v643
      %v690 = vpack.c.b16 %v646, %v645
      %v691 = vpack.c.b16 %v648, %v647
      %v692 = vpack.c.b16 %v650, %v649
      %v693 = vpack.c.b16 %v652, %v651
      %v694 = vpack.c.b16 %v654, %v653
      %v695 = vpack.c.b16 %v656, %v655
      %v696 = vpack.c.b16 %v658, %v657
      %v697 = vpack.c.b16 %v660, %v659
      %v698 = vpack.c.b16 %v662, %v661
      %v699 = vpack.c.b16 %v664, %v663
      %v700 = vpack.c.b16 %v666, %v665
      %v701 = vpack.c.b16 %v668, %v667
      %v702 = vpack.c.b16 %v670, %v669
      %v707 = vunpack.c.l.b16 %v539
      %v708 = vunpack.c.l.b16 %v540
      %v709 = vunpack.c.l.b16 %v541
      %v710 = vunpack.c.l.b16 %v542
      %v711 = vpack.c.b16 %v708, %v707
      %v712 = vpack.c.b16 %v710, %v709
      %vm715 = vcmask 261120
      %v717 = vsel %vm715, %v671, 0
      %v720 = vsel %vm715, %v672, 0
      %v723 = vsel %vm715, %v673, 0
      %v726 = vsel %vm715, %v674, 0
      %v729 = vsel %vm715, %v675, 0
      %v732 = vsel %vm715, %v676, 0
      %v735 = vsel %vm715, %v677, 0
      %v738 = vsel %vm715, %v678, 0
      %v741 = vsel %vm715, %v679, 0
      %v744 = vsel %vm715, %v680, 0
      %v747 = vsel %vm715, %v681, 0
      %v750 = vsel %vm715, %v682, 0
      %v753 = vsel %vm715, %v683, 0
      %v756 = vsel %vm715, %v684, 0
      %v759 = vsel %vm715, %v685, 0
      %v762 = vsel %vm715, %v686, 0
      %v765 = vsel %vm715, %v687, 0
      %v768 = vsel %vm715, %v688, 0
      %v771 = vsel %vm715, %v689, 0
      %v774 = vsel %vm715, %v690, 0
      %v777 = vsel %vm715, %v691, 0
      %v780 = vsel %vm715, %v692, 0
      %v783 = vsel %vm715, %v693, 0
      %v786 = vsel %vm715, %v694, 0
      %v789 = vsel %vm715, %v695, 0
      %v792 = vsel %vm715, %v696, 0
      %v795 = vsel %vm715, %v697, 0
      %v798 = vsel %vm715, %v698, 0
      %v801 = vsel %vm715, %v699, 0
      %v804 = vsel %vm715, %v700, 0
      %v807 = vsel %vm715, %v701, 0
      %v810 = vsel %vm715, %v702, 0
      %812 = vmatpush.bf16.msra.mxu0 0
      %813 = vmatpush.bf16.msra.mxu0 0
      %814 = vmatpush.bf16.msra.mxu0 0
      %815 = vmatpush.bf16.msra.mxu0 0
      %816 = vmatpush.bf16.msra.mxu0 0
      %817 = vmatpush.bf16.msra.mxu0 0
      %818 = vmatpush.bf16.msra.mxu0 %v712
      %819 = vmatpush.bf16.msra.mxu0 %v711
      %820 = vmatmul.bf16.gmra.mxu0 %v717
      %v821 = vpop.f32.mrf.mxu0
      %v822 = vadd.f32 0.0, %v821
      %v823 = vpop.f32.mrf.mxu0
      %v824 = vadd.f32 0.0, %v823
      %825 = vmatmul.bf16.gmra.mxu0 %v720
      %v826 = vpop.f32.mrf.mxu0
      %v827 = vadd.f32 0.0, %v826
      %v828 = vpop.f32.mrf.mxu0
      %v829 = vadd.f32 0.0, %v828
      %830 = vmatmul.bf16.gmra.mxu0 %v723
      %v831 = vpop.f32.mrf.mxu0
      %v832 = vadd.f32 0.0, %v831
      %v833 = vpop.f32.mrf.mxu0
      %v834 = vadd.f32 0.0, %v833
      %835 = vmatmul.bf16.gmra.mxu0 %v726
      %v836 = vpop.f32.mrf.mxu0
      %v837 = vadd.f32 0.0, %v836
      %v838 = vpop.f32.mrf.mxu0
      %v839 = vadd.f32 0.0, %v838
      %840 = vmatmul.bf16.gmra.mxu0 %v729
      %v841 = vpop.f32.mrf.mxu0
      %v842 = vadd.f32 0.0, %v841
      %v843 = vpop.f32.mrf.mxu0
      %v844 = vadd.f32 0.0, %v843
      %845 = vmatmul.bf16.gmra.mxu0 %v732
      %v846 = vpop.f32.mrf.mxu0
      %v847 = vadd.f32 0.0, %v846
      %v848 = vpop.f32.mrf.mxu0
      %v849 = vadd.f32 0.0, %v848
      %850 = vmatmul.bf16.gmra.mxu0 %v735
      %v851 = vpop.f32.mrf.mxu0
      %v852 = vadd.f32 0.0, %v851
      %v853 = vpop.f32.mrf.mxu0
      %v854 = vadd.f32 0.0, %v853
      %855 = vmatmul.bf16.gmra.mxu0 %v738
      %v856 = vpop.f32.mrf.mxu0
      %v857 = vadd.f32 0.0, %v856
      %v858 = vpop.f32.mrf.mxu0
      %v859 = vadd.f32 0.0, %v858
      %860 = vmatmul.bf16.gmra.mxu0 %v741
      %v861 = vpop.f32.mrf.mxu0
      %v862 = vadd.f32 0.0, %v861
      %v863 = vpop.f32.mrf.mxu0
      %v864 = vadd.f32 0.0, %v863
      %865 = vmatmul.bf16.gmra.mxu0 %v744
      %v866 = vpop.f32.mrf.mxu0
      %v867 = vadd.f32 0.0, %v866
      %v868 = vpop.f32.mrf.mxu0
      %v869 = vadd.f32 0.0, %v868
      %870 = vmatmul.bf16.gmra.mxu0 %v747
      %v871 = vpop.f32.mrf.mxu0
      %v872 = vadd.f32 0.0, %v871
      %v873 = vpop.f32.mrf.mxu0
      %v874 = vadd.f32 0.0, %v873
      %875 = vmatmul.bf16.gmra.mxu0 %v750
      %v876 = vpop.f32.mrf.mxu0
      %v877 = vadd.f32 0.0, %v876
      %v878 = vpop.f32.mrf.mxu0
      %v879 = vadd.f32 0.0, %v878
      %880 = vmatmul.bf16.gmra.mxu0 %v753
      %v881 = vpop.f32.mrf.mxu0
      %v882 = vadd.f32 0.0, %v881
      %v883 = vpop.f32.mrf.mxu0
      %v884 = vadd.f32 0.0, %v883
      %885 = vmatmul.bf16.gmra.mxu0 %v756
      %v886 = vpop.f32.mrf.mxu0
      %v887 = vadd.f32 0.0, %v886
      %v888 = vpop.f32.mrf.mxu0
      %v889 = vadd.f32 0.0, %v888
      %890 = vmatmul.bf16.gmra.mxu0 %v759
      %v891 = vpop.f32.mrf.mxu0
      %v892 = vadd.f32 0.0, %v891
      %v893 = vpop.f32.mrf.mxu0
      %v894 = vadd.f32 0.0, %v893
      %895 = vmatmul.bf16.gmra.mxu0 %v762
      %v896 = vpop.f32.mrf.mxu0
      %v897 = vadd.f32 0.0, %v896
      %v898 = vpop.f32.mrf.mxu0
      %v899 = vadd.f32 0.0, %v898
      %900 = vmatmul.bf16.gmra.mxu0 %v765
      %v901 = vpop.f32.mrf.mxu0
      %v902 = vadd.f32 0.0, %v901
      %v903 = vpop.f32.mrf.mxu0
      %v904 = vadd.f32 0.0, %v903
      %905 = vmatmul.bf16.gmra.mxu0 %v768
      %v906 = vpop.f32.mrf.mxu0
      %v907 = vadd.f32 0.0, %v906
      %v908 = vpop.f32.mrf.mxu0
      %v909 = vadd.f32 0.0, %v908
      %910 = vmatmul.bf16.gmra.mxu0 %v771
      %v911 = vpop.f32.mrf.mxu0
      %v912 = vadd.f32 0.0, %v911
      %v913 = vpop.f32.mrf.mxu0
      %v914 = vadd.f32 0.0, %v913
      %915 = vmatmul.bf16.gmra.mxu0 %v774
      %v916 = vpop.f32.mrf.mxu0
      %v917 = vadd.f32 0.0, %v916
      %v918 = vpop.f32.mrf.mxu0
      %v919 = vadd.f32 0.0, %v918
      %920 = vmatmul.bf16.gmra.mxu0 %v777
      %v921 = vpop.f32.mrf.mxu0
      %v922 = vadd.f32 0.0, %v921
      %v923 = vpop.f32.mrf.mxu0
      %v924 = vadd.f32 0.0, %v923
      %925 = vmatmul.bf16.gmra.mxu0 %v780
      %v926 = vpop.f32.mrf.mxu0
      %v927 = vadd.f32 0.0, %v926
      %v928 = vpop.f32.mrf.mxu0
      %v929 = vadd.f32 0.0, %v928
      %930 = vmatmul.bf16.gmra.mxu0 %v783
      %v931 = vpop.f32.mrf.mxu0
      %v932 = vadd.f32 0.0, %v931
      %v933 = vpop.f32.mrf.mxu0
      %v934 = vadd.f32 0.0, %v933
      %935 = vmatmul.bf16.gmra.mxu0 %v786
      %v936 = vpop.f32.mrf.mxu0
      %v937 = vadd.f32 0.0, %v936
      %v938 = vpop.f32.mrf.mxu0
      %v939 = vadd.f32 0.0, %v938
      %940 = vmatmul.bf16.gmra.mxu0 %v789
      %v941 = vpop.f32.mrf.mxu0
      %v942 = vadd.f32 0.0, %v941
      %v943 = vpop.f32.mrf.mxu0
      %v944 = vadd.f32 0.0, %v943
      %945 = vmatmul.bf16.gmra.mxu0 %v792
      %v946 = vpop.f32.mrf.mxu0
      %v947 = vadd.f32 0.0, %v946
      %v948 = vpop.f32.mrf.mxu0
      %v949 = vadd.f32 0.0, %v948
      %950 = vmatmul.bf16.gmra.mxu0 %v795
      %v951 = vpop.f32.mrf.mxu0
      %v952 = vadd.f32 0.0, %v951
      %v953 = vpop.f32.mrf.mxu0
      %v954 = vadd.f32 0.0, %v953
      %955 = vmatmul.bf16.gmra.mxu0 %v798
      %v956 = vpop.f32.mrf.mxu0
      %v957 = vadd.f32 0.0, %v956
      %v958 = vpop.f32.mrf.mxu0
      %v959 = vadd.f32 0.0, %v958
      %960 = vmatmul.bf16.gmra.mxu0 %v801
      %v961 = vpop.f32.mrf.mxu0
      %v962 = vadd.f32 0.0, %v961
      %v963 = vpop.f32.mrf.mxu0
      %v964 = vadd.f32 0.0, %v963
      %965 = vmatmul.bf16.gmra.mxu0 %v804
      %v966 = vpop.f32.mrf.mxu0
      %v967 = vadd.f32 0.0, %v966
      %v968 = vpop.f32.mrf.mxu0
      %v969 = vadd.f32 0.0, %v968
      %970 = vmatmul.bf16.gmra.mxu0 %v807
      %v971 = vpop.f32.mrf.mxu0
      %v972 = vadd.f32 0.0, %v971
      %v973 = vpop.f32.mrf.mxu0
      %v974 = vadd.f32 0.0, %v973
      %975 = vmatmul.bf16.gmra.mxu0 %v810
      %v976 = vpop.f32.mrf.mxu0
      %v977 = vadd.f32 0.0, %v976
      %v978 = vpop.f32.mrf.mxu0
      %v979 = vadd.f32 0.0, %v978
      %980 = vdwg.mxu0
      %v981 = vadd.f32 %v282, %v822
      %v982 = vadd.f32 %v282, %v824
      %v983 = vadd.f32 %v282, %v827
      %v984 = vadd.f32 %v282, %v829
      %v985 = vadd.f32 %v282, %v832
      %v986 = vadd.f32 %v282, %v834
      %v987 = vadd.f32 %v282, %v837
      %v988 = vadd.f32 %v282, %v839
      %v989 = vadd.f32 %v282, %v842
      %v990 = vadd.f32 %v282, %v844
      %v991 = vadd.f32 %v282, %v847
      %v992 = vadd.f32 %v282, %v849
      %v993 = vadd.f32 %v282, %v852
      %v994 = vadd.f32 %v282, %v854
      %v995 = vadd.f32 %v282, %v857
      %v996 = vadd.f32 %v282, %v859
      %v997 = vadd.f32 %v282, %v862
      %v998 = vadd.f32 %v282, %v864
      %v999 = vadd.f32 %v282, %v867
      %v1000 = vadd.f32 %v282, %v869
      %v1001 = vadd.f32 %v282, %v872
      %v1002 = vadd.f32 %v282, %v874
      %v1003 = vadd.f32 %v282, %v877
      %v1004 = vadd.f32 %v282, %v879
      %v1005 = vadd.f32 %v282, %v882
      %v1006 = vadd.f32 %v282, %v884
      %v1007 = vadd.f32 %v282, %v887
      %v1008 = vadd.f32 %v282, %v889
      %v1009 = vadd.f32 %v282, %v892
      %v1010 = vadd.f32 %v282, %v894
      %v1011 = vadd.f32 %v282, %v897
      %v1012 = vadd.f32 %v282, %v899
      %v1013 = vadd.f32 %v282, %v902
      %v1014 = vadd.f32 %v282, %v904
      %v1015 = vadd.f32 %v282, %v907
      %v1016 = vadd.f32 %v282, %v909
      %v1017 = vadd.f32 %v282, %v912
      %v1018 = vadd.f32 %v282, %v914
      %v1019 = vadd.f32 %v282, %v917
      %v1020 = vadd.f32 %v282, %v919
      %v1021 = vadd.f32 %v282, %v922
      %v1022 = vadd.f32 %v282, %v924
      %v1023 = vadd.f32 %v282, %v927
      %v1024 = vadd.f32 %v282, %v929
      %v1025 = vadd.f32 %v282, %v932
      %v1026 = vadd.f32 %v282, %v934
      %v1027 = vadd.f32 %v282, %v937
      %v1028 = vadd.f32 %v282, %v939
      %v1029 = vadd.f32 %v282, %v942
      %v1030 = vadd.f32 %v282, %v944
      %v1031 = vadd.f32 %v282, %v947
      %v1032 = vadd.f32 %v282, %v949
      %v1033 = vadd.f32 %v282, %v952
      %v1034 = vadd.f32 %v282, %v954
      %v1035 = vadd.f32 %v282, %v957
      %v1036 = vadd.f32 %v282, %v959
      %v1037 = vadd.f32 %v282, %v962
      %v1038 = vadd.f32 %v282, %v964
      %v1039 = vadd.f32 %v282, %v967
      %v1040 = vadd.f32 %v282, %v969
      %v1041 = vadd.f32 %v282, %v972
      %v1042 = vadd.f32 %v282, %v974
      %v1043 = vadd.f32 %v282, %v977
      %v1044 = vadd.f32 %v282, %v979
      %s1045 = scalar_lea.vmem %s1, 48
      %v1046 = vld [vmem:[%s1045] sm:$0xf]
      %v1047 = vld [vmem:[%s1045 + $0x4] sm:$0xf]
      %v1048 = vld [vmem:[%s1045 + $0x8] sm:$0xf]
      %v1049 = vld [vmem:[%s1045 + $0xc] sm:$0xf]
      %v1054 = vunpack.c.l.b16 %v499
      %v1055 = vunpack.c.l.b16 %v500
      %v1056 = vunpack.c.l.b16 %v535
      %v1057 = vunpack.c.l.b16 %v536
      %v1058 = vpack.c.b16 %v1055, %v1054
      %v1059 = vpack.c.b16 %v1057, %v1056
      %v1064 = vunpack.c.l.b16 %v1046
      %v1065 = vunpack.c.l.b16 %v1047
      %v1066 = vunpack.c.l.b16 %v1048
      %v1067 = vunpack.c.l.b16 %v1049
      %v1068 = vpack.c.b16 %v1065, %v1064
      %v1069 = vpack.c.b16 %v1067, %v1066
      %v1073 = vsel %vm715, %v1058, 0
      %v1076 = vsel %vm715, %v1059, 0
      %1078 = vmatpush.bf16.msra.mxu0 0
      %1079 = vmatpush.bf16.msra.mxu0 0
      %1080 = vmatpush.bf16.msra.mxu0 0
      %1081 = vmatpush.bf16.msra.mxu0 0
      %1082 = vmatpush.bf16.msra.mxu0 0
      %1083 = vmatpush.bf16.msra.mxu0 0
      %1084 = vmatpush.bf16.msra.mxu0 %v1069
      %1085 = vmatpush.bf16.msra.mxu0 %v1068
      %1086 = vmatmul.bf16.gmra.mxu0 %v720
      %v1087 = vpop.f32.mrf.mxu0
      %v1088 = vadd.f32 0.0, %v1087
      %v1089 = vpop.f32.mrf.mxu0
      %v1090 = vadd.f32 0.0, %v1089
      %1091 = vmatmul.bf16.gmra.mxu0 %v723
      %v1092 = vpop.f32.mrf.mxu0
      %v1093 = vadd.f32 0.0, %v1092
      %v1094 = vpop.f32.mrf.mxu0
      %v1095 = vadd.f32 0.0, %v1094
      %1096 = vmatmul.bf16.gmra.mxu0 %v726
      %v1097 = vpop.f32.mrf.mxu0
      %v1098 = vadd.f32 0.0, %v1097
      %v1099 = vpop.f32.mrf.mxu0
      %v1100 = vadd.f32 0.0, %v1099
      %1101 = vmatmul.bf16.gmra.mxu0 %v729
      %v1102 = vpop.f32.mrf.mxu0
      %v1103 = vadd.f32 0.0, %v1102
      %v1104 = vpop.f32.mrf.mxu0
      %v1105 = vadd.f32 0.0, %v1104
      %1106 = vmatmul.bf16.gmra.mxu0 %v732
      %v1107 = vpop.f32.mrf.mxu0
      %v1108 = vadd.f32 0.0, %v1107
      %v1109 = vpop.f32.mrf.mxu0
      %v1110 = vadd.f32 0.0, %v1109
      %1111 = vmatmul.bf16.gmra.mxu0 %v735
      %v1112 = vpop.f32.mrf.mxu0
      %v1113 = vadd.f32 0.0, %v1112
      %v1114 = vpop.f32.mrf.mxu0
      %v1115 = vadd.f32 0.0, %v1114
      %1116 = vmatmul.bf16.gmra.mxu0 %v738
      %v1117 = vpop.f32.mrf.mxu0
      %v1118 = vadd.f32 0.0, %v1117
      %v1119 = vpop.f32.mrf.mxu0
      %v1120 = vadd.f32 0.0, %v1119
      %1121 = vmatmul.bf16.gmra.mxu0 %v741
      %v1122 = vpop.f32.mrf.mxu0
      %v1123 = vadd.f32 0.0, %v1122
      %v1124 = vpop.f32.mrf.mxu0
      %v1125 = vadd.f32 0.0, %v1124
      %1126 = vmatmul.bf16.gmra.mxu0 %v744
      %v1127 = vpop.f32.mrf.mxu0
      %v1128 = vadd.f32 0.0, %v1127
      %v1129 = vpop.f32.mrf.mxu0
      %v1130 = vadd.f32 0.0, %v1129
      %1131 = vmatmul.bf16.gmra.mxu0 %v747
      %v1132 = vpop.f32.mrf.mxu0
      %v1133 = vadd.f32 0.0, %v1132
      %v1134 = vpop.f32.mrf.mxu0
      %v1135 = vadd.f32 0.0, %v1134
      %1136 = vmatmul.bf16.gmra.mxu0 %v750
      %v1137 = vpop.f32.mrf.mxu0
      %v1138 = vadd.f32 0.0, %v1137
      %v1139 = vpop.f32.mrf.mxu0
      %v1140 = vadd.f32 0.0, %v1139
      %1141 = vmatmul.bf16.gmra.mxu0 %v753
      %v1142 = vpop.f32.mrf.mxu0
      %v1143 = vadd.f32 0.0, %v1142
      %v1144 = vpop.f32.mrf.mxu0
      %v1145 = vadd.f32 0.0, %v1144
      %1146 = vmatmul.bf16.gmra.mxu0 %v756
      %v1147 = vpop.f32.mrf.mxu0
      %v1148 = vadd.f32 0.0, %v1147
      %v1149 = vpop.f32.mrf.mxu0
      %v1150 = vadd.f32 0.0, %v1149
      %1151 = vmatmul.bf16.gmra.mxu0 %v759
      %v1152 = vpop.f32.mrf.mxu0
      %v1153 = vadd.f32 0.0, %v1152
      %v1154 = vpop.f32.mrf.mxu0
      %v1155 = vadd.f32 0.0, %v1154
      %1156 = vmatmul.bf16.gmra.mxu0 %v762
      %v1157 = vpop.f32.mrf.mxu0
      %v1158 = vadd.f32 0.0, %v1157
      %v1159 = vpop.f32.mrf.mxu0
      %v1160 = vadd.f32 0.0, %v1159
      %1161 = vmatmul.bf16.gmra.mxu0 %v1073
      %v1162 = vpop.f32.mrf.mxu0
      %v1163 = vadd.f32 0.0, %v1162
      %v1164 = vpop.f32.mrf.mxu0
      %v1165 = vadd.f32 0.0, %v1164
      %1166 = vmatmul.bf16.gmra.mxu0 %v768
      %v1167 = vpop.f32.mrf.mxu0
      %v1168 = vadd.f32 0.0, %v1167
      %v1169 = vpop.f32.mrf.mxu0
      %v1170 = vadd.f32 0.0, %v1169
      %1171 = vmatmul.bf16.gmra.mxu0 %v771
      %v1172 = vpop.f32.mrf.mxu0
      %v1173 = vadd.f32 0.0, %v1172
      %v1174 = vpop.f32.mrf.mxu0
      %v1175 = vadd.f32 0.0, %v1174
      %1176 = vmatmul.bf16.gmra.mxu0 %v774
      %v1177 = vpop.f32.mrf.mxu0
      %v1178 = vadd.f32 0.0, %v1177
      %v1179 = vpop.f32.mrf.mxu0
      %v1180 = vadd.f32 0.0, %v1179
      %1181 = vmatmul.bf16.gmra.mxu0 %v777
      %v1182 = vpop.f32.mrf.mxu0
      %v1183 = vadd.f32 0.0, %v1182
      %v1184 = vpop.f32.mrf.mxu0
      %v1185 = vadd.f32 0.0, %v1184
      %1186 = vmatmul.bf16.gmra.mxu0 %v780
      %v1187 = vpop.f32.mrf.mxu0
      %v1188 = vadd.f32 0.0, %v1187
      %v1189 = vpop.f32.mrf.mxu0
      %v1190 = vadd.f32 0.0, %v1189
      %1191 = vmatmul.bf16.gmra.mxu0 %v783
      %v1192 = vpop.f32.mrf.mxu0
      %v1193 = vadd.f32 0.0, %v1192
      %v1194 = vpop.f32.mrf.mxu0
      %v1195 = vadd.f32 0.0, %v1194
      %1196 = vmatmul.bf16.gmra.mxu0 %v786
      %v1197 = vpop.f32.mrf.mxu0
      %v1198 = vadd.f32 0.0, %v1197
      %v1199 = vpop.f32.mrf.mxu0
      %v1200 = vadd.f32 0.0, %v1199
      %1201 = vmatmul.bf16.gmra.mxu0 %v789
      %v1202 = vpop.f32.mrf.mxu0
      %v1203 = vadd.f32 0.0, %v1202
      %v1204 = vpop.f32.mrf.mxu0
      %v1205 = vadd.f32 0.0, %v1204
      %1206 = vmatmul.bf16.gmra.mxu0 %v792
      %v1207 = vpop.f32.mrf.mxu0
      %v1208 = vadd.f32 0.0, %v1207
      %v1209 = vpop.f32.mrf.mxu0
      %v1210 = vadd.f32 0.0, %v1209
      %1211 = vmatmul.bf16.gmra.mxu0 %v795
      %v1212 = vpop.f32.mrf.mxu0
      %v1213 = vadd.f32 0.0, %v1212
      %v1214 = vpop.f32.mrf.mxu0
      %v1215 = vadd.f32 0.0, %v1214
      %1216 = vmatmul.bf16.gmra.mxu0 %v798
      %v1217 = vpop.f32.mrf.mxu0
      %v1218 = vadd.f32 0.0, %v1217
      %v1219 = vpop.f32.mrf.mxu0
      %v1220 = vadd.f32 0.0, %v1219
      %1221 = vmatmul.bf16.gmra.mxu0 %v801
      %v1222 = vpop.f32.mrf.mxu0
      %v1223 = vadd.f32 0.0, %v1222
      %v1224 = vpop.f32.mrf.mxu0
      %v1225 = vadd.f32 0.0, %v1224
      %1226 = vmatmul.bf16.gmra.mxu0 %v804
      %v1227 = vpop.f32.mrf.mxu0
      %v1228 = vadd.f32 0.0, %v1227
      %v1229 = vpop.f32.mrf.mxu0
      %v1230 = vadd.f32 0.0, %v1229
      %1231 = vmatmul.bf16.gmra.mxu0 %v807
      %v1232 = vpop.f32.mrf.mxu0
      %v1233 = vadd.f32 0.0, %v1232
      %v1234 = vpop.f32.mrf.mxu0
      %v1235 = vadd.f32 0.0, %v1234
      %1236 = vmatmul.bf16.gmra.mxu0 %v810
      %v1237 = vpop.f32.mrf.mxu0
      %v1238 = vadd.f32 0.0, %v1237
      %v1239 = vpop.f32.mrf.mxu0
      %v1240 = vadd.f32 0.0, %v1239
      %1241 = vmatmul.bf16.gmra.mxu0 %v1076
      %v1242 = vpop.f32.mrf.mxu0
      %v1243 = vadd.f32 0.0, %v1242
      %v1244 = vpop.f32.mrf.mxu0
      %v1245 = vadd.f32 0.0, %v1244
      %1246 = vdwg.mxu0
      %v1247 = vadd.f32 %v981, %v1088
      %v1248 = vadd.f32 %v982, %v1090
      %v1249 = vadd.f32 %v983, %v1093
      %v1250 = vadd.f32 %v984, %v1095
      %v1251 = vadd.f32 %v985, %v1098
      %v1252 = vadd.f32 %v986, %v1100
      %v1253 = vadd.f32 %v987, %v1103
      %v1254 = vadd.f32 %v988, %v1105
      %v1255 = vadd.f32 %v989, %v1108
      %v1256 = vadd.f32 %v990, %v1110
      %v1257 = vadd.f32 %v991, %v1113
      %v1258 = vadd.f32 %v992, %v1115
      %v1259 = vadd.f32 %v993, %v1118
      %v1260 = vadd.f32 %v994, %v1120
      %v1261 = vadd.f32 %v995, %v1123
      %v1262 = vadd.f32 %v996, %v1125
      %v1263 = vadd.f32 %v997, %v1128
      %v1264 = vadd.f32 %v998, %v1130
      %v1265 = vadd.f32 %v999, %v1133
      %v1266 = vadd.f32 %v1000, %v1135
      %v1267 = vadd.f32 %v1001, %v1138
      %v1268 = vadd.f32 %v1002, %v1140
      %v1269 = vadd.f32 %v1003, %v1143
      %v1270 = vadd.f32 %v1004, %v1145
      %v1271 = vadd.f32 %v1005, %v1148
      %v1272 = vadd.f32 %v1006, %v1150
      %v1273 = vadd.f32 %v1007, %v1153
      %v1274 = vadd.f32 %v1008, %v1155
      %v1275 = vadd.f32 %v1009, %v1158
      %v1276 = vadd.f32 %v1010, %v1160
      %v1277 = vadd.f32 %v1011, %v1163
      %v1278 = vadd.f32 %v1012, %v1165
      %v1279 = vadd.f32 %v1013, %v1168
      %v1280 = vadd.f32 %v1014, %v1170
      %v1281 = vadd.f32 %v1015, %v1173
      %v1282 = vadd.f32 %v1016, %v1175
      %v1283 = vadd.f32 %v1017, %v1178
      %v1284 = vadd.f32 %v1018, %v1180
      %v1285 = vadd.f32 %v1019, %v1183
      %v1286 = vadd.f32 %v1020, %v1185
      %v1287 = vadd.f32 %v1021, %v1188
      %v1288 = vadd.f32 %v1022, %v1190
      %v1289 = vadd.f32 %v1023, %v1193
      %v1290 = vadd.f32 %v1024, %v1195
      %v1291 = vadd.f32 %v1025, %v1198
      %v1292 = vadd.f32 %v1026, %v1200
      %v1293 = vadd.f32 %v1027, %v1203
      %v1294 = vadd.f32 %v1028, %v1205
      %v1295 = vadd.f32 %v1029, %v1208
      %v1296 = vadd.f32 %v1030, %v1210
      %v1297 = vadd.f32 %v1031, %v1213
      %v1298 = vadd.f32 %v1032, %v1215
      %v1299 = vadd.f32 %v1033, %v1218
      %v1300 = vadd.f32 %v1034, %v1220
      %v1301 = vadd.f32 %v1035, %v1223
      %v1302 = vadd.f32 %v1036, %v1225
      %v1303 = vadd.f32 %v1037, %v1228
      %v1304 = vadd.f32 %v1038, %v1230
      %v1305 = vadd.f32 %v1039, %v1233
      %v1306 = vadd.f32 %v1040, %v1235
      %v1307 = vadd.f32 %v1041, %v1238
      %v1308 = vadd.f32 %v1042, %v1240
      %v1309 = vadd.f32 %v1043, %v1243
      %v1310 = vadd.f32 %v1044, %v1245
      %s1311 = scalar_lea.vmem %s1, 96
      %v1312 = vld [vmem:[%s1311] sm:$0xf]
      %v1313 = vld [vmem:[%s1311 + $0x4] sm:$0xf]
      %v1314 = vld [vmem:[%s1311 + $0x8] sm:$0xf]
      %v1315 = vld [vmem:[%s1311 + $0xc] sm:$0xf]
      %v1320 = vunpack.c.l.b16 %v501
      %v1321 = vunpack.c.l.b16 %v502
      %v1322 = vunpack.c.l.b16 %v537
      %v1323 = vunpack.c.l.b16 %v538
      %v1324 = vpack.c.b16 %v1321, %v1320
      %v1325 = vpack.c.b16 %v1323, %v1322
      %v1330 = vunpack.c.l.b16 %v1312
      %v1331 = vunpack.c.l.b16 %v1313
      %v1332 = vunpack.c.l.b16 %v1314
      %v1333 = vunpack.c.l.b16 %v1315
      %v1334 = vpack.c.b16 %v1331, %v1330
      %v1335 = vpack.c.b16 %v1333, %v1332
      %v1339 = vsel %vm715, %v1324, 0
      %v1342 = vsel %vm715, %v1325, 0
      %1344 = vmatpush.bf16.msra.mxu0 0
      %1345 = vmatpush.bf16.msra.mxu0 0
      %1346 = vmatpush.bf16.msra.mxu0 0
      %1347 = vmatpush.bf16.msra.mxu0 0
      %1348 = vmatpush.bf16.msra.mxu0 0
      %1349 = vmatpush.bf16.msra.mxu0 0
      %1350 = vmatpush.bf16.msra.mxu0 %v1335
      %1351 = vmatpush.bf16.msra.mxu0 %v1334
      %1352 = vmatmul.bf16.gmra.mxu0 %v723
      %v1353 = vpop.f32.mrf.mxu0
      %v1354 = vadd.f32 0.0, %v1353
      %v1355 = vpop.f32.mrf.mxu0
      %v1356 = vadd.f32 0.0, %v1355
      %1357 = vmatmul.bf16.gmra.mxu0 %v726
      %v1358 = vpop.f32.mrf.mxu0
      %v1359 = vadd.f32 0.0, %v1358
      %v1360 = vpop.f32.mrf.mxu0
      %v1361 = vadd.f32 0.0, %v1360
      %1362 = vmatmul.bf16.gmra.mxu0 %v729
      %v1363 = vpop.f32.mrf.mxu0
      %v1364 = vadd.f32 0.0, %v1363
      %v1365 = vpop.f32.mrf.mxu0
      %v1366 = vadd.f32 0.0, %v1365
      %1367 = vmatmul.bf16.gmra.mxu0 %v732
      %v1368 = vpop.f32.mrf.mxu0
      %v1369 = vadd.f32 0.0, %v1368
      %v1370 = vpop.f32.mrf.mxu0
      %v1371 = vadd.f32 0.0, %v1370
      %1372 = vmatmul.bf16.gmra.mxu0 %v735
      %v1373 = vpop.f32.mrf.mxu0
      %v1374 = vadd.f32 0.0, %v1373
      %v1375 = vpop.f32.mrf.mxu0
      %v1376 = vadd.f32 0.0, %v1375
      %1377 = vmatmul.bf16.gmra.mxu0 %v738
      %v1378 = vpop.f32.mrf.mxu0
      %v1379 = vadd.f32 0.0, %v1378
      %v1380 = vpop.f32.mrf.mxu0
      %v1381 = vadd.f32 0.0, %v1380
      %1382 = vmatmul.bf16.gmra.mxu0 %v741
      %v1383 = vpop.f32.mrf.mxu0
      %v1384 = vadd.f32 0.0, %v1383
      %v1385 = vpop.f32.mrf.mxu0
      %v1386 = vadd.f32 0.0, %v1385
      %1387 = vmatmul.bf16.gmra.mxu0 %v744
      %v1388 = vpop.f32.mrf.mxu0
      %v1389 = vadd.f32 0.0, %v1388
      %v1390 = vpop.f32.mrf.mxu0
      %v1391 = vadd.f32 0.0, %v1390
      %1392 = vmatmul.bf16.gmra.mxu0 %v747
      %v1393 = vpop.f32.mrf.mxu0
      %v1394 = vadd.f32 0.0, %v1393
      %v1395 = vpop.f32.mrf.mxu0
      %v1396 = vadd.f32 0.0, %v1395
      %1397 = vmatmul.bf16.gmra.mxu0 %v750
      %v1398 = vpop.f32.mrf.mxu0
      %v1399 = vadd.f32 0.0, %v1398
      %v1400 = vpop.f32.mrf.mxu0
      %v1401 = vadd.f32 0.0, %v1400
      %1402 = vmatmul.bf16.gmra.mxu0 %v753
      %v1403 = vpop.f32.mrf.mxu0
      %v1404 = vadd.f32 0.0, %v1403
      %v1405 = vpop.f32.mrf.mxu0
      %v1406 = vadd.f32 0.0, %v1405
      %1407 = vmatmul.bf16.gmra.mxu0 %v756
      %v1408 = vpop.f32.mrf.mxu0
      %v1409 = vadd.f32 0.0, %v1408
      %v1410 = vpop.f32.mrf.mxu0
      %v1411 = vadd.f32 0.0, %v1410
      %1412 = vmatmul.bf16.gmra.mxu0 %v759
      %v1413 = vpop.f32.mrf.mxu0
      %v1414 = vadd.f32 0.0, %v1413
      %v1415 = vpop.f32.mrf.mxu0
      %v1416 = vadd.f32 0.0, %v1415
      %1417 = vmatmul.bf16.gmra.mxu0 %v762
      %v1418 = vpop.f32.mrf.mxu0
      %v1419 = vadd.f32 0.0, %v1418
      %v1420 = vpop.f32.mrf.mxu0
      %v1421 = vadd.f32 0.0, %v1420
      %1422 = vmatmul.bf16.gmra.mxu0 %v1073
      %v1423 = vpop.f32.mrf.mxu0
      %v1424 = vadd.f32 0.0, %v1423
      %v1425 = vpop.f32.mrf.mxu0
      %v1426 = vadd.f32 0.0, %v1425
      %1427 = vmatmul.bf16.gmra.mxu0 %v1339
      %v1428 = vpop.f32.mrf.mxu0
      %v1429 = vadd.f32 0.0, %v1428
      %v1430 = vpop.f32.mrf.mxu0
      %v1431 = vadd.f32 0.0, %v1430
      %1432 = vmatmul.bf16.gmra.mxu0 %v771
      %v1433 = vpop.f32.mrf.mxu0
      %v1434 = vadd.f32 0.0, %v1433
      %v1435 = vpop.f32.mrf.mxu0
      %v1436 = vadd.f32 0.0, %v1435
      %1437 = vmatmul.bf16.gmra.mxu0 %v774
      %v1438 = vpop.f32.mrf.mxu0
      %v1439 = vadd.f32 0.0, %v1438
      %v1440 = vpop.f32.mrf.mxu0
      %v1441 = vadd.f32 0.0, %v1440
      %1442 = vmatmul.bf16.gmra.mxu0 %v777
      %v1443 = vpop.f32.mrf.mxu0
      %v1444 = vadd.f32 0.0, %v1443
      %v1445 = vpop.f32.mrf.mxu0
      %v1446 = vadd.f32 0.0, %v1445
      %1447 = vmatmul.bf16.gmra.mxu0 %v780
      %v1448 = vpop.f32.mrf.mxu0
      %v1449 = vadd.f32 0.0, %v1448
      %v1450 = vpop.f32.mrf.mxu0
      %v1451 = vadd.f32 0.0, %v1450
      %1452 = vmatmul.bf16.gmra.mxu0 %v783
      %v1453 = vpop.f32.mrf.mxu0
      %v1454 = vadd.f32 0.0, %v1453
      %v1455 = vpop.f32.mrf.mxu0
      %v1456 = vadd.f32 0.0, %v1455
      %1457 = vmatmul.bf16.gmra.mxu0 %v786
      %v1458 = vpop.f32.mrf.mxu0
      %v1459 = vadd.f32 0.0, %v1458
      %v1460 = vpop.f32.mrf.mxu0
      %v1461 = vadd.f32 0.0, %v1460
      %1462 = vmatmul.bf16.gmra.mxu0 %v789
      %v1463 = vpop.f32.mrf.mxu0
      %v1464 = vadd.f32 0.0, %v1463
      %v1465 = vpop.f32.mrf.mxu0
      %v1466 = vadd.f32 0.0, %v1465
      %1467 = vmatmul.bf16.gmra.mxu0 %v792
      %v1468 = vpop.f32.mrf.mxu0
      %v1469 = vadd.f32 0.0, %v1468
      %v1470 = vpop.f32.mrf.mxu0
      %v1471 = vadd.f32 0.0, %v1470
      %1472 = vmatmul.bf16.gmra.mxu0 %v795
      %v1473 = vpop.f32.mrf.mxu0
      %v1474 = vadd.f32 0.0, %v1473
      %v1475 = vpop.f32.mrf.mxu0
      %v1476 = vadd.f32 0.0, %v1475
      %1477 = vmatmul.bf16.gmra.mxu0 %v798
      %v1478 = vpop.f32.mrf.mxu0
      %v1479 = vadd.f32 0.0, %v1478
      %v1480 = vpop.f32.mrf.mxu0
      %v1481 = vadd.f32 0.0, %v1480
      %1482 = vmatmul.bf16.gmra.mxu0 %v801
      %v1483 = vpop.f32.mrf.mxu0
      %v1484 = vadd.f32 0.0, %v1483
      %v1485 = vpop.f32.mrf.mxu0
      %v1486 = vadd.f32 0.0, %v1485
      %1487 = vmatmul.bf16.gmra.mxu0 %v804
      %v1488 = vpop.f32.mrf.mxu0
      %v1489 = vadd.f32 0.0, %v1488
      %v1490 = vpop.f32.mrf.mxu0
      %v1491 = vadd.f32 0.0, %v1490
      %1492 = vmatmul.bf16.gmra.mxu0 %v807
      %v1493 = vpop.f32.mrf.mxu0
      %v1494 = vadd.f32 0.0, %v1493
      %v1495 = vpop.f32.mrf.mxu0
      %v1496 = vadd.f32 0.0, %v1495
      %1497 = vmatmul.bf16.gmra.mxu0 %v810
      %v1498 = vpop.f32.mrf.mxu0
      %v1499 = vadd.f32 0.0, %v1498
      %v1500 = vpop.f32.mrf.mxu0
      %v1501 = vadd.f32 0.0, %v1500
      %1502 = vmatmul.bf16.gmra.mxu0 %v1076
      %v1503 = vpop.f32.mrf.mxu0
      %v1504 = vadd.f32 0.0, %v1503
      %v1505 = vpop.f32.mrf.mxu0
      %v1506 = vadd.f32 0.0, %v1505
      %1507 = vmatmul.bf16.gmra.mxu0 %v1342
      %v1508 = vpop.f32.mrf.mxu0
      %v1509 = vadd.f32 0.0, %v1508
      %v1510 = vpop.f32.mrf.mxu0
      %v1511 = vadd.f32 0.0, %v1510
      %1512 = vdwg.mxu0
      %v1513 = vadd.f32 %v1247, %v1354
      %v1514 = vadd.f32 %v1248, %v1356
      %v1515 = vadd.f32 %v1249, %v1359
      %v1516 = vadd.f32 %v1250, %v1361
      %v1517 = vadd.f32 %v1251, %v1364
      %v1518 = vadd.f32 %v1252, %v1366
      %v1519 = vadd.f32 %v1253, %v1369
      %v1520 = vadd.f32 %v1254, %v1371
      %v1521 = vadd.f32 %v1255, %v1374
      %v1522 = vadd.f32 %v1256, %v1376
      %v1523 = vadd.f32 %v1257, %v1379
      %v1524 = vadd.f32 %v1258, %v1381
      %v1525 = vadd.f32 %v1259, %v1384
      %v1526 = vadd.f32 %v1260, %v1386
      %v1527 = vadd.f32 %v1261, %v1389
      %v1528 = vadd.f32 %v1262, %v1391
      %v1529 = vadd.f32 %v1263, %v1394
      %v1530 = vadd.f32 %v1264, %v1396
      %v1531 = vadd.f32 %v1265, %v1399
      %v1532 = vadd.f32 %v1266, %v1401
      %v1533 = vadd.f32 %v1267, %v1404
      %v1534 = vadd.f32 %v1268, %v1406
      %v1535 = vadd.f32 %v1269, %v1409
      %v1536 = vadd.f32 %v1270, %v1411
      %v1537 = vadd.f32 %v1271, %v1414
      %v1538 = vadd.f32 %v1272, %v1416
      %v1539 = vadd.f32 %v1273, %v1419
      %v1540 = vadd.f32 %v1274, %v1421
      %v1541 = vadd.f32 %v1275, %v1424
      %v1542 = vadd.f32 %v1276, %v1426
      %v1543 = vadd.f32 %v1277, %v1429
      %v1544 = vadd.f32 %v1278, %v1431
      %v1545 = vadd.f32 %v1279, %v1434
      %v1546 = vadd.f32 %v1280, %v1436
      %v1547 = vadd.f32 %v1281, %v1439
      %v1548 = vadd.f32 %v1282, %v1441
      %v1549 = vadd.f32 %v1283, %v1444
      %v1550 = vadd.f32 %v1284, %v1446
      %v1551 = vadd.f32 %v1285, %v1449
      %v1552 = vadd.f32 %v1286, %v1451
      %v1553 = vadd.f32 %v1287, %v1454
      %v1554 = vadd.f32 %v1288, %v1456
      %v1555 = vadd.f32 %v1289, %v1459
      %v1556 = vadd.f32 %v1290, %v1461
      %v1557 = vadd.f32 %v1291, %v1464
      %v1558 = vadd.f32 %v1292, %v1466
      %v1559 = vadd.f32 %v1293, %v1469
      %v1560 = vadd.f32 %v1294, %v1471
      %v1561 = vadd.f32 %v1295, %v1474
      %v1562 = vadd.f32 %v1296, %v1476
      %v1563 = vadd.f32 %v1297, %v1479
      %v1564 = vadd.f32 %v1298, %v1481
      %v1565 = vadd.f32 %v1299, %v1484
      %v1566 = vadd.f32 %v1300, %v1486
      %v1567 = vadd.f32 %v1301, %v1489
      %v1568 = vadd.f32 %v1302, %v1491
      %v1569 = vadd.f32 %v1303, %v1494
      %v1570 = vadd.f32 %v1304, %v1496
      %v1571 = vadd.f32 %v1305, %v1499
      %v1572 = vadd.f32 %v1306, %v1501
      %v1573 = vadd.f32 %v1307, %v1504
      %v1574 = vadd.f32 %v1308, %v1506
      %v1575 = vadd.f32 %v1309, %v1509
      %v1576 = vadd.f32 %v1310, %v1511
      %v1577 = vpack.c.bf16 %v172, %v172
      %v1578 = vpack.c.bf16 %v173, %v173
      %v1579 = vpack.c.bf16 %v175, %v175
      %v1580 = vpack.c.bf16 %v176, %v176
      %v1581 = vpack.c.bf16 %v178, %v178
      %v1582 = vpack.c.bf16 %v179, %v179
      %v1583 = vpack.c.bf16 %v181, %v181
      %v1584 = vpack.c.bf16 %v182, %v182
      %v1585 = vpack.c.bf16 %v184, %v184
      %v1586 = vpack.c.bf16 %v185, %v185
      %v1587 = vpack.c.bf16 %v187, %v187
      %v1588 = vpack.c.bf16 %v188, %v188
      %v1589 = vpack.c.bf16 %v190, %v190
      %v1590 = vpack.c.bf16 %v191, %v191
      %v1591 = vpack.c.bf16 %v193, %v193
      %v1592 = vpack.c.bf16 %v194, %v194
      %v1593 = vpack.c.bf16 %v196, %v196
      %v1594 = vpack.c.bf16 %v197, %v197
      %v1595 = vpack.c.bf16 %v199, %v199
      %v1596 = vpack.c.bf16 %v200, %v200
      %v1597 = vpack.c.bf16 %v202, %v202
      %v1598 = vpack.c.bf16 %v203, %v203
      %v1599 = vpack.c.bf16 %v205, %v205
      %v1600 = vpack.c.bf16 %v206, %v206
      %v1601 = vpack.c.bf16 %v208, %v208
      %v1602 = vpack.c.bf16 %v209, %v209
      %v1603 = vpack.c.bf16 %v211, %v211
      %v1604 = vpack.c.bf16 %v212, %v212
      %v1605 = vpack.c.bf16 %v214, %v214
      %v1606 = vpack.c.bf16 %v215, %v215
      %v1607 = vpack.c.bf16 %v217, %v217
      %v1608 = vpack.c.bf16 %v218, %v218
      %v1609 = vpack.c.bf16 %v220, %v220
      %v1610 = vpack.c.bf16 %v221, %v221
      %v1611 = vpack.c.bf16 %v223, %v223
      %v1612 = vpack.c.bf16 %v224, %v224
      %v1613 = vpack.c.bf16 %v226, %v226
      %v1614 = vpack.c.bf16 %v227, %v227
      %v1615 = vpack.c.bf16 %v229, %v229
      %v1616 = vpack.c.bf16 %v230, %v230
      %v1617 = vpack.c.bf16 %v232, %v232
      %v1618 = vpack.c.bf16 %v233, %v233
      %v1619 = vpack.c.bf16 %v235, %v235
      %v1620 = vpack.c.bf16 %v236, %v236
      %v1621 = vpack.c.bf16 %v238, %v238
      %v1622 = vpack.c.bf16 %v239, %v239
      %v1623 = vpack.c.bf16 %v241, %v241
      %v1624 = vpack.c.bf16 %v242, %v242
      %v1625 = vpack.c.bf16 %v244, %v244
      %v1626 = vpack.c.bf16 %v245, %v245
      %v1627 = vpack.c.bf16 %v247, %v247
      %v1628 = vpack.c.bf16 %v248, %v248
      %v1629 = vpack.c.bf16 %v250, %v250
      %v1630 = vpack.c.bf16 %v251, %v251
      %v1631 = vpack.c.bf16 %v253, %v253
      %v1632 = vpack.c.bf16 %v254, %v254
      %v1633 = vpack.c.bf16 %v256, %v256
      %v1634 = vpack.c.bf16 %v257, %v257
      %v1635 = vpack.c.bf16 %v259, %v259
      %v1636 = vpack.c.bf16 %v260, %v260
      %v1637 = vpack.c.bf16 %v262, %v262
      %v1638 = vpack.c.bf16 %v263, %v263
      %v1639 = vpack.c.bf16 %v265, %v265
      %v1640 = vpack.c.bf16 %v266, %v266
      %v1641 = vpack.c.bf16 %v268, %v268
      %v1642 = vpack.c.bf16 %v269, %v269
      %v1643 = vpack.c.bf16 %v271, %v271
      %v1644 = vpack.c.bf16 %v272, %v272
      %v1645 = vpack.c.bf16 %v274, %v274
      %v1646 = vpack.c.bf16 %v275, %v275
      %v1647 = vpack.c.bf16 %v277, %v277
      %v1648 = vpack.c.bf16 %v278, %v278
      %s1649 = scalar_lea.vmem %s1, 16
      %v1650 = vld [vmem:[%s1649] sm:$0xf]
      %v1651 = vld [vmem:[%s1649 + $0x4] sm:$0xf]
      %v1652 = vld [vmem:[%s1649 + $0x8] sm:$0xf]
      %v1653 = vld [vmem:[%s1649 + $0xc] sm:$0xf]
      %v1718 = vunpack.c.l.b16 %v1577
      %v1719 = vunpack.c.l.b16 %v1578
      %v1720 = vunpack.c.l.b16 %v1579
      %v1721 = vunpack.c.l.b16 %v1580
      %v1722 = vunpack.c.l.b16 %v1581
      %v1723 = vunpack.c.l.b16 %v1582
      %v1724 = vunpack.c.l.b16 %v1583
      %v1725 = vunpack.c.l.b16 %v1584
      %v1726 = vunpack.c.l.b16 %v1585
      %v1727 = vunpack.c.l.b16 %v1586
      %v1728 = vunpack.c.l.b16 %v1587
      %v1729 = vunpack.c.l.b16 %v1588
      %v1730 = vunpack.c.l.b16 %v1589
      %v1731 = vunpack.c.l.b16 %v1590
      %v1732 = vunpack.c.l.b16 %v1591
      %v1733 = vunpack.c.l.b16 %v1592
      %v1734 = vunpack.c.l.b16 %v1593
      %v1735 = vunpack.c.l.b16 %v1594
      %v1736 = vunpack.c.l.b16 %v1595
      %v1737 = vunpack.c.l.b16 %v1596
      %v1738 = vunpack.c.l.b16 %v1597
      %v1739 = vunpack.c.l.b16 %v1598
      %v1740 = vunpack.c.l.b16 %v1599
      %v1741 = vunpack.c.l.b16 %v1600
      %v1742 = vunpack.c.l.b16 %v1601
      %v1743 = vunpack.c.l.b16 %v1602
      %v1744 = vunpack.c.l.b16 %v1603
      %v1745 = vunpack.c.l.b16 %v1604
      %v1746 = vunpack.c.l.b16 %v1605
      %v1747 = vunpack.c.l.b16 %v1606
      %v1748 = vunpack.c.l.b16 %v1607
      %v1749 = vunpack.c.l.b16 %v1608
      %v1750 = vunpack.c.l.b16 %v1613
      %v1751 = vunpack.c.l.b16 %v1614
      %v1752 = vunpack.c.l.b16 %v1615
      %v1753 = vunpack.c.l.b16 %v1616
      %v1754 = vunpack.c.l.b16 %v1617
      %v1755 = vunpack.c.l.b16 %v1618
      %v1756 = vunpack.c.l.b16 %v1619
      %v1757 = vunpack.c.l.b16 %v1620
      %v1758 = vunpack.c.l.b16 %v1621
      %v1759 = vunpack.c.l.b16 %v1622
      %v1760 = vunpack.c.l.b16 %v1623
      %v1761 = vunpack.c.l.b16 %v1624
      %v1762 = vunpack.c.l.b16 %v1625
      %v1763 = vunpack.c.l.b16 %v1626
      %v1764 = vunpack.c.l.b16 %v1627
      %v1765 = vunpack.c.l.b16 %v1628
      %v1766 = vunpack.c.l.b16 %v1629
      %v1767 = vunpack.c.l.b16 %v1630
      %v1768 = vunpack.c.l.b16 %v1631
      %v1769 = vunpack.c.l.b16 %v1632
      %v1770 = vunpack.c.l.b16 %v1633
      %v1771 = vunpack.c.l.b16 %v1634
      %v1772 = vunpack.c.l.b16 %v1635
      %v1773 = vunpack.c.l.b16 %v1636
      %v1774 = vunpack.c.l.b16 %v1637
      %v1775 = vunpack.c.l.b16 %v1638
      %v1776 = vunpack.c.l.b16 %v1639
      %v1777 = vunpack.c.l.b16 %v1640
      %v1778 = vunpack.c.l.b16 %v1641
      %v1779 = vunpack.c.l.b16 %v1642
      %v1780 = vunpack.c.l.b16 %v1643
      %v1781 = vunpack.c.l.b16 %v1644
      %v1782 = vpack.c.b16 %v1719, %v1718
      %v1783 = vpack.c.b16 %v1721, %v1720
      %v1784 = vpack.c.b16 %v1723, %v1722
      %v1785 = vpack.c.b16 %v1725, %v1724
      %v1786 = vpack.c.b16 %v1727, %v1726
      %v1787 = vpack.c.b16 %v1729, %v1728
      %v1788 = vpack.c.b16 %v1731, %v1730
      %v1789 = vpack.c.b16 %v1733, %v1732
      %v1790 = vpack.c.b16 %v1735, %v1734
      %v1791 = vpack.c.b16 %v1737, %v1736
      %v1792 = vpack.c.b16 %v1739, %v1738
      %v1793 = vpack.c.b16 %v1741, %v1740
      %v1794 = vpack.c.b16 %v1743, %v1742
      %v1795 = vpack.c.b16 %v1745, %v1744
      %v1796 = vpack.c.b16 %v1747, %v1746
      %v1797 = vpack.c.b16 %v1749, %v1748
      %v1798 = vpack.c.b16 %v1751, %v1750
      %v1799 = vpack.c.b16 %v1753, %v1752
      %v1800 = vpack.c.b16 %v1755, %v1754
      %v1801 = vpack.c.b16 %v1757, %v1756
      %v1802 = vpack.c.b16 %v1759, %v1758
      %v1803 = vpack.c.b16 %v1761, %v1760
      %v1804 = vpack.c.b16 %v1763, %v1762
      %v1805 = vpack.c.b16 %v1765, %v1764
      %v1806 = vpack.c.b16 %v1767, %v1766
      %v1807 = vpack.c.b16 %v1769, %v1768
      %v1808 = vpack.c.b16 %v1771, %v1770
      %v1809 = vpack.c.b16 %v1773, %v1772
      %v1810 = vpack.c.b16 %v1775, %v1774
      %v1811 = vpack.c.b16 %v1777, %v1776
      %v1812 = vpack.c.b16 %v1779, %v1778
      %v1813 = vpack.c.b16 %v1781, %v1780
      %v1818 = vunpack.c.l.b16 %v1650
      %v1819 = vunpack.c.l.b16 %v1651
      %v1820 = vunpack.c.l.b16 %v1652
      %v1821 = vunpack.c.l.b16 %v1653
      %v1822 = vpack.c.b16 %v1819, %v1818
      %v1823 = vpack.c.b16 %v1821, %v1820
      %v1827 = vsel %vm715, %v1782, 0
      %v1830 = vsel %vm715, %v1783, 0
      %v1833 = vsel %vm715, %v1784, 0
      %v1836 = vsel %vm715, %v1785, 0
      %v1839 = vsel %vm715, %v1786, 0
      %v1842 = vsel %vm715, %v1787, 0
      %v1845 = vsel %vm715, %v1788, 0
      %v1848 = vsel %vm715, %v1789, 0
      %v1851 = vsel %vm715, %v1790, 0
      %v1854 = vsel %vm715, %v1791, 0
      %v1857 = vsel %vm715, %v1792, 0
      %v1860 = vsel %vm715, %v1793, 0
      %v1863 = vsel %vm715, %v1794, 0
      %v1866 = vsel %vm715, %v1795, 0
      %v1869 = vsel %vm715, %v1796, 0
      %v1872 = vsel %vm715, %v1797, 0
      %v1875 = vsel %vm715, %v1798, 0
      %v1878 = vsel %vm715, %v1799, 0
      %v1881 = vsel %vm715, %v1800, 0
      %v1884 = vsel %vm715, %v1801, 0
      %v1887 = vsel %vm715, %v1802, 0
      %v1890 = vsel %vm715, %v1803, 0
      %v1893 = vsel %vm715, %v1804, 0
      %v1896 = vsel %vm715, %v1805, 0
      %v1899 = vsel %vm715, %v1806, 0
      %v1902 = vsel %vm715, %v1807, 0
      %v1905 = vsel %vm715, %v1808, 0
      %v1908 = vsel %vm715, %v1809, 0
      %v1911 = vsel %vm715, %v1810, 0
      %v1914 = vsel %vm715, %v1811, 0
      %v1917 = vsel %vm715, %v1812, 0
      %v1920 = vsel %vm715, %v1813, 0
      %1922 = vmatpush.bf16.msra.mxu0 0
      %1923 = vmatpush.bf16.msra.mxu0 0
      %1924 = vmatpush.bf16.msra.mxu0 0
      %1925 = vmatpush.bf16.msra.mxu0 0
      %1926 = vmatpush.bf16.msra.mxu0 0
      %1927 = vmatpush.bf16.msra.mxu0 0
      %1928 = vmatpush.bf16.msra.mxu0 %v1823
      %1929 = vmatpush.bf16.msra.mxu0 %v1822
      %1930 = vmatmul.bf16.gmra.mxu0 %v1827
      %v1931 = vpop.f32.mrf.mxu0
      %v1932 = vadd.f32 0.0, %v1931
      %v1933 = vpop.f32.mrf.mxu0
      %v1934 = vadd.f32 0.0, %v1933
      %1935 = vmatmul.bf16.gmra.mxu0 %v1830
      %v1936 = vpop.f32.mrf.mxu0
      %v1937 = vadd.f32 0.0, %v1936
      %v1938 = vpop.f32.mrf.mxu0
      %v1939 = vadd.f32 0.0, %v1938
      %1940 = vmatmul.bf16.gmra.mxu0 %v1833
      %v1941 = vpop.f32.mrf.mxu0
      %v1942 = vadd.f32 0.0, %v1941
      %v1943 = vpop.f32.mrf.mxu0
      %v1944 = vadd.f32 0.0, %v1943
      %1945 = vmatmul.bf16.gmra.mxu0 %v1836
      %v1946 = vpop.f32.mrf.mxu0
      %v1947 = vadd.f32 0.0, %v1946
      %v1948 = vpop.f32.mrf.mxu0
      %v1949 = vadd.f32 0.0, %v1948
      %1950 = vmatmul.bf16.gmra.mxu0 %v1839
      %v1951 = vpop.f32.mrf.mxu0
      %v1952 = vadd.f32 0.0, %v1951
      %v1953 = vpop.f32.mrf.mxu0
      %v1954 = vadd.f32 0.0, %v1953
      %1955 = vmatmul.bf16.gmra.mxu0 %v1842
      %v1956 = vpop.f32.mrf.mxu0
      %v1957 = vadd.f32 0.0, %v1956
      %v1958 = vpop.f32.mrf.mxu0
      %v1959 = vadd.f32 0.0, %v1958
      %1960 = vmatmul.bf16.gmra.mxu0 %v1845
      %v1961 = vpop.f32.mrf.mxu0
      %v1962 = vadd.f32 0.0, %v1961
      %v1963 = vpop.f32.mrf.mxu0
      %v1964 = vadd.f32 0.0, %v1963
      %1965 = vmatmul.bf16.gmra.mxu0 %v1848
      %v1966 = vpop.f32.mrf.mxu0
      %v1967 = vadd.f32 0.0, %v1966
      %v1968 = vpop.f32.mrf.mxu0
      %v1969 = vadd.f32 0.0, %v1968
      %1970 = vmatmul.bf16.gmra.mxu0 %v1851
      %v1971 = vpop.f32.mrf.mxu0
      %v1972 = vadd.f32 0.0, %v1971
      %v1973 = vpop.f32.mrf.mxu0
      %v1974 = vadd.f32 0.0, %v1973
      %1975 = vmatmul.bf16.gmra.mxu0 %v1854
      %v1976 = vpop.f32.mrf.mxu0
      %v1977 = vadd.f32 0.0, %v1976
      %v1978 = vpop.f32.mrf.mxu0
      %v1979 = vadd.f32 0.0, %v1978
      %1980 = vmatmul.bf16.gmra.mxu0 %v1857
      %v1981 = vpop.f32.mrf.mxu0
      %v1982 = vadd.f32 0.0, %v1981
      %v1983 = vpop.f32.mrf.mxu0
      %v1984 = vadd.f32 0.0, %v1983
      %1985 = vmatmul.bf16.gmra.mxu0 %v1860
      %v1986 = vpop.f32.mrf.mxu0
      %v1987 = vadd.f32 0.0, %v1986
      %v1988 = vpop.f32.mrf.mxu0
      %v1989 = vadd.f32 0.0, %v1988
      %1990 = vmatmul.bf16.gmra.mxu0 %v1863
      %v1991 = vpop.f32.mrf.mxu0
      %v1992 = vadd.f32 0.0, %v1991
      %v1993 = vpop.f32.mrf.mxu0
      %v1994 = vadd.f32 0.0, %v1993
      %1995 = vmatmul.bf16.gmra.mxu0 %v1866
      %v1996 = vpop.f32.mrf.mxu0
      %v1997 = vadd.f32 0.0, %v1996
      %v1998 = vpop.f32.mrf.mxu0
      %v1999 = vadd.f32 0.0, %v1998
      %2000 = vmatmul.bf16.gmra.mxu0 %v1869
      %v2001 = vpop.f32.mrf.mxu0
      %v2002 = vadd.f32 0.0, %v2001
      %v2003 = vpop.f32.mrf.mxu0
      %v2004 = vadd.f32 0.0, %v2003
      %2005 = vmatmul.bf16.gmra.mxu0 %v1872
      %v2006 = vpop.f32.mrf.mxu0
      %v2007 = vadd.f32 0.0, %v2006
      %v2008 = vpop.f32.mrf.mxu0
      %v2009 = vadd.f32 0.0, %v2008
      %2010 = vmatmul.bf16.gmra.mxu0 %v1875
      %v2011 = vpop.f32.mrf.mxu0
      %v2012 = vadd.f32 0.0, %v2011
      %v2013 = vpop.f32.mrf.mxu0
      %v2014 = vadd.f32 0.0, %v2013
      %2015 = vmatmul.bf16.gmra.mxu0 %v1878
      %v2016 = vpop.f32.mrf.mxu0
      %v2017 = vadd.f32 0.0, %v2016
      %v2018 = vpop.f32.mrf.mxu0
      %v2019 = vadd.f32 0.0, %v2018
      %2020 = vmatmul.bf16.gmra.mxu0 %v1881
      %v2021 = vpop.f32.mrf.mxu0
      %v2022 = vadd.f32 0.0, %v2021
      %v2023 = vpop.f32.mrf.mxu0
      %v2024 = vadd.f32 0.0, %v2023
      %2025 = vmatmul.bf16.gmra.mxu0 %v1884
      %v2026 = vpop.f32.mrf.mxu0
      %v2027 = vadd.f32 0.0, %v2026
      %v2028 = vpop.f32.mrf.mxu0
      %v2029 = vadd.f32 0.0, %v2028
      %2030 = vmatmul.bf16.gmra.mxu0 %v1887
      %v2031 = vpop.f32.mrf.mxu0
      %v2032 = vadd.f32 0.0, %v2031
      %v2033 = vpop.f32.mrf.mxu0
      %v2034 = vadd.f32 0.0, %v2033
      %2035 = vmatmul.bf16.gmra.mxu0 %v1890
      %v2036 = vpop.f32.mrf.mxu0
      %v2037 = vadd.f32 0.0, %v2036
      %v2038 = vpop.f32.mrf.mxu0
      %v2039 = vadd.f32 0.0, %v2038
      %2040 = vmatmul.bf16.gmra.mxu0 %v1893
      %v2041 = vpop.f32.mrf.mxu0
      %v2042 = vadd.f32 0.0, %v2041
      %v2043 = vpop.f32.mrf.mxu0
      %v2044 = vadd.f32 0.0, %v2043
      %2045 = vmatmul.bf16.gmra.mxu0 %v1896
      %v2046 = vpop.f32.mrf.mxu0
      %v2047 = vadd.f32 0.0, %v2046
      %v2048 = vpop.f32.mrf.mxu0
      %v2049 = vadd.f32 0.0, %v2048
      %2050 = vmatmul.bf16.gmra.mxu0 %v1899
      %v2051 = vpop.f32.mrf.mxu0
      %v2052 = vadd.f32 0.0, %v2051
      %v2053 = vpop.f32.mrf.mxu0
      %v2054 = vadd.f32 0.0, %v2053
      %2055 = vmatmul.bf16.gmra.mxu0 %v1902
      %v2056 = vpop.f32.mrf.mxu0
      %v2057 = vadd.f32 0.0, %v2056
      %v2058 = vpop.f32.mrf.mxu0
      %v2059 = vadd.f32 0.0, %v2058
      %2060 = vmatmul.bf16.gmra.mxu0 %v1905
      %v2061 = vpop.f32.mrf.mxu0
      %v2062 = vadd.f32 0.0, %v2061
      %v2063 = vpop.f32.mrf.mxu0
      %v2064 = vadd.f32 0.0, %v2063
      %2065 = vmatmul.bf16.gmra.mxu0 %v1908
      %v2066 = vpop.f32.mrf.mxu0
      %v2067 = vadd.f32 0.0, %v2066
      %v2068 = vpop.f32.mrf.mxu0
      %v2069 = vadd.f32 0.0, %v2068
      %2070 = vmatmul.bf16.gmra.mxu0 %v1911
      %v2071 = vpop.f32.mrf.mxu0
      %v2072 = vadd.f32 0.0, %v2071
      %v2073 = vpop.f32.mrf.mxu0
      %v2074 = vadd.f32 0.0, %v2073
      %2075 = vmatmul.bf16.gmra.mxu0 %v1914
      %v2076 = vpop.f32.mrf.mxu0
      %v2077 = vadd.f32 0.0, %v2076
      %v2078 = vpop.f32.mrf.mxu0
      %v2079 = vadd.f32 0.0, %v2078
      %2080 = vmatmul.bf16.gmra.mxu0 %v1917
      %v2081 = vpop.f32.mrf.mxu0
      %v2082 = vadd.f32 0.0, %v2081
      %v2083 = vpop.f32.mrf.mxu0
      %v2084 = vadd.f32 0.0, %v2083
      %2085 = vmatmul.bf16.gmra.mxu0 %v1920
      %v2086 = vpop.f32.mrf.mxu0
      %v2087 = vadd.f32 0.0, %v2086
      %v2088 = vpop.f32.mrf.mxu0
      %v2089 = vadd.f32 0.0, %v2088
      %2090 = vdwg.mxu0
      %v2091 = vadd.f32 %v1513, %v1932
      %v2092 = vadd.f32 %v1514, %v1934
      %v2093 = vadd.f32 %v1515, %v1937
      %v2094 = vadd.f32 %v1516, %v1939
      %v2095 = vadd.f32 %v1517, %v1942
      %v2096 = vadd.f32 %v1518, %v1944
      %v2097 = vadd.f32 %v1519, %v1947
      %v2098 = vadd.f32 %v1520, %v1949
      %v2099 = vadd.f32 %v1521, %v1952
      %v2100 = vadd.f32 %v1522, %v1954
      %v2101 = vadd.f32 %v1523, %v1957
      %v2102 = vadd.f32 %v1524, %v1959
      %v2103 = vadd.f32 %v1525, %v1962
      %v2104 = vadd.f32 %v1526, %v1964
      %v2105 = vadd.f32 %v1527, %v1967
      %v2106 = vadd.f32 %v1528, %v1969
      %v2107 = vadd.f32 %v1529, %v1972
      %v2108 = vadd.f32 %v1530, %v1974
      %v2109 = vadd.f32 %v1531, %v1977
      %v2110 = vadd.f32 %v1532, %v1979
      %v2111 = vadd.f32 %v1533, %v1982
      %v2112 = vadd.f32 %v1534, %v1984
      %v2113 = vadd.f32 %v1535, %v1987
      %v2114 = vadd.f32 %v1536, %v1989
      %v2115 = vadd.f32 %v1537, %v1992
      %v2116 = vadd.f32 %v1538, %v1994
      %v2117 = vadd.f32 %v1539, %v1997
      %v2118 = vadd.f32 %v1540, %v1999
      %v2119 = vadd.f32 %v1541, %v2002
      %v2120 = vadd.f32 %v1542, %v2004
      %v2121 = vadd.f32 %v1543, %v2007
      %v2122 = vadd.f32 %v1544, %v2009
      %v2123 = vadd.f32 %v1545, %v2012
      %v2124 = vadd.f32 %v1546, %v2014
      %v2125 = vadd.f32 %v1547, %v2017
      %v2126 = vadd.f32 %v1548, %v2019
      %v2127 = vadd.f32 %v1549, %v2022
      %v2128 = vadd.f32 %v1550, %v2024
      %v2129 = vadd.f32 %v1551, %v2027
      %v2130 = vadd.f32 %v1552, %v2029
      %v2131 = vadd.f32 %v1553, %v2032
      %v2132 = vadd.f32 %v1554, %v2034
      %v2133 = vadd.f32 %v1555, %v2037
      %v2134 = vadd.f32 %v1556, %v2039
      %v2135 = vadd.f32 %v1557, %v2042
      %v2136 = vadd.f32 %v1558, %v2044
      %v2137 = vadd.f32 %v1559, %v2047
      %v2138 = vadd.f32 %v1560, %v2049
      %v2139 = vadd.f32 %v1561, %v2052
      %v2140 = vadd.f32 %v1562, %v2054
      %v2141 = vadd.f32 %v1563, %v2057
      %v2142 = vadd.f32 %v1564, %v2059
      %v2143 = vadd.f32 %v1565, %v2062
      %v2144 = vadd.f32 %v1566, %v2064
      %v2145 = vadd.f32 %v1567, %v2067
      %v2146 = vadd.f32 %v1568, %v2069
      %v2147 = vadd.f32 %v1569, %v2072
      %v2148 = vadd.f32 %v1570, %v2074
      %v2149 = vadd.f32 %v1571, %v2077
      %v2150 = vadd.f32 %v1572, %v2079
      %v2151 = vadd.f32 %v1573, %v2082
      %v2152 = vadd.f32 %v1574, %v2084
      %v2153 = vadd.f32 %v1575, %v2087
      %v2154 = vadd.f32 %v1576, %v2089
      %s2155 = scalar_lea.vmem %s1, 64
      %v2156 = vld [vmem:[%s2155] sm:$0xf]
      %v2157 = vld [vmem:[%s2155 + $0x4] sm:$0xf]
      %v2158 = vld [vmem:[%s2155 + $0x8] sm:$0xf]
      %v2159 = vld [vmem:[%s2155 + $0xc] sm:$0xf]
      %v2164 = vunpack.c.l.b16 %v1609
      %v2165 = vunpack.c.l.b16 %v1610
      %v2166 = vunpack.c.l.b16 %v1645
      %v2167 = vunpack.c.l.b16 %v1646
      %v2168 = vpack.c.b16 %v2165, %v2164
      %v2169 = vpack.c.b16 %v2167, %v2166
      %v2174 = vunpack.c.l.b16 %v2156
      %v2175 = vunpack.c.l.b16 %v2157
      %v2176 = vunpack.c.l.b16 %v2158
      %v2177 = vunpack.c.l.b16 %v2159
      %v2178 = vpack.c.b16 %v2175, %v2174
      %v2179 = vpack.c.b16 %v2177, %v2176
      %v2183 = vsel %vm715, %v2168, 0
      %v2186 = vsel %vm715, %v2169, 0
      %2188 = vmatpush.bf16.msra.mxu0 0
      %2189 = vmatpush.bf16.msra.mxu0 0
      %2190 = vmatpush.bf16.msra.mxu0 0
      %2191 = vmatpush.bf16.msra.mxu0 0
      %2192 = vmatpush.bf16.msra.mxu0 0
      %2193 = vmatpush.bf16.msra.mxu0 0
      %2194 = vmatpush.bf16.msra.mxu0 %v2179
      %2195 = vmatpush.bf16.msra.mxu0 %v2178
      %2196 = vmatmul.bf16.gmra.mxu0 %v1830
      %v2197 = vpop.f32.mrf.mxu0
      %v2198 = vadd.f32 0.0, %v2197
      %v2199 = vpop.f32.mrf.mxu0
      %v2200 = vadd.f32 0.0, %v2199
      %2201 = vmatmul.bf16.gmra.mxu0 %v1833
      %v2202 = vpop.f32.mrf.mxu0
      %v2203 = vadd.f32 0.0, %v2202
      %v2204 = vpop.f32.mrf.mxu0
      %v2205 = vadd.f32 0.0, %v2204
      %2206 = vmatmul.bf16.gmra.mxu0 %v1836
      %v2207 = vpop.f32.mrf.mxu0
      %v2208 = vadd.f32 0.0, %v2207
      %v2209 = vpop.f32.mrf.mxu0
      %v2210 = vadd.f32 0.0, %v2209
      %2211 = vmatmul.bf16.gmra.mxu0 %v1839
      %v2212 = vpop.f32.mrf.mxu0
      %v2213 = vadd.f32 0.0, %v2212
      %v2214 = vpop.f32.mrf.mxu0
      %v2215 = vadd.f32 0.0, %v2214
      %2216 = vmatmul.bf16.gmra.mxu0 %v1842
      %v2217 = vpop.f32.mrf.mxu0
      %v2218 = vadd.f32 0.0, %v2217
      %v2219 = vpop.f32.mrf.mxu0
      %v2220 = vadd.f32 0.0, %v2219
      %2221 = vmatmul.bf16.gmra.mxu0 %v1845
      %v2222 = vpop.f32.mrf.mxu0
      %v2223 = vadd.f32 0.0, %v2222
      %v2224 = vpop.f32.mrf.mxu0
      %v2225 = vadd.f32 0.0, %v2224
      %2226 = vmatmul.bf16.gmra.mxu0 %v1848
      %v2227 = vpop.f32.mrf.mxu0
      %v2228 = vadd.f32 0.0, %v2227
      %v2229 = vpop.f32.mrf.mxu0
      %v2230 = vadd.f32 0.0, %v2229
      %2231 = vmatmul.bf16.gmra.mxu0 %v1851
      %v2232 = vpop.f32.mrf.mxu0
      %v2233 = vadd.f32 0.0, %v2232
      %v2234 = vpop.f32.mrf.mxu0
      %v2235 = vadd.f32 0.0, %v2234
      %2236 = vmatmul.bf16.gmra.mxu0 %v1854
      %v2237 = vpop.f32.mrf.mxu0
      %v2238 = vadd.f32 0.0, %v2237
      %v2239 = vpop.f32.mrf.mxu0
      %v2240 = vadd.f32 0.0, %v2239
      %2241 = vmatmul.bf16.gmra.mxu0 %v1857
      %v2242 = vpop.f32.mrf.mxu0
      %v2243 = vadd.f32 0.0, %v2242
      %v2244 = vpop.f32.mrf.mxu0
      %v2245 = vadd.f32 0.0, %v2244
      %2246 = vmatmul.bf16.gmra.mxu0 %v1860
      %v2247 = vpop.f32.mrf.mxu0
      %v2248 = vadd.f32 0.0, %v2247
      %v2249 = vpop.f32.mrf.mxu0
      %v2250 = vadd.f32 0.0, %v2249
      %2251 = vmatmul.bf16.gmra.mxu0 %v1863
      %v2252 = vpop.f32.mrf.mxu0
      %v2253 = vadd.f32 0.0, %v2252
      %v2254 = vpop.f32.mrf.mxu0
      %v2255 = vadd.f32 0.0, %v2254
      %2256 = vmatmul.bf16.gmra.mxu0 %v1866
      %v2257 = vpop.f32.mrf.mxu0
      %v2258 = vadd.f32 0.0, %v2257
      %v2259 = vpop.f32.mrf.mxu0
      %v2260 = vadd.f32 0.0, %v2259
      %2261 = vmatmul.bf16.gmra.mxu0 %v1869
      %v2262 = vpop.f32.mrf.mxu0
      %v2263 = vadd.f32 0.0, %v2262
      %v2264 = vpop.f32.mrf.mxu0
      %v2265 = vadd.f32 0.0, %v2264
      %2266 = vmatmul.bf16.gmra.mxu0 %v1872
      %v2267 = vpop.f32.mrf.mxu0
      %v2268 = vadd.f32 0.0, %v2267
      %v2269 = vpop.f32.mrf.mxu0
      %v2270 = vadd.f32 0.0, %v2269
      %2271 = vmatmul.bf16.gmra.mxu0 %v2183
      %v2272 = vpop.f32.mrf.mxu0
      %v2273 = vadd.f32 0.0, %v2272
      %v2274 = vpop.f32.mrf.mxu0
      %v2275 = vadd.f32 0.0, %v2274
      %2276 = vmatmul.bf16.gmra.mxu0 %v1878
      %v2277 = vpop.f32.mrf.mxu0
      %v2278 = vadd.f32 0.0, %v2277
      %v2279 = vpop.f32.mrf.mxu0
      %v2280 = vadd.f32 0.0, %v2279
      %2281 = vmatmul.bf16.gmra.mxu0 %v1881
      %v2282 = vpop.f32.mrf.mxu0
      %v2283 = vadd.f32 0.0, %v2282
      %v2284 = vpop.f32.mrf.mxu0
      %v2285 = vadd.f32 0.0, %v2284
      %2286 = vmatmul.bf16.gmra.mxu0 %v1884
      %v2287 = vpop.f32.mrf.mxu0
      %v2288 = vadd.f32 0.0, %v2287
      %v2289 = vpop.f32.mrf.mxu0
      %v2290 = vadd.f32 0.0, %v2289
      %2291 = vmatmul.bf16.gmra.mxu0 %v1887
      %v2292 = vpop.f32.mrf.mxu0
      %v2293 = vadd.f32 0.0, %v2292
      %v2294 = vpop.f32.mrf.mxu0
      %v2295 = vadd.f32 0.0, %v2294
      %2296 = vmatmul.bf16.gmra.mxu0 %v1890
      %v2297 = vpop.f32.mrf.mxu0
      %v2298 = vadd.f32 0.0, %v2297
      %v2299 = vpop.f32.mrf.mxu0
      %v2300 = vadd.f32 0.0, %v2299
      %2301 = vmatmul.bf16.gmra.mxu0 %v1893
      %v2302 = vpop.f32.mrf.mxu0
      %v2303 = vadd.f32 0.0, %v2302
      %v2304 = vpop.f32.mrf.mxu0
      %v2305 = vadd.f32 0.0, %v2304
      %2306 = vmatmul.bf16.gmra.mxu0 %v1896
      %v2307 = vpop.f32.mrf.mxu0
      %v2308 = vadd.f32 0.0, %v2307
      %v2309 = vpop.f32.mrf.mxu0
      %v2310 = vadd.f32 0.0, %v2309
      %2311 = vmatmul.bf16.gmra.mxu0 %v1899
      %v2312 = vpop.f32.mrf.mxu0
      %v2313 = vadd.f32 0.0, %v2312
      %v2314 = vpop.f32.mrf.mxu0
      %v2315 = vadd.f32 0.0, %v2314
      %2316 = vmatmul.bf16.gmra.mxu0 %v1902
      %v2317 = vpop.f32.mrf.mxu0
      %v2318 = vadd.f32 0.0, %v2317
      %v2319 = vpop.f32.mrf.mxu0
      %v2320 = vadd.f32 0.0, %v2319
      %2321 = vmatmul.bf16.gmra.mxu0 %v1905
      %v2322 = vpop.f32.mrf.mxu0
      %v2323 = vadd.f32 0.0, %v2322
      %v2324 = vpop.f32.mrf.mxu0
      %v2325 = vadd.f32 0.0, %v2324
      %2326 = vmatmul.bf16.gmra.mxu0 %v1908
      %v2327 = vpop.f32.mrf.mxu0
      %v2328 = vadd.f32 0.0, %v2327
      %v2329 = vpop.f32.mrf.mxu0
      %v2330 = vadd.f32 0.0, %v2329
      %2331 = vmatmul.bf16.gmra.mxu0 %v1911
      %v2332 = vpop.f32.mrf.mxu0
      %v2333 = vadd.f32 0.0, %v2332
      %v2334 = vpop.f32.mrf.mxu0
      %v2335 = vadd.f32 0.0, %v2334
      %2336 = vmatmul.bf16.gmra.mxu0 %v1914
      %v2337 = vpop.f32.mrf.mxu0
      %v2338 = vadd.f32 0.0, %v2337
      %v2339 = vpop.f32.mrf.mxu0
      %v2340 = vadd.f32 0.0, %v2339
      %2341 = vmatmul.bf16.gmra.mxu0 %v1917
      %v2342 = vpop.f32.mrf.mxu0
      %v2343 = vadd.f32 0.0, %v2342
      %v2344 = vpop.f32.mrf.mxu0
      %v2345 = vadd.f32 0.0, %v2344
      %2346 = vmatmul.bf16.gmra.mxu0 %v1920
      %v2347 = vpop.f32.mrf.mxu0
      %v2348 = vadd.f32 0.0, %v2347
      %v2349 = vpop.f32.mrf.mxu0
      %v2350 = vadd.f32 0.0, %v2349
      %2351 = vmatmul.bf16.gmra.mxu0 %v2186
      %v2352 = vpop.f32.mrf.mxu0
      %v2353 = vadd.f32 0.0, %v2352
      %v2354 = vpop.f32.mrf.mxu0
      %v2355 = vadd.f32 0.0, %v2354
      %2356 = vdwg.mxu0
      %v2357 = vadd.f32 %v2091, %v2198
      %v2358 = vadd.f32 %v2092, %v2200
      %v2359 = vadd.f32 %v2093, %v2203
      %v2360 = vadd.f32 %v2094, %v2205
      %v2361 = vadd.f32 %v2095, %v2208
      %v2362 = vadd.f32 %v2096, %v2210
      %v2363 = vadd.f32 %v2097, %v2213
      %v2364 = vadd.f32 %v2098, %v2215
      %v2365 = vadd.f32 %v2099, %v2218
      %v2366 = vadd.f32 %v2100, %v2220
      %v2367 = vadd.f32 %v2101, %v2223
      %v2368 = vadd.f32 %v2102, %v2225
      %v2369 = vadd.f32 %v2103, %v2228
      %v2370 = vadd.f32 %v2104, %v2230
      %v2371 = vadd.f32 %v2105, %v2233
      %v2372 = vadd.f32 %v2106, %v2235
      %v2373 = vadd.f32 %v2107, %v2238
      %v2374 = vadd.f32 %v2108, %v2240
      %v2375 = vadd.f32 %v2109, %v2243
      %v2376 = vadd.f32 %v2110, %v2245
      %v2377 = vadd.f32 %v2111, %v2248
      %v2378 = vadd.f32 %v2112, %v2250
      %v2379 = vadd.f32 %v2113, %v2253
      %v2380 = vadd.f32 %v2114, %v2255
      %v2381 = vadd.f32 %v2115, %v2258
      %v2382 = vadd.f32 %v2116, %v2260
      %v2383 = vadd.f32 %v2117, %v2263
      %v2384 = vadd.f32 %v2118, %v2265
      %v2385 = vadd.f32 %v2119, %v2268
      %v2386 = vadd.f32 %v2120, %v2270
      %v2387 = vadd.f32 %v2121, %v2273
      %v2388 = vadd.f32 %v2122, %v2275
      %v2389 = vadd.f32 %v2123, %v2278
      %v2390 = vadd.f32 %v2124, %v2280
      %v2391 = vadd.f32 %v2125, %v2283
      %v2392 = vadd.f32 %v2126, %v2285
      %v2393 = vadd.f32 %v2127, %v2288
      %v2394 = vadd.f32 %v2128, %v2290
      %v2395 = vadd.f32 %v2129, %v2293
      %v2396 = vadd.f32 %v2130, %v2295
      %v2397 = vadd.f32 %v2131, %v2298
      %v2398 = vadd.f32 %v2132, %v2300
      %v2399 = vadd.f32 %v2133, %v2303
      %v2400 = vadd.f32 %v2134, %v2305
      %v2401 = vadd.f32 %v2135, %v2308
      %v2402 = vadd.f32 %v2136, %v2310
      %v2403 = vadd.f32 %v2137, %v2313
      %v2404 = vadd.f32 %v2138, %v2315
      %v2405 = vadd.f32 %v2139, %v2318
      %v2406 = vadd.f32 %v2140, %v2320
      %v2407 = vadd.f32 %v2141, %v2323
      %v2408 = vadd.f32 %v2142, %v2325
      %v2409 = vadd.f32 %v2143, %v2328
      %v2410 = vadd.f32 %v2144, %v2330
      %v2411 = vadd.f32 %v2145, %v2333
      %v2412 = vadd.f32 %v2146, %v2335
      %v2413 = vadd.f32 %v2147, %v2338
      %v2414 = vadd.f32 %v2148, %v2340
      %v2415 = vadd.f32 %v2149, %v2343
      %v2416 = vadd.f32 %v2150, %v2345
      %v2417 = vadd.f32 %v2151, %v2348
      %v2418 = vadd.f32 %v2152, %v2350
      %v2419 = vadd.f32 %v2153, %v2353
      %v2420 = vadd.f32 %v2154, %v2355
      %s2421 = scalar_lea.vmem %s1, 112
      %v2422 = vld [vmem:[%s2421] sm:$0xf]
      %v2423 = vld [vmem:[%s2421 + $0x4] sm:$0xf]
      %v2424 = vld [vmem:[%s2421 + $0x8] sm:$0xf]
      %v2425 = vld [vmem:[%s2421 + $0xc] sm:$0xf]
      %v2430 = vunpack.c.l.b16 %v1611
      %v2431 = vunpack.c.l.b16 %v1612
      %v2432 = vunpack.c.l.b16 %v1647
      %v2433 = vunpack.c.l.b16 %v1648
      %v2434 = vpack.c.b16 %v2431, %v2430
      %v2435 = vpack.c.b16 %v2433, %v2432
      %v2440 = vunpack.c.l.b16 %v2422
      %v2441 = vunpack.c.l.b16 %v2423
      %v2442 = vunpack.c.l.b16 %v2424
      %v2443 = vunpack.c.l.b16 %v2425
      %v2444 = vpack.c.b16 %v2441, %v2440
      %v2445 = vpack.c.b16 %v2443, %v2442
      %v2449 = vsel %vm715, %v2434, 0
      %v2452 = vsel %vm715, %v2435, 0
      %2454 = vmatpush.bf16.msra.mxu0 0
      %2455 = vmatpush.bf16.msra.mxu0 0
      %2456 = vmatpush.bf16.msra.mxu0 0
      %2457 = vmatpush.bf16.msra.mxu0 0
      %2458 = vmatpush.bf16.msra.mxu0 0
      %2459 = vmatpush.bf16.msra.mxu0 0
      %2460 = vmatpush.bf16.msra.mxu0 %v2445
      %2461 = vmatpush.bf16.msra.mxu0 %v2444
      %2462 = vmatmul.bf16.gmra.mxu0 %v1833
      %v2463 = vpop.f32.mrf.mxu0
      %v2464 = vadd.f32 0.0, %v2463
      %v2465 = vpop.f32.mrf.mxu0
      %v2466 = vadd.f32 0.0, %v2465
      %2467 = vmatmul.bf16.gmra.mxu0 %v1836
      %v2468 = vpop.f32.mrf.mxu0
      %v2469 = vadd.f32 0.0, %v2468
      %v2470 = vpop.f32.mrf.mxu0
      %v2471 = vadd.f32 0.0, %v2470
      %2472 = vmatmul.bf16.gmra.mxu0 %v1839
      %v2473 = vpop.f32.mrf.mxu0
      %v2474 = vadd.f32 0.0, %v2473
      %v2475 = vpop.f32.mrf.mxu0
      %v2476 = vadd.f32 0.0, %v2475
      %2477 = vmatmul.bf16.gmra.mxu0 %v1842
      %v2478 = vpop.f32.mrf.mxu0
      %v2479 = vadd.f32 0.0, %v2478
      %v2480 = vpop.f32.mrf.mxu0
      %v2481 = vadd.f32 0.0, %v2480
      %2482 = vmatmul.bf16.gmra.mxu0 %v1845
      %v2483 = vpop.f32.mrf.mxu0
      %v2484 = vadd.f32 0.0, %v2483
      %v2485 = vpop.f32.mrf.mxu0
      %v2486 = vadd.f32 0.0, %v2485
      %2487 = vmatmul.bf16.gmra.mxu0 %v1848
      %v2488 = vpop.f32.mrf.mxu0
      %v2489 = vadd.f32 0.0, %v2488
      %v2490 = vpop.f32.mrf.mxu0
      %v2491 = vadd.f32 0.0, %v2490
      %2492 = vmatmul.bf16.gmra.mxu0 %v1851
      %v2493 = vpop.f32.mrf.mxu0
      %v2494 = vadd.f32 0.0, %v2493
      %v2495 = vpop.f32.mrf.mxu0
      %v2496 = vadd.f32 0.0, %v2495
      %2497 = vmatmul.bf16.gmra.mxu0 %v1854
      %v2498 = vpop.f32.mrf.mxu0
      %v2499 = vadd.f32 0.0, %v2498
      %v2500 = vpop.f32.mrf.mxu0
      %v2501 = vadd.f32 0.0, %v2500
      %2502 = vmatmul.bf16.gmra.mxu0 %v1857
      %v2503 = vpop.f32.mrf.mxu0
      %v2504 = vadd.f32 0.0, %v2503
      %v2505 = vpop.f32.mrf.mxu0
      %v2506 = vadd.f32 0.0, %v2505
      %2507 = vmatmul.bf16.gmra.mxu0 %v1860
      %v2508 = vpop.f32.mrf.mxu0
      %v2509 = vadd.f32 0.0, %v2508
      %v2510 = vpop.f32.mrf.mxu0
      %v2511 = vadd.f32 0.0, %v2510
      %2512 = vmatmul.bf16.gmra.mxu0 %v1863
      %v2513 = vpop.f32.mrf.mxu0
      %v2514 = vadd.f32 0.0, %v2513
      %v2515 = vpop.f32.mrf.mxu0
      %v2516 = vadd.f32 0.0, %v2515
      %2517 = vmatmul.bf16.gmra.mxu0 %v1866
      %v2518 = vpop.f32.mrf.mxu0
      %v2519 = vadd.f32 0.0, %v2518
      %v2520 = vpop.f32.mrf.mxu0
      %v2521 = vadd.f32 0.0, %v2520
      %2522 = vmatmul.bf16.gmra.mxu0 %v1869
      %v2523 = vpop.f32.mrf.mxu0
      %v2524 = vadd.f32 0.0, %v2523
      %v2525 = vpop.f32.mrf.mxu0
      %v2526 = vadd.f32 0.0, %v2525
      %2527 = vmatmul.bf16.gmra.mxu0 %v1872
      %v2528 = vpop.f32.mrf.mxu0
      %v2529 = vadd.f32 0.0, %v2528
      %v2530 = vpop.f32.mrf.mxu0
      %v2531 = vadd.f32 0.0, %v2530
      %2532 = vmatmul.bf16.gmra.mxu0 %v2183
      %v2533 = vpop.f32.mrf.mxu0
      %v2534 = vadd.f32 0.0, %v2533
      %v2535 = vpop.f32.mrf.mxu0
      %v2536 = vadd.f32 0.0, %v2535
      %2537 = vmatmul.bf16.gmra.mxu0 %v2449
      %v2538 = vpop.f32.mrf.mxu0
      %v2539 = vadd.f32 0.0, %v2538
      %v2540 = vpop.f32.mrf.mxu0
      %v2541 = vadd.f32 0.0, %v2540
      %2542 = vmatmul.bf16.gmra.mxu0 %v1881
      %v2543 = vpop.f32.mrf.mxu0
      %v2544 = vadd.f32 0.0, %v2543
      %v2545 = vpop.f32.mrf.mxu0
      %v2546 = vadd.f32 0.0, %v2545
      %2547 = vmatmul.bf16.gmra.mxu0 %v1884
      %v2548 = vpop.f32.mrf.mxu0
      %v2549 = vadd.f32 0.0, %v2548
      %v2550 = vpop.f32.mrf.mxu0
      %v2551 = vadd.f32 0.0, %v2550
      %2552 = vmatmul.bf16.gmra.mxu0 %v1887
      %v2553 = vpop.f32.mrf.mxu0
      %v2554 = vadd.f32 0.0, %v2553
      %v2555 = vpop.f32.mrf.mxu0
      %v2556 = vadd.f32 0.0, %v2555
      %2557 = vmatmul.bf16.gmra.mxu0 %v1890
      %v2558 = vpop.f32.mrf.mxu0
      %v2559 = vadd.f32 0.0, %v2558
      %v2560 = vpop.f32.mrf.mxu0
      %v2561 = vadd.f32 0.0, %v2560
      %2562 = vmatmul.bf16.gmra.mxu0 %v1893
      %v2563 = vpop.f32.mrf.mxu0
      %v2564 = vadd.f32 0.0, %v2563
      %v2565 = vpop.f32.mrf.mxu0
      %v2566 = vadd.f32 0.0, %v2565
      %2567 = vmatmul.bf16.gmra.mxu0 %v1896
      %v2568 = vpop.f32.mrf.mxu0
      %v2569 = vadd.f32 0.0, %v2568
      %v2570 = vpop.f32.mrf.mxu0
      %v2571 = vadd.f32 0.0, %v2570
      %2572 = vmatmul.bf16.gmra.mxu0 %v1899
      %v2573 = vpop.f32.mrf.mxu0
      %v2574 = vadd.f32 0.0, %v2573
      %v2575 = vpop.f32.mrf.mxu0
      %v2576 = vadd.f32 0.0, %v2575
      %2577 = vmatmul.bf16.gmra.mxu0 %v1902
      %v2578 = vpop.f32.mrf.mxu0
      %v2579 = vadd.f32 0.0, %v2578
      %v2580 = vpop.f32.mrf.mxu0
      %v2581 = vadd.f32 0.0, %v2580
      %2582 = vmatmul.bf16.gmra.mxu0 %v1905
      %v2583 = vpop.f32.mrf.mxu0
      %v2584 = vadd.f32 0.0, %v2583
      %v2585 = vpop.f32.mrf.mxu0
      %v2586 = vadd.f32 0.0, %v2585
      %2587 = vmatmul.bf16.gmra.mxu0 %v1908
      %v2588 = vpop.f32.mrf.mxu0
      %v2589 = vadd.f32 0.0, %v2588
      %v2590 = vpop.f32.mrf.mxu0
      %v2591 = vadd.f32 0.0, %v2590
      %2592 = vmatmul.bf16.gmra.mxu0 %v1911
      %v2593 = vpop.f32.mrf.mxu0
      %v2594 = vadd.f32 0.0, %v2593
      %v2595 = vpop.f32.mrf.mxu0
      %v2596 = vadd.f32 0.0, %v2595
      %2597 = vmatmul.bf16.gmra.mxu0 %v1914
      %v2598 = vpop.f32.mrf.mxu0
      %v2599 = vadd.f32 0.0, %v2598
      %v2600 = vpop.f32.mrf.mxu0
      %v2601 = vadd.f32 0.0, %v2600
      %2602 = vmatmul.bf16.gmra.mxu0 %v1917
      %v2603 = vpop.f32.mrf.mxu0
      %v2604 = vadd.f32 0.0, %v2603
      %v2605 = vpop.f32.mrf.mxu0
      %v2606 = vadd.f32 0.0, %v2605
      %2607 = vmatmul.bf16.gmra.mxu0 %v1920
      %v2608 = vpop.f32.mrf.mxu0
      %v2609 = vadd.f32 0.0, %v2608
      %v2610 = vpop.f32.mrf.mxu0
      %v2611 = vadd.f32 0.0, %v2610
      %2612 = vmatmul.bf16.gmra.mxu0 %v2186
      %v2613 = vpop.f32.mrf.mxu0
      %v2614 = vadd.f32 0.0, %v2613
      %v2615 = vpop.f32.mrf.mxu0
      %v2616 = vadd.f32 0.0, %v2615
      %2617 = vmatmul.bf16.gmra.mxu0 %v2452
      %v2618 = vpop.f32.mrf.mxu0
      %v2619 = vadd.f32 0.0, %v2618
      %v2620 = vpop.f32.mrf.mxu0
      %v2621 = vadd.f32 0.0, %v2620
      %2622 = vdwg.mxu0
      %v2623 = vadd.f32 %v2357, %v2464
      %v2624 = vadd.f32 %v2358, %v2466
      %v2625 = vadd.f32 %v2359, %v2469
      %v2626 = vadd.f32 %v2360, %v2471
      %v2627 = vadd.f32 %v2361, %v2474
      %v2628 = vadd.f32 %v2362, %v2476
      %v2629 = vadd.f32 %v2363, %v2479
      %v2630 = vadd.f32 %v2364, %v2481
      %v2631 = vadd.f32 %v2365, %v2484
      %v2632 = vadd.f32 %v2366, %v2486
      %v2633 = vadd.f32 %v2367, %v2489
      %v2634 = vadd.f32 %v2368, %v2491
      %v2635 = vadd.f32 %v2369, %v2494
      %v2636 = vadd.f32 %v2370, %v2496
      %v2637 = vadd.f32 %v2371, %v2499
      %v2638 = vadd.f32 %v2372, %v2501
      %v2639 = vadd.f32 %v2373, %v2504
      %v2640 = vadd.f32 %v2374, %v2506
      %v2641 = vadd.f32 %v2375, %v2509
      %v2642 = vadd.f32 %v2376, %v2511
      %v2643 = vadd.f32 %v2377, %v2514
      %v2644 = vadd.f32 %v2378, %v2516
      %v2645 = vadd.f32 %v2379, %v2519
      %v2646 = vadd.f32 %v2380, %v2521
      %v2647 = vadd.f32 %v2381, %v2524
      %v2648 = vadd.f32 %v2382, %v2526
      %v2649 = vadd.f32 %v2383, %v2529
      %v2650 = vadd.f32 %v2384, %v2531
      %v2651 = vadd.f32 %v2385, %v2534
      %v2652 = vadd.f32 %v2386, %v2536
      %v2653 = vadd.f32 %v2387, %v2539
      %v2654 = vadd.f32 %v2388, %v2541
      %v2655 = vadd.f32 %v2389, %v2544
      %v2656 = vadd.f32 %v2390, %v2546
      %v2657 = vadd.f32 %v2391, %v2549
      %v2658 = vadd.f32 %v2392, %v2551
      %v2659 = vadd.f32 %v2393, %v2554
      %v2660 = vadd.f32 %v2394, %v2556
      %v2661 = vadd.f32 %v2395, %v2559
      %v2662 = vadd.f32 %v2396, %v2561
      %v2663 = vadd.f32 %v2397, %v2564
      %v2664 = vadd.f32 %v2398, %v2566
      %v2665 = vadd.f32 %v2399, %v2569
      %v2666 = vadd.f32 %v2400, %v2571
      %v2667 = vadd.f32 %v2401, %v2574
      %v2668 = vadd.f32 %v2402, %v2576
      %v2669 = vadd.f32 %v2403, %v2579
      %v2670 = vadd.f32 %v2404, %v2581
      %v2671 = vadd.f32 %v2405, %v2584
      %v2672 = vadd.f32 %v2406, %v2586
      %v2673 = vadd.f32 %v2407, %v2589
      %v2674 = vadd.f32 %v2408, %v2591
      %v2675 = vadd.f32 %v2409, %v2594
      %v2676 = vadd.f32 %v2410, %v2596
      %v2677 = vadd.f32 %v2411, %v2599
      %v2678 = vadd.f32 %v2412, %v2601
      %v2679 = vadd.f32 %v2413, %v2604
      %v2680 = vadd.f32 %v2414, %v2606
      %v2681 = vadd.f32 %v2415, %v2609
      %v2682 = vadd.f32 %v2416, %v2611
      %v2683 = vadd.f32 %v2417, %v2614
      %v2684 = vadd.f32 %v2418, %v2616
      %v2685 = vadd.f32 %v2419, %v2619
      %v2686 = vadd.f32 %v2420, %v2621
      %v2687 = vrot.slane %v172, 1
      %v2688 = vrot.slane %v175, 1
      %v2689 = vrot.slane %v178, 1
      %v2690 = vrot.slane %v181, 1
      %v2691 = vrot.slane %v184, 1
      %v2692 = vrot.slane %v187, 1
      %v2693 = vrot.slane %v190, 1
      %v2694 = vrot.slane %v193, 1
      %v2695 = vrot.slane %v196, 1
      %v2696 = vrot.slane %v199, 1
      %v2697 = vrot.slane %v202, 1
      %v2698 = vrot.slane %v205, 1
      %v2699 = vrot.slane %v208, 1
      %v2700 = vrot.slane %v211, 1
      %v2701 = vrot.slane %v214, 1
      %v2702 = vrot.slane %v217, 1
      %v2703 = vrot.slane %v220, 1
      %v2704 = vrot.slane %v223, 1
      %v2705 = vrot.slane %v226, 1
      %v2706 = vrot.slane %v229, 1
      %v2707 = vrot.slane %v232, 1
      %v2708 = vrot.slane %v235, 1
      %v2709 = vrot.slane %v238, 1
      %v2710 = vrot.slane %v241, 1
      %v2711 = vrot.slane %v244, 1
      %v2712 = vrot.slane %v247, 1
      %v2713 = vrot.slane %v250, 1
      %v2714 = vrot.slane %v253, 1
      %v2715 = vrot.slane %v256, 1
      %v2716 = vrot.slane %v259, 1
      %v2717 = vrot.slane %v262, 1
      %v2718 = vrot.slane %v265, 1
      %v2719 = vrot.slane %v268, 1
      %v2720 = vrot.slane %v271, 1
      %v2721 = vrot.slane %v274, 1
      %v2722 = vrot.slane %v277, 1
      %v2723 = vrot.slane %v173, 1
      %v2724 = vrot.slane %v176, 1
      %v2725 = vrot.slane %v179, 1
      %v2726 = vrot.slane %v182, 1
      %v2727 = vrot.slane %v185, 1
      %v2728 = vrot.slane %v188, 1
      %v2729 = vrot.slane %v191, 1
      %v2730 = vrot.slane %v194, 1
      %v2731 = vrot.slane %v197, 1
      %v2732 = vrot.slane %v200, 1
      %v2733 = vrot.slane %v203, 1
      %v2734 = vrot.slane %v206, 1
      %v2735 = vrot.slane %v209, 1
      %v2736 = vrot.slane %v212, 1
      %v2737 = vrot.slane %v215, 1
      %v2738 = vrot.slane %v218, 1
      %v2739 = vrot.slane %v221, 1
      %v2740 = vrot.slane %v224, 1
      %v2741 = vrot.slane %v227, 1
      %v2742 = vrot.slane %v230, 1
      %v2743 = vrot.slane %v233, 1
      %v2744 = vrot.slane %v236, 1
      %v2745 = vrot.slane %v239, 1
      %v2746 = vrot.slane %v242, 1
      %v2747 = vrot.slane %v245, 1
      %v2748 = vrot.slane %v248, 1
      %v2749 = vrot.slane %v251, 1
      %v2750 = vrot.slane %v254, 1
      %v2751 = vrot.slane %v257, 1
      %v2752 = vrot.slane %v260, 1
      %v2753 = vrot.slane %v263, 1
      %v2754 = vrot.slane %v266, 1
      %v2755 = vrot.slane %v269, 1
      %v2756 = vrot.slane %v272, 1
      %v2757 = vrot.slane %v275, 1
      %v2758 = vrot.slane %v278, 1
      %v2759 = vrot.slane %v174, 1
      %v2760 = vrot.slane %v177, 1
      %v2761 = vrot.slane %v180, 1
      %v2762 = vrot.slane %v183, 1
      %v2763 = vrot.slane %v186, 1
      %v2764 = vrot.slane %v189, 1
      %v2765 = vrot.slane %v192, 1
      %v2766 = vrot.slane %v195, 1
      %v2767 = vrot.slane %v198, 1
      %v2768 = vrot.slane %v201, 1
      %v2769 = vrot.slane %v204, 1
      %v2770 = vrot.slane %v207, 1
      %v2771 = vrot.slane %v210, 1
      %v2772 = vrot.slane %v213, 1
      %v2773 = vrot.slane %v216, 1
      %v2774 = vrot.slane %v219, 1
      %v2775 = vrot.slane %v222, 1
      %v2776 = vrot.slane %v225, 1
      %v2777 = vrot.slane %v228, 1
      %v2778 = vrot.slane %v231, 1
      %v2779 = vrot.slane %v234, 1
      %v2780 = vrot.slane %v237, 1
      %v2781 = vrot.slane %v240, 1
      %v2782 = vrot.slane %v243, 1
      %v2783 = vrot.slane %v246, 1
      %v2784 = vrot.slane %v249, 1
      %v2785 = vrot.slane %v252, 1
      %v2786 = vrot.slane %v255, 1
      %v2787 = vrot.slane %v258, 1
      %v2788 = vrot.slane %v261, 1
      %v2789 = vrot.slane %v264, 1
      %v2790 = vrot.slane %v267, 1
      %v2791 = vrot.slane %v270, 1
      %v2792 = vrot.slane %v273, 1
      %v2793 = vrot.slane %v276, 1
      %v2794 = vrot.slane %v279, 1
      %vm2795 = vcmp.lt.s32.totalorder %v393, 7
      %v2796 = vsel %vm2795, %v2723, %v2759
      %v2797 = vsel %vm2795, %v2724, %v2760
      %v2798 = vsel %vm2795, %v2725, %v2761
      %v2799 = vsel %vm2795, %v2726, %v2762
      %v2800 = vsel %vm2795, %v2727, %v2763
      %v2801 = vsel %vm2795, %v2728, %v2764
      %v2802 = vsel %vm2795, %v2729, %v2765
      %v2803 = vsel %vm2795, %v2730, %v2766
      %v2804 = vsel %vm2795, %v2731, %v2767
      %v2805 = vsel %vm2795, %v2732, %v2768
      %v2806 = vsel %vm2795, %v2733, %v2769
      %v2807 = vsel %vm2795, %v2734, %v2770
      %v2808 = vsel %vm2795, %v2735, %v2771
      %v2809 = vsel %vm2795, %v2736, %v2772
      %v2810 = vsel %vm2795, %v2737, %v2773
      %v2811 = vsel %vm2795, %v2738, %v2774
      %v2812 = vsel %vm2795, %v2739, %v2775
      %v2813 = vsel %vm2795, %v2740, %v2776
      %v2814 = vsel %vm2795, %v2741, %v2777
      %v2815 = vsel %vm2795, %v2742, %v2778
      %v2816 = vsel %vm2795, %v2743, %v2779
      %v2817 = vsel %vm2795, %v2744, %v2780
      %v2818 = vsel %vm2795, %v2745, %v2781
      %v2819 = vsel %vm2795, %v2746, %v2782
      %v2820 = vsel %vm2795, %v2747, %v2783
      %v2821 = vsel %vm2795, %v2748, %v2784
      %v2822 = vsel %vm2795, %v2749, %v2785
      %v2823 = vsel %vm2795, %v2750, %v2786
      %v2824 = vsel %vm2795, %v2751, %v2787
      %v2825 = vsel %vm2795, %v2752, %v2788
      %v2826 = vsel %vm2795, %v2753, %v2789
      %v2827 = vsel %vm2795, %v2754, %v2790
      %v2828 = vsel %vm2795, %v2755, %v2791
      %v2829 = vsel %vm2795, %v2756, %v2792
      %v2830 = vsel %vm2795, %v2757, %v2793
      %v2831 = vsel %vm2795, %v2758, %v2794
      %v2832 = vsel %vm2795, %v2687, %v2723
      %v2833 = vsel %vm2795, %v2688, %v2724
      %v2834 = vsel %vm2795, %v2689, %v2725
      %v2835 = vsel %vm2795, %v2690, %v2726
      %v2836 = vsel %vm2795, %v2691, %v2727
      %v2837 = vsel %vm2795, %v2692, %v2728
      %v2838 = vsel %vm2795, %v2693, %v2729
      %v2839 = vsel %vm2795, %v2694, %v2730
      %v2840 = vsel %vm2795, %v2695, %v2731
      %v2841 = vsel %vm2795, %v2696, %v2732
      %v2842 = vsel %vm2795, %v2697, %v2733
      %v2843 = vsel %vm2795, %v2698, %v2734
      %v2844 = vsel %vm2795, %v2699, %v2735
      %v2845 = vsel %vm2795, %v2700, %v2736
      %v2846 = vsel %vm2795, %v2701, %v2737
      %v2847 = vsel %vm2795, %v2702, %v2738
      %v2848 = vsel %vm2795, %v2703, %v2739
      %v2849 = vsel %vm2795, %v2704, %v2740
      %v2850 = vsel %vm2795, %v2705, %v2741
      %v2851 = vsel %vm2795, %v2706, %v2742
      %v2852 = vsel %vm2795, %v2707, %v2743
      %v2853 = vsel %vm2795, %v2708, %v2744
      %v2854 = vsel %vm2795, %v2709, %v2745
      %v2855 = vsel %vm2795, %v2710, %v2746
      %v2856 = vsel %vm2795, %v2711, %v2747
      %v2857 = vsel %vm2795, %v2712, %v2748
      %v2858 = vsel %vm2795, %v2713, %v2749
      %v2859 = vsel %vm2795, %v2714, %v2750
      %v2860 = vsel %vm2795, %v2715, %v2751
      %v2861 = vsel %vm2795, %v2716, %v2752
      %v2862 = vsel %vm2795, %v2717, %v2753
      %v2863 = vsel %vm2795, %v2718, %v2754
      %v2864 = vsel %vm2795, %v2719, %v2755
      %v2865 = vsel %vm2795, %v2720, %v2756
      %v2866 = vsel %vm2795, %v2721, %v2757
      %v2867 = vsel %vm2795, %v2722, %v2758
      %v2868 = vpack.c.bf16 %v2832, %v2832
      %v2869 = vpack.c.bf16 %v2796, %v2796
      %v2870 = vpack.c.bf16 %v2833, %v2833
      %v2871 = vpack.c.bf16 %v2797, %v2797
      %v2872 = vpack.c.bf16 %v2834, %v2834
      %v2873 = vpack.c.bf16 %v2798, %v2798
      %v2874 = vpack.c.bf16 %v2835, %v2835
      %v2875 = vpack.c.bf16 %v2799, %v2799
      %v2876 = vpack.c.bf16 %v2836, %v2836
      %v2877 = vpack.c.bf16 %v2800, %v2800
      %v2878 = vpack.c.bf16 %v2837, %v2837
      %v2879 = vpack.c.bf16 %v2801, %v2801
      %v2880 = vpack.c.bf16 %v2838, %v2838
      %v2881 = vpack.c.bf16 %v2802, %v2802
      %v2882 = vpack.c.bf16 %v2839, %v2839
      %v2883 = vpack.c.bf16 %v2803, %v2803
      %v2884 = vpack.c.bf16 %v2840, %v2840
      %v2885 = vpack.c.bf16 %v2804, %v2804
      %v2886 = vpack.c.bf16 %v2841, %v2841
      %v2887 = vpack.c.bf16 %v2805, %v2805
      %v2888 = vpack.c.bf16 %v2842, %v2842
      %v2889 = vpack.c.bf16 %v2806, %v2806
      %v2890 = vpack.c.bf16 %v2843, %v2843
      %v2891 = vpack.c.bf16 %v2807, %v2807
      %v2892 = vpack.c.bf16 %v2844, %v2844
      %v2893 = vpack.c.bf16 %v2808, %v2808
      %v2894 = vpack.c.bf16 %v2845, %v2845
      %v2895 = vpack.c.bf16 %v2809, %v2809
      %v2896 = vpack.c.bf16 %v2846, %v2846
      %v2897 = vpack.c.bf16 %v2810, %v2810
      %v2898 = vpack.c.bf16 %v2847, %v2847
      %v2899 = vpack.c.bf16 %v2811, %v2811
      %v2900 = vpack.c.bf16 %v2848, %v2848
      %v2901 = vpack.c.bf16 %v2812, %v2812
      %v2902 = vpack.c.bf16 %v2849, %v2849
      %v2903 = vpack.c.bf16 %v2813, %v2813
      %v2904 = vpack.c.bf16 %v2850, %v2850
      %v2905 = vpack.c.bf16 %v2814, %v2814
      %v2906 = vpack.c.bf16 %v2851, %v2851
      %v2907 = vpack.c.bf16 %v2815, %v2815
      %v2908 = vpack.c.bf16 %v2852, %v2852
      %v2909 = vpack.c.bf16 %v2816, %v2816
      %v2910 = vpack.c.bf16 %v2853, %v2853
      %v2911 = vpack.c.bf16 %v2817, %v2817
      %v2912 = vpack.c.bf16 %v2854, %v2854
      %v2913 = vpack.c.bf16 %v2818, %v2818
      %v2914 = vpack.c.bf16 %v2855, %v2855
      %v2915 = vpack.c.bf16 %v2819, %v2819
      %v2916 = vpack.c.bf16 %v2856, %v2856
      %v2917 = vpack.c.bf16 %v2820, %v2820
      %v2918 = vpack.c.bf16 %v2857, %v2857
      %v2919 = vpack.c.bf16 %v2821, %v2821
      %v2920 = vpack.c.bf16 %v2858, %v2858
      %v2921 = vpack.c.bf16 %v2822, %v2822
      %v2922 = vpack.c.bf16 %v2859, %v2859
      %v2923 = vpack.c.bf16 %v2823, %v2823
      %v2924 = vpack.c.bf16 %v2860, %v2860
      %v2925 = vpack.c.bf16 %v2824, %v2824
      %v2926 = vpack.c.bf16 %v2861, %v2861
      %v2927 = vpack.c.bf16 %v2825, %v2825
      %v2928 = vpack.c.bf16 %v2862, %v2862
      %v2929 = vpack.c.bf16 %v2826, %v2826
      %v2930 = vpack.c.bf16 %v2863, %v2863
      %v2931 = vpack.c.bf16 %v2827, %v2827
      %v2932 = vpack.c.bf16 %v2864, %v2864
      %v2933 = vpack.c.bf16 %v2828, %v2828
      %v2934 = vpack.c.bf16 %v2865, %v2865
      %v2935 = vpack.c.bf16 %v2829, %v2829
      %v2936 = vpack.c.bf16 %v2866, %v2866
      %v2937 = vpack.c.bf16 %v2830, %v2830
      %v2938 = vpack.c.bf16 %v2867, %v2867
      %v2939 = vpack.c.bf16 %v2831, %v2831
      %s2940 = scalar_lea.vmem %s1, 32
      %v2941 = vld [vmem:[%s2940] sm:$0xf]
      %v2942 = vld [vmem:[%s2940 + $0x4] sm:$0xf]
      %v2943 = vld [vmem:[%s2940 + $0x8] sm:$0xf]
      %v2944 = vld [vmem:[%s2940 + $0xc] sm:$0xf]
      %v3009 = vunpack.c.l.b16 %v2868
      %v3010 = vunpack.c.l.b16 %v2869
      %v3011 = vunpack.c.l.b16 %v2870
      %v3012 = vunpack.c.l.b16 %v2871
      %v3013 = vunpack.c.l.b16 %v2872
      %v3014 = vunpack.c.l.b16 %v2873
      %v3015 = vunpack.c.l.b16 %v2874
      %v3016 = vunpack.c.l.b16 %v2875
      %v3017 = vunpack.c.l.b16 %v2876
      %v3018 = vunpack.c.l.b16 %v2877
      %v3019 = vunpack.c.l.b16 %v2878
      %v3020 = vunpack.c.l.b16 %v2879
      %v3021 = vunpack.c.l.b16 %v2880
      %v3022 = vunpack.c.l.b16 %v2881
      %v3023 = vunpack.c.l.b16 %v2882
      %v3024 = vunpack.c.l.b16 %v2883
      %v3025 = vunpack.c.l.b16 %v2884
      %v3026 = vunpack.c.l.b16 %v2885
      %v3027 = vunpack.c.l.b16 %v2886
      %v3028 = vunpack.c.l.b16 %v2887
      %v3029 = vunpack.c.l.b16 %v2888
      %v3030 = vunpack.c.l.b16 %v2889
      %v3031 = vunpack.c.l.b16 %v2890
      %v3032 = vunpack.c.l.b16 %v2891
      %v3033 = vunpack.c.l.b16 %v2892
      %v3034 = vunpack.c.l.b16 %v2893
      %v3035 = vunpack.c.l.b16 %v2894
      %v3036 = vunpack.c.l.b16 %v2895
      %v3037 = vunpack.c.l.b16 %v2896
      %v3038 = vunpack.c.l.b16 %v2897
      %v3039 = vunpack.c.l.b16 %v2898
      %v3040 = vunpack.c.l.b16 %v2899
      %v3041 = vunpack.c.l.b16 %v2904
      %v3042 = vunpack.c.l.b16 %v2905
      %v3043 = vunpack.c.l.b16 %v2906
      %v3044 = vunpack.c.l.b16 %v2907
      %v3045 = vunpack.c.l.b16 %v2908
      %v3046 = vunpack.c.l.b16 %v2909
      %v3047 = vunpack.c.l.b16 %v2910
      %v3048 = vunpack.c.l.b16 %v2911
      %v3049 = vunpack.c.l.b16 %v2912
      %v3050 = vunpack.c.l.b16 %v2913
      %v3051 = vunpack.c.l.b16 %v2914
      %v3052 = vunpack.c.l.b16 %v2915
      %v3053 = vunpack.c.l.b16 %v2916
      %v3054 = vunpack.c.l.b16 %v2917
      %v3055 = vunpack.c.l.b16 %v2918
      %v3056 = vunpack.c.l.b16 %v2919
      %v3057 = vunpack.c.l.b16 %v2920
      %v3058 = vunpack.c.l.b16 %v2921
      %v3059 = vunpack.c.l.b16 %v2922
      %v3060 = vunpack.c.l.b16 %v2923
      %v3061 = vunpack.c.l.b16 %v2924
      %v3062 = vunpack.c.l.b16 %v2925
      %v3063 = vunpack.c.l.b16 %v2926
      %v3064 = vunpack.c.l.b16 %v2927
      %v3065 = vunpack.c.l.b16 %v2928
      %v3066 = vunpack.c.l.b16 %v2929
      %v3067 = vunpack.c.l.b16 %v2930
      %v3068 = vunpack.c.l.b16 %v2931
      %v3069 = vunpack.c.l.b16 %v2932
      %v3070 = vunpack.c.l.b16 %v2933
      %v3071 = vunpack.c.l.b16 %v2934
      %v3072 = vunpack.c.l.b16 %v2935
      %v3073 = vpack.c.b16 %v3010, %v3009
      %v3074 = vpack.c.b16 %v3012, %v3011
      %v3075 = vpack.c.b16 %v3014, %v3013
      %v3076 = vpack.c.b16 %v3016, %v3015
      %v3077 = vpack.c.b16 %v3018, %v3017
      %v3078 = vpack.c.b16 %v3020, %v3019
      %v3079 = vpack.c.b16 %v3022, %v3021
      %v3080 = vpack.c.b16 %v3024, %v3023
      %v3081 = vpack.c.b16 %v3026, %v3025
      %v3082 = vpack.c.b16 %v3028, %v3027
      %v3083 = vpack.c.b16 %v3030, %v3029
      %v3084 = vpack.c.b16 %v3032, %v3031
      %v3085 = vpack.c.b16 %v3034, %v3033
      %v3086 = vpack.c.b16 %v3036, %v3035
      %v3087 = vpack.c.b16 %v3038, %v3037
      %v3088 = vpack.c.b16 %v3040, %v3039
      %v3089 = vpack.c.b16 %v3042, %v3041
      %v3090 = vpack.c.b16 %v3044, %v3043
      %v3091 = vpack.c.b16 %v3046, %v3045
      %v3092 = vpack.c.b16 %v3048, %v3047
      %v3093 = vpack.c.b16 %v3050, %v3049
      %v3094 = vpack.c.b16 %v3052, %v3051
      %v3095 = vpack.c.b16 %v3054, %v3053
      %v3096 = vpack.c.b16 %v3056, %v3055
      %v3097 = vpack.c.b16 %v3058, %v3057
      %v3098 = vpack.c.b16 %v3060, %v3059
      %v3099 = vpack.c.b16 %v3062, %v3061
      %v3100 = vpack.c.b16 %v3064, %v3063
      %v3101 = vpack.c.b16 %v3066, %v3065
      %v3102 = vpack.c.b16 %v3068, %v3067
      %v3103 = vpack.c.b16 %v3070, %v3069
      %v3104 = vpack.c.b16 %v3072, %v3071
      %v3109 = vunpack.c.l.b16 %v2941
      %v3110 = vunpack.c.l.b16 %v2942
      %v3111 = vunpack.c.l.b16 %v2943
      %v3112 = vunpack.c.l.b16 %v2944
      %v3113 = vpack.c.b16 %v3110, %v3109
      %v3114 = vpack.c.b16 %v3112, %v3111
      %v3118 = vsel %vm715, %v3073, 0
      %v3121 = vsel %vm715, %v3074, 0
      %v3124 = vsel %vm715, %v3075, 0
      %v3127 = vsel %vm715, %v3076, 0
      %v3130 = vsel %vm715, %v3077, 0
      %v3133 = vsel %vm715, %v3078, 0
      %v3136 = vsel %vm715, %v3079, 0
      %v3139 = vsel %vm715, %v3080, 0
      %v3142 = vsel %vm715, %v3081, 0
      %v3145 = vsel %vm715, %v3082, 0
      %v3148 = vsel %vm715, %v3083, 0
      %v3151 = vsel %vm715, %v3084, 0
      %v3154 = vsel %vm715, %v3085, 0
      %v3157 = vsel %vm715, %v3086, 0
      %v3160 = vsel %vm715, %v3087, 0
      %v3163 = vsel %vm715, %v3088, 0
      %v3166 = vsel %vm715, %v3089, 0
      %v3169 = vsel %vm715, %v3090, 0
      %v3172 = vsel %vm715, %v3091, 0
      %v3175 = vsel %vm715, %v3092, 0
      %v3178 = vsel %vm715, %v3093, 0
      %v3181 = vsel %vm715, %v3094, 0
      %v3184 = vsel %vm715, %v3095, 0
      %v3187 = vsel %vm715, %v3096, 0
      %v3190 = vsel %vm715, %v3097, 0
      %v3193 = vsel %vm715, %v3098, 0
      %v3196 = vsel %vm715, %v3099, 0
      %v3199 = vsel %vm715, %v3100, 0
      %v3202 = vsel %vm715, %v3101, 0
      %v3205 = vsel %vm715, %v3102, 0
      %v3208 = vsel %vm715, %v3103, 0
      %v3211 = vsel %vm715, %v3104, 0
      %3213 = vmatpush.bf16.msra.mxu0 0
      %3214 = vmatpush.bf16.msra.mxu0 0
      %3215 = vmatpush.bf16.msra.mxu0 0
      %3216 = vmatpush.bf16.msra.mxu0 0
      %3217 = vmatpush.bf16.msra.mxu0 0
      %3218 = vmatpush.bf16.msra.mxu0 0
      %3219 = vmatpush.bf16.msra.mxu0 %v3114
      %3220 = vmatpush.bf16.msra.mxu0 %v3113
      %3221 = vmatmul.bf16.gmra.mxu0 %v3118
      %v3222 = vpop.f32.mrf.mxu0
      %v3223 = vadd.f32 0.0, %v3222
      %v3224 = vpop.f32.mrf.mxu0
      %v3225 = vadd.f32 0.0, %v3224
      %3226 = vmatmul.bf16.gmra.mxu0 %v3121
      %v3227 = vpop.f32.mrf.mxu0
      %v3228 = vadd.f32 0.0, %v3227
      %v3229 = vpop.f32.mrf.mxu0
      %v3230 = vadd.f32 0.0, %v3229
      %3231 = vmatmul.bf16.gmra.mxu0 %v3124
      %v3232 = vpop.f32.mrf.mxu0
      %v3233 = vadd.f32 0.0, %v3232
      %v3234 = vpop.f32.mrf.mxu0
      %v3235 = vadd.f32 0.0, %v3234
      %3236 = vmatmul.bf16.gmra.mxu0 %v3127
      %v3237 = vpop.f32.mrf.mxu0
      %v3238 = vadd.f32 0.0, %v3237
      %v3239 = vpop.f32.mrf.mxu0
      %v3240 = vadd.f32 0.0, %v3239
      %3241 = vmatmul.bf16.gmra.mxu0 %v3130
      %v3242 = vpop.f32.mrf.mxu0
      %v3243 = vadd.f32 0.0, %v3242
      %v3244 = vpop.f32.mrf.mxu0
      %v3245 = vadd.f32 0.0, %v3244
      %3246 = vmatmul.bf16.gmra.mxu0 %v3133
      %v3247 = vpop.f32.mrf.mxu0
      %v3248 = vadd.f32 0.0, %v3247
      %v3249 = vpop.f32.mrf.mxu0
      %v3250 = vadd.f32 0.0, %v3249
      %3251 = vmatmul.bf16.gmra.mxu0 %v3136
      %v3252 = vpop.f32.mrf.mxu0
      %v3253 = vadd.f32 0.0, %v3252
      %v3254 = vpop.f32.mrf.mxu0
      %v3255 = vadd.f32 0.0, %v3254
      %3256 = vmatmul.bf16.gmra.mxu0 %v3139
      %v3257 = vpop.f32.mrf.mxu0
      %v3258 = vadd.f32 0.0, %v3257
      %v3259 = vpop.f32.mrf.mxu0
      %v3260 = vadd.f32 0.0, %v3259
      %3261 = vmatmul.bf16.gmra.mxu0 %v3142
      %v3262 = vpop.f32.mrf.mxu0
      %v3263 = vadd.f32 0.0, %v3262
      %v3264 = vpop.f32.mrf.mxu0
      %v3265 = vadd.f32 0.0, %v3264
      %3266 = vmatmul.bf16.gmra.mxu0 %v3145
      %v3267 = vpop.f32.mrf.mxu0
      %v3268 = vadd.f32 0.0, %v3267
      %v3269 = vpop.f32.mrf.mxu0
      %v3270 = vadd.f32 0.0, %v3269
      %3271 = vmatmul.bf16.gmra.mxu0 %v3148
      %v3272 = vpop.f32.mrf.mxu0
      %v3273 = vadd.f32 0.0, %v3272
      %v3274 = vpop.f32.mrf.mxu0
      %v3275 = vadd.f32 0.0, %v3274
      %3276 = vmatmul.bf16.gmra.mxu0 %v3151
      %v3277 = vpop.f32.mrf.mxu0
      %v3278 = vadd.f32 0.0, %v3277
      %v3279 = vpop.f32.mrf.mxu0
      %v3280 = vadd.f32 0.0, %v3279
      %3281 = vmatmul.bf16.gmra.mxu0 %v3154
      %v3282 = vpop.f32.mrf.mxu0
      %v3283 = vadd.f32 0.0, %v3282
      %v3284 = vpop.f32.mrf.mxu0
      %v3285 = vadd.f32 0.0, %v3284
      %3286 = vmatmul.bf16.gmra.mxu0 %v3157
      %v3287 = vpop.f32.mrf.mxu0
      %v3288 = vadd.f32 0.0, %v3287
      %v3289 = vpop.f32.mrf.mxu0
      %v3290 = vadd.f32 0.0, %v3289
      %3291 = vmatmul.bf16.gmra.mxu0 %v3160
      %v3292 = vpop.f32.mrf.mxu0
      %v3293 = vadd.f32 0.0, %v3292
      %v3294 = vpop.f32.mrf.mxu0
      %v3295 = vadd.f32 0.0, %v3294
      %3296 = vmatmul.bf16.gmra.mxu0 %v3163
      %v3297 = vpop.f32.mrf.mxu0
      %v3298 = vadd.f32 0.0, %v3297
      %v3299 = vpop.f32.mrf.mxu0
      %v3300 = vadd.f32 0.0, %v3299
      %3301 = vmatmul.bf16.gmra.mxu0 %v3166
      %v3302 = vpop.f32.mrf.mxu0
      %v3303 = vadd.f32 0.0, %v3302
      %v3304 = vpop.f32.mrf.mxu0
      %v3305 = vadd.f32 0.0, %v3304
      %3306 = vmatmul.bf16.gmra.mxu0 %v3169
      %v3307 = vpop.f32.mrf.mxu0
      %v3308 = vadd.f32 0.0, %v3307
      %v3309 = vpop.f32.mrf.mxu0
      %v3310 = vadd.f32 0.0, %v3309
      %3311 = vmatmul.bf16.gmra.mxu0 %v3172
      %v3312 = vpop.f32.mrf.mxu0
      %v3313 = vadd.f32 0.0, %v3312
      %v3314 = vpop.f32.mrf.mxu0
      %v3315 = vadd.f32 0.0, %v3314
      %3316 = vmatmul.bf16.gmra.mxu0 %v3175
      %v3317 = vpop.f32.mrf.mxu0
      %v3318 = vadd.f32 0.0, %v3317
      %v3319 = vpop.f32.mrf.mxu0
      %v3320 = vadd.f32 0.0, %v3319
      %3321 = vmatmul.bf16.gmra.mxu0 %v3178
      %v3322 = vpop.f32.mrf.mxu0
      %v3323 = vadd.f32 0.0, %v3322
      %v3324 = vpop.f32.mrf.mxu0
      %v3325 = vadd.f32 0.0, %v3324
      %3326 = vmatmul.bf16.gmra.mxu0 %v3181
      %v3327 = vpop.f32.mrf.mxu0
      %v3328 = vadd.f32 0.0, %v3327
      %v3329 = vpop.f32.mrf.mxu0
      %v3330 = vadd.f32 0.0, %v3329
      %3331 = vmatmul.bf16.gmra.mxu0 %v3184
      %v3332 = vpop.f32.mrf.mxu0
      %v3333 = vadd.f32 0.0, %v3332
      %v3334 = vpop.f32.mrf.mxu0
      %v3335 = vadd.f32 0.0, %v3334
      %3336 = vmatmul.bf16.gmra.mxu0 %v3187
      %v3337 = vpop.f32.mrf.mxu0
      %v3338 = vadd.f32 0.0, %v3337
      %v3339 = vpop.f32.mrf.mxu0
      %v3340 = vadd.f32 0.0, %v3339
      %3341 = vmatmul.bf16.gmra.mxu0 %v3190
      %v3342 = vpop.f32.mrf.mxu0
      %v3343 = vadd.f32 0.0, %v3342
      %v3344 = vpop.f32.mrf.mxu0
      %v3345 = vadd.f32 0.0, %v3344
      %3346 = vmatmul.bf16.gmra.mxu0 %v3193
      %v3347 = vpop.f32.mrf.mxu0
      %v3348 = vadd.f32 0.0, %v3347
      %v3349 = vpop.f32.mrf.mxu0
      %v3350 = vadd.f32 0.0, %v3349
      %3351 = vmatmul.bf16.gmra.mxu0 %v3196
      %v3352 = vpop.f32.mrf.mxu0
      %v3353 = vadd.f32 0.0, %v3352
      %v3354 = vpop.f32.mrf.mxu0
      %v3355 = vadd.f32 0.0, %v3354
      %3356 = vmatmul.bf16.gmra.mxu0 %v3199
      %v3357 = vpop.f32.mrf.mxu0
      %v3358 = vadd.f32 0.0, %v3357
      %v3359 = vpop.f32.mrf.mxu0
      %v3360 = vadd.f32 0.0, %v3359
      %3361 = vmatmul.bf16.gmra.mxu0 %v3202
      %v3362 = vpop.f32.mrf.mxu0
      %v3363 = vadd.f32 0.0, %v3362
      %v3364 = vpop.f32.mrf.mxu0
      %v3365 = vadd.f32 0.0, %v3364
      %3366 = vmatmul.bf16.gmra.mxu0 %v3205
      %v3367 = vpop.f32.mrf.mxu0
      %v3368 = vadd.f32 0.0, %v3367
      %v3369 = vpop.f32.mrf.mxu0
      %v3370 = vadd.f32 0.0, %v3369
      %3371 = vmatmul.bf16.gmra.mxu0 %v3208
      %v3372 = vpop.f32.mrf.mxu0
      %v3373 = vadd.f32 0.0, %v3372
      %v3374 = vpop.f32.mrf.mxu0
      %v3375 = vadd.f32 0.0, %v3374
      %3376 = vmatmul.bf16.gmra.mxu0 %v3211
      %v3377 = vpop.f32.mrf.mxu0
      %v3378 = vadd.f32 0.0, %v3377
      %v3379 = vpop.f32.mrf.mxu0
      %v3380 = vadd.f32 0.0, %v3379
      %3381 = vdwg.mxu0
      %v3382 = vadd.f32 %v2623, %v3223
      %v3383 = vadd.f32 %v2624, %v3225
      %v3384 = vadd.f32 %v2625, %v3228
      %v3385 = vadd.f32 %v2626, %v3230
      %v3386 = vadd.f32 %v2627, %v3233
      %v3387 = vadd.f32 %v2628, %v3235
      %v3388 = vadd.f32 %v2629, %v3238
      %v3389 = vadd.f32 %v2630, %v3240
      %v3390 = vadd.f32 %v2631, %v3243
      %v3391 = vadd.f32 %v2632, %v3245
      %v3392 = vadd.f32 %v2633, %v3248
      %v3393 = vadd.f32 %v2634, %v3250
      %v3394 = vadd.f32 %v2635, %v3253
      %v3395 = vadd.f32 %v2636, %v3255
      %v3396 = vadd.f32 %v2637, %v3258
      %v3397 = vadd.f32 %v2638, %v3260
      %v3398 = vadd.f32 %v2639, %v3263
      %v3399 = vadd.f32 %v2640, %v3265
      %v3400 = vadd.f32 %v2641, %v3268
      %v3401 = vadd.f32 %v2642, %v3270
      %v3402 = vadd.f32 %v2643, %v3273
      %v3403 = vadd.f32 %v2644, %v3275
      %v3404 = vadd.f32 %v2645, %v3278
      %v3405 = vadd.f32 %v2646, %v3280
      %v3406 = vadd.f32 %v2647, %v3283
      %v3407 = vadd.f32 %v2648, %v3285
      %v3408 = vadd.f32 %v2649, %v3288
      %v3409 = vadd.f32 %v2650, %v3290
      %v3410 = vadd.f32 %v2651, %v3293
      %v3411 = vadd.f32 %v2652, %v3295
      %v3412 = vadd.f32 %v2653, %v3298
      %v3413 = vadd.f32 %v2654, %v3300
      %v3414 = vadd.f32 %v2655, %v3303
      %v3415 = vadd.f32 %v2656, %v3305
      %v3416 = vadd.f32 %v2657, %v3308
      %v3417 = vadd.f32 %v2658, %v3310
      %v3418 = vadd.f32 %v2659, %v3313
      %v3419 = vadd.f32 %v2660, %v3315
      %v3420 = vadd.f32 %v2661, %v3318
      %v3421 = vadd.f32 %v2662, %v3320
      %v3422 = vadd.f32 %v2663, %v3323
      %v3423 = vadd.f32 %v2664, %v3325
      %v3424 = vadd.f32 %v2665, %v3328
      %v3425 = vadd.f32 %v2666, %v3330
      %v3426 = vadd.f32 %v2667, %v3333
      %v3427 = vadd.f32 %v2668, %v3335
      %v3428 = vadd.f32 %v2669, %v3338
      %v3429 = vadd.f32 %v2670, %v3340
      %v3430 = vadd.f32 %v2671, %v3343
      %v3431 = vadd.f32 %v2672, %v3345
      %v3432 = vadd.f32 %v2673, %v3348
      %v3433 = vadd.f32 %v2674, %v3350
      %v3434 = vadd.f32 %v2675, %v3353
      %v3435 = vadd.f32 %v2676, %v3355
      %v3436 = vadd.f32 %v2677, %v3358
      %v3437 = vadd.f32 %v2678, %v3360
      %v3438 = vadd.f32 %v2679, %v3363
      %v3439 = vadd.f32 %v2680, %v3365
      %v3440 = vadd.f32 %v2681, %v3368
      %v3441 = vadd.f32 %v2682, %v3370
      %v3442 = vadd.f32 %v2683, %v3373
      %v3443 = vadd.f32 %v2684, %v3375
      %v3444 = vadd.f32 %v2685, %v3378
      %v3445 = vadd.f32 %v2686, %v3380
      %s3446 = scalar_lea.vmem %s1, 80
      %v3447 = vld [vmem:[%s3446] sm:$0xf]
      %v3448 = vld [vmem:[%s3446 + $0x4] sm:$0xf]
      %v3449 = vld [vmem:[%s3446 + $0x8] sm:$0xf]
      %v3450 = vld [vmem:[%s3446 + $0xc] sm:$0xf]
      %v3455 = vunpack.c.l.b16 %v2900
      %v3456 = vunpack.c.l.b16 %v2901
      %v3457 = vunpack.c.l.b16 %v2936
      %v3458 = vunpack.c.l.b16 %v2937
      %v3459 = vpack.c.b16 %v3456, %v3455
      %v3460 = vpack.c.b16 %v3458, %v3457
      %v3465 = vunpack.c.l.b16 %v3447
      %v3466 = vunpack.c.l.b16 %v3448
      %v3467 = vunpack.c.l.b16 %v3449
      %v3468 = vunpack.c.l.b16 %v3450
      %v3469 = vpack.c.b16 %v3466, %v3465
      %v3470 = vpack.c.b16 %v3468, %v3467
      %v3474 = vsel %vm715, %v3459, 0
      %v3477 = vsel %vm715, %v3460, 0
      %3479 = vmatpush.bf16.msra.mxu0 0
      %3480 = vmatpush.bf16.msra.mxu0 0
      %3481 = vmatpush.bf16.msra.mxu0 0
      %3482 = vmatpush.bf16.msra.mxu0 0
      %3483 = vmatpush.bf16.msra.mxu0 0
      %3484 = vmatpush.bf16.msra.mxu0 0
      %3485 = vmatpush.bf16.msra.mxu0 %v3470
      %3486 = vmatpush.bf16.msra.mxu0 %v3469
      %3487 = vmatmul.bf16.gmra.mxu0 %v3121
      %v3488 = vpop.f32.mrf.mxu0
      %v3489 = vadd.f32 0.0, %v3488
      %v3490 = vpop.f32.mrf.mxu0
      %v3491 = vadd.f32 0.0, %v3490
      %3492 = vmatmul.bf16.gmra.mxu0 %v3124
      %v3493 = vpop.f32.mrf.mxu0
      %v3494 = vadd.f32 0.0, %v3493
      %v3495 = vpop.f32.mrf.mxu0
      %v3496 = vadd.f32 0.0, %v3495
      %3497 = vmatmul.bf16.gmra.mxu0 %v3127
      %v3498 = vpop.f32.mrf.mxu0
      %v3499 = vadd.f32 0.0, %v3498
      %v3500 = vpop.f32.mrf.mxu0
      %v3501 = vadd.f32 0.0, %v3500
      %3502 = vmatmul.bf16.gmra.mxu0 %v3130
      %v3503 = vpop.f32.mrf.mxu0
      %v3504 = vadd.f32 0.0, %v3503
      %v3505 = vpop.f32.mrf.mxu0
      %v3506 = vadd.f32 0.0, %v3505
      %3507 = vmatmul.bf16.gmra.mxu0 %v3133
      %v3508 = vpop.f32.mrf.mxu0
      %v3509 = vadd.f32 0.0, %v3508
      %v3510 = vpop.f32.mrf.mxu0
      %v3511 = vadd.f32 0.0, %v3510
      %3512 = vmatmul.bf16.gmra.mxu0 %v3136
      %v3513 = vpop.f32.mrf.mxu0
      %v3514 = vadd.f32 0.0, %v3513
      %v3515 = vpop.f32.mrf.mxu0
      %v3516 = vadd.f32 0.0, %v3515
      %3517 = vmatmul.bf16.gmra.mxu0 %v3139
      %v3518 = vpop.f32.mrf.mxu0
      %v3519 = vadd.f32 0.0, %v3518
      %v3520 = vpop.f32.mrf.mxu0
      %v3521 = vadd.f32 0.0, %v3520
      %3522 = vmatmul.bf16.gmra.mxu0 %v3142
      %v3523 = vpop.f32.mrf.mxu0
      %v3524 = vadd.f32 0.0, %v3523
      %v3525 = vpop.f32.mrf.mxu0
      %v3526 = vadd.f32 0.0, %v3525
      %3527 = vmatmul.bf16.gmra.mxu0 %v3145
      %v3528 = vpop.f32.mrf.mxu0
      %v3529 = vadd.f32 0.0, %v3528
      %v3530 = vpop.f32.mrf.mxu0
      %v3531 = vadd.f32 0.0, %v3530
      %3532 = vmatmul.bf16.gmra.mxu0 %v3148
      %v3533 = vpop.f32.mrf.mxu0
      %v3534 = vadd.f32 0.0, %v3533
      %v3535 = vpop.f32.mrf.mxu0
      %v3536 = vadd.f32 0.0, %v3535
      %3537 = vmatmul.bf16.gmra.mxu0 %v3151
      %v3538 = vpop.f32.mrf.mxu0
      %v3539 = vadd.f32 0.0, %v3538
      %v3540 = vpop.f32.mrf.mxu0
      %v3541 = vadd.f32 0.0, %v3540
      %3542 = vmatmul.bf16.gmra.mxu0 %v3154
      %v3543 = vpop.f32.mrf.mxu0
      %v3544 = vadd.f32 0.0, %v3543
      %v3545 = vpop.f32.mrf.mxu0
      %v3546 = vadd.f32 0.0, %v3545
      %3547 = vmatmul.bf16.gmra.mxu0 %v3157
      %v3548 = vpop.f32.mrf.mxu0
      %v3549 = vadd.f32 0.0, %v3548
      %v3550 = vpop.f32.mrf.mxu0
      %v3551 = vadd.f32 0.0, %v3550
      %3552 = vmatmul.bf16.gmra.mxu0 %v3160
      %v3553 = vpop.f32.mrf.mxu0
      %v3554 = vadd.f32 0.0, %v3553
      %v3555 = vpop.f32.mrf.mxu0
      %v3556 = vadd.f32 0.0, %v3555
      %3557 = vmatmul.bf16.gmra.mxu0 %v3163
      %v3558 = vpop.f32.mrf.mxu0
      %v3559 = vadd.f32 0.0, %v3558
      %v3560 = vpop.f32.mrf.mxu0
      %v3561 = vadd.f32 0.0, %v3560
      %3562 = vmatmul.bf16.gmra.mxu0 %v3474
      %v3563 = vpop.f32.mrf.mxu0
      %v3564 = vadd.f32 0.0, %v3563
      %v3565 = vpop.f32.mrf.mxu0
      %v3566 = vadd.f32 0.0, %v3565
      %3567 = vmatmul.bf16.gmra.mxu0 %v3169
      %v3568 = vpop.f32.mrf.mxu0
      %v3569 = vadd.f32 0.0, %v3568
      %v3570 = vpop.f32.mrf.mxu0
      %v3571 = vadd.f32 0.0, %v3570
      %3572 = vmatmul.bf16.gmra.mxu0 %v3172
      %v3573 = vpop.f32.mrf.mxu0
      %v3574 = vadd.f32 0.0, %v3573
      %v3575 = vpop.f32.mrf.mxu0
      %v3576 = vadd.f32 0.0, %v3575
      %3577 = vmatmul.bf16.gmra.mxu0 %v3175
      %v3578 = vpop.f32.mrf.mxu0
      %v3579 = vadd.f32 0.0, %v3578
      %v3580 = vpop.f32.mrf.mxu0
      %v3581 = vadd.f32 0.0, %v3580
      %3582 = vmatmul.bf16.gmra.mxu0 %v3178
      %v3583 = vpop.f32.mrf.mxu0
      %v3584 = vadd.f32 0.0, %v3583
      %v3585 = vpop.f32.mrf.mxu0
      %v3586 = vadd.f32 0.0, %v3585
      %3587 = vmatmul.bf16.gmra.mxu0 %v3181
      %v3588 = vpop.f32.mrf.mxu0
      %v3589 = vadd.f32 0.0, %v3588
      %v3590 = vpop.f32.mrf.mxu0
      %v3591 = vadd.f32 0.0, %v3590
      %3592 = vmatmul.bf16.gmra.mxu0 %v3184
      %v3593 = vpop.f32.mrf.mxu0
      %v3594 = vadd.f32 0.0, %v3593
      %v3595 = vpop.f32.mrf.mxu0
      %v3596 = vadd.f32 0.0, %v3595
      %3597 = vmatmul.bf16.gmra.mxu0 %v3187
      %v3598 = vpop.f32.mrf.mxu0
      %v3599 = vadd.f32 0.0, %v3598
      %v3600 = vpop.f32.mrf.mxu0
      %v3601 = vadd.f32 0.0, %v3600
      %3602 = vmatmul.bf16.gmra.mxu0 %v3190
      %v3603 = vpop.f32.mrf.mxu0
      %v3604 = vadd.f32 0.0, %v3603
      %v3605 = vpop.f32.mrf.mxu0
      %v3606 = vadd.f32 0.0, %v3605
      %3607 = vmatmul.bf16.gmra.mxu0 %v3193
      %v3608 = vpop.f32.mrf.mxu0
      %v3609 = vadd.f32 0.0, %v3608
      %v3610 = vpop.f32.mrf.mxu0
      %v3611 = vadd.f32 0.0, %v3610
      %3612 = vmatmul.bf16.gmra.mxu0 %v3196
      %v3613 = vpop.f32.mrf.mxu0
      %v3614 = vadd.f32 0.0, %v3613
      %v3615 = vpop.f32.mrf.mxu0
      %v3616 = vadd.f32 0.0, %v3615
      %3617 = vmatmul.bf16.gmra.mxu0 %v3199
      %v3618 = vpop.f32.mrf.mxu0
      %v3619 = vadd.f32 0.0, %v3618
      %v3620 = vpop.f32.mrf.mxu0
      %v3621 = vadd.f32 0.0, %v3620
      %3622 = vmatmul.bf16.gmra.mxu0 %v3202
      %v3623 = vpop.f32.mrf.mxu0
      %v3624 = vadd.f32 0.0, %v3623
      %v3625 = vpop.f32.mrf.mxu0
      %v3626 = vadd.f32 0.0, %v3625
      %3627 = vmatmul.bf16.gmra.mxu0 %v3205
      %v3628 = vpop.f32.mrf.mxu0
      %v3629 = vadd.f32 0.0, %v3628
      %v3630 = vpop.f32.mrf.mxu0
      %v3631 = vadd.f32 0.0, %v3630
      %3632 = vmatmul.bf16.gmra.mxu0 %v3208
      %v3633 = vpop.f32.mrf.mxu0
      %v3634 = vadd.f32 0.0, %v3633
      %v3635 = vpop.f32.mrf.mxu0
      %v3636 = vadd.f32 0.0, %v3635
      %3637 = vmatmul.bf16.gmra.mxu0 %v3211
      %v3638 = vpop.f32.mrf.mxu0
      %v3639 = vadd.f32 0.0, %v3638
      %v3640 = vpop.f32.mrf.mxu0
      %v3641 = vadd.f32 0.0, %v3640
      %3642 = vmatmul.bf16.gmra.mxu0 %v3477
      %v3643 = vpop.f32.mrf.mxu0
      %v3644 = vadd.f32 0.0, %v3643
      %v3645 = vpop.f32.mrf.mxu0
      %v3646 = vadd.f32 0.0, %v3645
      %3647 = vdwg.mxu0
      %v3648 = vadd.f32 %v3382, %v3489
      %v3649 = vadd.f32 %v3383, %v3491
      %v3650 = vadd.f32 %v3384, %v3494
      %v3651 = vadd.f32 %v3385, %v3496
      %v3652 = vadd.f32 %v3386, %v3499
      %v3653 = vadd.f32 %v3387, %v3501
      %v3654 = vadd.f32 %v3388, %v3504
      %v3655 = vadd.f32 %v3389, %v3506
      %v3656 = vadd.f32 %v3390, %v3509
      %v3657 = vadd.f32 %v3391, %v3511
      %v3658 = vadd.f32 %v3392, %v3514
      %v3659 = vadd.f32 %v3393, %v3516
      %v3660 = vadd.f32 %v3394, %v3519
      %v3661 = vadd.f32 %v3395, %v3521
      %v3662 = vadd.f32 %v3396, %v3524
      %v3663 = vadd.f32 %v3397, %v3526
      %v3664 = vadd.f32 %v3398, %v3529
      %v3665 = vadd.f32 %v3399, %v3531
      %v3666 = vadd.f32 %v3400, %v3534
      %v3667 = vadd.f32 %v3401, %v3536
      %v3668 = vadd.f32 %v3402, %v3539
      %v3669 = vadd.f32 %v3403, %v3541
      %v3670 = vadd.f32 %v3404, %v3544
      %v3671 = vadd.f32 %v3405, %v3546
      %v3672 = vadd.f32 %v3406, %v3549
      %v3673 = vadd.f32 %v3407, %v3551
      %v3674 = vadd.f32 %v3408, %v3554
      %v3675 = vadd.f32 %v3409, %v3556
      %v3676 = vadd.f32 %v3410, %v3559
      %v3677 = vadd.f32 %v3411, %v3561
      %v3678 = vadd.f32 %v3412, %v3564
      %v3679 = vadd.f32 %v3413, %v3566
      %v3680 = vadd.f32 %v3414, %v3569
      %v3681 = vadd.f32 %v3415, %v3571
      %v3682 = vadd.f32 %v3416, %v3574
      %v3683 = vadd.f32 %v3417, %v3576
      %v3684 = vadd.f32 %v3418, %v3579
      %v3685 = vadd.f32 %v3419, %v3581
      %v3686 = vadd.f32 %v3420, %v3584
      %v3687 = vadd.f32 %v3421, %v3586
      %v3688 = vadd.f32 %v3422, %v3589
      %v3689 = vadd.f32 %v3423, %v3591
      %v3690 = vadd.f32 %v3424, %v3594
      %v3691 = vadd.f32 %v3425, %v3596
      %v3692 = vadd.f32 %v3426, %v3599
      %v3693 = vadd.f32 %v3427, %v3601
      %v3694 = vadd.f32 %v3428, %v3604
      %v3695 = vadd.f32 %v3429, %v3606
      %v3696 = vadd.f32 %v3430, %v3609
      %v3697 = vadd.f32 %v3431, %v3611
      %v3698 = vadd.f32 %v3432, %v3614
      %v3699 = vadd.f32 %v3433, %v3616
      %v3700 = vadd.f32 %v3434, %v3619
      %v3701 = vadd.f32 %v3435, %v3621
      %v3702 = vadd.f32 %v3436, %v3624
      %v3703 = vadd.f32 %v3437, %v3626
      %v3704 = vadd.f32 %v3438, %v3629
      %v3705 = vadd.f32 %v3439, %v3631
      %v3706 = vadd.f32 %v3440, %v3634
      %v3707 = vadd.f32 %v3441, %v3636
      %v3708 = vadd.f32 %v3442, %v3639
      %v3709 = vadd.f32 %v3443, %v3641
      %v3710 = vadd.f32 %v3444, %v3644
      %v3711 = vadd.f32 %v3445, %v3646
      %s3712 = scalar_lea.vmem %s1, 128
      %v3713 = vld [vmem:[%s3712] sm:$0xf]
      %v3714 = vld [vmem:[%s3712 + $0x4] sm:$0xf]
      %v3715 = vld [vmem:[%s3712 + $0x8] sm:$0xf]
      %v3716 = vld [vmem:[%s3712 + $0xc] sm:$0xf]
      %v3721 = vunpack.c.l.b16 %v2902
      %v3722 = vunpack.c.l.b16 %v2903
      %v3723 = vunpack.c.l.b16 %v2938
      %v3724 = vunpack.c.l.b16 %v2939
      %v3725 = vpack.c.b16 %v3722, %v3721
      %v3726 = vpack.c.b16 %v3724, %v3723
      %v3731 = vunpack.c.l.b16 %v3713
      %v3732 = vunpack.c.l.b16 %v3714
      %v3733 = vunpack.c.l.b16 %v3715
      %v3734 = vunpack.c.l.b16 %v3716
      %v3735 = vpack.c.b16 %v3732, %v3731
      %v3736 = vpack.c.b16 %v3734, %v3733
      %v3740 = vsel %vm715, %v3725, 0
      %v3743 = vsel %vm715, %v3726, 0
      %3745 = vmatpush.bf16.msra.mxu0 0
      %3746 = vmatpush.bf16.msra.mxu0 0
      %3747 = vmatpush.bf16.msra.mxu0 0
      %3748 = vmatpush.bf16.msra.mxu0 0
      %3749 = vmatpush.bf16.msra.mxu0 0
      %3750 = vmatpush.bf16.msra.mxu0 0
      %3751 = vmatpush.bf16.msra.mxu0 %v3736
      %3752 = vmatpush.bf16.msra.mxu0 %v3735
      %3753 = vmatmul.bf16.gmra.mxu0 %v3124
      %v3754 = vpop.f32.mrf.mxu0
      %v3755 = vadd.f32 0.0, %v3754
      %v3756 = vpop.f32.mrf.mxu0
      %v3757 = vadd.f32 0.0, %v3756
      %3758 = vmatmul.bf16.gmra.mxu0 %v3127
      %v3759 = vpop.f32.mrf.mxu0
      %v3760 = vadd.f32 0.0, %v3759
      %v3761 = vpop.f32.mrf.mxu0
      %v3762 = vadd.f32 0.0, %v3761
      %3763 = vmatmul.bf16.gmra.mxu0 %v3130
      %v3764 = vpop.f32.mrf.mxu0
      %v3765 = vadd.f32 0.0, %v3764
      %v3766 = vpop.f32.mrf.mxu0
      %v3767 = vadd.f32 0.0, %v3766
      %3768 = vmatmul.bf16.gmra.mxu0 %v3133
      %v3769 = vpop.f32.mrf.mxu0
      %v3770 = vadd.f32 0.0, %v3769
      %v3771 = vpop.f32.mrf.mxu0
      %v3772 = vadd.f32 0.0, %v3771
      %3773 = vmatmul.bf16.gmra.mxu0 %v3136
      %v3774 = vpop.f32.mrf.mxu0
      %v3775 = vadd.f32 0.0, %v3774
      %v3776 = vpop.f32.mrf.mxu0
      %v3777 = vadd.f32 0.0, %v3776
      %3778 = vmatmul.bf16.gmra.mxu0 %v3139
      %v3779 = vpop.f32.mrf.mxu0
      %v3780 = vadd.f32 0.0, %v3779
      %v3781 = vpop.f32.mrf.mxu0
      %v3782 = vadd.f32 0.0, %v3781
      %3783 = vmatmul.bf16.gmra.mxu0 %v3142
      %v3784 = vpop.f32.mrf.mxu0
      %v3785 = vadd.f32 0.0, %v3784
      %v3786 = vpop.f32.mrf.mxu0
      %v3787 = vadd.f32 0.0, %v3786
      %3788 = vmatmul.bf16.gmra.mxu0 %v3145
      %v3789 = vpop.f32.mrf.mxu0
      %v3790 = vadd.f32 0.0, %v3789
      %v3791 = vpop.f32.mrf.mxu0
      %v3792 = vadd.f32 0.0, %v3791
      %3793 = vmatmul.bf16.gmra.mxu0 %v3148
      %v3794 = vpop.f32.mrf.mxu0
      %v3795 = vadd.f32 0.0, %v3794
      %v3796 = vpop.f32.mrf.mxu0
      %v3797 = vadd.f32 0.0, %v3796
      %3798 = vmatmul.bf16.gmra.mxu0 %v3151
      %v3799 = vpop.f32.mrf.mxu0
      %v3800 = vadd.f32 0.0, %v3799
      %v3801 = vpop.f32.mrf.mxu0
      %v3802 = vadd.f32 0.0, %v3801
      %3803 = vmatmul.bf16.gmra.mxu0 %v3154
      %v3804 = vpop.f32.mrf.mxu0
      %v3805 = vadd.f32 0.0, %v3804
      %v3806 = vpop.f32.mrf.mxu0
      %v3807 = vadd.f32 0.0, %v3806
      %3808 = vmatmul.bf16.gmra.mxu0 %v3157
      %v3809 = vpop.f32.mrf.mxu0
      %v3810 = vadd.f32 0.0, %v3809
      %v3811 = vpop.f32.mrf.mxu0
      %v3812 = vadd.f32 0.0, %v3811
      %3813 = vmatmul.bf16.gmra.mxu0 %v3160
      %v3814 = vpop.f32.mrf.mxu0
      %v3815 = vadd.f32 0.0, %v3814
      %v3816 = vpop.f32.mrf.mxu0
      %v3817 = vadd.f32 0.0, %v3816
      %3818 = vmatmul.bf16.gmra.mxu0 %v3163
      %v3819 = vpop.f32.mrf.mxu0
      %v3820 = vadd.f32 0.0, %v3819
      %v3821 = vpop.f32.mrf.mxu0
      %v3822 = vadd.f32 0.0, %v3821
      %3823 = vmatmul.bf16.gmra.mxu0 %v3474
      %v3824 = vpop.f32.mrf.mxu0
      %v3825 = vadd.f32 0.0, %v3824
      %v3826 = vpop.f32.mrf.mxu0
      %v3827 = vadd.f32 0.0, %v3826
      %3828 = vmatmul.bf16.gmra.mxu0 %v3740
      %v3829 = vpop.f32.mrf.mxu0
      %v3830 = vadd.f32 0.0, %v3829
      %v3831 = vpop.f32.mrf.mxu0
      %v3832 = vadd.f32 0.0, %v3831
      %3833 = vmatmul.bf16.gmra.mxu0 %v3172
      %v3834 = vpop.f32.mrf.mxu0
      %v3835 = vadd.f32 0.0, %v3834
      %v3836 = vpop.f32.mrf.mxu0
      %v3837 = vadd.f32 0.0, %v3836
      %3838 = vmatmul.bf16.gmra.mxu0 %v3175
      %v3839 = vpop.f32.mrf.mxu0
      %v3840 = vadd.f32 0.0, %v3839
      %v3841 = vpop.f32.mrf.mxu0
      %v3842 = vadd.f32 0.0, %v3841
      %3843 = vmatmul.bf16.gmra.mxu0 %v3178
      %v3844 = vpop.f32.mrf.mxu0
      %v3845 = vadd.f32 0.0, %v3844
      %v3846 = vpop.f32.mrf.mxu0
      %v3847 = vadd.f32 0.0, %v3846
      %3848 = vmatmul.bf16.gmra.mxu0 %v3181
      %v3849 = vpop.f32.mrf.mxu0
      %v3850 = vadd.f32 0.0, %v3849
      %v3851 = vpop.f32.mrf.mxu0
      %v3852 = vadd.f32 0.0, %v3851
      %3853 = vmatmul.bf16.gmra.mxu0 %v3184
      %v3854 = vpop.f32.mrf.mxu0
      %v3855 = vadd.f32 0.0, %v3854
      %v3856 = vpop.f32.mrf.mxu0
      %v3857 = vadd.f32 0.0, %v3856
      %3858 = vmatmul.bf16.gmra.mxu0 %v3187
      %v3859 = vpop.f32.mrf.mxu0
      %v3860 = vadd.f32 0.0, %v3859
      %v3861 = vpop.f32.mrf.mxu0
      %v3862 = vadd.f32 0.0, %v3861
      %3863 = vmatmul.bf16.gmra.mxu0 %v3190
      %v3864 = vpop.f32.mrf.mxu0
      %v3865 = vadd.f32 0.0, %v3864
      %v3866 = vpop.f32.mrf.mxu0
      %v3867 = vadd.f32 0.0, %v3866
      %3868 = vmatmul.bf16.gmra.mxu0 %v3193
      %v3869 = vpop.f32.mrf.mxu0
      %v3870 = vadd.f32 0.0, %v3869
      %v3871 = vpop.f32.mrf.mxu0
      %v3872 = vadd.f32 0.0, %v3871
      %3873 = vmatmul.bf16.gmra.mxu0 %v3196
      %v3874 = vpop.f32.mrf.mxu0
      %v3875 = vadd.f32 0.0, %v3874
      %v3876 = vpop.f32.mrf.mxu0
      %v3877 = vadd.f32 0.0, %v3876
      %3878 = vmatmul.bf16.gmra.mxu0 %v3199
      %v3879 = vpop.f32.mrf.mxu0
      %v3880 = vadd.f32 0.0, %v3879
      %v3881 = vpop.f32.mrf.mxu0
      %v3882 = vadd.f32 0.0, %v3881
      %3883 = vmatmul.bf16.gmra.mxu0 %v3202
      %v3884 = vpop.f32.mrf.mxu0
      %v3885 = vadd.f32 0.0, %v3884
      %v3886 = vpop.f32.mrf.mxu0
      %v3887 = vadd.f32 0.0, %v3886
      %3888 = vmatmul.bf16.gmra.mxu0 %v3205
      %v3889 = vpop.f32.mrf.mxu0
      %v3890 = vadd.f32 0.0, %v3889
      %v3891 = vpop.f32.mrf.mxu0
      %v3892 = vadd.f32 0.0, %v3891
      %3893 = vmatmul.bf16.gmra.mxu0 %v3208
      %v3894 = vpop.f32.mrf.mxu0
      %v3895 = vadd.f32 0.0, %v3894
      %v3896 = vpop.f32.mrf.mxu0
      %v3897 = vadd.f32 0.0, %v3896
      %3898 = vmatmul.bf16.gmra.mxu0 %v3211
      %v3899 = vpop.f32.mrf.mxu0
      %v3900 = vadd.f32 0.0, %v3899
      %v3901 = vpop.f32.mrf.mxu0
      %v3902 = vadd.f32 0.0, %v3901
      %3903 = vmatmul.bf16.gmra.mxu0 %v3477
      %v3904 = vpop.f32.mrf.mxu0
      %v3905 = vadd.f32 0.0, %v3904
      %v3906 = vpop.f32.mrf.mxu0
      %v3907 = vadd.f32 0.0, %v3906
      %3908 = vmatmul.bf16.gmra.mxu0 %v3743
      %v3909 = vpop.f32.mrf.mxu0
      %v3910 = vadd.f32 0.0, %v3909
      %v3911 = vpop.f32.mrf.mxu0
      %v3912 = vadd.f32 0.0, %v3911
      %3913 = vdwg.mxu0
      %v3914 = vadd.f32 %v3648, %v3755
      %v3915 = vadd.f32 %v3649, %v3757
      %v3916 = vadd.f32 %v3650, %v3760
      %v3917 = vadd.f32 %v3651, %v3762
      %v3918 = vadd.f32 %v3652, %v3765
      %v3919 = vadd.f32 %v3653, %v3767
      %v3920 = vadd.f32 %v3654, %v3770
      %v3921 = vadd.f32 %v3655, %v3772
      %v3922 = vadd.f32 %v3656, %v3775
      %v3923 = vadd.f32 %v3657, %v3777
      %v3924 = vadd.f32 %v3658, %v3780
      %v3925 = vadd.f32 %v3659, %v3782
      %v3926 = vadd.f32 %v3660, %v3785
      %v3927 = vadd.f32 %v3661, %v3787
      %v3928 = vadd.f32 %v3662, %v3790
      %v3929 = vadd.f32 %v3663, %v3792
      %v3930 = vadd.f32 %v3664, %v3795
      %v3931 = vadd.f32 %v3665, %v3797
      %v3932 = vadd.f32 %v3666, %v3800
      %v3933 = vadd.f32 %v3667, %v3802
      %v3934 = vadd.f32 %v3668, %v3805
      %v3935 = vadd.f32 %v3669, %v3807
      %v3936 = vadd.f32 %v3670, %v3810
      %v3937 = vadd.f32 %v3671, %v3812
      %v3938 = vadd.f32 %v3672, %v3815
      %v3939 = vadd.f32 %v3673, %v3817
      %v3940 = vadd.f32 %v3674, %v3820
      %v3941 = vadd.f32 %v3675, %v3822
      %v3942 = vadd.f32 %v3676, %v3825
      %v3943 = vadd.f32 %v3677, %v3827
      %v3944 = vadd.f32 %v3678, %v3830
      %v3945 = vadd.f32 %v3679, %v3832
      %v3946 = vadd.f32 %v3680, %v3835
      %v3947 = vadd.f32 %v3681, %v3837
      %v3948 = vadd.f32 %v3682, %v3840
      %v3949 = vadd.f32 %v3683, %v3842
      %v3950 = vadd.f32 %v3684, %v3845
      %v3951 = vadd.f32 %v3685, %v3847
      %v3952 = vadd.f32 %v3686, %v3850
      %v3953 = vadd.f32 %v3687, %v3852
      %v3954 = vadd.f32 %v3688, %v3855
      %v3955 = vadd.f32 %v3689, %v3857
      %v3956 = vadd.f32 %v3690, %v3860
      %v3957 = vadd.f32 %v3691, %v3862
      %v3958 = vadd.f32 %v3692, %v3865
      %v3959 = vadd.f32 %v3693, %v3867
      %v3960 = vadd.f32 %v3694, %v3870
      %v3961 = vadd.f32 %v3695, %v3872
      %v3962 = vadd.f32 %v3696, %v3875
      %v3963 = vadd.f32 %v3697, %v3877
      %v3964 = vadd.f32 %v3698, %v3880
      %v3965 = vadd.f32 %v3699, %v3882
      %v3966 = vadd.f32 %v3700, %v3885
      %v3967 = vadd.f32 %v3701, %v3887
      %v3968 = vadd.f32 %v3702, %v3890
      %v3969 = vadd.f32 %v3703, %v3892
      %v3970 = vadd.f32 %v3704, %v3895
      %v3971 = vadd.f32 %v3705, %v3897
      %v3972 = vadd.f32 %v3706, %v3900
      %v3973 = vadd.f32 %v3707, %v3902
      %v3974 = vadd.f32 %v3708, %v3905
      %v3975 = vadd.f32 %v3709, %v3907
      %v3976 = vadd.f32 %v3710, %v3910
      %v3977 = vadd.f32 %v3711, %v3912
      %3978 = vst [vmem:[%s170] sm:$0xff] %v3914
      %3979 = vst [vmem:[%s170 + $0x8] sm:$0xff] %v3915
      %3980 = vst [vmem:[%s170 + $0x10] sm:$0xff] %v3916
      %3981 = vst [vmem:[%s170 + $0x18] sm:$0xff] %v3917
      %3982 = vst [vmem:[%s170 + $0x20] sm:$0xff] %v3918
      %3983 = vst [vmem:[%s170 + $0x28] sm:$0xff] %v3919
      %3984 = vst [vmem:[%s170 + $0x30] sm:$0xff] %v3920
      %3985 = vst [vmem:[%s170 + $0x38] sm:$0xff] %v3921
      %3986 = vst [vmem:[%s170 + $0x40] sm:$0xff] %v3922
      %3987 = vst [vmem:[%s170 + $0x48] sm:$0xff] %v3923
      %3988 = vst [vmem:[%s170 + $0x50] sm:$0xff] %v3924
      %3989 = vst [vmem:[%s170 + $0x58] sm:$0xff] %v3925
      %3990 = vst [vmem:[%s170 + $0x60] sm:$0xff] %v3926
      %3991 = vst [vmem:[%s170 + $0x68] sm:$0xff] %v3927
      %3992 = vst [vmem:[%s170 + $0x70] sm:$0xff] %v3928
      %3993 = vst [vmem:[%s170 + $0x78] sm:$0xff] %v3929
      %3994 = vst [vmem:[%s170 + $0x80] sm:$0xff] %v3930
      %3995 = vst [vmem:[%s170 + $0x88] sm:$0xff] %v3931
      %3996 = vst [vmem:[%s170 + $0x90] sm:$0xff] %v3932
      %3997 = vst [vmem:[%s170 + $0x98] sm:$0xff] %v3933
      %3998 = vst [vmem:[%s170 + $0xa0] sm:$0xff] %v3934
      %3999 = vst [vmem:[%s170 + $0xa8] sm:$0xff] %v3935
      %4000 = vst [vmem:[%s170 + $0xb0] sm:$0xff] %v3936
      %4001 = vst [vmem:[%s170 + $0xb8] sm:$0xff] %v3937
      %4002 = vst [vmem:[%s170 + $0xc0] sm:$0xff] %v3938
      %4003 = vst [vmem:[%s170 + $0xc8] sm:$0xff] %v3939
      %4004 = vst [vmem:[%s170 + $0xd0] sm:$0xff] %v3940
      %4005 = vst [vmem:[%s170 + $0xd8] sm:$0xff] %v3941
      %4006 = vst [vmem:[%s170 + $0xe0] sm:$0xff] %v3942
      %4007 = vst [vmem:[%s170 + $0xe8] sm:$0xff] %v3943
      %4008 = vst [vmem:[%s170 + $0xf0] sm:$0xff] %v3944
      %4009 = vst [vmem:[%s170 + $0xf8] sm:$0xff] %v3945
      %4010 = vst [vmem:[%s170 + $0x100] sm:$0xff] %v3946
      %4011 = vst [vmem:[%s170 + $0x108] sm:$0xff] %v3947
      %4012 = vst [vmem:[%s170 + $0x110] sm:$0xff] %v3948
      %4013 = vst [vmem:[%s170 + $0x118] sm:$0xff] %v3949
      %4014 = vst [vmem:[%s170 + $0x120] sm:$0xff] %v3950
      %4015 = vst [vmem:[%s170 + $0x128] sm:$0xff] %v3951
      %4016 = vst [vmem:[%s170 + $0x130] sm:$0xff] %v3952
      %4017 = vst [vmem:[%s170 + $0x138] sm:$0xff] %v3953
      %4018 = vst [vmem:[%s170 + $0x140] sm:$0xff] %v3954
      %4019 = vst [vmem:[%s170 + $0x148] sm:$0xff] %v3955
      %4020 = vst [vmem:[%s170 + $0x150] sm:$0xff] %v3956
      %4021 = vst [vmem:[%s170 + $0x158] sm:$0xff] %v3957
      %4022 = vst [vmem:[%s170 + $0x160] sm:$0xff] %v3958
      %4023 = vst [vmem:[%s170 + $0x168] sm:$0xff] %v3959
      %4024 = vst [vmem:[%s170 + $0x170] sm:$0xff] %v3960
      %4025 = vst [vmem:[%s170 + $0x178] sm:$0xff] %v3961
      %4026 = vst [vmem:[%s170 + $0x180] sm:$0xff] %v3962
      %4027 = vst [vmem:[%s170 + $0x188] sm:$0xff] %v3963
      %4028 = vst [vmem:[%s170 + $0x190] sm:$0xff] %v3964
      %4029 = vst [vmem:[%s170 + $0x198] sm:$0xff] %v3965
      %4030 = vst [vmem:[%s170 + $0x1a0] sm:$0xff] %v3966
      %4031 = vst [vmem:[%s170 + $0x1a8] sm:$0xff] %v3967
      %4032 = vst [vmem:[%s170 + $0x1b0] sm:$0xff] %v3968
      %4033 = vst [vmem:[%s170 + $0x1b8] sm:$0xff] %v3969
      %4034 = vst [vmem:[%s170 + $0x1c0] sm:$0xff] %v3970
      %4035 = vst [vmem:[%s170 + $0x1c8] sm:$0xff] %v3971
      %4036 = vst [vmem:[%s170 + $0x1d0] sm:$0xff] %v3972
      %4037 = vst [vmem:[%s170 + $0x1d8] sm:$0xff] %v3973
      %4038 = vst [vmem:[%s170 + $0x1e0] sm:$0xff] %v3974
      %4039 = vst [vmem:[%s170 + $0x1e8] sm:$0xff] %v3975
      %4040 = vst [vmem:[%s170 + $0x1f0] sm:$0xff] %v3976
      %4041 = vst [vmem:[%s170 + $0x1f8] sm:$0xff] %v3977
      %p4042 = scmp.lt.s32.totalorder %s14, 7
      %s4043 = scalar_select %p4042, %s14, 7
      %s4044 = smul.addr %s4043, 64
      %s4045 = smul.addr %s4044, 8
      %s4046 = scalar_lea.vmem %s3, %s4045
      // Predicated region
      $region33: #{convlstm_forward.6} parent=31 // pred_check
        %p4047 = pneg %p100
      $region34: #{convlstm_forward.6} parent=31 // pred_check_branch
        %4049 = sbr.rel (%p4047) target = $region36
      $region35: #{convlstm_forward.6} parent=31 // pred_region
        _
      $region36: #{convlstm_forward.6} parent=31 // pred_fallthru
        _
    $region32: #{convlstm_forward.6} parent=5 // pred_fallthru
      _
    %p4050 = scmp.le.s32.totalorder 2, %s9
    // Predicated region
    $region37: #{convlstm_forward.6} parent=5 // pred_check
      %p4051 = pneg %p4050
    $region38: #{convlstm_forward.6} parent=5 // pred_check_branch
      %4053 = sbr.rel (%p4051) target = $region40
    $region39: #{convlstm_forward.6} parent=5 // pred_region
      %s4054 = ssub.s32 %s9, 2
      // Predicated region
      $region41: #{convlstm_forward.6} parent=39 // pred_check
        %p4055 = pneg %p106
      $region42: #{convlstm_forward.6} parent=39 // pred_check_branch
        %4057 = sbr.rel (%p4055) target = $region44
      $region43: #{convlstm_forward.6} parent=39 // pred_region
        %p4058 = scmp.lt.s32.totalorder %s15, 7
        %s4059 = scalar_select %p4058, %s15, 7
        %s4060 = smul.addr %s4059, 64
        %s4061 = smul.addr %s4060, 8
        %s4062 = scalar_lea.vmem %s3, %s4061
      $region44: #{convlstm_forward.6} parent=39 // pred_fallthru
        _
    $region40: #{convlstm_forward.6} parent=5 // pred_fallthru
      _
  $region6: #{convlstm_forward.6} parent=0 // loop_footer
    %s13 = sadd.s32 1, %s9
  $region7: #{convlstm_forward.6} parent=0 // loop_footer_branch
    %8 = sbr.rel target = $region3
  $region8: #{convlstm_forward.6} parent=0 // loop_exit
    _

</llo_original>
